<compile_context>
chip_gen: v7x
topology: tpu7x:2x2x1
jax: 0.10.0
libtpu: 0.0.40
codegen_flags: <defaults>
</compile_context>

<pallas_src>
import functools

import jax
import jax.numpy as jnp
import numpy as np
from jax.experimental import pallas as pl
from jax.experimental.pallas import tpu as pltpu

INPUT_DIM = 57          # vocab size == output dim
HIDDEN_DIM = 256
NUM_LAYERS = 2
EMB_DIM = 128
LN_EPS = 1e-3           # matches nn.LayerNorm(eps=0.001) in the reference module
VOCAB_PAD = 128         # embedding rows padded to a lane-friendly size (zeros beyond 57)
OUT_PAD = 128           # fnn output columns padded 57 -> 128 for lane-dense stores
SUBLANE = 8             # f32 sublane count; batch padded to a multiple of this


# ------------------------------ in-kernel helpers ------------------------------
def _layernorm_rows(x, gamma, beta, eps):
    mean = jnp.mean(x, axis=-1, keepdims=True)
    var = jnp.mean(jnp.square(x - mean), axis=-1, keepdims=True)
    return (x - mean) * jax.lax.rsqrt(var + eps) * gamma + beta


def _lstm_cell(gates, c_prev, hidden):
    # Gate order [i, f, o, g]: one contiguous sigmoid pass + one tanh pass (EUP).
    sig = jax.nn.sigmoid(gates[:, :3 * hidden])
    i_g = sig[:, :hidden]
    f_g = sig[:, hidden:2 * hidden]
    o_g = sig[:, 2 * hidden:3 * hidden]
    g_g = jnp.tanh(gates[:, 3 * hidden:])
    c_new = f_g * c_prev + i_g * g_g
    h_new = o_g * jnp.tanh(c_new)
    return h_new, c_new


# ------------------------------- fused kernel ----------------------------------
def _fused_lstm_kernel(
        tok_ref, emb_ref, ln0_g_ref, ln0_b_ref,
        wih0_ref, whh0_ref, b0_ref,
        wih1_ref, whh1_ref, b1_ref,
        ln1_g_ref, ln1_b_ref, fnn_w_ref, fnn_b_ref,
        h0_ref, c0_ref,
        out_ref, hN_ref, cN_ref,
        gx_s, y_s,
        *, seq_len, batch_pad, hidden, eps):
    S, BP, H = seq_len, batch_pad, hidden
    SBP = S * BP

    # ---- Phase A: embedding (one-hot MXU matmul) + LN0 + hoisted x @ W_ih_l0 ----
    tok = tok_ref[...]                                            # (S*BP, 1) int32
    vocab_ids = jax.lax.broadcasted_iota(jnp.int32, (SBP, emb_ref.shape[0]), 1)
    onehot = (vocab_ids == tok).astype(jnp.float32)               # (S*BP, VOCAB_PAD)
    feats = jnp.dot(onehot, emb_ref[...], preferred_element_type=jnp.float32)
    feats = _layernorm_rows(feats, ln0_g_ref[...], ln0_b_ref[...], eps)
    gx_s[...] = (jnp.dot(feats, wih0_ref[...], preferred_element_type=jnp.float32)
                 + b0_ref[...])                                   # (S*BP, 4H)

    # ---- Recurrence step: only h_{t-1} @ W_hh stays on the serial critical path.
    #      W_hh is loaded ONCE outside the loop (hoisted VMEM->vreg traffic).
    def make_step(whh):
        def step(t, carry):
            h, c = carry
            row = pl.multiple_of(t * BP, BP)                      # sublane-aligned
            gates = gx_s[pl.ds(row, BP), :] + jnp.dot(
                h, whh, preferred_element_type=jnp.float32)
            h_new, c_new = _lstm_cell(gates, c, H)
            y_s[pl.ds(row, BP), :] = h_new
            return h_new, c_new
        return step

    # ---- Phase B: layer-0 recurrence ----
    h_f, c_f = jax.lax.fori_loop(0, S, make_step(whh0_ref[...]),
                                 (h0_ref[0], c0_ref[0]), unroll=True)
    hN_ref[0] = h_f
    cN_ref[0] = c_f

    # ---- Phase C: hoisted layer-1 input projection over all timesteps ----
    # TODO(synk): training-mode dropout(p=0.3) would be applied to y_s here.
    gx_s[...] = (jnp.dot(y_s[...], wih1_ref[...], preferred_element_type=jnp.float32)
                 + b1_ref[...])

    # ---- Phase D: layer-1 recurrence (overwrites y_s with layer-1 hiddens) ----
    h_f, c_f = jax.lax.fori_loop(0, S, make_step(whh1_ref[...]),
                                 (h0_ref[1], c0_ref[1]), unroll=True)
    hN_ref[1] = h_f
    cN_ref[1] = c_f

    # ---- Phase E: LayerNorm1 + Linear (lane-dense, 128-wide padded output) ----
    y1 = _layernorm_rows(y_s[...], ln1_g_ref[...], ln1_b_ref[...], eps)
    out_ref[...] = (jnp.dot(y1, fnn_w_ref[...], preferred_element_type=jnp.float32)
                    + fnn_b_ref[...]).astype(out_ref.dtype)


# --------------------------------- wrapper --------------------------------------
def _round_up(x, m):
    return ((x + m - 1) // m) * m


@jax.jit
def lstm_forward(params, tokens, h0, c0):
    """tokens: (S, B) int32; h0/c0: (NUM_LAYERS, B, HIDDEN_DIM) float32."""
    S, B = tokens.shape
    L, _, H = h0.shape
    assert L == NUM_LAYERS
    BP = _round_up(B, SUBLANE)

    # Pad batch to a full f32 sublane; padded rows are independent and discarded.
    tok_p = jnp.zeros((S, BP), jnp.int32).at[:, :B].set(tokens).reshape(S * BP, 1)
    h0_p = jnp.zeros((L, BP, H), jnp.float32).at[:, :B, :].set(h0)
    c0_p = jnp.zeros((L, BP, H), jnp.float32).at[:, :B, :].set(c0)

    kernel = functools.partial(_fused_lstm_kernel, seq_len=S, batch_pad=BP,
                               hidden=H, eps=LN_EPS)
    out_p, h_n_p, c_n_p = pl.pallas_call(
        kernel,
        out_shape=(
            jax.ShapeDtypeStruct((S * BP, OUT_PAD), jnp.float32),   # padded logits
            jax.ShapeDtypeStruct((L, BP, H), jnp.float32),          # h_N
            jax.ShapeDtypeStruct((L, BP, H), jnp.float32),          # c_N
        ),
        scratch_shapes=[
            pltpu.VMEM((S * BP, 4 * H), jnp.float32),  # gate pre-activations (reused L0/L1)
            pltpu.VMEM((S * BP, H), jnp.float32),      # per-timestep hidden states (reused)
        ],
    )(tok_p, params["emb_pad"],
      params["ln0_g"], params["ln0_b"],
      params["w_ihT_l0"], params["w_hhT_l0"], params["b_l0"],
      params["w_ihT_l1"], params["w_hhT_l1"], params["b_l1"],
      params["ln1_g"], params["ln1_b"],
      params["fnn_wT_pad"], params["fnn_b_pad"],
      h0_p, c0_p)

    out = out_p.reshape(S, BP, OUT_PAD)[:, :B, :INPUT_DIM]
    return out, (h_n_p[:, :B, :], c_n_p[:, :B, :])


# ------------------------------ parameter init ----------------------------------
def init_params(key):
    H, E, V = HIDDEN_DIM, EMB_DIM, INPUT_DIM
    ks = jax.random.split(key, 8)
    p = {}

    # nn.Embedding default init N(0,1); rows >= V are zero padding (never selected).
    emb = jax.random.normal(ks[0], (V, E), jnp.float32)
    p["emb_pad"] = jnp.zeros((VOCAB_PAD, E), jnp.float32).at[:V].set(emb)

    # LayerNorm affine params (default init), stored 2D for direct kernel use.
    p["ln0_g"] = jnp.ones((1, E), jnp.float32)
    p["ln0_b"] = jnp.zeros((1, E), jnp.float32)
    p["ln1_g"] = jnp.ones((1, H), jnp.float32)
    p["ln1_b"] = jnp.zeros((1, H), jnp.float32)

    # LSTM weights stored pre-transposed (x @ W^T layout), gate columns in
    # [i, f, o, g] order (PyTorch uses [i, f, g, o]; permute when porting real
    # weights). Deterministic random stand-in for xavier_uniform / orthogonal init.
    def wscale(fan_in, fan_out):
        return (6.0 / (fan_in + fan_out)) ** 0.5

    def uni(k, shape, s):
        return jax.random.uniform(k, shape, jnp.float32, minval=-1.0, maxval=1.0) * s

    p["w_ihT_l0"] = uni(ks[1], (E, 4 * H), wscale(E, 4 * H))
    p["w_hhT_l0"] = uni(ks[2], (H, 4 * H), wscale(H, 4 * H))
    p["w_ihT_l1"] = uni(ks[3], (H, 4 * H), wscale(H, 4 * H))
    p["w_hhT_l1"] = uni(ks[4], (H, 4 * H), wscale(H, 4 * H))

    # bias_ih + bias_hh combined. The module fills the forget-gate slice [H:2H] of
    # BOTH bias vectors with 1.0 -> combined 2.0 (forget gate is still [H:2H] in
    # the [i, f, o, g] order).
    gate_bias = jnp.zeros((4 * H,), jnp.float32).at[H:2 * H].set(2.0)
    p["b_l0"] = gate_bias.reshape(1, 4 * H)
    p["b_l1"] = gate_bias.reshape(1, 4 * H)

    # fnn: Linear(H, V) xavier_uniform weight, zero bias; padded 57 -> 128 columns.
    fnn_w = uni(ks[5], (H, V), wscale(H, V))
    p["fnn_wT_pad"] = jnp.zeros((H, OUT_PAD), jnp.float32).at[:, :V].set(fnn_w)
    p["fnn_b_pad"] = jnp.zeros((1, OUT_PAD), jnp.float32)
    return p


# ----------------------------- pure-JAX reference --------------------------------
def reference_forward(params, tokens, h0, c0):
    H = HIDDEN_DIM
    dot = functools.partial(jnp.dot, precision=jax.lax.Precision.HIGHEST)

    def ln(x, g, b):
        mean = jnp.mean(x, axis=-1, keepdims=True)
        var = jnp.mean(jnp.square(x - mean), axis=-1, keepdims=True)
        return (x - mean) * jax.lax.rsqrt(var + LN_EPS) * g + b

    feats = jnp.take(params["emb_pad"], tokens, axis=0)             # (S, B, E)
    feats = ln(feats, params["ln0_g"][0], params["ln0_b"][0])

    def run_layer(x, w_ih, w_hh, bias, h, c):
        def cell(carry, x_t):
            h, c = carry
            gates = dot(x_t, w_ih) + dot(h, w_hh) + bias
            i = jax.nn.sigmoid(gates[:, :H])
            f = jax.nn.sigmoid(gates[:, H:2 * H])
            o = jax.nn.sigmoid(gates[:, 2 * H:3 * H])
            g = jnp.tanh(gates[:, 3 * H:])
            c = f * c + i * g
            h = o * jnp.tanh(c)
            return (h, c), h
        (h, c), ys = jax.lax.scan(cell, (h, c), x)
        return ys, h, c

    y0, h_l0, c_l0 = run_layer(feats, params["w_ihT_l0"], params["w_hhT_l0"],
                               params["b_l0"], h0[0], c0[0])
    y1, h_l1, c_l1 = run_layer(y0, params["w_ihT_l1"], params["w_hhT_l1"],
                               params["b_l1"], h0[1], c0[1])
    out = ln(y1, params["ln1_g"][0], params["ln1_b"][0])
    out = dot(out, params["fnn_wT_pad"][:, :INPUT_DIM]) + params["fnn_b_pad"][0, :INPUT_DIM]
    return out, (jnp.stack([h_l0, h_l1]), jnp.stack([c_l0, c_l1]))


# ----------------------------------- main ----------------------------------------
if __name__ == "__main__":
    key = jax.random.PRNGKey(0)
    pkey, tkey, hkey, ckey = jax.random.split(key, 4)

    params = init_params(pkey)

    SEQ, BATCH = 8, 2
    tokens = jax.random.randint(tkey, (SEQ, BATCH), 0, INPUT_DIM, dtype=jnp.int32)
    h0 = jax.random.normal(hkey, (NUM_LAYERS, BATCH, HIDDEN_DIM), jnp.float32) * 0.1
    c0 = jax.random.normal(ckey, (NUM_LAYERS, BATCH, HIDDEN_DIM), jnp.float32) * 0.1

    out, (h_n, c_n) = lstm_forward(params, tokens, h0, c0)
    jax.block_until_ready((out, h_n, c_n))

    assert out.shape == (SEQ, BATCH, INPUT_DIM)
    assert h_n.shape == (NUM_LAYERS, BATCH, HIDDEN_DIM)
    assert c_n.shape == (NUM_LAYERS, BATCH, HIDDEN_DIM)

    # Correctness check against a pure-JAX reference (loose tol: MXU matmul passes).
    ref_out, (ref_h, ref_c) = reference_forward(params, tokens, h0, c0)
    assert float(np.max(np.abs(np.asarray(out) - np.asarray(ref_out)))) < 5e-2
    assert float(np.max(np.abs(np.asarray(h_n) - np.asarray(ref_h)))) < 5e-2
    assert float(np.max(np.abs(np.asarray(c_n) - np.asarray(ref_c)))) < 5e-2

    print("KERNEL_OK")
</pallas_src>

<mosaic_0001>
module attributes {stable_mosaic.version = 11 : i64} {
  func.func @_fused_lstm_kernel(%arg0: memref<64x1xi32, #tpu.memory_space<vmem>>, %arg1: memref<128x128xf32, #tpu.memory_space<vmem>>, %arg2: memref<1x128xf32, #tpu.memory_space<vmem>>, %arg3: memref<1x128xf32, #tpu.memory_space<vmem>>, %arg4: memref<128x1024xf32, #tpu.memory_space<vmem>>, %arg5: memref<256x1024xf32, #tpu.memory_space<vmem>>, %arg6: memref<1x1024xf32, #tpu.memory_space<vmem>>, %arg7: memref<256x1024xf32, #tpu.memory_space<vmem>>, %arg8: memref<256x1024xf32, #tpu.memory_space<vmem>>, %arg9: memref<1x1024xf32, #tpu.memory_space<vmem>>, %arg10: memref<1x256xf32, #tpu.memory_space<vmem>>, %arg11: memref<1x256xf32, #tpu.memory_space<vmem>>, %arg12: memref<256x128xf32, #tpu.memory_space<vmem>>, %arg13: memref<1x128xf32, #tpu.memory_space<vmem>>, %arg14: memref<2x8x256xf32, #tpu.memory_space<vmem>>, %arg15: memref<2x8x256xf32, #tpu.memory_space<vmem>>, %arg16: memref<64x128xf32, #tpu.memory_space<vmem>>, %arg17: memref<2x8x256xf32, #tpu.memory_space<vmem>>, %arg18: memref<2x8x256xf32, #tpu.memory_space<vmem>>, %arg19: memref<64x1024xf32, #tpu.memory_space<vmem>>, %arg20: memref<64x256xf32, #tpu.memory_space<vmem>>) attributes {dimension_semantics = [], scalar_prefetch = 0 : i64, scratch_operands = 2 : i64, tpu.core_type = #tpu.core_type<tc>} {
    %c0 = arith.constant 0 : index
    %c0_0 = arith.constant 0 : index
    %0 = vector.load %arg0[%c0, %c0_0] : memref<64x1xi32, #tpu.memory_space<vmem>>, vector<64x1xi32>
    %1 = tpu.iota {dimensions = array<i32: 1>} : vector<64x128xi32>
    %2 = vector.broadcast %0 : vector<64x1xi32> to vector<64x128xi32>
    %3 = arith.cmpi eq, %1, %2 : vector<64x128xi32>
    %4 = arith.extui %3 : vector<64x128xi1> to vector<64x128xi32>
    %5 = arith.sitofp %4 : vector<64x128xi32> to vector<64x128xf32>
    %c0_1 = arith.constant 0 : index
    %c0_2 = arith.constant 0 : index
    %6 = vector.load %arg1[%c0_1, %c0_2] : memref<128x128xf32, #tpu.memory_space<vmem>>, vector<128x128xf32>
    %cst = arith.constant dense<0.000000e+00> : vector<64x128xf32>
    %7 = tpu.matmul %5, %6, %cst {dimension_numbers = #tpu.dot_dimension_numbers<[1], [0], [0], [1], [0, 0, 1, 1], [], []>} : vector<64x128xf32>, vector<128x128xf32>, vector<64x128xf32> -> vector<64x128xf32>
    %c0_3 = arith.constant 0 : index
    %c0_4 = arith.constant 0 : index
    %8 = vector.load %arg2[%c0_3, %c0_4] : memref<1x128xf32, #tpu.memory_space<vmem>>, vector<1x128xf32>
    %c0_5 = arith.constant 0 : index
    %c0_6 = arith.constant 0 : index
    %9 = vector.load %arg3[%c0_5, %c0_6] : memref<1x128xf32, #tpu.memory_space<vmem>>, vector<1x128xf32>
    %cst_7 = arith.constant dense<0.000000e+00> : vector<64xf32>
    %10 = vector.multi_reduction <add>, %7, %cst_7 [1] : vector<64x128xf32> to vector<64xf32>
    %11 = vector.shape_cast %10 : vector<64xf32> to vector<64x1xf32>
    %cst_8 = arith.constant 1.280000e+02 : f32
    %12 = vector.broadcast %cst_8 : f32 to vector<64x1xf32>
    %13 = arith.divf %11, %12 : vector<64x1xf32>
    %14 = vector.broadcast %13 : vector<64x1xf32> to vector<64x128xf32>
    %15 = arith.subf %7, %14 : vector<64x128xf32>
    %16 = arith.mulf %15, %15 : vector<64x128xf32>
    %cst_9 = arith.constant dense<0.000000e+00> : vector<64xf32>
    %17 = vector.multi_reduction <add>, %16, %cst_9 [1] : vector<64x128xf32> to vector<64xf32>
    %18 = vector.shape_cast %17 : vector<64xf32> to vector<64x1xf32>
    %cst_10 = arith.constant 1.280000e+02 : f32
    %19 = vector.broadcast %cst_10 : f32 to vector<64x1xf32>
    %20 = arith.divf %18, %19 : vector<64x1xf32>
    %21 = vector.broadcast %13 : vector<64x1xf32> to vector<64x128xf32>
    %22 = arith.subf %7, %21 : vector<64x128xf32>
    %cst_11 = arith.constant 1.000000e-03 : f32
    %23 = vector.broadcast %cst_11 : f32 to vector<64x1xf32>
    %24 = arith.addf %20, %23 : vector<64x1xf32>
    %25 = math.rsqrt %24 : vector<64x1xf32>
    %26 = vector.broadcast %25 : vector<64x1xf32> to vector<64x128xf32>
    %27 = arith.mulf %22, %26 : vector<64x128xf32>
    %28 = vector.broadcast %8 : vector<1x128xf32> to vector<64x128xf32>
    %29 = arith.mulf %27, %28 : vector<64x128xf32>
    %30 = vector.broadcast %9 : vector<1x128xf32> to vector<64x128xf32>
    %31 = arith.addf %29, %30 : vector<64x128xf32>
    %c0_12 = arith.constant 0 : index
    %c0_13 = arith.constant 0 : index
    %32 = vector.load %arg4[%c0_12, %c0_13] : memref<128x1024xf32, #tpu.memory_space<vmem>>, vector<128x1024xf32>
    %cst_14 = arith.constant dense<0.000000e+00> : vector<64x1024xf32>
    %33 = tpu.matmul %31, %32, %cst_14 {dimension_numbers = #tpu.dot_dimension_numbers<[1], [0], [0], [1], [0, 0, 1, 1], [], []>} : vector<64x128xf32>, vector<128x1024xf32>, vector<64x1024xf32> -> vector<64x1024xf32>
    %c0_15 = arith.constant 0 : index
    %c0_16 = arith.constant 0 : index
    %34 = vector.load %arg6[%c0_15, %c0_16] : memref<1x1024xf32, #tpu.memory_space<vmem>>, vector<1x1024xf32>
    %35 = vector.broadcast %34 : vector<1x1024xf32> to vector<64x1024xf32>
    %36 = arith.addf %33, %35 : vector<64x1024xf32>
    %c0_17 = arith.constant 0 : index
    %c0_18 = arith.constant 0 : index
    %37 = vector.load %arg19[%c0_17, %c0_18] : memref<64x1024xf32, #tpu.memory_space<vmem>>, vector<64x1024xf32>
    tpu.vector_store %arg19[%c0_17, %c0_18], %36 {strides = array<i32>} : memref<64x1024xf32, #tpu.memory_space<vmem>>, vector<64x1024xf32>,
    %c0_19 = arith.constant 0 : index
    %c0_20 = arith.constant 0 : index
    %38 = vector.load %arg5[%c0_19, %c0_20] : memref<256x1024xf32, #tpu.memory_space<vmem>>, vector<256x1024xf32>
    %c0_21 = arith.constant 0 : index
    %c0_22 = arith.constant 0 : index
    %c0_23 = arith.constant 0 : index
    %39 = vector.load %arg14[%c0_21, %c0_22, %c0_23] : memref<2x8x256xf32, #tpu.memory_space<vmem>>, vector<1x8x256xf32>
    %40 = vector.shape_cast %39 : vector<1x8x256xf32> to vector<8x256xf32>
    %c0_24 = arith.constant 0 : index
    %c0_25 = arith.constant 0 : index
    %c0_26 = arith.constant 0 : index
    %41 = vector.load %arg15[%c0_24, %c0_25, %c0_26] : memref<2x8x256xf32, #tpu.memory_space<vmem>>, vector<1x8x256xf32>
    %42 = vector.shape_cast %41 : vector<1x8x256xf32> to vector<8x256xf32>
    %c0_i32 = arith.constant 0 : i32
    %c8_i32 = arith.constant 8 : i32
    %43 = arith.muli %c0_i32, %c8_i32 : i32
    %44 = tpu.assume_multiple %43, 8 : i32
    %45 = arith.index_cast %44 : i32 to index
    %c0_27 = arith.constant 0 : index
    %46 = vector.load %arg19[%45, %c0_27] : memref<64x1024xf32, #tpu.memory_space<vmem>>, vector<8x1024xf32>
    %cst_28 = arith.constant dense<0.000000e+00> : vector<8x1024xf32>
    %47 = tpu.matmul %40, %38, %cst_28 {dimension_numbers = #tpu.dot_dimension_numbers<[1], [0], [0], [1], [0, 0, 1, 1], [], []>} : vector<8x256xf32>, vector<256x1024xf32>, vector<8x1024xf32> -> vector<8x1024xf32>
    %48 = arith.addf %46, %47 : vector<8x1024xf32>
    %49 = vector.extract_strided_slice %48 {offsets = [0, 0], sizes = [8, 768], strides = [1, 1]} : vector<8x1024xf32> to vector<8x768xf32>
    %50 = arith.negf %49 : vector<8x768xf32>
    %51 = math.exp %50 : vector<8x768xf32>
    %cst_29 = arith.constant 1.000000e+00 : f32
    %52 = vector.broadcast %cst_29 : f32 to vector<8x768xf32>
    %53 = arith.addf %52, %51 : vector<8x768xf32>
    %54 = arith.divf %52, %53 : vector<8x768xf32>
    %55 = vector.extract_strided_slice %54 {offsets = [0, 0], sizes = [8, 256], strides = [1, 1]} : vector<8x768xf32> to vector<8x256xf32>
    %56 = vector.extract_strided_slice %54 {offsets = [0, 256], sizes = [8, 256], strides = [1, 1]} : vector<8x768xf32> to vector<8x256xf32>
    %57 = vector.extract_strided_slice %54 {offsets = [0, 512], sizes = [8, 256], strides = [1, 1]} : vector<8x768xf32> to vector<8x256xf32>
    %58 = vector.extract_strided_slice %48 {offsets = [0, 768], sizes = [8, 256], strides = [1, 1]} : vector<8x1024xf32> to vector<8x256xf32>
    %59 = math.tanh %58 : vector<8x256xf32>
    %60 = arith.mulf %56, %42 : vector<8x256xf32>
    %61 = arith.mulf %55, %59 : vector<8x256xf32>
    %62 = arith.addf %60, %61 : vector<8x256xf32>
    %63 = math.tanh %62 : vector<8x256xf32>
    %64 = arith.mulf %57, %63 : vector<8x256xf32>
    %65 = arith.index_cast %44 : i32 to index
    %c0_30 = arith.constant 0 : index
    %66 = vector.load %arg20[%65, %c0_30] : memref<64x256xf32, #tpu.memory_space<vmem>>, vector<8x256xf32>
    tpu.vector_store %arg20[%65, %c0_30], %64 {strides = array<i32>} : memref<64x256xf32, #tpu.memory_space<vmem>>, vector<8x256xf32>,
    %c1_i32 = arith.constant 1 : i32
    %c8_i32_31 = arith.constant 8 : i32
    %67 = arith.muli %c1_i32, %c8_i32_31 : i32
    %68 = tpu.assume_multiple %67, 8 : i32
    %69 = arith.index_cast %68 : i32 to index
    %c0_32 = arith.constant 0 : index
    %70 = vector.load %arg19[%69, %c0_32] : memref<64x1024xf32, #tpu.memory_space<vmem>>, vector<8x1024xf32>
    %cst_33 = arith.constant dense<0.000000e+00> : vector<8x1024xf32>
    %71 = tpu.matmul %64, %38, %cst_33 {dimension_numbers = #tpu.dot_dimension_numbers<[1], [0], [0], [1], [0, 0, 1, 1], [], []>} : vector<8x256xf32>, vector<256x1024xf32>, vector<8x1024xf32> -> vector<8x1024xf32>
    %72 = arith.addf %70, %71 : vector<8x1024xf32>
    %73 = vector.extract_strided_slice %72 {offsets = [0, 0], sizes = [8, 768], strides = [1, 1]} : vector<8x1024xf32> to vector<8x768xf32>
    %74 = arith.negf %73 : vector<8x768xf32>
    %75 = math.exp %74 : vector<8x768xf32>
    %cst_34 = arith.constant 1.000000e+00 : f32
    %76 = vector.broadcast %cst_34 : f32 to vector<8x768xf32>
    %77 = arith.addf %76, %75 : vector<8x768xf32>
    %78 = arith.divf %76, %77 : vector<8x768xf32>
    %79 = vector.extract_strided_slice %78 {offsets = [0, 0], sizes = [8, 256], strides = [1, 1]} : vector<8x768xf32> to vector<8x256xf32>
    %80 = vector.extract_strided_slice %78 {offsets = [0, 256], sizes = [8, 256], strides = [1, 1]} : vector<8x768xf32> to vector<8x256xf32>
    %81 = vector.extract_strided_slice %78 {offsets = [0, 512], sizes = [8, 256], strides = [1, 1]} : vector<8x768xf32> to vector<8x256xf32>
    %82 = vector.extract_strided_slice %72 {offsets = [0, 768], sizes = [8, 256], strides = [1, 1]} : vector<8x1024xf32> to vector<8x256xf32>
    %83 = math.tanh %82 : vector<8x256xf32>
    %84 = arith.mulf %80, %62 : vector<8x256xf32>
    %85 = arith.mulf %79, %83 : vector<8x256xf32>
    %86 = arith.addf %84, %85 : vector<8x256xf32>
    %87 = math.tanh %86 : vector<8x256xf32>
    %88 = arith.mulf %81, %87 : vector<8x256xf32>
    %89 = arith.index_cast %68 : i32 to index
    %c0_35 = arith.constant 0 : index
    %90 = vector.load %arg20[%89, %c0_35] : memref<64x256xf32, #tpu.memory_space<vmem>>, vector<8x256xf32>
    tpu.vector_store %arg20[%89, %c0_35], %88 {strides = array<i32>} : memref<64x256xf32, #tpu.memory_space<vmem>>, vector<8x256xf32>,
    %c2_i32 = arith.constant 2 : i32
    %c8_i32_36 = arith.constant 8 : i32
    %91 = arith.muli %c2_i32, %c8_i32_36 : i32
    %92 = tpu.assume_multiple %91, 8 : i32
    %93 = arith.index_cast %92 : i32 to index
    %c0_37 = arith.constant 0 : index
    %94 = vector.load %arg19[%93, %c0_37] : memref<64x1024xf32, #tpu.memory_space<vmem>>, vector<8x1024xf32>
    %cst_38 = arith.constant dense<0.000000e+00> : vector<8x1024xf32>
    %95 = tpu.matmul %88, %38, %cst_38 {dimension_numbers = #tpu.dot_dimension_numbers<[1], [0], [0], [1], [0, 0, 1, 1], [], []>} : vector<8x256xf32>, vector<256x1024xf32>, vector<8x1024xf32> -> vector<8x1024xf32>
    %96 = arith.addf %94, %95 : vector<8x1024xf32>
    %97 = vector.extract_strided_slice %96 {offsets = [0, 0], sizes = [8, 768], strides = [1, 1]} : vector<8x1024xf32> to vector<8x768xf32>
    %98 = arith.negf %97 : vector<8x768xf32>
    %99 = math.exp %98 : vector<8x768xf32>
    %cst_39 = arith.constant 1.000000e+00 : f32
    %100 = vector.broadcast %cst_39 : f32 to vector<8x768xf32>
    %101 = arith.addf %100, %99 : vector<8x768xf32>
    %102 = arith.divf %100, %101 : vector<8x768xf32>
    %103 = vector.extract_strided_slice %102 {offsets = [0, 0], sizes = [8, 256], strides = [1, 1]} : vector<8x768xf32> to vector<8x256xf32>
    %104 = vector.extract_strided_slice %102 {offsets = [0, 256], sizes = [8, 256], strides = [1, 1]} : vector<8x768xf32> to vector<8x256xf32>
    %105 = vector.extract_strided_slice %102 {offsets = [0, 512], sizes = [8, 256], strides = [1, 1]} : vector<8x768xf32> to vector<8x256xf32>
    %106 = vector.extract_strided_slice %96 {offsets = [0, 768], sizes = [8, 256], strides = [1, 1]} : vector<8x1024xf32> to vector<8x256xf32>
    %107 = math.tanh %106 : vector<8x256xf32>
    %108 = arith.mulf %104, %86 : vector<8x256xf32>
    %109 = arith.mulf %103, %107 : vector<8x256xf32>
    %110 = arith.addf %108, %109 : vector<8x256xf32>
    %111 = math.tanh %110 : vector<8x256xf32>
    %112 = arith.mulf %105, %111 : vector<8x256xf32>
    %113 = arith.index_cast %92 : i32 to index
    %c0_40 = arith.constant 0 : index
    %114 = vector.load %arg20[%113, %c0_40] : memref<64x256xf32, #tpu.memory_space<vmem>>, vector<8x256xf32>
    tpu.vector_store %arg20[%113, %c0_40], %112 {strides = array<i32>} : memref<64x256xf32, #tpu.memory_space<vmem>>, vector<8x256xf32>,
    %c3_i32 = arith.constant 3 : i32
    %c8_i32_41 = arith.constant 8 : i32
    %115 = arith.muli %c3_i32, %c8_i32_41 : i32
    %116 = tpu.assume_multiple %115, 8 : i32
    %117 = arith.index_cast %116 : i32 to index
    %c0_42 = arith.constant 0 : index
    %118 = vector.load %arg19[%117, %c0_42] : memref<64x1024xf32, #tpu.memory_space<vmem>>, vector<8x1024xf32>
    %cst_43 = arith.constant dense<0.000000e+00> : vector<8x1024xf32>
    %119 = tpu.matmul %112, %38, %cst_43 {dimension_numbers = #tpu.dot_dimension_numbers<[1], [0], [0], [1], [0, 0, 1, 1], [], []>} : vector<8x256xf32>, vector<256x1024xf32>, vector<8x1024xf32> -> vector<8x1024xf32>
    %120 = arith.addf %118, %119 : vector<8x1024xf32>
    %121 = vector.extract_strided_slice %120 {offsets = [0, 0], sizes = [8, 768], strides = [1, 1]} : vector<8x1024xf32> to vector<8x768xf32>
    %122 = arith.negf %121 : vector<8x768xf32>
    %123 = math.exp %122 : vector<8x768xf32>
    %cst_44 = arith.constant 1.000000e+00 : f32
    %124 = vector.broadcast %cst_44 : f32 to vector<8x768xf32>
    %125 = arith.addf %124, %123 : vector<8x768xf32>
    %126 = arith.divf %124, %125 : vector<8x768xf32>
    %127 = vector.extract_strided_slice %126 {offsets = [0, 0], sizes = [8, 256], strides = [1, 1]} : vector<8x768xf32> to vector<8x256xf32>
    %128 = vector.extract_strided_slice %126 {offsets = [0, 256], sizes = [8, 256], strides = [1, 1]} : vector<8x768xf32> to vector<8x256xf32>
    %129 = vector.extract_strided_slice %126 {offsets = [0, 512], sizes = [8, 256], strides = [1, 1]} : vector<8x768xf32> to vector<8x256xf32>
    %130 = vector.extract_strided_slice %120 {offsets = [0, 768], sizes = [8, 256], strides = [1, 1]} : vector<8x1024xf32> to vector<8x256xf32>
    %131 = math.tanh %130 : vector<8x256xf32>
    %132 = arith.mulf %128, %110 : vector<8x256xf32>
    %133 = arith.mulf %127, %131 : vector<8x256xf32>
    %134 = arith.addf %132, %133 : vector<8x256xf32>
    %135 = math.tanh %134 : vector<8x256xf32>
    %136 = arith.mulf %129, %135 : vector<8x256xf32>
    %137 = arith.index_cast %116 : i32 to index
    %c0_45 = arith.constant 0 : index
    %138 = vector.load %arg20[%137, %c0_45] : memref<64x256xf32, #tpu.memory_space<vmem>>, vector<8x256xf32>
    tpu.vector_store %arg20[%137, %c0_45], %136 {strides = array<i32>} : memref<64x256xf32, #tpu.memory_space<vmem>>, vector<8x256xf32>,
    %c4_i32 = arith.constant 4 : i32
    %c8_i32_46 = arith.constant 8 : i32
    %139 = arith.muli %c4_i32, %c8_i32_46 : i32
    %140 = tpu.assume_multiple %139, 8 : i32
    %141 = arith.index_cast %140 : i32 to index
    %c0_47 = arith.constant 0 : index
    %142 = vector.load %arg19[%141, %c0_47] : memref<64x1024xf32, #tpu.memory_space<vmem>>, vector<8x1024xf32>
    %cst_48 = arith.constant dense<0.000000e+00> : vector<8x1024xf32>
    %143 = tpu.matmul %136, %38, %cst_48 {dimension_numbers = #tpu.dot_dimension_numbers<[1], [0], [0], [1], [0, 0, 1, 1], [], []>} : vector<8x256xf32>, vector<256x1024xf32>, vector<8x1024xf32> -> vector<8x1024xf32>
    %144 = arith.addf %142, %143 : vector<8x1024xf32>
    %145 = vector.extract_strided_slice %144 {offsets = [0, 0], sizes = [8, 768], strides = [1, 1]} : vector<8x1024xf32> to vector<8x768xf32>
    %146 = arith.negf %145 : vector<8x768xf32>
    %147 = math.exp %146 : vector<8x768xf32>
    %cst_49 = arith.constant 1.000000e+00 : f32
    %148 = vector.broadcast %cst_49 : f32 to vector<8x768xf32>
    %149 = arith.addf %148, %147 : vector<8x768xf32>
    %150 = arith.divf %148, %149 : vector<8x768xf32>
    %151 = vector.extract_strided_slice %150 {offsets = [0, 0], sizes = [8, 256], strides = [1, 1]} : vector<8x768xf32> to vector<8x256xf32>
    %152 = vector.extract_strided_slice %150 {offsets = [0, 256], sizes = [8, 256], strides = [1, 1]} : vector<8x768xf32> to vector<8x256xf32>
    %153 = vector.extract_strided_slice %150 {offsets = [0, 512], sizes = [8, 256], strides = [1, 1]} : vector<8x768xf32> to vector<8x256xf32>
    %154 = vector.extract_strided_slice %144 {offsets = [0, 768], sizes = [8, 256], strides = [1, 1]} : vector<8x1024xf32> to vector<8x256xf32>
    %155 = math.tanh %154 : vector<8x256xf32>
    %156 = arith.mulf %152, %134 : vector<8x256xf32>
    %157 = arith.mulf %151, %155 : vector<8x256xf32>
    %158 = arith.addf %156, %157 : vector<8x256xf32>
    %159 = math.tanh %158 : vector<8x256xf32>
    %160 = arith.mulf %153, %159 : vector<8x256xf32>
    %161 = arith.index_cast %140 : i32 to index
    %c0_50 = arith.constant 0 : index
    %162 = vector.load %arg20[%161, %c0_50] : memref<64x256xf32, #tpu.memory_space<vmem>>, vector<8x256xf32>
    tpu.vector_store %arg20[%161, %c0_50], %160 {strides = array<i32>} : memref<64x256xf32, #tpu.memory_space<vmem>>, vector<8x256xf32>,
    %c5_i32 = arith.constant 5 : i32
    %c8_i32_51 = arith.constant 8 : i32
    %163 = arith.muli %c5_i32, %c8_i32_51 : i32
    %164 = tpu.assume_multiple %163, 8 : i32
    %165 = arith.index_cast %164 : i32 to index
    %c0_52 = arith.constant 0 : index
    %166 = vector.load %arg19[%165, %c0_52] : memref<64x1024xf32, #tpu.memory_space<vmem>>, vector<8x1024xf32>
    %cst_53 = arith.constant dense<0.000000e+00> : vector<8x1024xf32>
    %167 = tpu.matmul %160, %38, %cst_53 {dimension_numbers = #tpu.dot_dimension_numbers<[1], [0], [0], [1], [0, 0, 1, 1], [], []>} : vector<8x256xf32>, vector<256x1024xf32>, vector<8x1024xf32> -> vector<8x1024xf32>
    %168 = arith.addf %166, %167 : vector<8x1024xf32>
    %169 = vector.extract_strided_slice %168 {offsets = [0, 0], sizes = [8, 768], strides = [1, 1]} : vector<8x1024xf32> to vector<8x768xf32>
    %170 = arith.negf %169 : vector<8x768xf32>
    %171 = math.exp %170 : vector<8x768xf32>
    %cst_54 = arith.constant 1.000000e+00 : f32
    %172 = vector.broadcast %cst_54 : f32 to vector<8x768xf32>
    %173 = arith.addf %172, %171 : vector<8x768xf32>
    %174 = arith.divf %172, %173 : vector<8x768xf32>
    %175 = vector.extract_strided_slice %174 {offsets = [0, 0], sizes = [8, 256], strides = [1, 1]} : vector<8x768xf32> to vector<8x256xf32>
    %176 = vector.extract_strided_slice %174 {offsets = [0, 256], sizes = [8, 256], strides = [1, 1]} : vector<8x768xf32> to vector<8x256xf32>
    %177 = vector.extract_strided_slice %174 {offsets = [0, 512], sizes = [8, 256], strides = [1, 1]} : vector<8x768xf32> to vector<8x256xf32>
    %178 = vector.extract_strided_slice %168 {offsets = [0, 768], sizes = [8, 256], strides = [1, 1]} : vector<8x1024xf32> to vector<8x256xf32>
    %179 = math.tanh %178 : vector<8x256xf32>
    %180 = arith.mulf %176, %158 : vector<8x256xf32>
    %181 = arith.mulf %175, %179 : vector<8x256xf32>
    %182 = arith.addf %180, %181 : vector<8x256xf32>
    %183 = math.tanh %182 : vector<8x256xf32>
    %184 = arith.mulf %177, %183 : vector<8x256xf32>
    %185 = arith.index_cast %164 : i32 to index
    %c0_55 = arith.constant 0 : index
    %186 = vector.load %arg20[%185, %c0_55] : memref<64x256xf32, #tpu.memory_space<vmem>>, vector<8x256xf32>
    tpu.vector_store %arg20[%185, %c0_55], %184 {strides = array<i32>} : memref<64x256xf32, #tpu.memory_space<vmem>>, vector<8x256xf32>,
    %c6_i32 = arith.constant 6 : i32
    %c8_i32_56 = arith.constant 8 : i32
    %187 = arith.muli %c6_i32, %c8_i32_56 : i32
    %188 = tpu.assume_multiple %187, 8 : i32
    %189 = arith.index_cast %188 : i32 to index
    %c0_57 = arith.constant 0 : index
    %190 = vector.load %arg19[%189, %c0_57] : memref<64x1024xf32, #tpu.memory_space<vmem>>, vector<8x1024xf32>
    %cst_58 = arith.constant dense<0.000000e+00> : vector<8x1024xf32>
    %191 = tpu.matmul %184, %38, %cst_58 {dimension_numbers = #tpu.dot_dimension_numbers<[1], [0], [0], [1], [0, 0, 1, 1], [], []>} : vector<8x256xf32>, vector<256x1024xf32>, vector<8x1024xf32> -> vector<8x1024xf32>
    %192 = arith.addf %190, %191 : vector<8x1024xf32>
    %193 = vector.extract_strided_slice %192 {offsets = [0, 0], sizes = [8, 768], strides = [1, 1]} : vector<8x1024xf32> to vector<8x768xf32>
    %194 = arith.negf %193 : vector<8x768xf32>
    %195 = math.exp %194 : vector<8x768xf32>
    %cst_59 = arith.constant 1.000000e+00 : f32
    %196 = vector.broadcast %cst_59 : f32 to vector<8x768xf32>
    %197 = arith.addf %196, %195 : vector<8x768xf32>
    %198 = arith.divf %196, %197 : vector<8x768xf32>
    %199 = vector.extract_strided_slice %198 {offsets = [0, 0], sizes = [8, 256], strides = [1, 1]} : vector<8x768xf32> to vector<8x256xf32>
    %200 = vector.extract_strided_slice %198 {offsets = [0, 256], sizes = [8, 256], strides = [1, 1]} : vector<8x768xf32> to vector<8x256xf32>
    %201 = vector.extract_strided_slice %198 {offsets = [0, 512], sizes = [8, 256], strides = [1, 1]} : vector<8x768xf32> to vector<8x256xf32>
    %202 = vector.extract_strided_slice %192 {offsets = [0, 768], sizes = [8, 256], strides = [1, 1]} : vector<8x1024xf32> to vector<8x256xf32>
    %203 = math.tanh %202 : vector<8x256xf32>
    %204 = arith.mulf %200, %182 : vector<8x256xf32>
    %205 = arith.mulf %199, %203 : vector<8x256xf32>
    %206 = arith.addf %204, %205 : vector<8x256xf32>
    %207 = math.tanh %206 : vector<8x256xf32>
    %208 = arith.mulf %201, %207 : vector<8x256xf32>
    %209 = arith.index_cast %188 : i32 to index
    %c0_60 = arith.constant 0 : index
    %210 = vector.load %arg20[%209, %c0_60] : memref<64x256xf32, #tpu.memory_space<vmem>>, vector<8x256xf32>
    tpu.vector_store %arg20[%209, %c0_60], %208 {strides = array<i32>} : memref<64x256xf32, #tpu.memory_space<vmem>>, vector<8x256xf32>,
    %c7_i32 = arith.constant 7 : i32
    %c8_i32_61 = arith.constant 8 : i32
    %211 = arith.muli %c7_i32, %c8_i32_61 : i32
    %212 = tpu.assume_multiple %211, 8 : i32
    %213 = arith.index_cast %212 : i32 to index
    %c0_62 = arith.constant 0 : index
    %214 = vector.load %arg19[%213, %c0_62] : memref<64x1024xf32, #tpu.memory_space<vmem>>, vector<8x1024xf32>
    %cst_63 = arith.constant dense<0.000000e+00> : vector<8x1024xf32>
    %215 = tpu.matmul %208, %38, %cst_63 {dimension_numbers = #tpu.dot_dimension_numbers<[1], [0], [0], [1], [0, 0, 1, 1], [], []>} : vector<8x256xf32>, vector<256x1024xf32>, vector<8x1024xf32> -> vector<8x1024xf32>
    %216 = arith.addf %214, %215 : vector<8x1024xf32>
    %217 = vector.extract_strided_slice %216 {offsets = [0, 0], sizes = [8, 768], strides = [1, 1]} : vector<8x1024xf32> to vector<8x768xf32>
    %218 = arith.negf %217 : vector<8x768xf32>
    %219 = math.exp %218 : vector<8x768xf32>
    %cst_64 = arith.constant 1.000000e+00 : f32
    %220 = vector.broadcast %cst_64 : f32 to vector<8x768xf32>
    %221 = arith.addf %220, %219 : vector<8x768xf32>
    %222 = arith.divf %220, %221 : vector<8x768xf32>
    %223 = vector.extract_strided_slice %222 {offsets = [0, 0], sizes = [8, 256], strides = [1, 1]} : vector<8x768xf32> to vector<8x256xf32>
    %224 = vector.extract_strided_slice %222 {offsets = [0, 256], sizes = [8, 256], strides = [1, 1]} : vector<8x768xf32> to vector<8x256xf32>
    %225 = vector.extract_strided_slice %222 {offsets = [0, 512], sizes = [8, 256], strides = [1, 1]} : vector<8x768xf32> to vector<8x256xf32>
    %226 = vector.extract_strided_slice %216 {offsets = [0, 768], sizes = [8, 256], strides = [1, 1]} : vector<8x1024xf32> to vector<8x256xf32>
    %227 = math.tanh %226 : vector<8x256xf32>
    %228 = arith.mulf %224, %206 : vector<8x256xf32>
    %229 = arith.mulf %223, %227 : vector<8x256xf32>
    %230 = arith.addf %228, %229 : vector<8x256xf32>
    %231 = math.tanh %230 : vector<8x256xf32>
    %232 = arith.mulf %225, %231 : vector<8x256xf32>
    %233 = arith.index_cast %212 : i32 to index
    %c0_65 = arith.constant 0 : index
    %234 = vector.load %arg20[%233, %c0_65] : memref<64x256xf32, #tpu.memory_space<vmem>>, vector<8x256xf32>
    tpu.vector_store %arg20[%233, %c0_65], %232 {strides = array<i32>} : memref<64x256xf32, #tpu.memory_space<vmem>>, vector<8x256xf32>,
    %c8_i32_66 = arith.constant 8 : i32
    %c0_67 = arith.constant 0 : index
    %c0_68 = arith.constant 0 : index
    %c0_69 = arith.constant 0 : index
    %235 = vector.load %arg17[%c0_67, %c0_68, %c0_69] : memref<2x8x256xf32, #tpu.memory_space<vmem>>, vector<1x8x256xf32>
    %236 = vector.shape_cast %235 : vector<1x8x256xf32> to vector<8x256xf32>
    %237 = vector.shape_cast %232 : vector<8x256xf32> to vector<1x8x256xf32>
    tpu.vector_store %arg17[%c0_67, %c0_68, %c0_69], %237 {strides = array<i32>} : memref<2x8x256xf32, #tpu.memory_space<vmem>>, vector<1x8x256xf32>,
    %c0_70 = arith.constant 0 : index
    %c0_71 = arith.constant 0 : index
    %c0_72 = arith.constant 0 : index
    %238 = vector.load %arg18[%c0_70, %c0_71, %c0_72] : memref<2x8x256xf32, #tpu.memory_space<vmem>>, vector<1x8x256xf32>
    %239 = vector.shape_cast %238 : vector<1x8x256xf32> to vector<8x256xf32>
    %240 = vector.shape_cast %230 : vector<8x256xf32> to vector<1x8x256xf32>
    tpu.vector_store %arg18[%c0_70, %c0_71, %c0_72], %240 {strides = array<i32>} : memref<2x8x256xf32, #tpu.memory_space<vmem>>, vector<1x8x256xf32>,
    %c0_73 = arith.constant 0 : index
    %c0_74 = arith.constant 0 : index
    %241 = vector.load %arg20[%c0_73, %c0_74] : memref<64x256xf32, #tpu.memory_space<vmem>>, vector<64x256xf32>
    %c0_75 = arith.constant 0 : index
    %c0_76 = arith.constant 0 : index
    %242 = vector.load %arg7[%c0_75, %c0_76] : memref<256x1024xf32, #tpu.memory_space<vmem>>, vector<256x1024xf32>
    %cst_77 = arith.constant dense<0.000000e+00> : vector<64x1024xf32>
    %243 = tpu.matmul %241, %242, %cst_77 {dimension_numbers = #tpu.dot_dimension_numbers<[1], [0], [0], [1], [0, 0, 1, 1], [], []>} : vector<64x256xf32>, vector<256x1024xf32>, vector<64x1024xf32> -> vector<64x1024xf32>
    %c0_78 = arith.constant 0 : index
    %c0_79 = arith.constant 0 : index
    %244 = vector.load %arg9[%c0_78, %c0_79] : memref<1x1024xf32, #tpu.memory_space<vmem>>, vector<1x1024xf32>
    %245 = vector.broadcast %244 : vector<1x1024xf32> to vector<64x1024xf32>
    %246 = arith.addf %243, %245 : vector<64x1024xf32>
    %c0_80 = arith.constant 0 : index
    %c0_81 = arith.constant 0 : index
    %247 = vector.load %arg19[%c0_80, %c0_81] : memref<64x1024xf32, #tpu.memory_space<vmem>>, vector<64x1024xf32>
    tpu.vector_store %arg19[%c0_80, %c0_81], %246 {strides = array<i32>} : memref<64x1024xf32, #tpu.memory_space<vmem>>, vector<64x1024xf32>,
    %c0_82 = arith.constant 0 : index
    %c0_83 = arith.constant 0 : index
    %248 = vector.load %arg8[%c0_82, %c0_83] : memref<256x1024xf32, #tpu.memory_space<vmem>>, vector<256x1024xf32>
    %c1 = arith.constant 1 : index
    %c0_84 = arith.constant 0 : index
    %c0_85 = arith.constant 0 : index
    %249 = vector.load %arg14[%c1, %c0_84, %c0_85] : memref<2x8x256xf32, #tpu.memory_space<vmem>>, vector<1x8x256xf32>
    %250 = vector.shape_cast %249 : vector<1x8x256xf32> to vector<8x256xf32>
    %c1_86 = arith.constant 1 : index
    %c0_87 = arith.constant 0 : index
    %c0_88 = arith.constant 0 : index
    %251 = vector.load %arg15[%c1_86, %c0_87, %c0_88] : memref<2x8x256xf32, #tpu.memory_space<vmem>>, vector<1x8x256xf32>
    %252 = vector.shape_cast %251 : vector<1x8x256xf32> to vector<8x256xf32>
    %c0_i32_89 = arith.constant 0 : i32
    %c8_i32_90 = arith.constant 8 : i32
    %253 = arith.muli %c0_i32_89, %c8_i32_90 : i32
    %254 = tpu.assume_multiple %253, 8 : i32
    %255 = arith.index_cast %254 : i32 to index
    %c0_91 = arith.constant 0 : index
    %256 = vector.load %arg19[%255, %c0_91] : memref<64x1024xf32, #tpu.memory_space<vmem>>, vector<8x1024xf32>
    %cst_92 = arith.constant dense<0.000000e+00> : vector<8x1024xf32>
    %257 = tpu.matmul %250, %248, %cst_92 {dimension_numbers = #tpu.dot_dimension_numbers<[1], [0], [0], [1], [0, 0, 1, 1], [], []>} : vector<8x256xf32>, vector<256x1024xf32>, vector<8x1024xf32> -> vector<8x1024xf32>
    %258 = arith.addf %256, %257 : vector<8x1024xf32>
    %259 = vector.extract_strided_slice %258 {offsets = [0, 0], sizes = [8, 768], strides = [1, 1]} : vector<8x1024xf32> to vector<8x768xf32>
    %260 = arith.negf %259 : vector<8x768xf32>
    %261 = math.exp %260 : vector<8x768xf32>
    %cst_93 = arith.constant 1.000000e+00 : f32
    %262 = vector.broadcast %cst_93 : f32 to vector<8x768xf32>
    %263 = arith.addf %262, %261 : vector<8x768xf32>
    %264 = arith.divf %262, %263 : vector<8x768xf32>
    %265 = vector.extract_strided_slice %264 {offsets = [0, 0], sizes = [8, 256], strides = [1, 1]} : vector<8x768xf32> to vector<8x256xf32>
    %266 = vector.extract_strided_slice %264 {offsets = [0, 256], sizes = [8, 256], strides = [1, 1]} : vector<8x768xf32> to vector<8x256xf32>
    %267 = vector.extract_strided_slice %264 {offsets = [0, 512], sizes = [8, 256], strides = [1, 1]} : vector<8x768xf32> to vector<8x256xf32>
    %268 = vector.extract_strided_slice %258 {offsets = [0, 768], sizes = [8, 256], strides = [1, 1]} : vector<8x1024xf32> to vector<8x256xf32>
    %269 = math.tanh %268 : vector<8x256xf32>
    %270 = arith.mulf %266, %252 : vector<8x256xf32>
    %271 = arith.mulf %265, %269 : vector<8x256xf32>
    %272 = arith.addf %270, %271 : vector<8x256xf32>
    %273 = math.tanh %272 : vector<8x256xf32>
    %274 = arith.mulf %267, %273 : vector<8x256xf32>
    %275 = arith.index_cast %254 : i32 to index
    %c0_94 = arith.constant 0 : index
    %276 = vector.load %arg20[%275, %c0_94] : memref<64x256xf32, #tpu.memory_space<vmem>>, vector<8x256xf32>
    tpu.vector_store %arg20[%275, %c0_94], %274 {strides = array<i32>} : memref<64x256xf32, #tpu.memory_space<vmem>>, vector<8x256xf32>,
    %c1_i32_95 = arith.constant 1 : i32
    %c8_i32_96 = arith.constant 8 : i32
    %277 = arith.muli %c1_i32_95, %c8_i32_96 : i32
    %278 = tpu.assume_multiple %277, 8 : i32
    %279 = arith.index_cast %278 : i32 to index
    %c0_97 = arith.constant 0 : index
    %280 = vector.load %arg19[%279, %c0_97] : memref<64x1024xf32, #tpu.memory_space<vmem>>, vector<8x1024xf32>
    %cst_98 = arith.constant dense<0.000000e+00> : vector<8x1024xf32>
    %281 = tpu.matmul %274, %248, %cst_98 {dimension_numbers = #tpu.dot_dimension_numbers<[1], [0], [0], [1], [0, 0, 1, 1], [], []>} : vector<8x256xf32>, vector<256x1024xf32>, vector<8x1024xf32> -> vector<8x1024xf32>
    %282 = arith.addf %280, %281 : vector<8x1024xf32>
    %283 = vector.extract_strided_slice %282 {offsets = [0, 0], sizes = [8, 768], strides = [1, 1]} : vector<8x1024xf32> to vector<8x768xf32>
    %284 = arith.negf %283 : vector<8x768xf32>
    %285 = math.exp %284 : vector<8x768xf32>
    %cst_99 = arith.constant 1.000000e+00 : f32
    %286 = vector.broadcast %cst_99 : f32 to vector<8x768xf32>
    %287 = arith.addf %286, %285 : vector<8x768xf32>
    %288 = arith.divf %286, %287 : vector<8x768xf32>
    %289 = vector.extract_strided_slice %288 {offsets = [0, 0], sizes = [8, 256], strides = [1, 1]} : vector<8x768xf32> to vector<8x256xf32>
    %290 = vector.extract_strided_slice %288 {offsets = [0, 256], sizes = [8, 256], strides = [1, 1]} : vector<8x768xf32> to vector<8x256xf32>
    %291 = vector.extract_strided_slice %288 {offsets = [0, 512], sizes = [8, 256], strides = [1, 1]} : vector<8x768xf32> to vector<8x256xf32>
    %292 = vector.extract_strided_slice %282 {offsets = [0, 768], sizes = [8, 256], strides = [1, 1]} : vector<8x1024xf32> to vector<8x256xf32>
    %293 = math.tanh %292 : vector<8x256xf32>
    %294 = arith.mulf %290, %272 : vector<8x256xf32>
    %295 = arith.mulf %289, %293 : vector<8x256xf32>
    %296 = arith.addf %294, %295 : vector<8x256xf32>
    %297 = math.tanh %296 : vector<8x256xf32>
    %298 = arith.mulf %291, %297 : vector<8x256xf32>
    %299 = arith.index_cast %278 : i32 to index
    %c0_100 = arith.constant 0 : index
    %300 = vector.load %arg20[%299, %c0_100] : memref<64x256xf32, #tpu.memory_space<vmem>>, vector<8x256xf32>
    tpu.vector_store %arg20[%299, %c0_100], %298 {strides = array<i32>} : memref<64x256xf32, #tpu.memory_space<vmem>>, vector<8x256xf32>,
    %c2_i32_101 = arith.constant 2 : i32
    %c8_i32_102 = arith.constant 8 : i32
    %301 = arith.muli %c2_i32_101, %c8_i32_102 : i32
    %302 = tpu.assume_multiple %301, 8 : i32
    %303 = arith.index_cast %302 : i32 to index
    %c0_103 = arith.constant 0 : index
    %304 = vector.load %arg19[%303, %c0_103] : memref<64x1024xf32, #tpu.memory_space<vmem>>, vector<8x1024xf32>
    %cst_104 = arith.constant dense<0.000000e+00> : vector<8x1024xf32>
    %305 = tpu.matmul %298, %248, %cst_104 {dimension_numbers = #tpu.dot_dimension_numbers<[1], [0], [0], [1], [0, 0, 1, 1], [], []>} : vector<8x256xf32>, vector<256x1024xf32>, vector<8x1024xf32> -> vector<8x1024xf32>
    %306 = arith.addf %304, %305 : vector<8x1024xf32>
    %307 = vector.extract_strided_slice %306 {offsets = [0, 0], sizes = [8, 768], strides = [1, 1]} : vector<8x1024xf32> to vector<8x768xf32>
    %308 = arith.negf %307 : vector<8x768xf32>
    %309 = math.exp %308 : vector<8x768xf32>
    %cst_105 = arith.constant 1.000000e+00 : f32
    %310 = vector.broadcast %cst_105 : f32 to vector<8x768xf32>
    %311 = arith.addf %310, %309 : vector<8x768xf32>
    %312 = arith.divf %310, %311 : vector<8x768xf32>
    %313 = vector.extract_strided_slice %312 {offsets = [0, 0], sizes = [8, 256], strides = [1, 1]} : vector<8x768xf32> to vector<8x256xf32>
    %314 = vector.extract_strided_slice %312 {offsets = [0, 256], sizes = [8, 256], strides = [1, 1]} : vector<8x768xf32> to vector<8x256xf32>
    %315 = vector.extract_strided_slice %312 {offsets = [0, 512], sizes = [8, 256], strides = [1, 1]} : vector<8x768xf32> to vector<8x256xf32>
    %316 = vector.extract_strided_slice %306 {offsets = [0, 768], sizes = [8, 256], strides = [1, 1]} : vector<8x1024xf32> to vector<8x256xf32>
    %317 = math.tanh %316 : vector<8x256xf32>
    %318 = arith.mulf %314, %296 : vector<8x256xf32>
    %319 = arith.mulf %313, %317 : vector<8x256xf32>
    %320 = arith.addf %318, %319 : vector<8x256xf32>
    %321 = math.tanh %320 : vector<8x256xf32>
    %322 = arith.mulf %315, %321 : vector<8x256xf32>
    %323 = arith.index_cast %302 : i32 to index
    %c0_106 = arith.constant 0 : index
    %324 = vector.load %arg20[%323, %c0_106] : memref<64x256xf32, #tpu.memory_space<vmem>>, vector<8x256xf32>
    tpu.vector_store %arg20[%323, %c0_106], %322 {strides = array<i32>} : memref<64x256xf32, #tpu.memory_space<vmem>>, vector<8x256xf32>,
    %c3_i32_107 = arith.constant 3 : i32
    %c8_i32_108 = arith.constant 8 : i32
    %325 = arith.muli %c3_i32_107, %c8_i32_108 : i32
    %326 = tpu.assume_multiple %325, 8 : i32
    %327 = arith.index_cast %326 : i32 to index
    %c0_109 = arith.constant 0 : index
    %328 = vector.load %arg19[%327, %c0_109] : memref<64x1024xf32, #tpu.memory_space<vmem>>, vector<8x1024xf32>
    %cst_110 = arith.constant dense<0.000000e+00> : vector<8x1024xf32>
    %329 = tpu.matmul %322, %248, %cst_110 {dimension_numbers = #tpu.dot_dimension_numbers<[1], [0], [0], [1], [0, 0, 1, 1], [], []>} : vector<8x256xf32>, vector<256x1024xf32>, vector<8x1024xf32> -> vector<8x1024xf32>
    %330 = arith.addf %328, %329 : vector<8x1024xf32>
    %331 = vector.extract_strided_slice %330 {offsets = [0, 0], sizes = [8, 768], strides = [1, 1]} : vector<8x1024xf32> to vector<8x768xf32>
    %332 = arith.negf %331 : vector<8x768xf32>
    %333 = math.exp %332 : vector<8x768xf32>
    %cst_111 = arith.constant 1.000000e+00 : f32
    %334 = vector.broadcast %cst_111 : f32 to vector<8x768xf32>
    %335 = arith.addf %334, %333 : vector<8x768xf32>
    %336 = arith.divf %334, %335 : vector<8x768xf32>
    %337 = vector.extract_strided_slice %336 {offsets = [0, 0], sizes = [8, 256], strides = [1, 1]} : vector<8x768xf32> to vector<8x256xf32>
    %338 = vector.extract_strided_slice %336 {offsets = [0, 256], sizes = [8, 256], strides = [1, 1]} : vector<8x768xf32> to vector<8x256xf32>
    %339 = vector.extract_strided_slice %336 {offsets = [0, 512], sizes = [8, 256], strides = [1, 1]} : vector<8x768xf32> to vector<8x256xf32>
    %340 = vector.extract_strided_slice %330 {offsets = [0, 768], sizes = [8, 256], strides = [1, 1]} : vector<8x1024xf32> to vector<8x256xf32>
    %341 = math.tanh %340 : vector<8x256xf32>
    %342 = arith.mulf %338, %320 : vector<8x256xf32>
    %343 = arith.mulf %337, %341 : vector<8x256xf32>
    %344 = arith.addf %342, %343 : vector<8x256xf32>
    %345 = math.tanh %344 : vector<8x256xf32>
    %346 = arith.mulf %339, %345 : vector<8x256xf32>
    %347 = arith.index_cast %326 : i32 to index
    %c0_112 = arith.constant 0 : index
    %348 = vector.load %arg20[%347, %c0_112] : memref<64x256xf32, #tpu.memory_space<vmem>>, vector<8x256xf32>
    tpu.vector_store %arg20[%347, %c0_112], %346 {strides = array<i32>} : memref<64x256xf32, #tpu.memory_space<vmem>>, vector<8x256xf32>,
    %c4_i32_113 = arith.constant 4 : i32
    %c8_i32_114 = arith.constant 8 : i32
    %349 = arith.muli %c4_i32_113, %c8_i32_114 : i32
    %350 = tpu.assume_multiple %349, 8 : i32
    %351 = arith.index_cast %350 : i32 to index
    %c0_115 = arith.constant 0 : index
    %352 = vector.load %arg19[%351, %c0_115] : memref<64x1024xf32, #tpu.memory_space<vmem>>, vector<8x1024xf32>
    %cst_116 = arith.constant dense<0.000000e+00> : vector<8x1024xf32>
    %353 = tpu.matmul %346, %248, %cst_116 {dimension_numbers = #tpu.dot_dimension_numbers<[1], [0], [0], [1], [0, 0, 1, 1], [], []>} : vector<8x256xf32>, vector<256x1024xf32>, vector<8x1024xf32> -> vector<8x1024xf32>
    %354 = arith.addf %352, %353 : vector<8x1024xf32>
    %355 = vector.extract_strided_slice %354 {offsets = [0, 0], sizes = [8, 768], strides = [1, 1]} : vector<8x1024xf32> to vector<8x768xf32>
    %356 = arith.negf %355 : vector<8x768xf32>
    %357 = math.exp %356 : vector<8x768xf32>
    %cst_117 = arith.constant 1.000000e+00 : f32
    %358 = vector.broadcast %cst_117 : f32 to vector<8x768xf32>
    %359 = arith.addf %358, %357 : vector<8x768xf32>
    %360 = arith.divf %358, %359 : vector<8x768xf32>
    %361 = vector.extract_strided_slice %360 {offsets = [0, 0], sizes = [8, 256], strides = [1, 1]} : vector<8x768xf32> to vector<8x256xf32>
    %362 = vector.extract_strided_slice %360 {offsets = [0, 256], sizes = [8, 256], strides = [1, 1]} : vector<8x768xf32> to vector<8x256xf32>
    %363 = vector.extract_strided_slice %360 {offsets = [0, 512], sizes = [8, 256], strides = [1, 1]} : vector<8x768xf32> to vector<8x256xf32>
    %364 = vector.extract_strided_slice %354 {offsets = [0, 768], sizes = [8, 256], strides = [1, 1]} : vector<8x1024xf32> to vector<8x256xf32>
    %365 = math.tanh %364 : vector<8x256xf32>
    %366 = arith.mulf %362, %344 : vector<8x256xf32>
    %367 = arith.mulf %361, %365 : vector<8x256xf32>
    %368 = arith.addf %366, %367 : vector<8x256xf32>
    %369 = math.tanh %368 : vector<8x256xf32>
    %370 = arith.mulf %363, %369 : vector<8x256xf32>
    %371 = arith.index_cast %350 : i32 to index
    %c0_118 = arith.constant 0 : index
    %372 = vector.load %arg20[%371, %c0_118] : memref<64x256xf32, #tpu.memory_space<vmem>>, vector<8x256xf32>
    tpu.vector_store %arg20[%371, %c0_118], %370 {strides = array<i32>} : memref<64x256xf32, #tpu.memory_space<vmem>>, vector<8x256xf32>,
    %c5_i32_119 = arith.constant 5 : i32
    %c8_i32_120 = arith.constant 8 : i32
    %373 = arith.muli %c5_i32_119, %c8_i32_120 : i32
    %374 = tpu.assume_multiple %373, 8 : i32
    %375 = arith.index_cast %374 : i32 to index
    %c0_121 = arith.constant 0 : index
    %376 = vector.load %arg19[%375, %c0_121] : memref<64x1024xf32, #tpu.memory_space<vmem>>, vector<8x1024xf32>
    %cst_122 = arith.constant dense<0.000000e+00> : vector<8x1024xf32>
    %377 = tpu.matmul %370, %248, %cst_122 {dimension_numbers = #tpu.dot_dimension_numbers<[1], [0], [0], [1], [0, 0, 1, 1], [], []>} : vector<8x256xf32>, vector<256x1024xf32>, vector<8x1024xf32> -> vector<8x1024xf32>
    %378 = arith.addf %376, %377 : vector<8x1024xf32>
    %379 = vector.extract_strided_slice %378 {offsets = [0, 0], sizes = [8, 768], strides = [1, 1]} : vector<8x1024xf32> to vector<8x768xf32>
    %380 = arith.negf %379 : vector<8x768xf32>
    %381 = math.exp %380 : vector<8x768xf32>
    %cst_123 = arith.constant 1.000000e+00 : f32
    %382 = vector.broadcast %cst_123 : f32 to vector<8x768xf32>
    %383 = arith.addf %382, %381 : vector<8x768xf32>
    %384 = arith.divf %382, %383 : vector<8x768xf32>
    %385 = vector.extract_strided_slice %384 {offsets = [0, 0], sizes = [8, 256], strides = [1, 1]} : vector<8x768xf32> to vector<8x256xf32>
    %386 = vector.extract_strided_slice %384 {offsets = [0, 256], sizes = [8, 256], strides = [1, 1]} : vector<8x768xf32> to vector<8x256xf32>
    %387 = vector.extract_strided_slice %384 {offsets = [0, 512], sizes = [8, 256], strides = [1, 1]} : vector<8x768xf32> to vector<8x256xf32>
    %388 = vector.extract_strided_slice %378 {offsets = [0, 768], sizes = [8, 256], strides = [1, 1]} : vector<8x1024xf32> to vector<8x256xf32>
    %389 = math.tanh %388 : vector<8x256xf32>
    %390 = arith.mulf %386, %368 : vector<8x256xf32>
    %391 = arith.mulf %385, %389 : vector<8x256xf32>
    %392 = arith.addf %390, %391 : vector<8x256xf32>
    %393 = math.tanh %392 : vector<8x256xf32>
    %394 = arith.mulf %387, %393 : vector<8x256xf32>
    %395 = arith.index_cast %374 : i32 to index
    %c0_124 = arith.constant 0 : index
    %396 = vector.load %arg20[%395, %c0_124] : memref<64x256xf32, #tpu.memory_space<vmem>>, vector<8x256xf32>
    tpu.vector_store %arg20[%395, %c0_124], %394 {strides = array<i32>} : memref<64x256xf32, #tpu.memory_space<vmem>>, vector<8x256xf32>,
    %c6_i32_125 = arith.constant 6 : i32
    %c8_i32_126 = arith.constant 8 : i32
    %397 = arith.muli %c6_i32_125, %c8_i32_126 : i32
    %398 = tpu.assume_multiple %397, 8 : i32
    %399 = arith.index_cast %398 : i32 to index
    %c0_127 = arith.constant 0 : index
    %400 = vector.load %arg19[%399, %c0_127] : memref<64x1024xf32, #tpu.memory_space<vmem>>, vector<8x1024xf32>
    %cst_128 = arith.constant dense<0.000000e+00> : vector<8x1024xf32>
    %401 = tpu.matmul %394, %248, %cst_128 {dimension_numbers = #tpu.dot_dimension_numbers<[1], [0], [0], [1], [0, 0, 1, 1], [], []>} : vector<8x256xf32>, vector<256x1024xf32>, vector<8x1024xf32> -> vector<8x1024xf32>
    %402 = arith.addf %400, %401 : vector<8x1024xf32>
    %403 = vector.extract_strided_slice %402 {offsets = [0, 0], sizes = [8, 768], strides = [1, 1]} : vector<8x1024xf32> to vector<8x768xf32>
    %404 = arith.negf %403 : vector<8x768xf32>
    %405 = math.exp %404 : vector<8x768xf32>
    %cst_129 = arith.constant 1.000000e+00 : f32
    %406 = vector.broadcast %cst_129 : f32 to vector<8x768xf32>
    %407 = arith.addf %406, %405 : vector<8x768xf32>
    %408 = arith.divf %406, %407 : vector<8x768xf32>
    %409 = vector.extract_strided_slice %408 {offsets = [0, 0], sizes = [8, 256], strides = [1, 1]} : vector<8x768xf32> to vector<8x256xf32>
    %410 = vector.extract_strided_slice %408 {offsets = [0, 256], sizes = [8, 256], strides = [1, 1]} : vector<8x768xf32> to vector<8x256xf32>
    %411 = vector.extract_strided_slice %408 {offsets = [0, 512], sizes = [8, 256], strides = [1, 1]} : vector<8x768xf32> to vector<8x256xf32>
    %412 = vector.extract_strided_slice %402 {offsets = [0, 768], sizes = [8, 256], strides = [1, 1]} : vector<8x1024xf32> to vector<8x256xf32>
    %413 = math.tanh %412 : vector<8x256xf32>
    %414 = arith.mulf %410, %392 : vector<8x256xf32>
    %415 = arith.mulf %409, %413 : vector<8x256xf32>
    %416 = arith.addf %414, %415 : vector<8x256xf32>
    %417 = math.tanh %416 : vector<8x256xf32>
    %418 = arith.mulf %411, %417 : vector<8x256xf32>
    %419 = arith.index_cast %398 : i32 to index
    %c0_130 = arith.constant 0 : index
    %420 = vector.load %arg20[%419, %c0_130] : memref<64x256xf32, #tpu.memory_space<vmem>>, vector<8x256xf32>
    tpu.vector_store %arg20[%419, %c0_130], %418 {strides = array<i32>} : memref<64x256xf32, #tpu.memory_space<vmem>>, vector<8x256xf32>,
    %c7_i32_131 = arith.constant 7 : i32
    %c8_i32_132 = arith.constant 8 : i32
    %421 = arith.muli %c7_i32_131, %c8_i32_132 : i32
    %422 = tpu.assume_multiple %421, 8 : i32
    %423 = arith.index_cast %422 : i32 to index
    %c0_133 = arith.constant 0 : index
    %424 = vector.load %arg19[%423, %c0_133] : memref<64x1024xf32, #tpu.memory_space<vmem>>, vector<8x1024xf32>
    %cst_134 = arith.constant dense<0.000000e+00> : vector<8x1024xf32>
    %425 = tpu.matmul %418, %248, %cst_134 {dimension_numbers = #tpu.dot_dimension_numbers<[1], [0], [0], [1], [0, 0, 1, 1], [], []>} : vector<8x256xf32>, vector<256x1024xf32>, vector<8x1024xf32> -> vector<8x1024xf32>
    %426 = arith.addf %424, %425 : vector<8x1024xf32>
    %427 = vector.extract_strided_slice %426 {offsets = [0, 0], sizes = [8, 768], strides = [1, 1]} : vector<8x1024xf32> to vector<8x768xf32>
    %428 = arith.negf %427 : vector<8x768xf32>
    %429 = math.exp %428 : vector<8x768xf32>
    %cst_135 = arith.constant 1.000000e+00 : f32
    %430 = vector.broadcast %cst_135 : f32 to vector<8x768xf32>
    %431 = arith.addf %430, %429 : vector<8x768xf32>
    %432 = arith.divf %430, %431 : vector<8x768xf32>
    %433 = vector.extract_strided_slice %432 {offsets = [0, 0], sizes = [8, 256], strides = [1, 1]} : vector<8x768xf32> to vector<8x256xf32>
    %434 = vector.extract_strided_slice %432 {offsets = [0, 256], sizes = [8, 256], strides = [1, 1]} : vector<8x768xf32> to vector<8x256xf32>
    %435 = vector.extract_strided_slice %432 {offsets = [0, 512], sizes = [8, 256], strides = [1, 1]} : vector<8x768xf32> to vector<8x256xf32>
    %436 = vector.extract_strided_slice %426 {offsets = [0, 768], sizes = [8, 256], strides = [1, 1]} : vector<8x1024xf32> to vector<8x256xf32>
    %437 = math.tanh %436 : vector<8x256xf32>
    %438 = arith.mulf %434, %416 : vector<8x256xf32>
    %439 = arith.mulf %433, %437 : vector<8x256xf32>
    %440 = arith.addf %438, %439 : vector<8x256xf32>
    %441 = math.tanh %440 : vector<8x256xf32>
    %442 = arith.mulf %435, %441 : vector<8x256xf32>
    %443 = arith.index_cast %422 : i32 to index
    %c0_136 = arith.constant 0 : index
    %444 = vector.load %arg20[%443, %c0_136] : memref<64x256xf32, #tpu.memory_space<vmem>>, vector<8x256xf32>
    tpu.vector_store %arg20[%443, %c0_136], %442 {strides = array<i32>} : memref<64x256xf32, #tpu.memory_space<vmem>>, vector<8x256xf32>,
    %c8_i32_137 = arith.constant 8 : i32
    %c1_138 = arith.constant 1 : index
    %c0_139 = arith.constant 0 : index
    %c0_140 = arith.constant 0 : index
    %445 = vector.load %arg17[%c1_138, %c0_139, %c0_140] : memref<2x8x256xf32, #tpu.memory_space<vmem>>, vector<1x8x256xf32>
    %446 = vector.shape_cast %445 : vector<1x8x256xf32> to vector<8x256xf32>
    %447 = vector.shape_cast %442 : vector<8x256xf32> to vector<1x8x256xf32>
    tpu.vector_store %arg17[%c1_138, %c0_139, %c0_140], %447 {strides = array<i32>} : memref<2x8x256xf32, #tpu.memory_space<vmem>>, vector<1x8x256xf32>,
    %c1_141 = arith.constant 1 : index
    %c0_142 = arith.constant 0 : index
    %c0_143 = arith.constant 0 : index
    %448 = vector.load %arg18[%c1_141, %c0_142, %c0_143] : memref<2x8x256xf32, #tpu.memory_space<vmem>>, vector<1x8x256xf32>
    %449 = vector.shape_cast %448 : vector<1x8x256xf32> to vector<8x256xf32>
    %450 = vector.shape_cast %440 : vector<8x256xf32> to vector<1x8x256xf32>
    tpu.vector_store %arg18[%c1_141, %c0_142, %c0_143], %450 {strides = array<i32>} : memref<2x8x256xf32, #tpu.memory_space<vmem>>, vector<1x8x256xf32>,
    %c0_144 = arith.constant 0 : index
    %c0_145 = arith.constant 0 : index
    %451 = vector.load %arg20[%c0_144, %c0_145] : memref<64x256xf32, #tpu.memory_space<vmem>>, vector<64x256xf32>
    %c0_146 = arith.constant 0 : index
    %c0_147 = arith.constant 0 : index
    %452 = vector.load %arg10[%c0_146, %c0_147] : memref<1x256xf32, #tpu.memory_space<vmem>>, vector<1x256xf32>
    %c0_148 = arith.constant 0 : index
    %c0_149 = arith.constant 0 : index
    %453 = vector.load %arg11[%c0_148, %c0_149] : memref<1x256xf32, #tpu.memory_space<vmem>>, vector<1x256xf32>
    %cst_150 = arith.constant dense<0.000000e+00> : vector<64xf32>
    %454 = vector.multi_reduction <add>, %451, %cst_150 [1] : vector<64x256xf32> to vector<64xf32>
    %455 = vector.shape_cast %454 : vector<64xf32> to vector<64x1xf32>
    %cst_151 = arith.constant 2.560000e+02 : f32
    %456 = vector.broadcast %cst_151 : f32 to vector<64x1xf32>
    %457 = arith.divf %455, %456 : vector<64x1xf32>
    %458 = vector.broadcast %457 : vector<64x1xf32> to vector<64x256xf32>
    %459 = arith.subf %451, %458 : vector<64x256xf32>
    %460 = arith.mulf %459, %459 : vector<64x256xf32>
    %cst_152 = arith.constant dense<0.000000e+00> : vector<64xf32>
    %461 = vector.multi_reduction <add>, %460, %cst_152 [1] : vector<64x256xf32> to vector<64xf32>
    %462 = vector.shape_cast %461 : vector<64xf32> to vector<64x1xf32>
    %cst_153 = arith.constant 2.560000e+02 : f32
    %463 = vector.broadcast %cst_153 : f32 to vector<64x1xf32>
    %464 = arith.divf %462, %463 : vector<64x1xf32>
    %465 = vector.broadcast %457 : vector<64x1xf32> to vector<64x256xf32>
    %466 = arith.subf %451, %465 : vector<64x256xf32>
    %cst_154 = arith.constant 1.000000e-03 : f32
    %467 = vector.broadcast %cst_154 : f32 to vector<64x1xf32>
    %468 = arith.addf %464, %467 : vector<64x1xf32>
    %469 = math.rsqrt %468 : vector<64x1xf32>
    %470 = vector.broadcast %469 : vector<64x1xf32> to vector<64x256xf32>
    %471 = arith.mulf %466, %470 : vector<64x256xf32>
    %472 = vector.broadcast %452 : vector<1x256xf32> to vector<64x256xf32>
    %473 = arith.mulf %471, %472 : vector<64x256xf32>
    %474 = vector.broadcast %453 : vector<1x256xf32> to vector<64x256xf32>
    %475 = arith.addf %473, %474 : vector<64x256xf32>
    %c0_155 = arith.constant 0 : index
    %c0_156 = arith.constant 0 : index
    %476 = vector.load %arg12[%c0_155, %c0_156] : memref<256x128xf32, #tpu.memory_space<vmem>>, vector<256x128xf32>
    %cst_157 = arith.constant dense<0.000000e+00> : vector<64x128xf32>
    %477 = tpu.matmul %475, %476, %cst_157 {dimension_numbers = #tpu.dot_dimension_numbers<[1], [0], [0], [1], [0, 0, 1, 1], [], []>} : vector<64x256xf32>, vector<256x128xf32>, vector<64x128xf32> -> vector<64x128xf32>
    %c0_158 = arith.constant 0 : index
    %c0_159 = arith.constant 0 : index
    %478 = vector.load %arg13[%c0_158, %c0_159] : memref<1x128xf32, #tpu.memory_space<vmem>>, vector<1x128xf32>
    %479 = vector.broadcast %478 : vector<1x128xf32> to vector<64x128xf32>
    %480 = arith.addf %477, %479 : vector<64x128xf32>
    %c0_160 = arith.constant 0 : index
    %c0_161 = arith.constant 0 : index
    %481 = vector.load %arg16[%c0_160, %c0_161] : memref<64x128xf32, #tpu.memory_space<vmem>>, vector<64x128xf32>
    tpu.vector_store %arg16[%c0_160, %c0_161], %480 {strides = array<i32>} : memref<64x128xf32, #tpu.memory_space<vmem>>, vector<64x128xf32>,
    return
  }
}

</mosaic_0001>

<llo_original>
// kernel: lstm_forward.1
$region0: #{lstm_forward.1}
  #allocation0 [shape = 'u32[]', space=smem, size = 0x4, offset = 0x4, fixed_abs, tag = 'smem constant byte address 0x4 - core index']
  #allocation1 [shape = 'u32[144,128]{1,0:T(1,128)}', space=vmem, size = 0x12000, scoped, tag = 'internal scratch']
  #allocation2 [shape = 'f32[64,1024]{1,0:T(8,128)}', space=vmem, size = 0x40000, scoped, tag = 'scratch operand']
  #allocation3 [shape = 'f32[64,256]{1,0:T(8,128)}', space=vmem, size = 0x10000, scoped, tag = 'scratch operand']
  %s0 = inlined_call_operand.vmem [shape: s32[64,1], index: 0, kind: input, shape index: {}]
  %s1 = inlined_call_operand.vmem [shape: f32[128,128], index: 1, kind: input, shape index: {}]
  %s2 = inlined_call_operand.vmem [shape: f32[1,128], index: 2, kind: input, shape index: {}]
  %s3 = inlined_call_operand.vmem [shape: f32[1,128], index: 3, kind: input, shape index: {}]
  %s4 = inlined_call_operand.hbm [shape: f32[128,1024], index: 4, kind: input, shape index: {}]
  %s5 = inlined_call_operand.hbm [shape: f32[256,1024], index: 5, kind: input, shape index: {}]
  %s6 = inlined_call_operand.vmem [shape: f32[1,1024], index: 6, kind: input, shape index: {}]
  %s7 = inlined_call_operand.hbm [shape: f32[256,1024], index: 7, kind: input, shape index: {}]
  %s8 = inlined_call_operand.hbm [shape: f32[256,1024], index: 8, kind: input, shape index: {}]
  %s9 = inlined_call_operand.vmem [shape: f32[1,1024], index: 9, kind: input, shape index: {}]
  %s10 = inlined_call_operand.vmem [shape: f32[1,256], index: 10, kind: input, shape index: {}]
  %s11 = inlined_call_operand.vmem [shape: f32[1,256], index: 11, kind: input, shape index: {}]
  %s12 = inlined_call_operand.hbm [shape: f32[256,128], index: 12, kind: input, shape index: {}]
  %s13 = inlined_call_operand.vmem [shape: f32[1,128], index: 13, kind: input, shape index: {}]
  %s14 = inlined_call_operand.vmem [shape: f32[2,8,256], index: 14, kind: input, shape index: {}]
  %s15 = inlined_call_operand.vmem [shape: f32[2,8,256], index: 15, kind: input, shape index: {}]
  %s16 = inlined_call_operand.vmem [shape: f32[64,128], index: 16, kind: output, shape index: {0}]
  %s17 = inlined_call_operand.vmem [shape: f32[2,8,256], index: 17, kind: output, shape index: {1}]
  %s18 = inlined_call_operand.vmem [shape: f32[2,8,256], index: 18, kind: output, shape index: {2}]
  %19 = xla_tuple %s16, %s17, %s18
  %s20 = sld [smem:[#allocation0]]
  $region110: #{lstm_forward.1} parent=0
    _
  %s22 = ssub.s32 1, %s20
  %s23 = scalar_select 0, %s22, %s20
  $region1: #{lstm_forward.1} parent=0
    #allocation4 [shape = 'u8[524288]{0}', space=vmem, size = 0x80000, scoped, tag = 'input window, operand 4, single buffered']
    #allocation5 [shape = 's32[1]{0}', space=sflag, size = 0x4, scoped, tag = 'scoped memory for lstm_forward.1']
    #allocation6 [shape = 'u8[1048576]{0}', space=vmem, size = 0x100000, scoped, tag = 'input window, operand 5, single buffered']
    #allocation7 [shape = 's32[1]{0}', space=sflag, size = 0x4, scoped, tag = 'scoped memory for lstm_forward.1']
    #allocation8 [shape = 'u8[1048576]{0}', space=vmem, size = 0x100000, scoped, tag = 'input window, operand 7, single buffered']
    #allocation9 [shape = 'u8[1048576]{0}', space=vmem, size = 0x100000, scoped, tag = 'input window, operand 8, single buffered']
    #allocation10 [shape = 's32[1]{0}', space=sflag, size = 0x4, scoped, tag = 'scoped memory for lstm_forward.1']
    #allocation11 [shape = 'u8[131072]{0}', space=vmem, size = 0x20000, scoped, tag = 'input window, operand 12, single buffered']
    %24 = vsyncpa [#allocation5], 0
    %25 = vsyncpa [#allocation7], 0
    %26 = vsyncpa [#allocation10], 0
    // Predicated region
    $region2: #{lstm_forward.1} parent=1 // pred_check
      _
    $region3: #{lstm_forward.1} parent=1 // pred_check_branch
      %28 = sbr.rel (0) target = $region5
    $region4: #{lstm_forward.1} parent=1 // pred_region
      _
    $region5: #{lstm_forward.1} parent=1 // pred_fallthru
      _
    // Predicated region
    $region6: #{lstm_forward.1} parent=1 // pred_check
      _
    $region7: #{lstm_forward.1} parent=1 // pred_check_branch
      %30 = sbr.rel (0) target = $region9
    $region8: #{lstm_forward.1} parent=1 // pred_region
      _
    $region9: #{lstm_forward.1} parent=1 // pred_fallthru
      _
    // Predicated region
    $region10: #{lstm_forward.1} parent=1 // pred_check
      _
    $region11: #{lstm_forward.1} parent=1 // pred_check_branch
      %32 = sbr.rel (0) target = $region13
    $region12: #{lstm_forward.1} parent=1 // pred_region
      _
    $region13: #{lstm_forward.1} parent=1 // pred_fallthru
      _
    // Predicated region
    $region14: #{lstm_forward.1} parent=1 // pred_check
      _
    $region15: #{lstm_forward.1} parent=1 // pred_check_branch
      %34 = sbr.rel (0) target = $region17
    $region16: #{lstm_forward.1} parent=1 // pred_region
      _
    $region17: #{lstm_forward.1} parent=1 // pred_fallthru
      _
    // Predicated region
    $region18: #{lstm_forward.1} parent=1 // pred_check
      _
    $region19: #{lstm_forward.1} parent=1 // pred_check_branch
      %36 = sbr.rel (0) target = $region21
    $region20: #{lstm_forward.1} parent=1 // pred_region
      %s38 = ssub.s32 16384, 16384
      %39 = vsyncadd [#allocation5], %s38
      %s40 = sshll.u32 [#allocation4], 4
      %s41 = int_to_ptr.vmem [resolvable:$true] %s40
      %46 = dma.hbm_to_vmem [thread:$0]  %s4, 16384, %s41, [#allocation5], 1024, 1024, 64
    $region21: #{lstm_forward.1} parent=1 // pred_fallthru
      _
    // Predicated region
    $region22: #{lstm_forward.1} parent=1 // pred_check
      _
    $region23: #{lstm_forward.1} parent=1 // pred_check_branch
      %48 = sbr.rel (0) target = $region25
    $region24: #{lstm_forward.1} parent=1 // pred_region
      %s50 = ssub.s32 32768, 32768
      %51 = vsyncadd [#allocation7], %s50
      %s52 = sshll.u32 [#allocation6], 4
      %s53 = int_to_ptr.vmem [resolvable:$true] %s52
      %58 = dma.hbm_to_vmem [thread:$0]  %s5, 32768, %s53, [#allocation7], 1024, 1024, 64
    $region25: #{lstm_forward.1} parent=1 // pred_fallthru
      _
    // Predicated region
    $region26: #{lstm_forward.1} parent=1 // pred_check
      _
    $region27: #{lstm_forward.1} parent=1 // pred_check_branch
      %60 = sbr.rel (0) target = $region29
    $region28: #{lstm_forward.1} parent=1 // pred_region
      _
    $region29: #{lstm_forward.1} parent=1 // pred_fallthru
      _
    // Predicated region
    $region30: #{lstm_forward.1} parent=1 // pred_check
      _
    $region31: #{lstm_forward.1} parent=1 // pred_check_branch
      %62 = sbr.rel (0) target = $region33
    $region32: #{lstm_forward.1} parent=1 // pred_region
      %s64 = ssub.s32 32768, 32768
      %65 = vsyncadd [#allocation7], %s64
      %s66 = sshll.u32 [#allocation8], 4
      %s67 = int_to_ptr.vmem [resolvable:$true] %s66
      %72 = dma.hbm_to_vmem [thread:$0]  %s7, 32768, %s67, [#allocation7], 1024, 1024, 64
    $region33: #{lstm_forward.1} parent=1 // pred_fallthru
      _
    // Predicated region
    $region34: #{lstm_forward.1} parent=1 // pred_check
      _
    $region35: #{lstm_forward.1} parent=1 // pred_check_branch
      %74 = sbr.rel (0) target = $region37
    $region36: #{lstm_forward.1} parent=1 // pred_region
      %s76 = ssub.s32 32768, 32768
      %77 = vsyncadd [#allocation10], %s76
      %s78 = sshll.u32 [#allocation9], 4
      %s79 = int_to_ptr.vmem [resolvable:$true] %s78
      %84 = dma.hbm_to_vmem [thread:$0]  %s8, 32768, %s79, [#allocation10], 1024, 1024, 64
    $region37: #{lstm_forward.1} parent=1 // pred_fallthru
      _
    // Predicated region
    $region38: #{lstm_forward.1} parent=1 // pred_check
      _
    $region39: #{lstm_forward.1} parent=1 // pred_check_branch
      %86 = sbr.rel (0) target = $region41
    $region40: #{lstm_forward.1} parent=1 // pred_region
      _
    $region41: #{lstm_forward.1} parent=1 // pred_fallthru
      _
    // Predicated region
    $region42: #{lstm_forward.1} parent=1 // pred_check
      _
    $region43: #{lstm_forward.1} parent=1 // pred_check_branch
      %88 = sbr.rel (0) target = $region45
    $region44: #{lstm_forward.1} parent=1 // pred_region
      _
    $region45: #{lstm_forward.1} parent=1 // pred_fallthru
      _
    // Predicated region
    $region46: #{lstm_forward.1} parent=1 // pred_check
      _
    $region47: #{lstm_forward.1} parent=1 // pred_check_branch
      %90 = sbr.rel (0) target = $region49
    $region48: #{lstm_forward.1} parent=1 // pred_region
      _
    $region49: #{lstm_forward.1} parent=1 // pred_fallthru
      _
    // Predicated region
    $region50: #{lstm_forward.1} parent=1 // pred_check
      _
    $region51: #{lstm_forward.1} parent=1 // pred_check_branch
      %92 = sbr.rel (0) target = $region53
    $region52: #{lstm_forward.1} parent=1 // pred_region
      %s94 = ssub.s32 4096, 4096
      %95 = vsyncadd [#allocation10], %s94
      %s96 = sshll.u32 [#allocation11], 4
      %s97 = int_to_ptr.vmem [resolvable:$true] %s96
      %102 = dma.hbm_to_vmem [thread:$0]  %s12, 4096, %s97, [#allocation10], 128, 128, 8
    $region53: #{lstm_forward.1} parent=1 // pred_fallthru
      _
    // Predicated region
    $region54: #{lstm_forward.1} parent=1 // pred_check
      _
    $region55: #{lstm_forward.1} parent=1 // pred_check_branch
      %104 = sbr.rel (0) target = $region57
    $region56: #{lstm_forward.1} parent=1 // pred_region
      _
    $region57: #{lstm_forward.1} parent=1 // pred_fallthru
      _
    // Predicated region
    $region58: #{lstm_forward.1} parent=1 // pred_check
      _
    $region59: #{lstm_forward.1} parent=1 // pred_check_branch
      %106 = sbr.rel (0) target = $region61
    $region60: #{lstm_forward.1} parent=1 // pred_region
      _
    $region61: #{lstm_forward.1} parent=1 // pred_fallthru
      _
    // Predicated region
    $region62: #{lstm_forward.1} parent=1 // pred_check
      _
    $region63: #{lstm_forward.1} parent=1 // pred_check_branch
      %108 = sbr.rel (0) target = $region65
    $region64: #{lstm_forward.1} parent=1 // pred_region
      _
    $region65: #{lstm_forward.1} parent=1 // pred_fallthru
      _
    // Predicated region
    $region66: #{lstm_forward.1} parent=1 // pred_check
      _
    $region67: #{lstm_forward.1} parent=1 // pred_check_branch
      %110 = sbr.rel (0) target = $region69
    $region68: #{lstm_forward.1} parent=1 // pred_region
      %111 = dma.done [#allocation5], 16384
    $region69: #{lstm_forward.1} parent=1 // pred_fallthru
      _
    // Predicated region
    $region70: #{lstm_forward.1} parent=1 // pred_check
      _
    $region71: #{lstm_forward.1} parent=1 // pred_check_branch
      %113 = sbr.rel (0) target = $region73
    $region72: #{lstm_forward.1} parent=1 // pred_region
      %114 = dma.done [#allocation7], 32768
    $region73: #{lstm_forward.1} parent=1 // pred_fallthru
      _
    // Predicated region
    $region74: #{lstm_forward.1} parent=1 // pred_check
      _
    $region75: #{lstm_forward.1} parent=1 // pred_check_branch
      %116 = sbr.rel (0) target = $region77
    $region76: #{lstm_forward.1} parent=1 // pred_region
      %117 = dma.done [#allocation7], 32768
    $region77: #{lstm_forward.1} parent=1 // pred_fallthru
      _
    // Predicated region
    $region78: #{lstm_forward.1} parent=1 // pred_check
      _
    $region79: #{lstm_forward.1} parent=1 // pred_check_branch
      %119 = sbr.rel (0) target = $region81
    $region80: #{lstm_forward.1} parent=1 // pred_region
      %120 = dma.done [#allocation10], 32768
    $region81: #{lstm_forward.1} parent=1 // pred_fallthru
      _
    // Predicated region
    $region82: #{lstm_forward.1} parent=1 // pred_check
      _
    $region83: #{lstm_forward.1} parent=1 // pred_check_branch
      %122 = sbr.rel (0) target = $region85
    $region84: #{lstm_forward.1} parent=1 // pred_region
      %123 = dma.done [#allocation10], 4096
    $region85: #{lstm_forward.1} parent=1 // pred_fallthru
      _
    %v124 = vld [vmem:[%s0] sm:$0xff]
    %v125 = vld [vmem:[%s0 + $0x8] sm:$0xff]
    %v126 = vld [vmem:[%s0 + $0x10] sm:$0xff]
    %v127 = vld [vmem:[%s0 + $0x18] sm:$0xff]
    %v128 = vld [vmem:[%s0 + $0x20] sm:$0xff]
    %v129 = vld [vmem:[%s0 + $0x28] sm:$0xff]
    %v130 = vld [vmem:[%s0 + $0x30] sm:$0xff]
    %v131 = vld [vmem:[%s0 + $0x38] sm:$0xff]
    %v132 = vlaneseq
    %v133 = vand.u32 %v132, 127
    %134 = vset.pattern.permute.xlu0 0
    %135 = vperm.xlu0 %134, %v124
    %v136 = vpop.permute.xlu0 %135
    %137 = vset.pattern.permute.xlu0 0
    %138 = vperm.xlu0 %137, %v125
    %v139 = vpop.permute.xlu0 %138
    %140 = vset.pattern.permute.xlu0 0
    %141 = vperm.xlu0 %140, %v126
    %v142 = vpop.permute.xlu0 %141
    %143 = vset.pattern.permute.xlu0 0
    %144 = vperm.xlu0 %143, %v127
    %v145 = vpop.permute.xlu0 %144
    %146 = vset.pattern.permute.xlu0 0
    %147 = vperm.xlu0 %146, %v128
    %v148 = vpop.permute.xlu0 %147
    %149 = vset.pattern.permute.xlu0 0
    %150 = vperm.xlu0 %149, %v129
    %v151 = vpop.permute.xlu0 %150
    %152 = vset.pattern.permute.xlu0 0
    %153 = vperm.xlu0 %152, %v130
    %v154 = vpop.permute.xlu0 %153
    %155 = vset.pattern.permute.xlu0 0
    %156 = vperm.xlu0 %155, %v131
    %v157 = vpop.permute.xlu0 %156
    %vm158 = vcmp.eq.s32.totalorder %v133, %v136
    %vm159 = vcmp.eq.s32.totalorder %v133, %v139
    %vm160 = vcmp.eq.s32.totalorder %v133, %v142
    %vm161 = vcmp.eq.s32.totalorder %v133, %v145
    %vm162 = vcmp.eq.s32.totalorder %v133, %v148
    %vm163 = vcmp.eq.s32.totalorder %v133, %v151
    %vm164 = vcmp.eq.s32.totalorder %v133, %v154
    %vm165 = vcmp.eq.s32.totalorder %v133, %v157
    %v166 = vsel %vm158, 1, 0
    %v167 = vsel %vm159, 1, 0
    %v168 = vsel %vm160, 1, 0
    %v169 = vsel %vm161, 1, 0
    %v170 = vsel %vm162, 1, 0
    %v171 = vsel %vm163, 1, 0
    %v172 = vsel %vm164, 1, 0
    %v173 = vsel %vm165, 1, 0
    %v174 = vcvt.s32.f32 %v166
    %v175 = vcvt.s32.f32 %v167
    %v176 = vcvt.s32.f32 %v168
    %v177 = vcvt.s32.f32 %v169
    %v178 = vcvt.s32.f32 %v170
    %v179 = vcvt.s32.f32 %v171
    %v180 = vcvt.s32.f32 %v172
    %v181 = vcvt.s32.f32 %v173
    %v182 = vld [vmem:[%s1] sm:$0xff]
    %v183 = vld [vmem:[%s1 + $0x8] sm:$0xff]
    %v184 = vld [vmem:[%s1 + $0x10] sm:$0xff]
    %v185 = vld [vmem:[%s1 + $0x18] sm:$0xff]
    %v186 = vld [vmem:[%s1 + $0x20] sm:$0xff]
    %v187 = vld [vmem:[%s1 + $0x28] sm:$0xff]
    %v188 = vld [vmem:[%s1 + $0x30] sm:$0xff]
    %v189 = vld [vmem:[%s1 + $0x38] sm:$0xff]
    %v190 = vld [vmem:[%s1 + $0x40] sm:$0xff]
    %v191 = vld [vmem:[%s1 + $0x48] sm:$0xff]
    %v192 = vld [vmem:[%s1 + $0x50] sm:$0xff]
    %v193 = vld [vmem:[%s1 + $0x58] sm:$0xff]
    %v194 = vld [vmem:[%s1 + $0x60] sm:$0xff]
    %v195 = vld [vmem:[%s1 + $0x68] sm:$0xff]
    %v196 = vld [vmem:[%s1 + $0x70] sm:$0xff]
    %v197 = vld [vmem:[%s1 + $0x78] sm:$0xff]
    %198 = vmatprep.subr.mxu0 0.0
    %199 = vmatpush1.msra.mxu0 %v182
    %200 = vmatprep.subr.mxu0 0.0
    %201 = vmatpush1.msra.mxu0 %v183
    %202 = vmatprep.subr.mxu0 0.0
    %203 = vmatpush1.msra.mxu0 %v184
    %204 = vmatprep.subr.mxu0 0.0
    %205 = vmatpush1.msra.mxu0 %v185
    %206 = vmatprep.subr.mxu0 0.0
    %207 = vmatpush1.msra.mxu0 %v186
    %208 = vmatprep.subr.mxu0 0.0
    %209 = vmatpush1.msra.mxu0 %v187
    %210 = vmatprep.subr.mxu0 0.0
    %211 = vmatpush1.msra.mxu0 %v188
    %212 = vmatprep.subr.mxu0 0.0
    %213 = vmatpush1.msra.mxu0 %v189
    %214 = vmatprep.subr.mxu0 0.0
    %215 = vmatpush1.msra.mxu0 %v190
    %216 = vmatprep.subr.mxu0 0.0
    %217 = vmatpush1.msra.mxu0 %v191
    %218 = vmatprep.subr.mxu0 0.0
    %219 = vmatpush1.msra.mxu0 %v192
    %220 = vmatprep.subr.mxu0 0.0
    %221 = vmatpush1.msra.mxu0 %v193
    %222 = vmatprep.subr.mxu0 0.0
    %223 = vmatpush1.msra.mxu0 %v194
    %224 = vmatprep.subr.mxu0 0.0
    %225 = vmatpush1.msra.mxu0 %v195
    %226 = vmatprep.subr.mxu0 0.0
    %227 = vmatpush1.msra.mxu0 %v196
    %228 = vmatprep.subr.mxu0 0.0
    %229 = vmatpush1.msra.mxu0 %v197
    %230 = vmatprep.subr.mxu0 0.0
    %231 = vmatpush1.msra.mxu0 0.0
    %232 = vmatprep.subr.mxu0 0.0
    %233 = vmatpush1.msra.mxu0 0.0
    %234 = vmatprep.subr.mxu0 0.0
    %235 = vmatpush1.msra.mxu0 0.0
    %236 = vmatprep.subr.mxu0 0.0
    %237 = vmatpush1.msra.mxu0 0.0
    %238 = vmatprep.subr.mxu0 0.0
    %239 = vmatpush1.msra.mxu0 0.0
    %240 = vmatprep.subr.mxu0 0.0
    %241 = vmatpush1.msra.mxu0 0.0
    %242 = vmatprep.subr.mxu0 0.0
    %243 = vmatpush1.msra.mxu0 0.0
    %244 = vmatprep.subr.mxu0 0.0
    %245 = vmatpush1.msra.mxu0 0.0
    %246 = vmatprep.subr.mxu0 0.0
    %247 = vmatpush1.msra.mxu0 0.0
    %248 = vmatprep.subr.mxu0 0.0
    %249 = vmatpush1.msra.mxu0 0.0
    %250 = vmatprep.subr.mxu0 0.0
    %251 = vmatpush1.msra.mxu0 0.0
    %252 = vmatprep.subr.mxu0 0.0
    %253 = vmatpush1.msra.mxu0 0.0
    %254 = vmatprep.subr.mxu0 0.0
    %255 = vmatpush1.msra.mxu0 0.0
    %256 = vmatprep.subr.mxu0 0.0
    %257 = vmatpush1.msra.mxu0 0.0
    %258 = vmatprep.subr.mxu0 0.0
    %259 = vmatpush1.msra.mxu0 0.0
    %260 = vmatprep.subr.mxu0 0.0
    %261 = vmatpush1.msra.mxu0 0.0
    %262 = vmatprep.mubr.f32.mxu0 0.0
    %263 = vmatmul.mubr.f32.gmra.mrb[0].mxu0 %v174
    %v264 = vpop.f32.mrb[0].mxu0
    %v265 = vadd.f32 0.0, %v264
    %v266 = vpop.f32.mrb[0].mxu0
    %267 = vmatprep.mubr.f32.mxu0 0.0
    %268 = vmatmul.mubr.f32.gmra.mrb[0].mxu0 %v175
    %v269 = vpop.f32.mrb[0].mxu0
    %v270 = vadd.f32 0.0, %v269
    %v271 = vpop.f32.mrb[0].mxu0
    %272 = vmatprep.mubr.f32.mxu0 0.0
    %273 = vmatmul.mubr.f32.gmra.mrb[0].mxu0 %v176
    %v274 = vpop.f32.mrb[0].mxu0
    %v275 = vadd.f32 0.0, %v274
    %v276 = vpop.f32.mrb[0].mxu0
    %277 = vmatprep.mubr.f32.mxu0 0.0
    %278 = vmatmul.mubr.f32.gmra.mrb[0].mxu0 %v177
    %v279 = vpop.f32.mrb[0].mxu0
    %v280 = vadd.f32 0.0, %v279
    %v281 = vpop.f32.mrb[0].mxu0
    %282 = vmatprep.mubr.f32.mxu0 0.0
    %283 = vmatmul.mubr.f32.gmra.mrb[0].mxu0 %v178
    %v284 = vpop.f32.mrb[0].mxu0
    %v285 = vadd.f32 0.0, %v284
    %v286 = vpop.f32.mrb[0].mxu0
    %287 = vmatprep.mubr.f32.mxu0 0.0
    %288 = vmatmul.mubr.f32.gmra.mrb[0].mxu0 %v179
    %v289 = vpop.f32.mrb[0].mxu0
    %v290 = vadd.f32 0.0, %v289
    %v291 = vpop.f32.mrb[0].mxu0
    %292 = vmatprep.mubr.f32.mxu0 0.0
    %293 = vmatmul.mubr.f32.gmra.mrb[0].mxu0 %v180
    %v294 = vpop.f32.mrb[0].mxu0
    %v295 = vadd.f32 0.0, %v294
    %v296 = vpop.f32.mrb[0].mxu0
    %297 = vmatprep.mubr.f32.mxu0 0.0
    %298 = vmatmul.mubr.f32.gmra.mrb[0].mxu0 %v181
    %v299 = vpop.f32.mrb[0].mxu0
    %v300 = vadd.f32 0.0, %v299
    %v301 = vpop.f32.mrb[0].mxu0
    %302 = vdwg.mxu0
    %v303 = vld [vmem:[%s2] sm:$0x1]
    %v304 = vld [vmem:[%s3] sm:$0x1]
    %305 = vadd.xlane.f32.xlu0 %v265
    %v306 = vpop.xlane.xlu0 %305
    %307 = vadd.xlane.f32.xlu0 %v270
    %v308 = vpop.xlane.xlu0 %307
    %309 = vadd.xlane.f32.xlu0 %v275
    %v310 = vpop.xlane.xlu0 %309
    %311 = vadd.xlane.f32.xlu0 %v280
    %v312 = vpop.xlane.xlu0 %311
    %313 = vadd.xlane.f32.xlu0 %v285
    %v314 = vpop.xlane.xlu0 %313
    %315 = vadd.xlane.f32.xlu0 %v290
    %v316 = vpop.xlane.xlu0 %315
    %317 = vadd.xlane.f32.xlu0 %v295
    %v318 = vpop.xlane.xlu0 %317
    %319 = vadd.xlane.f32.xlu0 %v300
    %v320 = vpop.xlane.xlu0 %319
    %v321 = vrcp.pop 128.0
    %v322 = vmul.f32 %v306, %v321
    %v323 = vmul.f32 %v308, %v321
    %v324 = vmul.f32 %v310, %v321
    %v325 = vmul.f32 %v312, %v321
    %v326 = vmul.f32 %v314, %v321
    %v327 = vmul.f32 %v316, %v321
    %v328 = vmul.f32 %v318, %v321
    %v329 = vmul.f32 %v320, %v321
    %v330 = vsub.f32 %v265, %v322
    %v331 = vsub.f32 %v270, %v323
    %v332 = vsub.f32 %v275, %v324
    %v333 = vsub.f32 %v280, %v325
    %v334 = vsub.f32 %v285, %v326
    %v335 = vsub.f32 %v290, %v327
    %v336 = vsub.f32 %v295, %v328
    %v337 = vsub.f32 %v300, %v329
    %v338 = vmul.f32 %v330, %v330
    %v339 = vmul.f32 %v331, %v331
    %v340 = vmul.f32 %v332, %v332
    %v341 = vmul.f32 %v333, %v333
    %v342 = vmul.f32 %v334, %v334
    %v343 = vmul.f32 %v335, %v335
    %v344 = vmul.f32 %v336, %v336
    %v345 = vmul.f32 %v337, %v337
    %346 = vadd.xlane.f32.xlu0 %v338
    %v347 = vpop.xlane.xlu0 %346
    %348 = vadd.xlane.f32.xlu0 %v339
    %v349 = vpop.xlane.xlu0 %348
    %350 = vadd.xlane.f32.xlu0 %v340
    %v351 = vpop.xlane.xlu0 %350
    %352 = vadd.xlane.f32.xlu0 %v341
    %v353 = vpop.xlane.xlu0 %352
    %354 = vadd.xlane.f32.xlu0 %v342
    %v355 = vpop.xlane.xlu0 %354
    %356 = vadd.xlane.f32.xlu0 %v343
    %v357 = vpop.xlane.xlu0 %356
    %358 = vadd.xlane.f32.xlu0 %v344
    %v359 = vpop.xlane.xlu0 %358
    %360 = vadd.xlane.f32.xlu0 %v345
    %v361 = vpop.xlane.xlu0 %360
    %v362 = vmul.f32 %v347, %v321
    %v363 = vmul.f32 %v349, %v321
    %v364 = vmul.f32 %v351, %v321
    %v365 = vmul.f32 %v353, %v321
    %v366 = vmul.f32 %v355, %v321
    %v367 = vmul.f32 %v357, %v321
    %v368 = vmul.f32 %v359, %v321
    %v369 = vmul.f32 %v361, %v321
    %v370 = vadd.f32 %v362, 0.001
    %v371 = vadd.f32 %v363, 0.001
    %v372 = vadd.f32 %v364, 0.001
    %v373 = vadd.f32 %v365, 0.001
    %v374 = vadd.f32 %v366, 0.001
    %v375 = vadd.f32 %v367, 0.001
    %v376 = vadd.f32 %v368, 0.001
    %v377 = vadd.f32 %v369, 0.001
    %v378 = vrsqrt.pop %v370
    %v379 = vrsqrt.pop %v371
    %v380 = vrsqrt.pop %v372
    %v381 = vrsqrt.pop %v373
    %v382 = vrsqrt.pop %v374
    %v383 = vrsqrt.pop %v375
    %v384 = vrsqrt.pop %v376
    %v385 = vrsqrt.pop %v377
    %v386 = vmul.f32 %v330, %v378
    %v387 = vmul.f32 %v331, %v379
    %v388 = vmul.f32 %v332, %v380
    %v389 = vmul.f32 %v333, %v381
    %v390 = vmul.f32 %v334, %v382
    %v391 = vmul.f32 %v335, %v383
    %v392 = vmul.f32 %v336, %v384
    %v393 = vmul.f32 %v337, %v385
    %v395 = vlaneseq
    %v396 = vshrl.u32 %v395, 7
    %v397 = vsub.s32 0, %v396
    %v398 = vrot.slane %v303, %v397
    %v400 = vmul.f32 %v386, %v398
    %v401 = vmul.f32 %v387, %v398
    %v402 = vmul.f32 %v388, %v398
    %v403 = vmul.f32 %v389, %v398
    %v404 = vmul.f32 %v390, %v398
    %v405 = vmul.f32 %v391, %v398
    %v406 = vmul.f32 %v392, %v398
    %v407 = vmul.f32 %v393, %v398
    %v409 = vlaneseq
    %v410 = vshrl.u32 %v409, 7
    %v411 = vsub.s32 0, %v410
    %v412 = vrot.slane %v304, %v411
    %v414 = vadd.f32 %v400, %v412
    %v415 = vadd.f32 %v401, %v412
    %v416 = vadd.f32 %v402, %v412
    %v417 = vadd.f32 %v403, %v412
    %v418 = vadd.f32 %v404, %v412
    %v419 = vadd.f32 %v405, %v412
    %v420 = vadd.f32 %v406, %v412
    %v421 = vadd.f32 %v407, %v412
    %v422 = vld [vmem:[#allocation4] sm:$0xff]
    %v423 = vld [vmem:[#allocation4 + $0x8] sm:$0xff]
    %v424 = vld [vmem:[#allocation4 + $0x10] sm:$0xff]
    %v425 = vld [vmem:[#allocation4 + $0x18] sm:$0xff]
    %v426 = vld [vmem:[#allocation4 + $0x20] sm:$0xff]
    %v427 = vld [vmem:[#allocation4 + $0x28] sm:$0xff]
    %v428 = vld [vmem:[#allocation4 + $0x30] sm:$0xff]
    %v429 = vld [vmem:[#allocation4 + $0x38] sm:$0xff]
    %v430 = vld [vmem:[#allocation4 + $0x40] sm:$0xff]
    %v431 = vld [vmem:[#allocation4 + $0x48] sm:$0xff]
    %v432 = vld [vmem:[#allocation4 + $0x50] sm:$0xff]
    %v433 = vld [vmem:[#allocation4 + $0x58] sm:$0xff]
    %v434 = vld [vmem:[#allocation4 + $0x60] sm:$0xff]
    %v435 = vld [vmem:[#allocation4 + $0x68] sm:$0xff]
    %v436 = vld [vmem:[#allocation4 + $0x70] sm:$0xff]
    %v437 = vld [vmem:[#allocation4 + $0x78] sm:$0xff]
    %v438 = vld [vmem:[#allocation4 + $0x80] sm:$0xff]
    %v439 = vld [vmem:[#allocation4 + $0x88] sm:$0xff]
    %v440 = vld [vmem:[#allocation4 + $0x90] sm:$0xff]
    %v441 = vld [vmem:[#allocation4 + $0x98] sm:$0xff]
    %v442 = vld [vmem:[#allocation4 + $0xa0] sm:$0xff]
    %v443 = vld [vmem:[#allocation4 + $0xa8] sm:$0xff]
    %v444 = vld [vmem:[#allocation4 + $0xb0] sm:$0xff]
    %v445 = vld [vmem:[#allocation4 + $0xb8] sm:$0xff]
    %v446 = vld [vmem:[#allocation4 + $0xc0] sm:$0xff]
    %v447 = vld [vmem:[#allocation4 + $0xc8] sm:$0xff]
    %v448 = vld [vmem:[#allocation4 + $0xd0] sm:$0xff]
    %v449 = vld [vmem:[#allocation4 + $0xd8] sm:$0xff]
    %v450 = vld [vmem:[#allocation4 + $0xe0] sm:$0xff]
    %v451 = vld [vmem:[#allocation4 + $0xe8] sm:$0xff]
    %v452 = vld [vmem:[#allocation4 + $0xf0] sm:$0xff]
    %v453 = vld [vmem:[#allocation4 + $0xf8] sm:$0xff]
    %v454 = vld [vmem:[#allocation4 + $0x100] sm:$0xff]
    %v455 = vld [vmem:[#allocation4 + $0x108] sm:$0xff]
    %v456 = vld [vmem:[#allocation4 + $0x110] sm:$0xff]
    %v457 = vld [vmem:[#allocation4 + $0x118] sm:$0xff]
    %v458 = vld [vmem:[#allocation4 + $0x120] sm:$0xff]
    %v459 = vld [vmem:[#allocation4 + $0x128] sm:$0xff]
    %v460 = vld [vmem:[#allocation4 + $0x130] sm:$0xff]
    %v461 = vld [vmem:[#allocation4 + $0x138] sm:$0xff]
    %v462 = vld [vmem:[#allocation4 + $0x140] sm:$0xff]
    %v463 = vld [vmem:[#allocation4 + $0x148] sm:$0xff]
    %v464 = vld [vmem:[#allocation4 + $0x150] sm:$0xff]
    %v465 = vld [vmem:[#allocation4 + $0x158] sm:$0xff]
    %v466 = vld [vmem:[#allocation4 + $0x160] sm:$0xff]
    %v467 = vld [vmem:[#allocation4 + $0x168] sm:$0xff]
    %v468 = vld [vmem:[#allocation4 + $0x170] sm:$0xff]
    %v469 = vld [vmem:[#allocation4 + $0x178] sm:$0xff]
    %v470 = vld [vmem:[#allocation4 + $0x180] sm:$0xff]
    %v471 = vld [vmem:[#allocation4 + $0x188] sm:$0xff]
    %v472 = vld [vmem:[#allocation4 + $0x190] sm:$0xff]
    %v473 = vld [vmem:[#allocation4 + $0x198] sm:$0xff]
    %v474 = vld [vmem:[#allocation4 + $0x1a0] sm:$0xff]
    %v475 = vld [vmem:[#allocation4 + $0x1a8] sm:$0xff]
    %v476 = vld [vmem:[#allocation4 + $0x1b0] sm:$0xff]
    %v477 = vld [vmem:[#allocation4 + $0x1b8] sm:$0xff]
    %v478 = vld [vmem:[#allocation4 + $0x1c0] sm:$0xff]
    %v479 = vld [vmem:[#allocation4 + $0x1c8] sm:$0xff]
    %v480 = vld [vmem:[#allocation4 + $0x1d0] sm:$0xff]
    %v481 = vld [vmem:[#allocation4 + $0x1d8] sm:$0xff]
    %v482 = vld [vmem:[#allocation4 + $0x1e0] sm:$0xff]
    %v483 = vld [vmem:[#allocation4 + $0x1e8] sm:$0xff]
    %v484 = vld [vmem:[#allocation4 + $0x1f0] sm:$0xff]
    %v485 = vld [vmem:[#allocation4 + $0x1f8] sm:$0xff]
    %v486 = vld [vmem:[#allocation4 + $0x200] sm:$0xff]
    %v487 = vld [vmem:[#allocation4 + $0x208] sm:$0xff]
    %v488 = vld [vmem:[#allocation4 + $0x210] sm:$0xff]
    %v489 = vld [vmem:[#allocation4 + $0x218] sm:$0xff]
    %v490 = vld [vmem:[#allocation4 + $0x220] sm:$0xff]
    %v491 = vld [vmem:[#allocation4 + $0x228] sm:$0xff]
    %v492 = vld [vmem:[#allocation4 + $0x230] sm:$0xff]
    %v493 = vld [vmem:[#allocation4 + $0x238] sm:$0xff]
    %v494 = vld [vmem:[#allocation4 + $0x240] sm:$0xff]
    %v495 = vld [vmem:[#allocation4 + $0x248] sm:$0xff]
    %v496 = vld [vmem:[#allocation4 + $0x250] sm:$0xff]
    %v497 = vld [vmem:[#allocation4 + $0x258] sm:$0xff]
    %v498 = vld [vmem:[#allocation4 + $0x260] sm:$0xff]
    %v499 = vld [vmem:[#allocation4 + $0x268] sm:$0xff]
    %v500 = vld [vmem:[#allocation4 + $0x270] sm:$0xff]
    %v501 = vld [vmem:[#allocation4 + $0x278] sm:$0xff]
    %v502 = vld [vmem:[#allocation4 + $0x280] sm:$0xff]
    %v503 = vld [vmem:[#allocation4 + $0x288] sm:$0xff]
    %v504 = vld [vmem:[#allocation4 + $0x290] sm:$0xff]
    %v505 = vld [vmem:[#allocation4 + $0x298] sm:$0xff]
    %v506 = vld [vmem:[#allocation4 + $0x2a0] sm:$0xff]
    %v507 = vld [vmem:[#allocation4 + $0x2a8] sm:$0xff]
    %v508 = vld [vmem:[#allocation4 + $0x2b0] sm:$0xff]
    %v509 = vld [vmem:[#allocation4 + $0x2b8] sm:$0xff]
    %v510 = vld [vmem:[#allocation4 + $0x2c0] sm:$0xff]
    %v511 = vld [vmem:[#allocation4 + $0x2c8] sm:$0xff]
    %v512 = vld [vmem:[#allocation4 + $0x2d0] sm:$0xff]
    %v513 = vld [vmem:[#allocation4 + $0x2d8] sm:$0xff]
    %v514 = vld [vmem:[#allocation4 + $0x2e0] sm:$0xff]
    %v515 = vld [vmem:[#allocation4 + $0x2e8] sm:$0xff]
    %v516 = vld [vmem:[#allocation4 + $0x2f0] sm:$0xff]
    %v517 = vld [vmem:[#allocation4 + $0x2f8] sm:$0xff]
    %v518 = vld [vmem:[#allocation4 + $0x300] sm:$0xff]
    %v519 = vld [vmem:[#allocation4 + $0x308] sm:$0xff]
    %v520 = vld [vmem:[#allocation4 + $0x310] sm:$0xff]
    %v521 = vld [vmem:[#allocation4 + $0x318] sm:$0xff]
    %v522 = vld [vmem:[#allocation4 + $0x320] sm:$0xff]
    %v523 = vld [vmem:[#allocation4 + $0x328] sm:$0xff]
    %v524 = vld [vmem:[#allocation4 + $0x330] sm:$0xff]
    %v525 = vld [vmem:[#allocation4 + $0x338] sm:$0xff]
    %v526 = vld [vmem:[#allocation4 + $0x340] sm:$0xff]
    %v527 = vld [vmem:[#allocation4 + $0x348] sm:$0xff]
    %v528 = vld [vmem:[#allocation4 + $0x350] sm:$0xff]
    %v529 = vld [vmem:[#allocation4 + $0x358] sm:$0xff]
    %v530 = vld [vmem:[#allocation4 + $0x360] sm:$0xff]
    %v531 = vld [vmem:[#allocation4 + $0x368] sm:$0xff]
    %v532 = vld [vmem:[#allocation4 + $0x370] sm:$0xff]
    %v533 = vld [vmem:[#allocation4 + $0x378] sm:$0xff]
    %v534 = vld [vmem:[#allocation4 + $0x380] sm:$0xff]
    %v535 = vld [vmem:[#allocation4 + $0x388] sm:$0xff]
    %v536 = vld [vmem:[#allocation4 + $0x390] sm:$0xff]
    %v537 = vld [vmem:[#allocation4 + $0x398] sm:$0xff]
    %v538 = vld [vmem:[#allocation4 + $0x3a0] sm:$0xff]
    %v539 = vld [vmem:[#allocation4 + $0x3a8] sm:$0xff]
    %v540 = vld [vmem:[#allocation4 + $0x3b0] sm:$0xff]
    %v541 = vld [vmem:[#allocation4 + $0x3b8] sm:$0xff]
    %v542 = vld [vmem:[#allocation4 + $0x3c0] sm:$0xff]
    %v543 = vld [vmem:[#allocation4 + $0x3c8] sm:$0xff]
    %v544 = vld [vmem:[#allocation4 + $0x3d0] sm:$0xff]
    %v545 = vld [vmem:[#allocation4 + $0x3d8] sm:$0xff]
    %v546 = vld [vmem:[#allocation4 + $0x3e0] sm:$0xff]
    %v547 = vld [vmem:[#allocation4 + $0x3e8] sm:$0xff]
    %v548 = vld [vmem:[#allocation4 + $0x3f0] sm:$0xff]
    %v549 = vld [vmem:[#allocation4 + $0x3f8] sm:$0xff]
    %v550 = vld [vmem:[%s6] sm:$0xff]
    %v552 = vlaneseq
    %v553 = vshrl.u32 %v552, 7
    %v554 = vsub.s32 0, %v553
    %v555 = vrot.slane %v550, %v554
    %v556 = vlaneseq
    %v557 = vshrl.u32 %v556, 7
    %v558 = vsub.s32 1, %v557
    %v559 = vrot.slane %v550, %v558
    %v560 = vlaneseq
    %v561 = vshrl.u32 %v560, 7
    %v562 = vsub.s32 2, %v561
    %v563 = vrot.slane %v550, %v562
    %v564 = vlaneseq
    %v565 = vshrl.u32 %v564, 7
    %v566 = vsub.s32 3, %v565
    %v567 = vrot.slane %v550, %v566
    %v568 = vlaneseq
    %v569 = vshrl.u32 %v568, 7
    %v570 = vsub.s32 4, %v569
    %v571 = vrot.slane %v550, %v570
    %v572 = vlaneseq
    %v573 = vshrl.u32 %v572, 7
    %v574 = vsub.s32 5, %v573
    %v575 = vrot.slane %v550, %v574
    %v576 = vlaneseq
    %v577 = vshrl.u32 %v576, 7
    %v578 = vsub.s32 6, %v577
    %v579 = vrot.slane %v550, %v578
    %v580 = vlaneseq
    %v581 = vshrl.u32 %v580, 7
    %v582 = vsub.s32 7, %v581
    %v583 = vrot.slane %v550, %v582
    %592 = vmatprep.subr.mxu0 %v423
    %593 = vmatpush1.msra.mxu0 %v422
    %594 = vmatprep.subr.mxu0 %v431
    %595 = vmatpush1.msra.mxu0 %v430
    %596 = vmatprep.subr.mxu0 %v439
    %597 = vmatpush1.msra.mxu0 %v438
    %598 = vmatprep.subr.mxu0 %v447
    %599 = vmatpush1.msra.mxu0 %v446
    %600 = vmatprep.subr.mxu0 %v455
    %601 = vmatpush1.msra.mxu0 %v454
    %602 = vmatprep.subr.mxu0 %v463
    %603 = vmatpush1.msra.mxu0 %v462
    %604 = vmatprep.subr.mxu0 %v471
    %605 = vmatpush1.msra.mxu0 %v470
    %606 = vmatprep.subr.mxu0 %v479
    %607 = vmatpush1.msra.mxu0 %v478
    %608 = vmatprep.subr.mxu0 %v487
    %609 = vmatpush1.msra.mxu0 %v486
    %610 = vmatprep.subr.mxu0 %v495
    %611 = vmatpush1.msra.mxu0 %v494
    %612 = vmatprep.subr.mxu0 %v503
    %613 = vmatpush1.msra.mxu0 %v502
    %614 = vmatprep.subr.mxu0 %v511
    %615 = vmatpush1.msra.mxu0 %v510
    %616 = vmatprep.subr.mxu0 %v519
    %617 = vmatpush1.msra.mxu0 %v518
    %618 = vmatprep.subr.mxu0 %v527
    %619 = vmatpush1.msra.mxu0 %v526
    %620 = vmatprep.subr.mxu0 %v535
    %621 = vmatpush1.msra.mxu0 %v534
    %622 = vmatprep.subr.mxu0 %v543
    %623 = vmatpush1.msra.mxu0 %v542
    %624 = vmatprep.subr.mxu0 0.0
    %625 = vmatpush1.msra.mxu0 0.0
    %626 = vmatprep.subr.mxu0 0.0
    %627 = vmatpush1.msra.mxu0 0.0
    %628 = vmatprep.subr.mxu0 0.0
    %629 = vmatpush1.msra.mxu0 0.0
    %630 = vmatprep.subr.mxu0 0.0
    %631 = vmatpush1.msra.mxu0 0.0
    %632 = vmatprep.subr.mxu0 0.0
    %633 = vmatpush1.msra.mxu0 0.0
    %634 = vmatprep.subr.mxu0 0.0
    %635 = vmatpush1.msra.mxu0 0.0
    %636 = vmatprep.subr.mxu0 0.0
    %637 = vmatpush1.msra.mxu0 0.0
    %638 = vmatprep.subr.mxu0 0.0
    %639 = vmatpush1.msra.mxu0 0.0
    %640 = vmatprep.subr.mxu0 0.0
    %641 = vmatpush1.msra.mxu0 0.0
    %642 = vmatprep.subr.mxu0 0.0
    %643 = vmatpush1.msra.mxu0 0.0
    %644 = vmatprep.subr.mxu0 0.0
    %645 = vmatpush1.msra.mxu0 0.0
    %646 = vmatprep.subr.mxu0 0.0
    %647 = vmatpush1.msra.mxu0 0.0
    %648 = vmatprep.subr.mxu0 0.0
    %649 = vmatpush1.msra.mxu0 0.0
    %650 = vmatprep.subr.mxu0 0.0
    %651 = vmatpush1.msra.mxu0 0.0
    %652 = vmatprep.subr.mxu0 0.0
    %653 = vmatpush1.msra.mxu0 0.0
    %654 = vmatprep.subr.mxu0 0.0
    %655 = vmatpush1.msra.mxu0 0.0
    %656 = vmatprep.mubr.f32.mxu0 0.0
    %657 = vmatmul.mubr.f32.gmra.mrb[0].mxu0 %v414
    %v658 = vpop.f32.mrb[0].mxu0
    %v659 = vadd.f32 %v555, %v658
    %v660 = vpop.f32.mrb[0].mxu0
    %v661 = vadd.f32 %v559, %v660
    %662 = vmatprep.mubr.f32.mxu0 0.0
    %663 = vmatmul.mubr.f32.gmra.mrb[0].mxu0 %v415
    %v664 = vpop.f32.mrb[0].mxu0
    %v665 = vadd.f32 %v555, %v664
    %v666 = vpop.f32.mrb[0].mxu0
    %v667 = vadd.f32 %v559, %v666
    %668 = vmatprep.mubr.f32.mxu0 0.0
    %669 = vmatmul.mubr.f32.gmra.mrb[0].mxu0 %v416
    %v670 = vpop.f32.mrb[0].mxu0
    %v671 = vadd.f32 %v555, %v670
    %v672 = vpop.f32.mrb[0].mxu0
    %v673 = vadd.f32 %v559, %v672
    %674 = vmatprep.mubr.f32.mxu0 0.0
    %675 = vmatmul.mubr.f32.gmra.mrb[0].mxu0 %v417
    %v676 = vpop.f32.mrb[0].mxu0
    %v677 = vadd.f32 %v555, %v676
    %v678 = vpop.f32.mrb[0].mxu0
    %v679 = vadd.f32 %v559, %v678
    %680 = vmatprep.mubr.f32.mxu0 0.0
    %681 = vmatmul.mubr.f32.gmra.mrb[0].mxu0 %v418
    %v682 = vpop.f32.mrb[0].mxu0
    %v683 = vadd.f32 %v555, %v682
    %v684 = vpop.f32.mrb[0].mxu0
    %v685 = vadd.f32 %v559, %v684
    %686 = vmatprep.mubr.f32.mxu0 0.0
    %687 = vmatmul.mubr.f32.gmra.mrb[0].mxu0 %v419
    %v688 = vpop.f32.mrb[0].mxu0
    %v689 = vadd.f32 %v555, %v688
    %v690 = vpop.f32.mrb[0].mxu0
    %v691 = vadd.f32 %v559, %v690
    %692 = vmatprep.mubr.f32.mxu0 0.0
    %693 = vmatmul.mubr.f32.gmra.mrb[0].mxu0 %v420
    %v694 = vpop.f32.mrb[0].mxu0
    %v695 = vadd.f32 %v555, %v694
    %v696 = vpop.f32.mrb[0].mxu0
    %v697 = vadd.f32 %v559, %v696
    %698 = vmatprep.mubr.f32.mxu0 0.0
    %699 = vmatmul.mubr.f32.gmra.mrb[0].mxu0 %v421
    %v700 = vpop.f32.mrb[0].mxu0
    %v701 = vadd.f32 %v555, %v700
    %v702 = vpop.f32.mrb[0].mxu0
    %v703 = vadd.f32 %v559, %v702
    %704 = vdwg.mxu0
    %705 = vmatprep.subr.mxu0 %v425
    %706 = vmatpush1.msra.mxu0 %v424
    %707 = vmatprep.subr.mxu0 %v433
    %708 = vmatpush1.msra.mxu0 %v432
    %709 = vmatprep.subr.mxu0 %v441
    %710 = vmatpush1.msra.mxu0 %v440
    %711 = vmatprep.subr.mxu0 %v449
    %712 = vmatpush1.msra.mxu0 %v448
    %713 = vmatprep.subr.mxu0 %v457
    %714 = vmatpush1.msra.mxu0 %v456
    %715 = vmatprep.subr.mxu0 %v465
    %716 = vmatpush1.msra.mxu0 %v464
    %717 = vmatprep.subr.mxu0 %v473
    %718 = vmatpush1.msra.mxu0 %v472
    %719 = vmatprep.subr.mxu0 %v481
    %720 = vmatpush1.msra.mxu0 %v480
    %721 = vmatprep.subr.mxu0 %v489
    %722 = vmatpush1.msra.mxu0 %v488
    %723 = vmatprep.subr.mxu0 %v497
    %724 = vmatpush1.msra.mxu0 %v496
    %725 = vmatprep.subr.mxu0 %v505
    %726 = vmatpush1.msra.mxu0 %v504
    %727 = vmatprep.subr.mxu0 %v513
    %728 = vmatpush1.msra.mxu0 %v512
    %729 = vmatprep.subr.mxu0 %v521
    %730 = vmatpush1.msra.mxu0 %v520
    %731 = vmatprep.subr.mxu0 %v529
    %732 = vmatpush1.msra.mxu0 %v528
    %733 = vmatprep.subr.mxu0 %v537
    %734 = vmatpush1.msra.mxu0 %v536
    %735 = vmatprep.subr.mxu0 %v545
    %736 = vmatpush1.msra.mxu0 %v544
    %737 = vmatprep.subr.mxu0 0.0
    %738 = vmatpush1.msra.mxu0 0.0
    %739 = vmatprep.subr.mxu0 0.0
    %740 = vmatpush1.msra.mxu0 0.0
    %741 = vmatprep.subr.mxu0 0.0
    %742 = vmatpush1.msra.mxu0 0.0
    %743 = vmatprep.subr.mxu0 0.0
    %744 = vmatpush1.msra.mxu0 0.0
    %745 = vmatprep.subr.mxu0 0.0
    %746 = vmatpush1.msra.mxu0 0.0
    %747 = vmatprep.subr.mxu0 0.0
    %748 = vmatpush1.msra.mxu0 0.0
    %749 = vmatprep.subr.mxu0 0.0
    %750 = vmatpush1.msra.mxu0 0.0
    %751 = vmatprep.subr.mxu0 0.0
    %752 = vmatpush1.msra.mxu0 0.0
    %753 = vmatprep.subr.mxu0 0.0
    %754 = vmatpush1.msra.mxu0 0.0
    %755 = vmatprep.subr.mxu0 0.0
    %756 = vmatpush1.msra.mxu0 0.0
    %757 = vmatprep.subr.mxu0 0.0
    %758 = vmatpush1.msra.mxu0 0.0
    %759 = vmatprep.subr.mxu0 0.0
    %760 = vmatpush1.msra.mxu0 0.0
    %761 = vmatprep.subr.mxu0 0.0
    %762 = vmatpush1.msra.mxu0 0.0
    %763 = vmatprep.subr.mxu0 0.0
    %764 = vmatpush1.msra.mxu0 0.0
    %765 = vmatprep.subr.mxu0 0.0
    %766 = vmatpush1.msra.mxu0 0.0
    %767 = vmatprep.subr.mxu0 0.0
    %768 = vmatpush1.msra.mxu0 0.0
    %769 = vmatprep.mubr.f32.mxu0 0.0
    %770 = vmatmul.mubr.f32.gmra.mrb[0].mxu0 %v414
    %v771 = vpop.f32.mrb[0].mxu0
    %v772 = vadd.f32 %v563, %v771
    %v773 = vpop.f32.mrb[0].mxu0
    %v774 = vadd.f32 %v567, %v773
    %775 = vmatprep.mubr.f32.mxu0 0.0
    %776 = vmatmul.mubr.f32.gmra.mrb[0].mxu0 %v415
    %v777 = vpop.f32.mrb[0].mxu0
    %v778 = vadd.f32 %v563, %v777
    %v779 = vpop.f32.mrb[0].mxu0
    %v780 = vadd.f32 %v567, %v779
    %781 = vmatprep.mubr.f32.mxu0 0.0
    %782 = vmatmul.mubr.f32.gmra.mrb[0].mxu0 %v416
    %v783 = vpop.f32.mrb[0].mxu0
    %v784 = vadd.f32 %v563, %v783
    %v785 = vpop.f32.mrb[0].mxu0
    %v786 = vadd.f32 %v567, %v785
    %787 = vmatprep.mubr.f32.mxu0 0.0
    %788 = vmatmul.mubr.f32.gmra.mrb[0].mxu0 %v417
    %v789 = vpop.f32.mrb[0].mxu0
    %v790 = vadd.f32 %v563, %v789
    %v791 = vpop.f32.mrb[0].mxu0
    %v792 = vadd.f32 %v567, %v791
    %793 = vmatprep.mubr.f32.mxu0 0.0
    %794 = vmatmul.mubr.f32.gmra.mrb[0].mxu0 %v418
    %v795 = vpop.f32.mrb[0].mxu0
    %v796 = vadd.f32 %v563, %v795
    %v797 = vpop.f32.mrb[0].mxu0
    %v798 = vadd.f32 %v567, %v797
    %799 = vmatprep.mubr.f32.mxu0 0.0
    %800 = vmatmul.mubr.f32.gmra.mrb[0].mxu0 %v419
    %v801 = vpop.f32.mrb[0].mxu0
    %v802 = vadd.f32 %v563, %v801
    %v803 = vpop.f32.mrb[0].mxu0
    %v804 = vadd.f32 %v567, %v803
    %805 = vmatprep.mubr.f32.mxu0 0.0
    %806 = vmatmul.mubr.f32.gmra.mrb[0].mxu0 %v420
    %v807 = vpop.f32.mrb[0].mxu0
    %v808 = vadd.f32 %v563, %v807
    %v809 = vpop.f32.mrb[0].mxu0
    %v810 = vadd.f32 %v567, %v809
    %811 = vmatprep.mubr.f32.mxu0 0.0
    %812 = vmatmul.mubr.f32.gmra.mrb[0].mxu0 %v421
    %v813 = vpop.f32.mrb[0].mxu0
    %v814 = vadd.f32 %v563, %v813
    %v815 = vpop.f32.mrb[0].mxu0
    %v816 = vadd.f32 %v567, %v815
    %817 = vdwg.mxu0
    %818 = vmatprep.subr.mxu0 %v427
    %819 = vmatpush1.msra.mxu0 %v426
    %820 = vmatprep.subr.mxu0 %v435
    %821 = vmatpush1.msra.mxu0 %v434
    %822 = vmatprep.subr.mxu0 %v443
    %823 = vmatpush1.msra.mxu0 %v442
    %824 = vmatprep.subr.mxu0 %v451
    %825 = vmatpush1.msra.mxu0 %v450
    %826 = vmatprep.subr.mxu0 %v459
    %827 = vmatpush1.msra.mxu0 %v458
    %828 = vmatprep.subr.mxu0 %v467
    %829 = vmatpush1.msra.mxu0 %v466
    %830 = vmatprep.subr.mxu0 %v475
    %831 = vmatpush1.msra.mxu0 %v474
    %832 = vmatprep.subr.mxu0 %v483
    %833 = vmatpush1.msra.mxu0 %v482
    %834 = vmatprep.subr.mxu0 %v491
    %835 = vmatpush1.msra.mxu0 %v490
    %836 = vmatprep.subr.mxu0 %v499
    %837 = vmatpush1.msra.mxu0 %v498
    %838 = vmatprep.subr.mxu0 %v507
    %839 = vmatpush1.msra.mxu0 %v506
    %840 = vmatprep.subr.mxu0 %v515
    %841 = vmatpush1.msra.mxu0 %v514
    %842 = vmatprep.subr.mxu0 %v523
    %843 = vmatpush1.msra.mxu0 %v522
    %844 = vmatprep.subr.mxu0 %v531
    %845 = vmatpush1.msra.mxu0 %v530
    %846 = vmatprep.subr.mxu0 %v539
    %847 = vmatpush1.msra.mxu0 %v538
    %848 = vmatprep.subr.mxu0 %v547
    %849 = vmatpush1.msra.mxu0 %v546
    %850 = vmatprep.subr.mxu0 0.0
    %851 = vmatpush1.msra.mxu0 0.0
    %852 = vmatprep.subr.mxu0 0.0
    %853 = vmatpush1.msra.mxu0 0.0
    %854 = vmatprep.subr.mxu0 0.0
    %855 = vmatpush1.msra.mxu0 0.0
    %856 = vmatprep.subr.mxu0 0.0
    %857 = vmatpush1.msra.mxu0 0.0
    %858 = vmatprep.subr.mxu0 0.0
    %859 = vmatpush1.msra.mxu0 0.0
    %860 = vmatprep.subr.mxu0 0.0
    %861 = vmatpush1.msra.mxu0 0.0
    %862 = vmatprep.subr.mxu0 0.0
    %863 = vmatpush1.msra.mxu0 0.0
    %864 = vmatprep.subr.mxu0 0.0
    %865 = vmatpush1.msra.mxu0 0.0
    %866 = vmatprep.subr.mxu0 0.0
    %867 = vmatpush1.msra.mxu0 0.0
    %868 = vmatprep.subr.mxu0 0.0
    %869 = vmatpush1.msra.mxu0 0.0
    %870 = vmatprep.subr.mxu0 0.0
    %871 = vmatpush1.msra.mxu0 0.0
    %872 = vmatprep.subr.mxu0 0.0
    %873 = vmatpush1.msra.mxu0 0.0
    %874 = vmatprep.subr.mxu0 0.0
    %875 = vmatpush1.msra.mxu0 0.0
    %876 = vmatprep.subr.mxu0 0.0
    %877 = vmatpush1.msra.mxu0 0.0
    %878 = vmatprep.subr.mxu0 0.0
    %879 = vmatpush1.msra.mxu0 0.0
    %880 = vmatprep.subr.mxu0 0.0
    %881 = vmatpush1.msra.mxu0 0.0
    %882 = vmatprep.mubr.f32.mxu0 0.0
    %883 = vmatmul.mubr.f32.gmra.mrb[0].mxu0 %v414
    %v884 = vpop.f32.mrb[0].mxu0
    %v885 = vadd.f32 %v571, %v884
    %v886 = vpop.f32.mrb[0].mxu0
    %v887 = vadd.f32 %v575, %v886
    %888 = vmatprep.mubr.f32.mxu0 0.0
    %889 = vmatmul.mubr.f32.gmra.mrb[0].mxu0 %v415
    %v890 = vpop.f32.mrb[0].mxu0
    %v891 = vadd.f32 %v571, %v890
    %v892 = vpop.f32.mrb[0].mxu0
    %v893 = vadd.f32 %v575, %v892
    %894 = vmatprep.mubr.f32.mxu0 0.0
    %895 = vmatmul.mubr.f32.gmra.mrb[0].mxu0 %v416
    %v896 = vpop.f32.mrb[0].mxu0
    %v897 = vadd.f32 %v571, %v896
    %v898 = vpop.f32.mrb[0].mxu0
    %v899 = vadd.f32 %v575, %v898
    %900 = vmatprep.mubr.f32.mxu0 0.0
    %901 = vmatmul.mubr.f32.gmra.mrb[0].mxu0 %v417
    %v902 = vpop.f32.mrb[0].mxu0
    %v903 = vadd.f32 %v571, %v902
    %v904 = vpop.f32.mrb[0].mxu0
    %v905 = vadd.f32 %v575, %v904
    %906 = vmatprep.mubr.f32.mxu0 0.0
    %907 = vmatmul.mubr.f32.gmra.mrb[0].mxu0 %v418
    %v908 = vpop.f32.mrb[0].mxu0
    %v909 = vadd.f32 %v571, %v908
    %v910 = vpop.f32.mrb[0].mxu0
    %v911 = vadd.f32 %v575, %v910
    %912 = vmatprep.mubr.f32.mxu0 0.0
    %913 = vmatmul.mubr.f32.gmra.mrb[0].mxu0 %v419
    %v914 = vpop.f32.mrb[0].mxu0
    %v915 = vadd.f32 %v571, %v914
    %v916 = vpop.f32.mrb[0].mxu0
    %v917 = vadd.f32 %v575, %v916
    %918 = vmatprep.mubr.f32.mxu0 0.0
    %919 = vmatmul.mubr.f32.gmra.mrb[0].mxu0 %v420
    %v920 = vpop.f32.mrb[0].mxu0
    %v921 = vadd.f32 %v571, %v920
    %v922 = vpop.f32.mrb[0].mxu0
    %v923 = vadd.f32 %v575, %v922
    %924 = vmatprep.mubr.f32.mxu0 0.0
    %925 = vmatmul.mubr.f32.gmra.mrb[0].mxu0 %v421
    %v926 = vpop.f32.mrb[0].mxu0
    %v927 = vadd.f32 %v571, %v926
    %v928 = vpop.f32.mrb[0].mxu0
    %v929 = vadd.f32 %v575, %v928
    %930 = vdwg.mxu0
    %931 = vmatprep.subr.mxu0 %v429
    %932 = vmatpush1.msra.mxu0 %v428
    %933 = vmatprep.subr.mxu0 %v437
    %934 = vmatpush1.msra.mxu0 %v436
    %935 = vmatprep.subr.mxu0 %v445
    %936 = vmatpush1.msra.mxu0 %v444
    %937 = vmatprep.subr.mxu0 %v453
    %938 = vmatpush1.msra.mxu0 %v452
    %939 = vmatprep.subr.mxu0 %v461
    %940 = vmatpush1.msra.mxu0 %v460
    %941 = vmatprep.subr.mxu0 %v469
    %942 = vmatpush1.msra.mxu0 %v468
    %943 = vmatprep.subr.mxu0 %v477
    %944 = vmatpush1.msra.mxu0 %v476
    %945 = vmatprep.subr.mxu0 %v485
    %946 = vmatpush1.msra.mxu0 %v484
    %947 = vmatprep.subr.mxu0 %v493
    %948 = vmatpush1.msra.mxu0 %v492
    %949 = vmatprep.subr.mxu0 %v501
    %950 = vmatpush1.msra.mxu0 %v500
    %951 = vmatprep.subr.mxu0 %v509
    %952 = vmatpush1.msra.mxu0 %v508
    %953 = vmatprep.subr.mxu0 %v517
    %954 = vmatpush1.msra.mxu0 %v516
    %955 = vmatprep.subr.mxu0 %v525
    %956 = vmatpush1.msra.mxu0 %v524
    %957 = vmatprep.subr.mxu0 %v533
    %958 = vmatpush1.msra.mxu0 %v532
    %959 = vmatprep.subr.mxu0 %v541
    %960 = vmatpush1.msra.mxu0 %v540
    %961 = vmatprep.subr.mxu0 %v549
    %962 = vmatpush1.msra.mxu0 %v548
    %963 = vmatprep.subr.mxu0 0.0
    %964 = vmatpush1.msra.mxu0 0.0
    %965 = vmatprep.subr.mxu0 0.0
    %966 = vmatpush1.msra.mxu0 0.0
    %967 = vmatprep.subr.mxu0 0.0
    %968 = vmatpush1.msra.mxu0 0.0
    %969 = vmatprep.subr.mxu0 0.0
    %970 = vmatpush1.msra.mxu0 0.0
    %971 = vmatprep.subr.mxu0 0.0
    %972 = vmatpush1.msra.mxu0 0.0
    %973 = vmatprep.subr.mxu0 0.0
    %974 = vmatpush1.msra.mxu0 0.0
    %975 = vmatprep.subr.mxu0 0.0
    %976 = vmatpush1.msra.mxu0 0.0
    %977 = vmatprep.subr.mxu0 0.0
    %978 = vmatpush1.msra.mxu0 0.0
    %979 = vmatprep.subr.mxu0 0.0
    %980 = vmatpush1.msra.mxu0 0.0
    %981 = vmatprep.subr.mxu0 0.0
    %982 = vmatpush1.msra.mxu0 0.0
    %983 = vmatprep.subr.mxu0 0.0
    %984 = vmatpush1.msra.mxu0 0.0
    %985 = vmatprep.subr.mxu0 0.0
    %986 = vmatpush1.msra.mxu0 0.0
    %987 = vmatprep.subr.mxu0 0.0
    %988 = vmatpush1.msra.mxu0 0.0
    %989 = vmatprep.subr.mxu0 0.0
    %990 = vmatpush1.msra.mxu0 0.0
    %991 = vmatprep.subr.mxu0 0.0
    %992 = vmatpush1.msra.mxu0 0.0
    %993 = vmatprep.subr.mxu0 0.0
    %994 = vmatpush1.msra.mxu0 0.0
    %995 = vmatprep.mubr.f32.mxu0 0.0
    %996 = vmatmul.mubr.f32.gmra.mrb[0].mxu0 %v414
    %v997 = vpop.f32.mrb[0].mxu0
    %v998 = vadd.f32 %v579, %v997
    %v999 = vpop.f32.mrb[0].mxu0
    %v1000 = vadd.f32 %v583, %v999
    %1001 = vmatprep.mubr.f32.mxu0 0.0
    %1002 = vmatmul.mubr.f32.gmra.mrb[0].mxu0 %v415
    %v1003 = vpop.f32.mrb[0].mxu0
    %v1004 = vadd.f32 %v579, %v1003
    %v1005 = vpop.f32.mrb[0].mxu0
    %v1006 = vadd.f32 %v583, %v1005
    %1007 = vmatprep.mubr.f32.mxu0 0.0
    %1008 = vmatmul.mubr.f32.gmra.mrb[0].mxu0 %v416
    %v1009 = vpop.f32.mrb[0].mxu0
    %v1010 = vadd.f32 %v579, %v1009
    %v1011 = vpop.f32.mrb[0].mxu0
    %v1012 = vadd.f32 %v583, %v1011
    %1013 = vmatprep.mubr.f32.mxu0 0.0
    %1014 = vmatmul.mubr.f32.gmra.mrb[0].mxu0 %v417
    %v1015 = vpop.f32.mrb[0].mxu0
    %v1016 = vadd.f32 %v579, %v1015
    %v1017 = vpop.f32.mrb[0].mxu0
    %v1018 = vadd.f32 %v583, %v1017
    %1019 = vmatprep.mubr.f32.mxu0 0.0
    %1020 = vmatmul.mubr.f32.gmra.mrb[0].mxu0 %v418
    %v1021 = vpop.f32.mrb[0].mxu0
    %v1022 = vadd.f32 %v579, %v1021
    %v1023 = vpop.f32.mrb[0].mxu0
    %v1024 = vadd.f32 %v583, %v1023
    %1025 = vmatprep.mubr.f32.mxu0 0.0
    %1026 = vmatmul.mubr.f32.gmra.mrb[0].mxu0 %v419
    %v1027 = vpop.f32.mrb[0].mxu0
    %v1028 = vadd.f32 %v579, %v1027
    %v1029 = vpop.f32.mrb[0].mxu0
    %v1030 = vadd.f32 %v583, %v1029
    %1031 = vmatprep.mubr.f32.mxu0 0.0
    %1032 = vmatmul.mubr.f32.gmra.mrb[0].mxu0 %v420
    %v1033 = vpop.f32.mrb[0].mxu0
    %v1034 = vadd.f32 %v579, %v1033
    %v1035 = vpop.f32.mrb[0].mxu0
    %v1036 = vadd.f32 %v583, %v1035
    %1037 = vmatprep.mubr.f32.mxu0 0.0
    %1038 = vmatmul.mubr.f32.gmra.mrb[0].mxu0 %v421
    %v1039 = vpop.f32.mrb[0].mxu0
    %v1040 = vadd.f32 %v579, %v1039
    %v1041 = vpop.f32.mrb[0].mxu0
    %v1042 = vadd.f32 %v583, %v1041
    %1043 = vdwg.mxu0
    %1044 = vst [vmem:[#allocation2] sm:$0xff] %v659
    %1045 = vst [vmem:[#allocation2 + $0x8] sm:$0xff] %v661
    %1046 = vst [vmem:[#allocation2 + $0x10] sm:$0xff] %v772
    %1047 = vst [vmem:[#allocation2 + $0x18] sm:$0xff] %v774
    %1048 = vst [vmem:[#allocation2 + $0x20] sm:$0xff] %v885
    %1049 = vst [vmem:[#allocation2 + $0x28] sm:$0xff] %v887
    %1050 = vst [vmem:[#allocation2 + $0x30] sm:$0xff] %v998
    %1051 = vst [vmem:[#allocation2 + $0x38] sm:$0xff] %v1000
    %1052 = vst [vmem:[#allocation2 + $0x40] sm:$0xff] %v665
    %1053 = vst [vmem:[#allocation2 + $0x48] sm:$0xff] %v667
    %1054 = vst [vmem:[#allocation2 + $0x50] sm:$0xff] %v778
    %1055 = vst [vmem:[#allocation2 + $0x58] sm:$0xff] %v780
    %1056 = vst [vmem:[#allocation2 + $0x60] sm:$0xff] %v891
    %1057 = vst [vmem:[#allocation2 + $0x68] sm:$0xff] %v893
    %1058 = vst [vmem:[#allocation2 + $0x70] sm:$0xff] %v1004
    %1059 = vst [vmem:[#allocation2 + $0x78] sm:$0xff] %v1006
    %1060 = vst [vmem:[#allocation2 + $0x80] sm:$0xff] %v671
    %1061 = vst [vmem:[#allocation2 + $0x88] sm:$0xff] %v673
    %1062 = vst [vmem:[#allocation2 + $0x90] sm:$0xff] %v784
    %1063 = vst [vmem:[#allocation2 + $0x98] sm:$0xff] %v786
    %1064 = vst [vmem:[#allocation2 + $0xa0] sm:$0xff] %v897
    %1065 = vst [vmem:[#allocation2 + $0xa8] sm:$0xff] %v899
    %1066 = vst [vmem:[#allocation2 + $0xb0] sm:$0xff] %v1010
    %1067 = vst [vmem:[#allocation2 + $0xb8] sm:$0xff] %v1012
    %1068 = vst [vmem:[#allocation2 + $0xc0] sm:$0xff] %v677
    %1069 = vst [vmem:[#allocation2 + $0xc8] sm:$0xff] %v679
    %1070 = vst [vmem:[#allocation2 + $0xd0] sm:$0xff] %v790
    %1071 = vst [vmem:[#allocation2 + $0xd8] sm:$0xff] %v792
    %1072 = vst [vmem:[#allocation2 + $0xe0] sm:$0xff] %v903
    %1073 = vst [vmem:[#allocation2 + $0xe8] sm:$0xff] %v905
    %1074 = vst [vmem:[#allocation2 + $0xf0] sm:$0xff] %v1016
    %1075 = vst [vmem:[#allocation2 + $0xf8] sm:$0xff] %v1018
    %1076 = vst [vmem:[#allocation2 + $0x100] sm:$0xff] %v683
    %1077 = vst [vmem:[#allocation2 + $0x108] sm:$0xff] %v685
    %1078 = vst [vmem:[#allocation2 + $0x110] sm:$0xff] %v796
    %1079 = vst [vmem:[#allocation2 + $0x118] sm:$0xff] %v798
    %1080 = vst [vmem:[#allocation2 + $0x120] sm:$0xff] %v909
    %1081 = vst [vmem:[#allocation2 + $0x128] sm:$0xff] %v911
    %1082 = vst [vmem:[#allocation2 + $0x130] sm:$0xff] %v1022
    %1083 = vst [vmem:[#allocation2 + $0x138] sm:$0xff] %v1024
    %1084 = vst [vmem:[#allocation2 + $0x140] sm:$0xff] %v689
    %1085 = vst [vmem:[#allocation2 + $0x148] sm:$0xff] %v691
    %1086 = vst [vmem:[#allocation2 + $0x150] sm:$0xff] %v802
    %1087 = vst [vmem:[#allocation2 + $0x158] sm:$0xff] %v804
    %1088 = vst [vmem:[#allocation2 + $0x160] sm:$0xff] %v915
    %1089 = vst [vmem:[#allocation2 + $0x168] sm:$0xff] %v917
    %1090 = vst [vmem:[#allocation2 + $0x170] sm:$0xff] %v1028
    %1091 = vst [vmem:[#allocation2 + $0x178] sm:$0xff] %v1030
    %1092 = vst [vmem:[#allocation2 + $0x180] sm:$0xff] %v695
    %1093 = vst [vmem:[#allocation2 + $0x188] sm:$0xff] %v697
    %1094 = vst [vmem:[#allocation2 + $0x190] sm:$0xff] %v808
    %1095 = vst [vmem:[#allocation2 + $0x198] sm:$0xff] %v810
    %1096 = vst [vmem:[#allocation2 + $0x1a0] sm:$0xff] %v921
    %1097 = vst [vmem:[#allocation2 + $0x1a8] sm:$0xff] %v923
    %1098 = vst [vmem:[#allocation2 + $0x1b0] sm:$0xff] %v1034
    %1099 = vst [vmem:[#allocation2 + $0x1b8] sm:$0xff] %v1036
    %1100 = vst [vmem:[#allocation2 + $0x1c0] sm:$0xff] %v701
    %1101 = vst [vmem:[#allocation2 + $0x1c8] sm:$0xff] %v703
    %1102 = vst [vmem:[#allocation2 + $0x1d0] sm:$0xff] %v814
    %1103 = vst [vmem:[#allocation2 + $0x1d8] sm:$0xff] %v816
    %1104 = vst [vmem:[#allocation2 + $0x1e0] sm:$0xff] %v927
    %1105 = vst [vmem:[#allocation2 + $0x1e8] sm:$0xff] %v929
    %1106 = vst [vmem:[#allocation2 + $0x1f0] sm:$0xff] %v1040
    %1107 = vst [vmem:[#allocation2 + $0x1f8] sm:$0xff] %v1042
    %v1108 = vld [vmem:[#allocation6] sm:$0xff]
    %v1109 = vld [vmem:[#allocation6 + $0x8] sm:$0xff]
    %v1110 = vld [vmem:[#allocation6 + $0x10] sm:$0xff]
    %v1111 = vld [vmem:[#allocation6 + $0x18] sm:$0xff]
    %v1112 = vld [vmem:[#allocation6 + $0x20] sm:$0xff]
    %v1113 = vld [vmem:[#allocation6 + $0x28] sm:$0xff]
    %v1114 = vld [vmem:[#allocation6 + $0x30] sm:$0xff]
    %v1115 = vld [vmem:[#allocation6 + $0x38] sm:$0xff]
    %v1116 = vld [vmem:[#allocation6 + $0x40] sm:$0xff]
    %v1117 = vld [vmem:[#allocation6 + $0x48] sm:$0xff]
    %v1118 = vld [vmem:[#allocation6 + $0x50] sm:$0xff]
    %v1119 = vld [vmem:[#allocation6 + $0x58] sm:$0xff]
    %v1120 = vld [vmem:[#allocation6 + $0x60] sm:$0xff]
    %v1121 = vld [vmem:[#allocation6 + $0x68] sm:$0xff]
    %v1122 = vld [vmem:[#allocation6 + $0x70] sm:$0xff]
    %v1123 = vld [vmem:[#allocation6 + $0x78] sm:$0xff]
    %v1124 = vld [vmem:[#allocation6 + $0x80] sm:$0xff]
    %v1125 = vld [vmem:[#allocation6 + $0x88] sm:$0xff]
    %v1126 = vld [vmem:[#allocation6 + $0x90] sm:$0xff]
    %v1127 = vld [vmem:[#allocation6 + $0x98] sm:$0xff]
    %v1128 = vld [vmem:[#allocation6 + $0xa0] sm:$0xff]
    %v1129 = vld [vmem:[#allocation6 + $0xa8] sm:$0xff]
    %v1130 = vld [vmem:[#allocation6 + $0xb0] sm:$0xff]
    %v1131 = vld [vmem:[#allocation6 + $0xb8] sm:$0xff]
    %v1132 = vld [vmem:[#allocation6 + $0xc0] sm:$0xff]
    %v1133 = vld [vmem:[#allocation6 + $0xc8] sm:$0xff]
    %v1134 = vld [vmem:[#allocation6 + $0xd0] sm:$0xff]
    %v1135 = vld [vmem:[#allocation6 + $0xd8] sm:$0xff]
    %v1136 = vld [vmem:[#allocation6 + $0xe0] sm:$0xff]
    %v1137 = vld [vmem:[#allocation6 + $0xe8] sm:$0xff]
    %v1138 = vld [vmem:[#allocation6 + $0xf0] sm:$0xff]
    %v1139 = vld [vmem:[#allocation6 + $0xf8] sm:$0xff]
    %v1140 = vld [vmem:[#allocation6 + $0x100] sm:$0xff]
    %v1141 = vld [vmem:[#allocation6 + $0x108] sm:$0xff]
    %v1142 = vld [vmem:[#allocation6 + $0x110] sm:$0xff]
    %v1143 = vld [vmem:[#allocation6 + $0x118] sm:$0xff]
    %v1144 = vld [vmem:[#allocation6 + $0x120] sm:$0xff]
    %v1145 = vld [vmem:[#allocation6 + $0x128] sm:$0xff]
    %v1146 = vld [vmem:[#allocation6 + $0x130] sm:$0xff]
    %v1147 = vld [vmem:[#allocation6 + $0x138] sm:$0xff]
    %v1148 = vld [vmem:[#allocation6 + $0x140] sm:$0xff]
    %v1149 = vld [vmem:[#allocation6 + $0x148] sm:$0xff]
    %v1150 = vld [vmem:[#allocation6 + $0x150] sm:$0xff]
    %v1151 = vld [vmem:[#allocation6 + $0x158] sm:$0xff]
    %v1152 = vld [vmem:[#allocation6 + $0x160] sm:$0xff]
    %v1153 = vld [vmem:[#allocation6 + $0x168] sm:$0xff]
    %v1154 = vld [vmem:[#allocation6 + $0x170] sm:$0xff]
    %v1155 = vld [vmem:[#allocation6 + $0x178] sm:$0xff]
    %v1156 = vld [vmem:[#allocation6 + $0x180] sm:$0xff]
    %v1157 = vld [vmem:[#allocation6 + $0x188] sm:$0xff]
    %v1158 = vld [vmem:[#allocation6 + $0x190] sm:$0xff]
    %v1159 = vld [vmem:[#allocation6 + $0x198] sm:$0xff]
    %v1160 = vld [vmem:[#allocation6 + $0x1a0] sm:$0xff]
    %v1161 = vld [vmem:[#allocation6 + $0x1a8] sm:$0xff]
    %v1162 = vld [vmem:[#allocation6 + $0x1b0] sm:$0xff]
    %v1163 = vld [vmem:[#allocation6 + $0x1b8] sm:$0xff]
    %v1164 = vld [vmem:[#allocation6 + $0x1c0] sm:$0xff]
    %v1165 = vld [vmem:[#allocation6 + $0x1c8] sm:$0xff]
    %v1166 = vld [vmem:[#allocation6 + $0x1d0] sm:$0xff]
    %v1167 = vld [vmem:[#allocation6 + $0x1d8] sm:$0xff]
    %v1168 = vld [vmem:[#allocation6 + $0x1e0] sm:$0xff]
    %v1169 = vld [vmem:[#allocation6 + $0x1e8] sm:$0xff]
    %v1170 = vld [vmem:[#allocation6 + $0x1f0] sm:$0xff]
    %v1171 = vld [vmem:[#allocation6 + $0x1f8] sm:$0xff]
    %v1172 = vld [vmem:[#allocation6 + $0x200] sm:$0xff]
    %v1173 = vld [vmem:[#allocation6 + $0x208] sm:$0xff]
    %v1174 = vld [vmem:[#allocation6 + $0x210] sm:$0xff]
    %v1175 = vld [vmem:[#allocation6 + $0x218] sm:$0xff]
    %v1176 = vld [vmem:[#allocation6 + $0x220] sm:$0xff]
    %v1177 = vld [vmem:[#allocation6 + $0x228] sm:$0xff]
    %v1178 = vld [vmem:[#allocation6 + $0x230] sm:$0xff]
    %v1179 = vld [vmem:[#allocation6 + $0x238] sm:$0xff]
    %v1180 = vld [vmem:[#allocation6 + $0x240] sm:$0xff]
    %v1181 = vld [vmem:[#allocation6 + $0x248] sm:$0xff]
    %v1182 = vld [vmem:[#allocation6 + $0x250] sm:$0xff]
    %v1183 = vld [vmem:[#allocation6 + $0x258] sm:$0xff]
    %v1184 = vld [vmem:[#allocation6 + $0x260] sm:$0xff]
    %v1185 = vld [vmem:[#allocation6 + $0x268] sm:$0xff]
    %v1186 = vld [vmem:[#allocation6 + $0x270] sm:$0xff]
    %v1187 = vld [vmem:[#allocation6 + $0x278] sm:$0xff]
    %v1188 = vld [vmem:[#allocation6 + $0x280] sm:$0xff]
    %v1189 = vld [vmem:[#allocation6 + $0x288] sm:$0xff]
    %v1190 = vld [vmem:[#allocation6 + $0x290] sm:$0xff]
    %v1191 = vld [vmem:[#allocation6 + $0x298] sm:$0xff]
    %v1192 = vld [vmem:[#allocation6 + $0x2a0] sm:$0xff]
    %v1193 = vld [vmem:[#allocation6 + $0x2a8] sm:$0xff]
    %v1194 = vld [vmem:[#allocation6 + $0x2b0] sm:$0xff]
    %v1195 = vld [vmem:[#allocation6 + $0x2b8] sm:$0xff]
    %v1196 = vld [vmem:[#allocation6 + $0x2c0] sm:$0xff]
    %v1197 = vld [vmem:[#allocation6 + $0x2c8] sm:$0xff]
    %v1198 = vld [vmem:[#allocation6 + $0x2d0] sm:$0xff]
    %v1199 = vld [vmem:[#allocation6 + $0x2d8] sm:$0xff]
    %v1200 = vld [vmem:[#allocation6 + $0x2e0] sm:$0xff]
    %v1201 = vld [vmem:[#allocation6 + $0x2e8] sm:$0xff]
    %v1202 = vld [vmem:[#allocation6 + $0x2f0] sm:$0xff]
    %v1203 = vld [vmem:[#allocation6 + $0x2f8] sm:$0xff]
    %v1204 = vld [vmem:[#allocation6 + $0x300] sm:$0xff]
    %v1205 = vld [vmem:[#allocation6 + $0x308] sm:$0xff]
    %v1206 = vld [vmem:[#allocation6 + $0x310] sm:$0xff]
    %v1207 = vld [vmem:[#allocation6 + $0x318] sm:$0xff]
    %v1208 = vld [vmem:[#allocation6 + $0x320] sm:$0xff]
    %v1209 = vld [vmem:[#allocation6 + $0x328] sm:$0xff]
    %v1210 = vld [vmem:[#allocation6 + $0x330] sm:$0xff]
    %v1211 = vld [vmem:[#allocation6 + $0x338] sm:$0xff]
    %v1212 = vld [vmem:[#allocation6 + $0x340] sm:$0xff]
    %v1213 = vld [vmem:[#allocation6 + $0x348] sm:$0xff]
    %v1214 = vld [vmem:[#allocation6 + $0x350] sm:$0xff]
    %v1215 = vld [vmem:[#allocation6 + $0x358] sm:$0xff]
    %v1216 = vld [vmem:[#allocation6 + $0x360] sm:$0xff]
    %v1217 = vld [vmem:[#allocation6 + $0x368] sm:$0xff]
    %v1218 = vld [vmem:[#allocation6 + $0x370] sm:$0xff]
    %v1219 = vld [vmem:[#allocation6 + $0x378] sm:$0xff]
    %v1220 = vld [vmem:[#allocation6 + $0x380] sm:$0xff]
    %v1221 = vld [vmem:[#allocation6 + $0x388] sm:$0xff]
    %v1222 = vld [vmem:[#allocation6 + $0x390] sm:$0xff]
    %v1223 = vld [vmem:[#allocation6 + $0x398] sm:$0xff]
    %v1224 = vld [vmem:[#allocation6 + $0x3a0] sm:$0xff]
    %v1225 = vld [vmem:[#allocation6 + $0x3a8] sm:$0xff]
    %v1226 = vld [vmem:[#allocation6 + $0x3b0] sm:$0xff]
    %v1227 = vld [vmem:[#allocation6 + $0x3b8] sm:$0xff]
    %v1228 = vld [vmem:[#allocation6 + $0x3c0] sm:$0xff]
    %v1229 = vld [vmem:[#allocation6 + $0x3c8] sm:$0xff]
    %v1230 = vld [vmem:[#allocation6 + $0x3d0] sm:$0xff]
    %v1231 = vld [vmem:[#allocation6 + $0x3d8] sm:$0xff]
    %v1232 = vld [vmem:[#allocation6 + $0x3e0] sm:$0xff]
    %v1233 = vld [vmem:[#allocation6 + $0x3e8] sm:$0xff]
    %v1234 = vld [vmem:[#allocation6 + $0x3f0] sm:$0xff]
    %v1235 = vld [vmem:[#allocation6 + $0x3f8] sm:$0xff]
    %v1236 = vld [vmem:[#allocation6 + $0x400] sm:$0xff]
    %v1237 = vld [vmem:[#allocation6 + $0x408] sm:$0xff]
    %v1238 = vld [vmem:[#allocation6 + $0x410] sm:$0xff]
    %v1239 = vld [vmem:[#allocation6 + $0x418] sm:$0xff]
    %v1240 = vld [vmem:[#allocation6 + $0x420] sm:$0xff]
    %v1241 = vld [vmem:[#allocation6 + $0x428] sm:$0xff]
    %v1242 = vld [vmem:[#allocation6 + $0x430] sm:$0xff]
    %v1243 = vld [vmem:[#allocation6 + $0x438] sm:$0xff]
    %v1244 = vld [vmem:[#allocation6 + $0x440] sm:$0xff]
    %v1245 = vld [vmem:[#allocation6 + $0x448] sm:$0xff]
    %v1246 = vld [vmem:[#allocation6 + $0x450] sm:$0xff]
    %v1247 = vld [vmem:[#allocation6 + $0x458] sm:$0xff]
    %v1248 = vld [vmem:[#allocation6 + $0x460] sm:$0xff]
    %v1249 = vld [vmem:[#allocation6 + $0x468] sm:$0xff]
    %v1250 = vld [vmem:[#allocation6 + $0x470] sm:$0xff]
    %v1251 = vld [vmem:[#allocation6 + $0x478] sm:$0xff]
    %v1252 = vld [vmem:[#allocation6 + $0x480] sm:$0xff]
    %v1253 = vld [vmem:[#allocation6 + $0x488] sm:$0xff]
    %v1254 = vld [vmem:[#allocation6 + $0x490] sm:$0xff]
    %v1255 = vld [vmem:[#allocation6 + $0x498] sm:$0xff]
    %v1256 = vld [vmem:[#allocation6 + $0x4a0] sm:$0xff]
    %v1257 = vld [vmem:[#allocation6 + $0x4a8] sm:$0xff]
    %v1258 = vld [vmem:[#allocation6 + $0x4b0] sm:$0xff]
    %v1259 = vld [vmem:[#allocation6 + $0x4b8] sm:$0xff]
    %v1260 = vld [vmem:[#allocation6 + $0x4c0] sm:$0xff]
    %v1261 = vld [vmem:[#allocation6 + $0x4c8] sm:$0xff]
    %v1262 = vld [vmem:[#allocation6 + $0x4d0] sm:$0xff]
    %v1263 = vld [vmem:[#allocation6 + $0x4d8] sm:$0xff]
    %v1264 = vld [vmem:[#allocation6 + $0x4e0] sm:$0xff]
    %v1265 = vld [vmem:[#allocation6 + $0x4e8] sm:$0xff]
    %v1266 = vld [vmem:[#allocation6 + $0x4f0] sm:$0xff]
    %v1267 = vld [vmem:[#allocation6 + $0x4f8] sm:$0xff]
    %v1268 = vld [vmem:[#allocation6 + $0x500] sm:$0xff]
    %v1269 = vld [vmem:[#allocation6 + $0x508] sm:$0xff]
    %v1270 = vld [vmem:[#allocation6 + $0x510] sm:$0xff]
    %v1271 = vld [vmem:[#allocation6 + $0x518] sm:$0xff]
    %v1272 = vld [vmem:[#allocation6 + $0x520] sm:$0xff]
    %v1273 = vld [vmem:[#allocation6 + $0x528] sm:$0xff]
    %v1274 = vld [vmem:[#allocation6 + $0x530] sm:$0xff]
    %v1275 = vld [vmem:[#allocation6 + $0x538] sm:$0xff]
    %v1276 = vld [vmem:[#allocation6 + $0x540] sm:$0xff]
    %v1277 = vld [vmem:[#allocation6 + $0x548] sm:$0xff]
    %v1278 = vld [vmem:[#allocation6 + $0x550] sm:$0xff]
    %v1279 = vld [vmem:[#allocation6 + $0x558] sm:$0xff]
    %v1280 = vld [vmem:[#allocation6 + $0x560] sm:$0xff]
    %v1281 = vld [vmem:[#allocation6 + $0x568] sm:$0xff]
    %v1282 = vld [vmem:[#allocation6 + $0x570] sm:$0xff]
    %v1283 = vld [vmem:[#allocation6 + $0x578] sm:$0xff]
    %v1284 = vld [vmem:[#allocation6 + $0x580] sm:$0xff]
    %v1285 = vld [vmem:[#allocation6 + $0x588] sm:$0xff]
    %v1286 = vld [vmem:[#allocation6 + $0x590] sm:$0xff]
    %v1287 = vld [vmem:[#allocation6 + $0x598] sm:$0xff]
    %v1288 = vld [vmem:[#allocation6 + $0x5a0] sm:$0xff]
    %v1289 = vld [vmem:[#allocation6 + $0x5a8] sm:$0xff]
    %v1290 = vld [vmem:[#allocation6 + $0x5b0] sm:$0xff]
    %v1291 = vld [vmem:[#allocation6 + $0x5b8] sm:$0xff]
    %v1292 = vld [vmem:[#allocation6 + $0x5c0] sm:$0xff]
    %v1293 = vld [vmem:[#allocation6 + $0x5c8] sm:$0xff]
    %v1294 = vld [vmem:[#allocation6 + $0x5d0] sm:$0xff]
    %v1295 = vld [vmem:[#allocation6 + $0x5d8] sm:$0xff]
    %v1296 = vld [vmem:[#allocation6 + $0x5e0] sm:$0xff]
    %v1297 = vld [vmem:[#allocation6 + $0x5e8] sm:$0xff]
    %v1298 = vld [vmem:[#allocation6 + $0x5f0] sm:$0xff]
    %v1299 = vld [vmem:[#allocation6 + $0x5f8] sm:$0xff]
    %v1300 = vld [vmem:[#allocation6 + $0x600] sm:$0xff]
    %v1301 = vld [vmem:[#allocation6 + $0x608] sm:$0xff]
    %v1302 = vld [vmem:[#allocation6 + $0x610] sm:$0xff]
    %v1303 = vld [vmem:[#allocation6 + $0x618] sm:$0xff]
    %v1304 = vld [vmem:[#allocation6 + $0x620] sm:$0xff]
    %v1305 = vld [vmem:[#allocation6 + $0x628] sm:$0xff]
    %v1306 = vld [vmem:[#allocation6 + $0x630] sm:$0xff]
    %v1307 = vld [vmem:[#allocation6 + $0x638] sm:$0xff]
    %v1308 = vld [vmem:[#allocation6 + $0x640] sm:$0xff]
    %v1309 = vld [vmem:[#allocation6 + $0x648] sm:$0xff]
    %v1310 = vld [vmem:[#allocation6 + $0x650] sm:$0xff]
    %v1311 = vld [vmem:[#allocation6 + $0x658] sm:$0xff]
    %v1312 = vld [vmem:[#allocation6 + $0x660] sm:$0xff]
    %v1313 = vld [vmem:[#allocation6 + $0x668] sm:$0xff]
    %v1314 = vld [vmem:[#allocation6 + $0x670] sm:$0xff]
    %v1315 = vld [vmem:[#allocation6 + $0x678] sm:$0xff]
    %v1316 = vld [vmem:[#allocation6 + $0x680] sm:$0xff]
    %v1317 = vld [vmem:[#allocation6 + $0x688] sm:$0xff]
    %v1318 = vld [vmem:[#allocation6 + $0x690] sm:$0xff]
    %v1319 = vld [vmem:[#allocation6 + $0x698] sm:$0xff]
    %v1320 = vld [vmem:[#allocation6 + $0x6a0] sm:$0xff]
    %v1321 = vld [vmem:[#allocation6 + $0x6a8] sm:$0xff]
    %v1322 = vld [vmem:[#allocation6 + $0x6b0] sm:$0xff]
    %v1323 = vld [vmem:[#allocation6 + $0x6b8] sm:$0xff]
    %v1324 = vld [vmem:[#allocation6 + $0x6c0] sm:$0xff]
    %v1325 = vld [vmem:[#allocation6 + $0x6c8] sm:$0xff]
    %v1326 = vld [vmem:[#allocation6 + $0x6d0] sm:$0xff]
    %v1327 = vld [vmem:[#allocation6 + $0x6d8] sm:$0xff]
    %v1328 = vld [vmem:[#allocation6 + $0x6e0] sm:$0xff]
    %v1329 = vld [vmem:[#allocation6 + $0x6e8] sm:$0xff]
    %v1330 = vld [vmem:[#allocation6 + $0x6f0] sm:$0xff]
    %v1331 = vld [vmem:[#allocation6 + $0x6f8] sm:$0xff]
    %v1332 = vld [vmem:[#allocation6 + $0x700] sm:$0xff]
    %v1333 = vld [vmem:[#allocation6 + $0x708] sm:$0xff]
    %v1334 = vld [vmem:[#allocation6 + $0x710] sm:$0xff]
    %v1335 = vld [vmem:[#allocation6 + $0x718] sm:$0xff]
    %v1336 = vld [vmem:[#allocation6 + $0x720] sm:$0xff]
    %v1337 = vld [vmem:[#allocation6 + $0x728] sm:$0xff]
    %v1338 = vld [vmem:[#allocation6 + $0x730] sm:$0xff]
    %v1339 = vld [vmem:[#allocation6 + $0x738] sm:$0xff]
    %v1340 = vld [vmem:[#allocation6 + $0x740] sm:$0xff]
    %v1341 = vld [vmem:[#allocation6 + $0x748] sm:$0xff]
    %v1342 = vld [vmem:[#allocation6 + $0x750] sm:$0xff]
    %v1343 = vld [vmem:[#allocation6 + $0x758] sm:$0xff]
    %v1344 = vld [vmem:[#allocation6 + $0x760] sm:$0xff]
    %v1345 = vld [vmem:[#allocation6 + $0x768] sm:$0xff]
    %v1346 = vld [vmem:[#allocation6 + $0x770] sm:$0xff]
    %v1347 = vld [vmem:[#allocation6 + $0x778] sm:$0xff]
    %v1348 = vld [vmem:[#allocation6 + $0x780] sm:$0xff]
    %v1349 = vld [vmem:[#allocation6 + $0x788] sm:$0xff]
    %v1350 = vld [vmem:[#allocation6 + $0x790] sm:$0xff]
    %v1351 = vld [vmem:[#allocation6 + $0x798] sm:$0xff]
    %v1352 = vld [vmem:[#allocation6 + $0x7a0] sm:$0xff]
    %v1353 = vld [vmem:[#allocation6 + $0x7a8] sm:$0xff]
    %v1354 = vld [vmem:[#allocation6 + $0x7b0] sm:$0xff]
    %v1355 = vld [vmem:[#allocation6 + $0x7b8] sm:$0xff]
    %v1356 = vld [vmem:[#allocation6 + $0x7c0] sm:$0xff]
    %v1357 = vld [vmem:[#allocation6 + $0x7c8] sm:$0xff]
    %v1358 = vld [vmem:[#allocation6 + $0x7d0] sm:$0xff]
    %v1359 = vld [vmem:[#allocation6 + $0x7d8] sm:$0xff]
    %v1360 = vld [vmem:[#allocation6 + $0x7e0] sm:$0xff]
    %v1361 = vld [vmem:[#allocation6 + $0x7e8] sm:$0xff]
    %v1362 = vld [vmem:[#allocation6 + $0x7f0] sm:$0xff]
    %v1363 = vld [vmem:[#allocation6 + $0x7f8] sm:$0xff]
    %v1364 = vld [vmem:[%s14] sm:$0xff]
    %v1365 = vld [vmem:[%s14 + $0x8] sm:$0xff]
    %v1366 = vld [vmem:[%s15] sm:$0xff]
    %v1367 = vld [vmem:[%s15 + $0x8] sm:$0xff]
    %s1368 = smul.u32 0, 8
    %s1369 = smul.addr %s1368, 8
    %s1370 = scalar_lea.vmem [#allocation2], %s1369
    %v1371 = vld [vmem:[%s1370] sm:$0xff]
    %v1372 = vld [vmem:[%s1370 + $0x8] sm:$0xff]
    %v1373 = vld [vmem:[%s1370 + $0x10] sm:$0xff]
    %v1374 = vld [vmem:[%s1370 + $0x18] sm:$0xff]
    %v1375 = vld [vmem:[%s1370 + $0x20] sm:$0xff]
    %v1376 = vld [vmem:[%s1370 + $0x28] sm:$0xff]
    %v1377 = vld [vmem:[%s1370 + $0x30] sm:$0xff]
    %v1378 = vld [vmem:[%s1370 + $0x38] sm:$0xff]
    %1379 = vmatprep.subr.mxu0 %v1109
    %1380 = vmatpush1.msra.mxu0 %v1108
    %1381 = vmatprep.subr.mxu0 %v1117
    %1382 = vmatpush1.msra.mxu0 %v1116
    %1383 = vmatprep.subr.mxu0 %v1125
    %1384 = vmatpush1.msra.mxu0 %v1124
    %1385 = vmatprep.subr.mxu0 %v1133
    %1386 = vmatpush1.msra.mxu0 %v1132
    %1387 = vmatprep.subr.mxu0 %v1141
    %1388 = vmatpush1.msra.mxu0 %v1140
    %1389 = vmatprep.subr.mxu0 %v1149
    %1390 = vmatpush1.msra.mxu0 %v1148
    %1391 = vmatprep.subr.mxu0 %v1157
    %1392 = vmatpush1.msra.mxu0 %v1156
    %1393 = vmatprep.subr.mxu0 %v1165
    %1394 = vmatpush1.msra.mxu0 %v1164
    %1395 = vmatprep.subr.mxu0 %v1173
    %1396 = vmatpush1.msra.mxu0 %v1172
    %1397 = vmatprep.subr.mxu0 %v1181
    %1398 = vmatpush1.msra.mxu0 %v1180
    %1399 = vmatprep.subr.mxu0 %v1189
    %1400 = vmatpush1.msra.mxu0 %v1188
    %1401 = vmatprep.subr.mxu0 %v1197
    %1402 = vmatpush1.msra.mxu0 %v1196
    %1403 = vmatprep.subr.mxu0 %v1205
    %1404 = vmatpush1.msra.mxu0 %v1204
    %1405 = vmatprep.subr.mxu0 %v1213
    %1406 = vmatpush1.msra.mxu0 %v1212
    %1407 = vmatprep.subr.mxu0 %v1221
    %1408 = vmatpush1.msra.mxu0 %v1220
    %1409 = vmatprep.subr.mxu0 %v1229
    %1410 = vmatpush1.msra.mxu0 %v1228
    %1411 = vmatprep.subr.mxu0 %v1237
    %1412 = vmatpush1.msra.mxu0 %v1236
    %1413 = vmatprep.subr.mxu0 %v1245
    %1414 = vmatpush1.msra.mxu0 %v1244
    %1415 = vmatprep.subr.mxu0 %v1253
    %1416 = vmatpush1.msra.mxu0 %v1252
    %1417 = vmatprep.subr.mxu0 %v1261
    %1418 = vmatpush1.msra.mxu0 %v1260
    %1419 = vmatprep.subr.mxu0 %v1269
    %1420 = vmatpush1.msra.mxu0 %v1268
    %1421 = vmatprep.subr.mxu0 %v1277
    %1422 = vmatpush1.msra.mxu0 %v1276
    %1423 = vmatprep.subr.mxu0 %v1285
    %1424 = vmatpush1.msra.mxu0 %v1284
    %1425 = vmatprep.subr.mxu0 %v1293
    %1426 = vmatpush1.msra.mxu0 %v1292
    %1427 = vmatprep.subr.mxu0 %v1301
    %1428 = vmatpush1.msra.mxu0 %v1300
    %1429 = vmatprep.subr.mxu0 %v1309
    %1430 = vmatpush1.msra.mxu0 %v1308
    %1431 = vmatprep.subr.mxu0 %v1317
    %1432 = vmatpush1.msra.mxu0 %v1316
    %1433 = vmatprep.subr.mxu0 %v1325
    %1434 = vmatpush1.msra.mxu0 %v1324
    %1435 = vmatprep.subr.mxu0 %v1333
    %1436 = vmatpush1.msra.mxu0 %v1332
    %1437 = vmatprep.subr.mxu0 %v1341
    %1438 = vmatpush1.msra.mxu0 %v1340
    %1439 = vmatprep.subr.mxu0 %v1349
    %1440 = vmatpush1.msra.mxu0 %v1348
    %1441 = vmatprep.subr.mxu0 %v1357
    %1442 = vmatpush1.msra.mxu0 %v1356
    %1443 = vmatprep.mubr.f32.mxu0 %v1365
    %1444 = vmatmul.mubr.f32.gmra.mrb[0].mxu0 %v1364
    %v1445 = vpop.f32.mrb[0].mxu0
    %v1446 = vadd.f32 0.0, %v1445
    %v1447 = vpop.f32.mrb[0].mxu0
    %v1448 = vadd.f32 0.0, %v1447
    %1449 = vdwg.mxu0
    %1450 = vmatprep.subr.mxu0 %v1111
    %1451 = vmatpush1.msra.mxu0 %v1110
    %1452 = vmatprep.subr.mxu0 %v1119
    %1453 = vmatpush1.msra.mxu0 %v1118
    %1454 = vmatprep.subr.mxu0 %v1127
    %1455 = vmatpush1.msra.mxu0 %v1126
    %1456 = vmatprep.subr.mxu0 %v1135
    %1457 = vmatpush1.msra.mxu0 %v1134
    %1458 = vmatprep.subr.mxu0 %v1143
    %1459 = vmatpush1.msra.mxu0 %v1142
    %1460 = vmatprep.subr.mxu0 %v1151
    %1461 = vmatpush1.msra.mxu0 %v1150
    %1462 = vmatprep.subr.mxu0 %v1159
    %1463 = vmatpush1.msra.mxu0 %v1158
    %1464 = vmatprep.subr.mxu0 %v1167
    %1465 = vmatpush1.msra.mxu0 %v1166
    %1466 = vmatprep.subr.mxu0 %v1175
    %1467 = vmatpush1.msra.mxu0 %v1174
    %1468 = vmatprep.subr.mxu0 %v1183
    %1469 = vmatpush1.msra.mxu0 %v1182
    %1470 = vmatprep.subr.mxu0 %v1191
    %1471 = vmatpush1.msra.mxu0 %v1190
    %1472 = vmatprep.subr.mxu0 %v1199
    %1473 = vmatpush1.msra.mxu0 %v1198
    %1474 = vmatprep.subr.mxu0 %v1207
    %1475 = vmatpush1.msra.mxu0 %v1206
    %1476 = vmatprep.subr.mxu0 %v1215
    %1477 = vmatpush1.msra.mxu0 %v1214
    %1478 = vmatprep.subr.mxu0 %v1223
    %1479 = vmatpush1.msra.mxu0 %v1222
    %1480 = vmatprep.subr.mxu0 %v1231
    %1481 = vmatpush1.msra.mxu0 %v1230
    %1482 = vmatprep.subr.mxu0 %v1239
    %1483 = vmatpush1.msra.mxu0 %v1238
    %1484 = vmatprep.subr.mxu0 %v1247
    %1485 = vmatpush1.msra.mxu0 %v1246
    %1486 = vmatprep.subr.mxu0 %v1255
    %1487 = vmatpush1.msra.mxu0 %v1254
    %1488 = vmatprep.subr.mxu0 %v1263
    %1489 = vmatpush1.msra.mxu0 %v1262
    %1490 = vmatprep.subr.mxu0 %v1271
    %1491 = vmatpush1.msra.mxu0 %v1270
    %1492 = vmatprep.subr.mxu0 %v1279
    %1493 = vmatpush1.msra.mxu0 %v1278
    %1494 = vmatprep.subr.mxu0 %v1287
    %1495 = vmatpush1.msra.mxu0 %v1286
    %1496 = vmatprep.subr.mxu0 %v1295
    %1497 = vmatpush1.msra.mxu0 %v1294
    %1498 = vmatprep.subr.mxu0 %v1303
    %1499 = vmatpush1.msra.mxu0 %v1302
    %1500 = vmatprep.subr.mxu0 %v1311
    %1501 = vmatpush1.msra.mxu0 %v1310
    %1502 = vmatprep.subr.mxu0 %v1319
    %1503 = vmatpush1.msra.mxu0 %v1318
    %1504 = vmatprep.subr.mxu0 %v1327
    %1505 = vmatpush1.msra.mxu0 %v1326
    %1506 = vmatprep.subr.mxu0 %v1335
    %1507 = vmatpush1.msra.mxu0 %v1334
    %1508 = vmatprep.subr.mxu0 %v1343
    %1509 = vmatpush1.msra.mxu0 %v1342
    %1510 = vmatprep.subr.mxu0 %v1351
    %1511 = vmatpush1.msra.mxu0 %v1350
    %1512 = vmatprep.subr.mxu0 %v1359
    %1513 = vmatpush1.msra.mxu0 %v1358
    %1514 = vmatprep.mubr.f32.mxu0 %v1365
    %1515 = vmatmul.mubr.f32.gmra.mrb[0].mxu0 %v1364
    %v1516 = vpop.f32.mrb[0].mxu0
    %v1517 = vadd.f32 0.0, %v1516
    %v1518 = vpop.f32.mrb[0].mxu0
    %v1519 = vadd.f32 0.0, %v1518
    %1520 = vdwg.mxu0
    %1521 = vmatprep.subr.mxu0 %v1113
    %1522 = vmatpush1.msra.mxu0 %v1112
    %1523 = vmatprep.subr.mxu0 %v1121
    %1524 = vmatpush1.msra.mxu0 %v1120
    %1525 = vmatprep.subr.mxu0 %v1129
    %1526 = vmatpush1.msra.mxu0 %v1128
    %1527 = vmatprep.subr.mxu0 %v1137
    %1528 = vmatpush1.msra.mxu0 %v1136
    %1529 = vmatprep.subr.mxu0 %v1145
    %1530 = vmatpush1.msra.mxu0 %v1144
    %1531 = vmatprep.subr.mxu0 %v1153
    %1532 = vmatpush1.msra.mxu0 %v1152
    %1533 = vmatprep.subr.mxu0 %v1161
    %1534 = vmatpush1.msra.mxu0 %v1160
    %1535 = vmatprep.subr.mxu0 %v1169
    %1536 = vmatpush1.msra.mxu0 %v1168
    %1537 = vmatprep.subr.mxu0 %v1177
    %1538 = vmatpush1.msra.mxu0 %v1176
    %1539 = vmatprep.subr.mxu0 %v1185
    %1540 = vmatpush1.msra.mxu0 %v1184
    %1541 = vmatprep.subr.mxu0 %v1193
    %1542 = vmatpush1.msra.mxu0 %v1192
    %1543 = vmatprep.subr.mxu0 %v1201
    %1544 = vmatpush1.msra.mxu0 %v1200
    %1545 = vmatprep.subr.mxu0 %v1209
    %1546 = vmatpush1.msra.mxu0 %v1208
    %1547 = vmatprep.subr.mxu0 %v1217
    %1548 = vmatpush1.msra.mxu0 %v1216
    %1549 = vmatprep.subr.mxu0 %v1225
    %1550 = vmatpush1.msra.mxu0 %v1224
    %1551 = vmatprep.subr.mxu0 %v1233
    %1552 = vmatpush1.msra.mxu0 %v1232
    %1553 = vmatprep.subr.mxu0 %v1241
    %1554 = vmatpush1.msra.mxu0 %v1240
    %1555 = vmatprep.subr.mxu0 %v1249
    %1556 = vmatpush1.msra.mxu0 %v1248
    %1557 = vmatprep.subr.mxu0 %v1257
    %1558 = vmatpush1.msra.mxu0 %v1256
    %1559 = vmatprep.subr.mxu0 %v1265
    %1560 = vmatpush1.msra.mxu0 %v1264
    %1561 = vmatprep.subr.mxu0 %v1273
    %1562 = vmatpush1.msra.mxu0 %v1272
    %1563 = vmatprep.subr.mxu0 %v1281
    %1564 = vmatpush1.msra.mxu0 %v1280
    %1565 = vmatprep.subr.mxu0 %v1289
    %1566 = vmatpush1.msra.mxu0 %v1288
    %1567 = vmatprep.subr.mxu0 %v1297
    %1568 = vmatpush1.msra.mxu0 %v1296
    %1569 = vmatprep.subr.mxu0 %v1305
    %1570 = vmatpush1.msra.mxu0 %v1304
    %1571 = vmatprep.subr.mxu0 %v1313
    %1572 = vmatpush1.msra.mxu0 %v1312
    %1573 = vmatprep.subr.mxu0 %v1321
    %1574 = vmatpush1.msra.mxu0 %v1320
    %1575 = vmatprep.subr.mxu0 %v1329
    %1576 = vmatpush1.msra.mxu0 %v1328
    %1577 = vmatprep.subr.mxu0 %v1337
    %1578 = vmatpush1.msra.mxu0 %v1336
    %1579 = vmatprep.subr.mxu0 %v1345
    %1580 = vmatpush1.msra.mxu0 %v1344
    %1581 = vmatprep.subr.mxu0 %v1353
    %1582 = vmatpush1.msra.mxu0 %v1352
    %1583 = vmatprep.subr.mxu0 %v1361
    %1584 = vmatpush1.msra.mxu0 %v1360
    %1585 = vmatprep.mubr.f32.mxu0 %v1365
    %1586 = vmatmul.mubr.f32.gmra.mrb[0].mxu0 %v1364
    %v1587 = vpop.f32.mrb[0].mxu0
    %v1588 = vadd.f32 0.0, %v1587
    %v1589 = vpop.f32.mrb[0].mxu0
    %v1590 = vadd.f32 0.0, %v1589
    %1591 = vdwg.mxu0
    %1592 = vmatprep.subr.mxu0 %v1115
    %1593 = vmatpush1.msra.mxu0 %v1114
    %1594 = vmatprep.subr.mxu0 %v1123
    %1595 = vmatpush1.msra.mxu0 %v1122
    %1596 = vmatprep.subr.mxu0 %v1131
    %1597 = vmatpush1.msra.mxu0 %v1130
    %1598 = vmatprep.subr.mxu0 %v1139
    %1599 = vmatpush1.msra.mxu0 %v1138
    %1600 = vmatprep.subr.mxu0 %v1147
    %1601 = vmatpush1.msra.mxu0 %v1146
    %1602 = vmatprep.subr.mxu0 %v1155
    %1603 = vmatpush1.msra.mxu0 %v1154
    %1604 = vmatprep.subr.mxu0 %v1163
    %1605 = vmatpush1.msra.mxu0 %v1162
    %1606 = vmatprep.subr.mxu0 %v1171
    %1607 = vmatpush1.msra.mxu0 %v1170
    %1608 = vmatprep.subr.mxu0 %v1179
    %1609 = vmatpush1.msra.mxu0 %v1178
    %1610 = vmatprep.subr.mxu0 %v1187
    %1611 = vmatpush1.msra.mxu0 %v1186
    %1612 = vmatprep.subr.mxu0 %v1195
    %1613 = vmatpush1.msra.mxu0 %v1194
    %1614 = vmatprep.subr.mxu0 %v1203
    %1615 = vmatpush1.msra.mxu0 %v1202
    %1616 = vmatprep.subr.mxu0 %v1211
    %1617 = vmatpush1.msra.mxu0 %v1210
    %1618 = vmatprep.subr.mxu0 %v1219
    %1619 = vmatpush1.msra.mxu0 %v1218
    %1620 = vmatprep.subr.mxu0 %v1227
    %1621 = vmatpush1.msra.mxu0 %v1226
    %1622 = vmatprep.subr.mxu0 %v1235
    %1623 = vmatpush1.msra.mxu0 %v1234
    %1624 = vmatprep.subr.mxu0 %v1243
    %1625 = vmatpush1.msra.mxu0 %v1242
    %1626 = vmatprep.subr.mxu0 %v1251
    %1627 = vmatpush1.msra.mxu0 %v1250
    %1628 = vmatprep.subr.mxu0 %v1259
    %1629 = vmatpush1.msra.mxu0 %v1258
    %1630 = vmatprep.subr.mxu0 %v1267
    %1631 = vmatpush1.msra.mxu0 %v1266
    %1632 = vmatprep.subr.mxu0 %v1275
    %1633 = vmatpush1.msra.mxu0 %v1274
    %1634 = vmatprep.subr.mxu0 %v1283
    %1635 = vmatpush1.msra.mxu0 %v1282
    %1636 = vmatprep.subr.mxu0 %v1291
    %1637 = vmatpush1.msra.mxu0 %v1290
    %1638 = vmatprep.subr.mxu0 %v1299
    %1639 = vmatpush1.msra.mxu0 %v1298
    %1640 = vmatprep.subr.mxu0 %v1307
    %1641 = vmatpush1.msra.mxu0 %v1306
    %1642 = vmatprep.subr.mxu0 %v1315
    %1643 = vmatpush1.msra.mxu0 %v1314
    %1644 = vmatprep.subr.mxu0 %v1323
    %1645 = vmatpush1.msra.mxu0 %v1322
    %1646 = vmatprep.subr.mxu0 %v1331
    %1647 = vmatpush1.msra.mxu0 %v1330
    %1648 = vmatprep.subr.mxu0 %v1339
    %1649 = vmatpush1.msra.mxu0 %v1338
    %1650 = vmatprep.subr.mxu0 %v1347
    %1651 = vmatpush1.msra.mxu0 %v1346
    %1652 = vmatprep.subr.mxu0 %v1355
    %1653 = vmatpush1.msra.mxu0 %v1354
    %1654 = vmatprep.subr.mxu0 %v1363
    %1655 = vmatpush1.msra.mxu0 %v1362
    %1656 = vmatprep.mubr.f32.mxu0 %v1365
    %1657 = vmatmul.mubr.f32.gmra.mrb[0].mxu0 %v1364
    %v1658 = vpop.f32.mrb[0].mxu0
    %v1659 = vadd.f32 0.0, %v1658
    %v1660 = vpop.f32.mrb[0].mxu0
    %v1661 = vadd.f32 0.0, %v1660
    %1662 = vdwg.mxu0
    %v1663 = vadd.f32 %v1371, %v1446
    %v1664 = vadd.f32 %v1372, %v1448
    %v1665 = vadd.f32 %v1373, %v1517
    %v1666 = vadd.f32 %v1374, %v1519
    %v1667 = vadd.f32 %v1375, %v1588
    %v1668 = vadd.f32 %v1376, %v1590
    %v1669 = vadd.f32 %v1377, %v1659
    %v1670 = vadd.f32 %v1378, %v1661
    %v1671 = vxor.u32 %v1663, 2147483648
    %v1672 = vxor.u32 %v1664, 2147483648
    %v1673 = vxor.u32 %v1665, 2147483648
    %v1674 = vxor.u32 %v1666, 2147483648
    %v1675 = vxor.u32 %v1667, 2147483648
    %v1676 = vxor.u32 %v1668, 2147483648
    %v1677 = vmul.f32 %v1671, 1.442695
    %v1678 = vpow.pop %v1677
    %v1679 = vmul.f32 %v1672, 1.442695
    %v1680 = vpow.pop %v1679
    %v1681 = vmul.f32 %v1673, 1.442695
    %v1682 = vpow.pop %v1681
    %v1683 = vmul.f32 %v1674, 1.442695
    %v1684 = vpow.pop %v1683
    %v1685 = vmul.f32 %v1675, 1.442695
    %v1686 = vpow.pop %v1685
    %v1687 = vmul.f32 %v1676, 1.442695
    %v1688 = vpow.pop %v1687
    %v1689 = vadd.f32 %v1678, 1.0
    %v1690 = vadd.f32 %v1680, 1.0
    %v1691 = vadd.f32 %v1682, 1.0
    %v1692 = vadd.f32 %v1684, 1.0
    %v1693 = vadd.f32 %v1686, 1.0
    %v1694 = vadd.f32 %v1688, 1.0
    %v1695 = vrcp.pop %v1689
    %v1696 = vmul.f32 1.0, %v1695
    %v1697 = vrcp.pop %v1690
    %v1698 = vmul.f32 1.0, %v1697
    %v1699 = vrcp.pop %v1691
    %v1700 = vmul.f32 1.0, %v1699
    %v1701 = vrcp.pop %v1692
    %v1702 = vmul.f32 1.0, %v1701
    %v1703 = vrcp.pop %v1693
    %v1704 = vmul.f32 1.0, %v1703
    %v1705 = vrcp.pop %v1694
    %v1706 = vmul.f32 1.0, %v1705
    %v1707 = vtanh.pop %v1669
    %v1708 = vtanh.pop %v1670
    %v1709 = vmul.f32 %v1700, %v1366
    %v1710 = vmul.f32 %v1702, %v1367
    %v1711 = vmul.f32 %v1696, %v1707
    %v1712 = vmul.f32 %v1698, %v1708
    %v1713 = vadd.f32 %v1709, %v1711
    %v1714 = vadd.f32 %v1710, %v1712
    %v1715 = vtanh.pop %v1713
    %v1716 = vtanh.pop %v1714
    %v1717 = vmul.f32 %v1704, %v1715
    %v1718 = vmul.f32 %v1706, %v1716
    %s1719 = smul.u32 0, 2
    %s1720 = smul.addr %s1719, 8
    %s1721 = scalar_lea.vmem [#allocation3], %s1720
    %1722 = vst [vmem:[%s1721] sm:$0xff] %v1717
    %1723 = vst [vmem:[%s1721 + $0x8] sm:$0xff] %v1718
    %s1724 = smul.u32 1, 8
    %s1725 = smul.addr %s1724, 8
    %s1726 = scalar_lea.vmem [#allocation2], %s1725
    %v1727 = vld [vmem:[%s1726] sm:$0xff]
    %v1728 = vld [vmem:[%s1726 + $0x8] sm:$0xff]
    %v1729 = vld [vmem:[%s1726 + $0x10] sm:$0xff]
    %v1730 = vld [vmem:[%s1726 + $0x18] sm:$0xff]
    %v1731 = vld [vmem:[%s1726 + $0x20] sm:$0xff]
    %v1732 = vld [vmem:[%s1726 + $0x28] sm:$0xff]
    %v1733 = vld [vmem:[%s1726 + $0x30] sm:$0xff]
    %v1734 = vld [vmem:[%s1726 + $0x38] sm:$0xff]
    %1735 = vmatprep.subr.mxu0 %v1109
    %1736 = vmatpush1.msra.mxu0 %v1108
    %1737 = vmatprep.subr.mxu0 %v1117
    %1738 = vmatpush1.msra.mxu0 %v1116
    %1739 = vmatprep.subr.mxu0 %v1125
    %1740 = vmatpush1.msra.mxu0 %v1124
    %1741 = vmatprep.subr.mxu0 %v1133
    %1742 = vmatpush1.msra.mxu0 %v1132
    %1743 = vmatprep.subr.mxu0 %v1141
    %1744 = vmatpush1.msra.mxu0 %v1140
    %1745 = vmatprep.subr.mxu0 %v1149
    %1746 = vmatpush1.msra.mxu0 %v1148
    %1747 = vmatprep.subr.mxu0 %v1157
    %1748 = vmatpush1.msra.mxu0 %v1156
    %1749 = vmatprep.subr.mxu0 %v1165
    %1750 = vmatpush1.msra.mxu0 %v1164
    %1751 = vmatprep.subr.mxu0 %v1173
    %1752 = vmatpush1.msra.mxu0 %v1172
    %1753 = vmatprep.subr.mxu0 %v1181
    %1754 = vmatpush1.msra.mxu0 %v1180
    %1755 = vmatprep.subr.mxu0 %v1189
    %1756 = vmatpush1.msra.mxu0 %v1188
    %1757 = vmatprep.subr.mxu0 %v1197
    %1758 = vmatpush1.msra.mxu0 %v1196
    %1759 = vmatprep.subr.mxu0 %v1205
    %1760 = vmatpush1.msra.mxu0 %v1204
    %1761 = vmatprep.subr.mxu0 %v1213
    %1762 = vmatpush1.msra.mxu0 %v1212
    %1763 = vmatprep.subr.mxu0 %v1221
    %1764 = vmatpush1.msra.mxu0 %v1220
    %1765 = vmatprep.subr.mxu0 %v1229
    %1766 = vmatpush1.msra.mxu0 %v1228
    %1767 = vmatprep.subr.mxu0 %v1237
    %1768 = vmatpush1.msra.mxu0 %v1236
    %1769 = vmatprep.subr.mxu0 %v1245
    %1770 = vmatpush1.msra.mxu0 %v1244
    %1771 = vmatprep.subr.mxu0 %v1253
    %1772 = vmatpush1.msra.mxu0 %v1252
    %1773 = vmatprep.subr.mxu0 %v1261
    %1774 = vmatpush1.msra.mxu0 %v1260
    %1775 = vmatprep.subr.mxu0 %v1269
    %1776 = vmatpush1.msra.mxu0 %v1268
    %1777 = vmatprep.subr.mxu0 %v1277
    %1778 = vmatpush1.msra.mxu0 %v1276
    %1779 = vmatprep.subr.mxu0 %v1285
    %1780 = vmatpush1.msra.mxu0 %v1284
    %1781 = vmatprep.subr.mxu0 %v1293
    %1782 = vmatpush1.msra.mxu0 %v1292
    %1783 = vmatprep.subr.mxu0 %v1301
    %1784 = vmatpush1.msra.mxu0 %v1300
    %1785 = vmatprep.subr.mxu0 %v1309
    %1786 = vmatpush1.msra.mxu0 %v1308
    %1787 = vmatprep.subr.mxu0 %v1317
    %1788 = vmatpush1.msra.mxu0 %v1316
    %1789 = vmatprep.subr.mxu0 %v1325
    %1790 = vmatpush1.msra.mxu0 %v1324
    %1791 = vmatprep.subr.mxu0 %v1333
    %1792 = vmatpush1.msra.mxu0 %v1332
    %1793 = vmatprep.subr.mxu0 %v1341
    %1794 = vmatpush1.msra.mxu0 %v1340
    %1795 = vmatprep.subr.mxu0 %v1349
    %1796 = vmatpush1.msra.mxu0 %v1348
    %1797 = vmatprep.subr.mxu0 %v1357
    %1798 = vmatpush1.msra.mxu0 %v1356
    %1799 = vmatprep.mubr.f32.mxu0 %v1718
    %1800 = vmatmul.mubr.f32.gmra.mrb[0].mxu0 %v1717
    %v1801 = vpop.f32.mrb[0].mxu0
    %v1802 = vadd.f32 0.0, %v1801
    %v1803 = vpop.f32.mrb[0].mxu0
    %v1804 = vadd.f32 0.0, %v1803
    %1805 = vdwg.mxu0
    %1806 = vmatprep.subr.mxu0 %v1111
    %1807 = vmatpush1.msra.mxu0 %v1110
    %1808 = vmatprep.subr.mxu0 %v1119
    %1809 = vmatpush1.msra.mxu0 %v1118
    %1810 = vmatprep.subr.mxu0 %v1127
    %1811 = vmatpush1.msra.mxu0 %v1126
    %1812 = vmatprep.subr.mxu0 %v1135
    %1813 = vmatpush1.msra.mxu0 %v1134
    %1814 = vmatprep.subr.mxu0 %v1143
    %1815 = vmatpush1.msra.mxu0 %v1142
    %1816 = vmatprep.subr.mxu0 %v1151
    %1817 = vmatpush1.msra.mxu0 %v1150
    %1818 = vmatprep.subr.mxu0 %v1159
    %1819 = vmatpush1.msra.mxu0 %v1158
    %1820 = vmatprep.subr.mxu0 %v1167
    %1821 = vmatpush1.msra.mxu0 %v1166
    %1822 = vmatprep.subr.mxu0 %v1175
    %1823 = vmatpush1.msra.mxu0 %v1174
    %1824 = vmatprep.subr.mxu0 %v1183
    %1825 = vmatpush1.msra.mxu0 %v1182
    %1826 = vmatprep.subr.mxu0 %v1191
    %1827 = vmatpush1.msra.mxu0 %v1190
    %1828 = vmatprep.subr.mxu0 %v1199
    %1829 = vmatpush1.msra.mxu0 %v1198
    %1830 = vmatprep.subr.mxu0 %v1207
    %1831 = vmatpush1.msra.mxu0 %v1206
    %1832 = vmatprep.subr.mxu0 %v1215
    %1833 = vmatpush1.msra.mxu0 %v1214
    %1834 = vmatprep.subr.mxu0 %v1223
    %1835 = vmatpush1.msra.mxu0 %v1222
    %1836 = vmatprep.subr.mxu0 %v1231
    %1837 = vmatpush1.msra.mxu0 %v1230
    %1838 = vmatprep.subr.mxu0 %v1239
    %1839 = vmatpush1.msra.mxu0 %v1238
    %1840 = vmatprep.subr.mxu0 %v1247
    %1841 = vmatpush1.msra.mxu0 %v1246
    %1842 = vmatprep.subr.mxu0 %v1255
    %1843 = vmatpush1.msra.mxu0 %v1254
    %1844 = vmatprep.subr.mxu0 %v1263
    %1845 = vmatpush1.msra.mxu0 %v1262
    %1846 = vmatprep.subr.mxu0 %v1271
    %1847 = vmatpush1.msra.mxu0 %v1270
    %1848 = vmatprep.subr.mxu0 %v1279
    %1849 = vmatpush1.msra.mxu0 %v1278
    %1850 = vmatprep.subr.mxu0 %v1287
    %1851 = vmatpush1.msra.mxu0 %v1286
    %1852 = vmatprep.subr.mxu0 %v1295
    %1853 = vmatpush1.msra.mxu0 %v1294
    %1854 = vmatprep.subr.mxu0 %v1303
    %1855 = vmatpush1.msra.mxu0 %v1302
    %1856 = vmatprep.subr.mxu0 %v1311
    %1857 = vmatpush1.msra.mxu0 %v1310
    %1858 = vmatprep.subr.mxu0 %v1319
    %1859 = vmatpush1.msra.mxu0 %v1318
    %1860 = vmatprep.subr.mxu0 %v1327
    %1861 = vmatpush1.msra.mxu0 %v1326
    %1862 = vmatprep.subr.mxu0 %v1335
    %1863 = vmatpush1.msra.mxu0 %v1334
    %1864 = vmatprep.subr.mxu0 %v1343
    %1865 = vmatpush1.msra.mxu0 %v1342
    %1866 = vmatprep.subr.mxu0 %v1351
    %1867 = vmatpush1.msra.mxu0 %v1350
    %1868 = vmatprep.subr.mxu0 %v1359
    %1869 = vmatpush1.msra.mxu0 %v1358
    %1870 = vmatprep.mubr.f32.mxu0 %v1718
    %1871 = vmatmul.mubr.f32.gmra.mrb[0].mxu0 %v1717
    %v1872 = vpop.f32.mrb[0].mxu0
    %v1873 = vadd.f32 0.0, %v1872
    %v1874 = vpop.f32.mrb[0].mxu0
    %v1875 = vadd.f32 0.0, %v1874
    %1876 = vdwg.mxu0
    %1877 = vmatprep.subr.mxu0 %v1113
    %1878 = vmatpush1.msra.mxu0 %v1112
    %1879 = vmatprep.subr.mxu0 %v1121
    %1880 = vmatpush1.msra.mxu0 %v1120
    %1881 = vmatprep.subr.mxu0 %v1129
    %1882 = vmatpush1.msra.mxu0 %v1128
    %1883 = vmatprep.subr.mxu0 %v1137
    %1884 = vmatpush1.msra.mxu0 %v1136
    %1885 = vmatprep.subr.mxu0 %v1145
    %1886 = vmatpush1.msra.mxu0 %v1144
    %1887 = vmatprep.subr.mxu0 %v1153
    %1888 = vmatpush1.msra.mxu0 %v1152
    %1889 = vmatprep.subr.mxu0 %v1161
    %1890 = vmatpush1.msra.mxu0 %v1160
    %1891 = vmatprep.subr.mxu0 %v1169
    %1892 = vmatpush1.msra.mxu0 %v1168
    %1893 = vmatprep.subr.mxu0 %v1177
    %1894 = vmatpush1.msra.mxu0 %v1176
    %1895 = vmatprep.subr.mxu0 %v1185
    %1896 = vmatpush1.msra.mxu0 %v1184
    %1897 = vmatprep.subr.mxu0 %v1193
    %1898 = vmatpush1.msra.mxu0 %v1192
    %1899 = vmatprep.subr.mxu0 %v1201
    %1900 = vmatpush1.msra.mxu0 %v1200
    %1901 = vmatprep.subr.mxu0 %v1209
    %1902 = vmatpush1.msra.mxu0 %v1208
    %1903 = vmatprep.subr.mxu0 %v1217
    %1904 = vmatpush1.msra.mxu0 %v1216
    %1905 = vmatprep.subr.mxu0 %v1225
    %1906 = vmatpush1.msra.mxu0 %v1224
    %1907 = vmatprep.subr.mxu0 %v1233
    %1908 = vmatpush1.msra.mxu0 %v1232
    %1909 = vmatprep.subr.mxu0 %v1241
    %1910 = vmatpush1.msra.mxu0 %v1240
    %1911 = vmatprep.subr.mxu0 %v1249
    %1912 = vmatpush1.msra.mxu0 %v1248
    %1913 = vmatprep.subr.mxu0 %v1257
    %1914 = vmatpush1.msra.mxu0 %v1256
    %1915 = vmatprep.subr.mxu0 %v1265
    %1916 = vmatpush1.msra.mxu0 %v1264
    %1917 = vmatprep.subr.mxu0 %v1273
    %1918 = vmatpush1.msra.mxu0 %v1272
    %1919 = vmatprep.subr.mxu0 %v1281
    %1920 = vmatpush1.msra.mxu0 %v1280
    %1921 = vmatprep.subr.mxu0 %v1289
    %1922 = vmatpush1.msra.mxu0 %v1288
    %1923 = vmatprep.subr.mxu0 %v1297
    %1924 = vmatpush1.msra.mxu0 %v1296
    %1925 = vmatprep.subr.mxu0 %v1305
    %1926 = vmatpush1.msra.mxu0 %v1304
    %1927 = vmatprep.subr.mxu0 %v1313
    %1928 = vmatpush1.msra.mxu0 %v1312
    %1929 = vmatprep.subr.mxu0 %v1321
    %1930 = vmatpush1.msra.mxu0 %v1320
    %1931 = vmatprep.subr.mxu0 %v1329
    %1932 = vmatpush1.msra.mxu0 %v1328
    %1933 = vmatprep.subr.mxu0 %v1337
    %1934 = vmatpush1.msra.mxu0 %v1336
    %1935 = vmatprep.subr.mxu0 %v1345
    %1936 = vmatpush1.msra.mxu0 %v1344
    %1937 = vmatprep.subr.mxu0 %v1353
    %1938 = vmatpush1.msra.mxu0 %v1352
    %1939 = vmatprep.subr.mxu0 %v1361
    %1940 = vmatpush1.msra.mxu0 %v1360
    %1941 = vmatprep.mubr.f32.mxu0 %v1718
    %1942 = vmatmul.mubr.f32.gmra.mrb[0].mxu0 %v1717
    %v1943 = vpop.f32.mrb[0].mxu0
    %v1944 = vadd.f32 0.0, %v1943
    %v1945 = vpop.f32.mrb[0].mxu0
    %v1946 = vadd.f32 0.0, %v1945
    %1947 = vdwg.mxu0
    %1948 = vmatprep.subr.mxu0 %v1115
    %1949 = vmatpush1.msra.mxu0 %v1114
    %1950 = vmatprep.subr.mxu0 %v1123
    %1951 = vmatpush1.msra.mxu0 %v1122
    %1952 = vmatprep.subr.mxu0 %v1131
    %1953 = vmatpush1.msra.mxu0 %v1130
    %1954 = vmatprep.subr.mxu0 %v1139
    %1955 = vmatpush1.msra.mxu0 %v1138
    %1956 = vmatprep.subr.mxu0 %v1147
    %1957 = vmatpush1.msra.mxu0 %v1146
    %1958 = vmatprep.subr.mxu0 %v1155
    %1959 = vmatpush1.msra.mxu0 %v1154
    %1960 = vmatprep.subr.mxu0 %v1163
    %1961 = vmatpush1.msra.mxu0 %v1162
    %1962 = vmatprep.subr.mxu0 %v1171
    %1963 = vmatpush1.msra.mxu0 %v1170
    %1964 = vmatprep.subr.mxu0 %v1179
    %1965 = vmatpush1.msra.mxu0 %v1178
    %1966 = vmatprep.subr.mxu0 %v1187
    %1967 = vmatpush1.msra.mxu0 %v1186
    %1968 = vmatprep.subr.mxu0 %v1195
    %1969 = vmatpush1.msra.mxu0 %v1194
    %1970 = vmatprep.subr.mxu0 %v1203
    %1971 = vmatpush1.msra.mxu0 %v1202
    %1972 = vmatprep.subr.mxu0 %v1211
    %1973 = vmatpush1.msra.mxu0 %v1210
    %1974 = vmatprep.subr.mxu0 %v1219
    %1975 = vmatpush1.msra.mxu0 %v1218
    %1976 = vmatprep.subr.mxu0 %v1227
    %1977 = vmatpush1.msra.mxu0 %v1226
    %1978 = vmatprep.subr.mxu0 %v1235
    %1979 = vmatpush1.msra.mxu0 %v1234
    %1980 = vmatprep.subr.mxu0 %v1243
    %1981 = vmatpush1.msra.mxu0 %v1242
    %1982 = vmatprep.subr.mxu0 %v1251
    %1983 = vmatpush1.msra.mxu0 %v1250
    %1984 = vmatprep.subr.mxu0 %v1259
    %1985 = vmatpush1.msra.mxu0 %v1258
    %1986 = vmatprep.subr.mxu0 %v1267
    %1987 = vmatpush1.msra.mxu0 %v1266
    %1988 = vmatprep.subr.mxu0 %v1275
    %1989 = vmatpush1.msra.mxu0 %v1274
    %1990 = vmatprep.subr.mxu0 %v1283
    %1991 = vmatpush1.msra.mxu0 %v1282
    %1992 = vmatprep.subr.mxu0 %v1291
    %1993 = vmatpush1.msra.mxu0 %v1290
    %1994 = vmatprep.subr.mxu0 %v1299
    %1995 = vmatpush1.msra.mxu0 %v1298
    %1996 = vmatprep.subr.mxu0 %v1307
    %1997 = vmatpush1.msra.mxu0 %v1306
    %1998 = vmatprep.subr.mxu0 %v1315
    %1999 = vmatpush1.msra.mxu0 %v1314
    %2000 = vmatprep.subr.mxu0 %v1323
    %2001 = vmatpush1.msra.mxu0 %v1322
    %2002 = vmatprep.subr.mxu0 %v1331
    %2003 = vmatpush1.msra.mxu0 %v1330
    %2004 = vmatprep.subr.mxu0 %v1339
    %2005 = vmatpush1.msra.mxu0 %v1338
    %2006 = vmatprep.subr.mxu0 %v1347
    %2007 = vmatpush1.msra.mxu0 %v1346
    %2008 = vmatprep.subr.mxu0 %v1355
    %2009 = vmatpush1.msra.mxu0 %v1354
    %2010 = vmatprep.subr.mxu0 %v1363
    %2011 = vmatpush1.msra.mxu0 %v1362
    %2012 = vmatprep.mubr.f32.mxu0 %v1718
    %2013 = vmatmul.mubr.f32.gmra.mrb[0].mxu0 %v1717
    %v2014 = vpop.f32.mrb[0].mxu0
    %v2015 = vadd.f32 0.0, %v2014
    %v2016 = vpop.f32.mrb[0].mxu0
    %v2017 = vadd.f32 0.0, %v2016
    %2018 = vdwg.mxu0
    %v2019 = vadd.f32 %v1727, %v1802
    %v2020 = vadd.f32 %v1728, %v1804
    %v2021 = vadd.f32 %v1729, %v1873
    %v2022 = vadd.f32 %v1730, %v1875
    %v2023 = vadd.f32 %v1731, %v1944
    %v2024 = vadd.f32 %v1732, %v1946
    %v2025 = vadd.f32 %v1733, %v2015
    %v2026 = vadd.f32 %v1734, %v2017
    %v2027 = vxor.u32 %v2019, 2147483648
    %v2028 = vxor.u32 %v2020, 2147483648
    %v2029 = vxor.u32 %v2021, 2147483648
    %v2030 = vxor.u32 %v2022, 2147483648
    %v2031 = vxor.u32 %v2023, 2147483648
    %v2032 = vxor.u32 %v2024, 2147483648
    %v2033 = vmul.f32 %v2027, 1.442695
    %v2034 = vpow.pop %v2033
    %v2035 = vmul.f32 %v2028, 1.442695
    %v2036 = vpow.pop %v2035
    %v2037 = vmul.f32 %v2029, 1.442695
    %v2038 = vpow.pop %v2037
    %v2039 = vmul.f32 %v2030, 1.442695
    %v2040 = vpow.pop %v2039
    %v2041 = vmul.f32 %v2031, 1.442695
    %v2042 = vpow.pop %v2041
    %v2043 = vmul.f32 %v2032, 1.442695
    %v2044 = vpow.pop %v2043
    %v2045 = vadd.f32 %v2034, 1.0
    %v2046 = vadd.f32 %v2036, 1.0
    %v2047 = vadd.f32 %v2038, 1.0
    %v2048 = vadd.f32 %v2040, 1.0
    %v2049 = vadd.f32 %v2042, 1.0
    %v2050 = vadd.f32 %v2044, 1.0
    %v2051 = vrcp.pop %v2045
    %v2052 = vmul.f32 1.0, %v2051
    %v2053 = vrcp.pop %v2046
    %v2054 = vmul.f32 1.0, %v2053
    %v2055 = vrcp.pop %v2047
    %v2056 = vmul.f32 1.0, %v2055
    %v2057 = vrcp.pop %v2048
    %v2058 = vmul.f32 1.0, %v2057
    %v2059 = vrcp.pop %v2049
    %v2060 = vmul.f32 1.0, %v2059
    %v2061 = vrcp.pop %v2050
    %v2062 = vmul.f32 1.0, %v2061
    %v2063 = vtanh.pop %v2025
    %v2064 = vtanh.pop %v2026
    %v2065 = vmul.f32 %v2056, %v1713
    %v2066 = vmul.f32 %v2058, %v1714
    %v2067 = vmul.f32 %v2052, %v2063
    %v2068 = vmul.f32 %v2054, %v2064
    %v2069 = vadd.f32 %v2065, %v2067
    %v2070 = vadd.f32 %v2066, %v2068
    %v2071 = vtanh.pop %v2069
    %v2072 = vtanh.pop %v2070
    %v2073 = vmul.f32 %v2060, %v2071
    %v2074 = vmul.f32 %v2062, %v2072
    %s2075 = smul.u32 1, 2
    %s2076 = smul.addr %s2075, 8
    %s2077 = scalar_lea.vmem [#allocation3], %s2076
    %2078 = vst [vmem:[%s2077] sm:$0xff] %v2073
    %2079 = vst [vmem:[%s2077 + $0x8] sm:$0xff] %v2074
    %s2080 = smul.u32 2, 8
    %s2081 = smul.addr %s2080, 8
    %s2082 = scalar_lea.vmem [#allocation2], %s2081
    %v2083 = vld [vmem:[%s2082] sm:$0xff]
    %v2084 = vld [vmem:[%s2082 + $0x8] sm:$0xff]
    %v2085 = vld [vmem:[%s2082 + $0x10] sm:$0xff]
    %v2086 = vld [vmem:[%s2082 + $0x18] sm:$0xff]
    %v2087 = vld [vmem:[%s2082 + $0x20] sm:$0xff]
    %v2088 = vld [vmem:[%s2082 + $0x28] sm:$0xff]
    %v2089 = vld [vmem:[%s2082 + $0x30] sm:$0xff]
    %v2090 = vld [vmem:[%s2082 + $0x38] sm:$0xff]
    %2091 = vmatprep.subr.mxu0 %v1109
    %2092 = vmatpush1.msra.mxu0 %v1108
    %2093 = vmatprep.subr.mxu0 %v1117
    %2094 = vmatpush1.msra.mxu0 %v1116
    %2095 = vmatprep.subr.mxu0 %v1125
    %2096 = vmatpush1.msra.mxu0 %v1124
    %2097 = vmatprep.subr.mxu0 %v1133
    %2098 = vmatpush1.msra.mxu0 %v1132
    %2099 = vmatprep.subr.mxu0 %v1141
    %2100 = vmatpush1.msra.mxu0 %v1140
    %2101 = vmatprep.subr.mxu0 %v1149
    %2102 = vmatpush1.msra.mxu0 %v1148
    %2103 = vmatprep.subr.mxu0 %v1157
    %2104 = vmatpush1.msra.mxu0 %v1156
    %2105 = vmatprep.subr.mxu0 %v1165
    %2106 = vmatpush1.msra.mxu0 %v1164
    %2107 = vmatprep.subr.mxu0 %v1173
    %2108 = vmatpush1.msra.mxu0 %v1172
    %2109 = vmatprep.subr.mxu0 %v1181
    %2110 = vmatpush1.msra.mxu0 %v1180
    %2111 = vmatprep.subr.mxu0 %v1189
    %2112 = vmatpush1.msra.mxu0 %v1188
    %2113 = vmatprep.subr.mxu0 %v1197
    %2114 = vmatpush1.msra.mxu0 %v1196
    %2115 = vmatprep.subr.mxu0 %v1205
    %2116 = vmatpush1.msra.mxu0 %v1204
    %2117 = vmatprep.subr.mxu0 %v1213
    %2118 = vmatpush1.msra.mxu0 %v1212
    %2119 = vmatprep.subr.mxu0 %v1221
    %2120 = vmatpush1.msra.mxu0 %v1220
    %2121 = vmatprep.subr.mxu0 %v1229
    %2122 = vmatpush1.msra.mxu0 %v1228
    %2123 = vmatprep.subr.mxu0 %v1237
    %2124 = vmatpush1.msra.mxu0 %v1236
    %2125 = vmatprep.subr.mxu0 %v1245
    %2126 = vmatpush1.msra.mxu0 %v1244
    %2127 = vmatprep.subr.mxu0 %v1253
    %2128 = vmatpush1.msra.mxu0 %v1252
    %2129 = vmatprep.subr.mxu0 %v1261
    %2130 = vmatpush1.msra.mxu0 %v1260
    %2131 = vmatprep.subr.mxu0 %v1269
    %2132 = vmatpush1.msra.mxu0 %v1268
    %2133 = vmatprep.subr.mxu0 %v1277
    %2134 = vmatpush1.msra.mxu0 %v1276
    %2135 = vmatprep.subr.mxu0 %v1285
    %2136 = vmatpush1.msra.mxu0 %v1284
    %2137 = vmatprep.subr.mxu0 %v1293
    %2138 = vmatpush1.msra.mxu0 %v1292
    %2139 = vmatprep.subr.mxu0 %v1301
    %2140 = vmatpush1.msra.mxu0 %v1300
    %2141 = vmatprep.subr.mxu0 %v1309
    %2142 = vmatpush1.msra.mxu0 %v1308
    %2143 = vmatprep.subr.mxu0 %v1317
    %2144 = vmatpush1.msra.mxu0 %v1316
    %2145 = vmatprep.subr.mxu0 %v1325
    %2146 = vmatpush1.msra.mxu0 %v1324
    %2147 = vmatprep.subr.mxu0 %v1333
    %2148 = vmatpush1.msra.mxu0 %v1332
    %2149 = vmatprep.subr.mxu0 %v1341
    %2150 = vmatpush1.msra.mxu0 %v1340
    %2151 = vmatprep.subr.mxu0 %v1349
    %2152 = vmatpush1.msra.mxu0 %v1348
    %2153 = vmatprep.subr.mxu0 %v1357
    %2154 = vmatpush1.msra.mxu0 %v1356
    %2155 = vmatprep.mubr.f32.mxu0 %v2074
    %2156 = vmatmul.mubr.f32.gmra.mrb[0].mxu0 %v2073
    %v2157 = vpop.f32.mrb[0].mxu0
    %v2158 = vadd.f32 0.0, %v2157
    %v2159 = vpop.f32.mrb[0].mxu0
    %v2160 = vadd.f32 0.0, %v2159
    %2161 = vdwg.mxu0
    %2162 = vmatprep.subr.mxu0 %v1111
    %2163 = vmatpush1.msra.mxu0 %v1110
    %2164 = vmatprep.subr.mxu0 %v1119
    %2165 = vmatpush1.msra.mxu0 %v1118
    %2166 = vmatprep.subr.mxu0 %v1127
    %2167 = vmatpush1.msra.mxu0 %v1126
    %2168 = vmatprep.subr.mxu0 %v1135
    %2169 = vmatpush1.msra.mxu0 %v1134
    %2170 = vmatprep.subr.mxu0 %v1143
    %2171 = vmatpush1.msra.mxu0 %v1142
    %2172 = vmatprep.subr.mxu0 %v1151
    %2173 = vmatpush1.msra.mxu0 %v1150
    %2174 = vmatprep.subr.mxu0 %v1159
    %2175 = vmatpush1.msra.mxu0 %v1158
    %2176 = vmatprep.subr.mxu0 %v1167
    %2177 = vmatpush1.msra.mxu0 %v1166
    %2178 = vmatprep.subr.mxu0 %v1175
    %2179 = vmatpush1.msra.mxu0 %v1174
    %2180 = vmatprep.subr.mxu0 %v1183
    %2181 = vmatpush1.msra.mxu0 %v1182
    %2182 = vmatprep.subr.mxu0 %v1191
    %2183 = vmatpush1.msra.mxu0 %v1190
    %2184 = vmatprep.subr.mxu0 %v1199
    %2185 = vmatpush1.msra.mxu0 %v1198
    %2186 = vmatprep.subr.mxu0 %v1207
    %2187 = vmatpush1.msra.mxu0 %v1206
    %2188 = vmatprep.subr.mxu0 %v1215
    %2189 = vmatpush1.msra.mxu0 %v1214
    %2190 = vmatprep.subr.mxu0 %v1223
    %2191 = vmatpush1.msra.mxu0 %v1222
    %2192 = vmatprep.subr.mxu0 %v1231
    %2193 = vmatpush1.msra.mxu0 %v1230
    %2194 = vmatprep.subr.mxu0 %v1239
    %2195 = vmatpush1.msra.mxu0 %v1238
    %2196 = vmatprep.subr.mxu0 %v1247
    %2197 = vmatpush1.msra.mxu0 %v1246
    %2198 = vmatprep.subr.mxu0 %v1255
    %2199 = vmatpush1.msra.mxu0 %v1254
    %2200 = vmatprep.subr.mxu0 %v1263
    %2201 = vmatpush1.msra.mxu0 %v1262
    %2202 = vmatprep.subr.mxu0 %v1271
    %2203 = vmatpush1.msra.mxu0 %v1270
    %2204 = vmatprep.subr.mxu0 %v1279
    %2205 = vmatpush1.msra.mxu0 %v1278
    %2206 = vmatprep.subr.mxu0 %v1287
    %2207 = vmatpush1.msra.mxu0 %v1286
    %2208 = vmatprep.subr.mxu0 %v1295
    %2209 = vmatpush1.msra.mxu0 %v1294
    %2210 = vmatprep.subr.mxu0 %v1303
    %2211 = vmatpush1.msra.mxu0 %v1302
    %2212 = vmatprep.subr.mxu0 %v1311
    %2213 = vmatpush1.msra.mxu0 %v1310
    %2214 = vmatprep.subr.mxu0 %v1319
    %2215 = vmatpush1.msra.mxu0 %v1318
    %2216 = vmatprep.subr.mxu0 %v1327
    %2217 = vmatpush1.msra.mxu0 %v1326
    %2218 = vmatprep.subr.mxu0 %v1335
    %2219 = vmatpush1.msra.mxu0 %v1334
    %2220 = vmatprep.subr.mxu0 %v1343
    %2221 = vmatpush1.msra.mxu0 %v1342
    %2222 = vmatprep.subr.mxu0 %v1351
    %2223 = vmatpush1.msra.mxu0 %v1350
    %2224 = vmatprep.subr.mxu0 %v1359
    %2225 = vmatpush1.msra.mxu0 %v1358
    %2226 = vmatprep.mubr.f32.mxu0 %v2074
    %2227 = vmatmul.mubr.f32.gmra.mrb[0].mxu0 %v2073
    %v2228 = vpop.f32.mrb[0].mxu0
    %v2229 = vadd.f32 0.0, %v2228
    %v2230 = vpop.f32.mrb[0].mxu0
    %v2231 = vadd.f32 0.0, %v2230
    %2232 = vdwg.mxu0
    %2233 = vmatprep.subr.mxu0 %v1113
    %2234 = vmatpush1.msra.mxu0 %v1112
    %2235 = vmatprep.subr.mxu0 %v1121
    %2236 = vmatpush1.msra.mxu0 %v1120
    %2237 = vmatprep.subr.mxu0 %v1129
    %2238 = vmatpush1.msra.mxu0 %v1128
    %2239 = vmatprep.subr.mxu0 %v1137
    %2240 = vmatpush1.msra.mxu0 %v1136
    %2241 = vmatprep.subr.mxu0 %v1145
    %2242 = vmatpush1.msra.mxu0 %v1144
    %2243 = vmatprep.subr.mxu0 %v1153
    %2244 = vmatpush1.msra.mxu0 %v1152
    %2245 = vmatprep.subr.mxu0 %v1161
    %2246 = vmatpush1.msra.mxu0 %v1160
    %2247 = vmatprep.subr.mxu0 %v1169
    %2248 = vmatpush1.msra.mxu0 %v1168
    %2249 = vmatprep.subr.mxu0 %v1177
    %2250 = vmatpush1.msra.mxu0 %v1176
    %2251 = vmatprep.subr.mxu0 %v1185
    %2252 = vmatpush1.msra.mxu0 %v1184
    %2253 = vmatprep.subr.mxu0 %v1193
    %2254 = vmatpush1.msra.mxu0 %v1192
    %2255 = vmatprep.subr.mxu0 %v1201
    %2256 = vmatpush1.msra.mxu0 %v1200
    %2257 = vmatprep.subr.mxu0 %v1209
    %2258 = vmatpush1.msra.mxu0 %v1208
    %2259 = vmatprep.subr.mxu0 %v1217
    %2260 = vmatpush1.msra.mxu0 %v1216
    %2261 = vmatprep.subr.mxu0 %v1225
    %2262 = vmatpush1.msra.mxu0 %v1224
    %2263 = vmatprep.subr.mxu0 %v1233
    %2264 = vmatpush1.msra.mxu0 %v1232
    %2265 = vmatprep.subr.mxu0 %v1241
    %2266 = vmatpush1.msra.mxu0 %v1240
    %2267 = vmatprep.subr.mxu0 %v1249
    %2268 = vmatpush1.msra.mxu0 %v1248
    %2269 = vmatprep.subr.mxu0 %v1257
    %2270 = vmatpush1.msra.mxu0 %v1256
    %2271 = vmatprep.subr.mxu0 %v1265
    %2272 = vmatpush1.msra.mxu0 %v1264
    %2273 = vmatprep.subr.mxu0 %v1273
    %2274 = vmatpush1.msra.mxu0 %v1272
    %2275 = vmatprep.subr.mxu0 %v1281
    %2276 = vmatpush1.msra.mxu0 %v1280
    %2277 = vmatprep.subr.mxu0 %v1289
    %2278 = vmatpush1.msra.mxu0 %v1288
    %2279 = vmatprep.subr.mxu0 %v1297
    %2280 = vmatpush1.msra.mxu0 %v1296
    %2281 = vmatprep.subr.mxu0 %v1305
    %2282 = vmatpush1.msra.mxu0 %v1304
    %2283 = vmatprep.subr.mxu0 %v1313
    %2284 = vmatpush1.msra.mxu0 %v1312
    %2285 = vmatprep.subr.mxu0 %v1321
    %2286 = vmatpush1.msra.mxu0 %v1320
    %2287 = vmatprep.subr.mxu0 %v1329
    %2288 = vmatpush1.msra.mxu0 %v1328
    %2289 = vmatprep.subr.mxu0 %v1337
    %2290 = vmatpush1.msra.mxu0 %v1336
    %2291 = vmatprep.subr.mxu0 %v1345
    %2292 = vmatpush1.msra.mxu0 %v1344
    %2293 = vmatprep.subr.mxu0 %v1353
    %2294 = vmatpush1.msra.mxu0 %v1352
    %2295 = vmatprep.subr.mxu0 %v1361
    %2296 = vmatpush1.msra.mxu0 %v1360
    %2297 = vmatprep.mubr.f32.mxu0 %v2074
    %2298 = vmatmul.mubr.f32.gmra.mrb[0].mxu0 %v2073
    %v2299 = vpop.f32.mrb[0].mxu0
    %v2300 = vadd.f32 0.0, %v2299
    %v2301 = vpop.f32.mrb[0].mxu0
    %v2302 = vadd.f32 0.0, %v2301
    %2303 = vdwg.mxu0
    %2304 = vmatprep.subr.mxu0 %v1115
    %2305 = vmatpush1.msra.mxu0 %v1114
    %2306 = vmatprep.subr.mxu0 %v1123
    %2307 = vmatpush1.msra.mxu0 %v1122
    %2308 = vmatprep.subr.mxu0 %v1131
    %2309 = vmatpush1.msra.mxu0 %v1130
    %2310 = vmatprep.subr.mxu0 %v1139
    %2311 = vmatpush1.msra.mxu0 %v1138
    %2312 = vmatprep.subr.mxu0 %v1147
    %2313 = vmatpush1.msra.mxu0 %v1146
    %2314 = vmatprep.subr.mxu0 %v1155
    %2315 = vmatpush1.msra.mxu0 %v1154
    %2316 = vmatprep.subr.mxu0 %v1163
    %2317 = vmatpush1.msra.mxu0 %v1162
    %2318 = vmatprep.subr.mxu0 %v1171
    %2319 = vmatpush1.msra.mxu0 %v1170
    %2320 = vmatprep.subr.mxu0 %v1179
    %2321 = vmatpush1.msra.mxu0 %v1178
    %2322 = vmatprep.subr.mxu0 %v1187
    %2323 = vmatpush1.msra.mxu0 %v1186
    %2324 = vmatprep.subr.mxu0 %v1195
    %2325 = vmatpush1.msra.mxu0 %v1194
    %2326 = vmatprep.subr.mxu0 %v1203
    %2327 = vmatpush1.msra.mxu0 %v1202
    %2328 = vmatprep.subr.mxu0 %v1211
    %2329 = vmatpush1.msra.mxu0 %v1210
    %2330 = vmatprep.subr.mxu0 %v1219
    %2331 = vmatpush1.msra.mxu0 %v1218
    %2332 = vmatprep.subr.mxu0 %v1227
    %2333 = vmatpush1.msra.mxu0 %v1226
    %2334 = vmatprep.subr.mxu0 %v1235
    %2335 = vmatpush1.msra.mxu0 %v1234
    %2336 = vmatprep.subr.mxu0 %v1243
    %2337 = vmatpush1.msra.mxu0 %v1242
    %2338 = vmatprep.subr.mxu0 %v1251
    %2339 = vmatpush1.msra.mxu0 %v1250
    %2340 = vmatprep.subr.mxu0 %v1259
    %2341 = vmatpush1.msra.mxu0 %v1258
    %2342 = vmatprep.subr.mxu0 %v1267
    %2343 = vmatpush1.msra.mxu0 %v1266
    %2344 = vmatprep.subr.mxu0 %v1275
    %2345 = vmatpush1.msra.mxu0 %v1274
    %2346 = vmatprep.subr.mxu0 %v1283
    %2347 = vmatpush1.msra.mxu0 %v1282
    %2348 = vmatprep.subr.mxu0 %v1291
    %2349 = vmatpush1.msra.mxu0 %v1290
    %2350 = vmatprep.subr.mxu0 %v1299
    %2351 = vmatpush1.msra.mxu0 %v1298
    %2352 = vmatprep.subr.mxu0 %v1307
    %2353 = vmatpush1.msra.mxu0 %v1306
    %2354 = vmatprep.subr.mxu0 %v1315
    %2355 = vmatpush1.msra.mxu0 %v1314
    %2356 = vmatprep.subr.mxu0 %v1323
    %2357 = vmatpush1.msra.mxu0 %v1322
    %2358 = vmatprep.subr.mxu0 %v1331
    %2359 = vmatpush1.msra.mxu0 %v1330
    %2360 = vmatprep.subr.mxu0 %v1339
    %2361 = vmatpush1.msra.mxu0 %v1338
    %2362 = vmatprep.subr.mxu0 %v1347
    %2363 = vmatpush1.msra.mxu0 %v1346
    %2364 = vmatprep.subr.mxu0 %v1355
    %2365 = vmatpush1.msra.mxu0 %v1354
    %2366 = vmatprep.subr.mxu0 %v1363
    %2367 = vmatpush1.msra.mxu0 %v1362
    %2368 = vmatprep.mubr.f32.mxu0 %v2074
    %2369 = vmatmul.mubr.f32.gmra.mrb[0].mxu0 %v2073
    %v2370 = vpop.f32.mrb[0].mxu0
    %v2371 = vadd.f32 0.0, %v2370
    %v2372 = vpop.f32.mrb[0].mxu0
    %v2373 = vadd.f32 0.0, %v2372
    %2374 = vdwg.mxu0
    %v2375 = vadd.f32 %v2083, %v2158
    %v2376 = vadd.f32 %v2084, %v2160
    %v2377 = vadd.f32 %v2085, %v2229
    %v2378 = vadd.f32 %v2086, %v2231
    %v2379 = vadd.f32 %v2087, %v2300
    %v2380 = vadd.f32 %v2088, %v2302
    %v2381 = vadd.f32 %v2089, %v2371
    %v2382 = vadd.f32 %v2090, %v2373
    %v2383 = vxor.u32 %v2375, 2147483648
    %v2384 = vxor.u32 %v2376, 2147483648
    %v2385 = vxor.u32 %v2377, 2147483648
    %v2386 = vxor.u32 %v2378, 2147483648
    %v2387 = vxor.u32 %v2379, 2147483648
    %v2388 = vxor.u32 %v2380, 2147483648
    %v2389 = vmul.f32 %v2383, 1.442695
    %v2390 = vpow.pop %v2389
    %v2391 = vmul.f32 %v2384, 1.442695
    %v2392 = vpow.pop %v2391
    %v2393 = vmul.f32 %v2385, 1.442695
    %v2394 = vpow.pop %v2393
    %v2395 = vmul.f32 %v2386, 1.442695
    %v2396 = vpow.pop %v2395
    %v2397 = vmul.f32 %v2387, 1.442695
    %v2398 = vpow.pop %v2397
    %v2399 = vmul.f32 %v2388, 1.442695
    %v2400 = vpow.pop %v2399
    %v2401 = vadd.f32 %v2390, 1.0
    %v2402 = vadd.f32 %v2392, 1.0
    %v2403 = vadd.f32 %v2394, 1.0
    %v2404 = vadd.f32 %v2396, 1.0
    %v2405 = vadd.f32 %v2398, 1.0
    %v2406 = vadd.f32 %v2400, 1.0
    %v2407 = vrcp.pop %v2401
    %v2408 = vmul.f32 1.0, %v2407
    %v2409 = vrcp.pop %v2402
    %v2410 = vmul.f32 1.0, %v2409
    %v2411 = vrcp.pop %v2403
    %v2412 = vmul.f32 1.0, %v2411
    %v2413 = vrcp.pop %v2404
    %v2414 = vmul.f32 1.0, %v2413
    %v2415 = vrcp.pop %v2405
    %v2416 = vmul.f32 1.0, %v2415
    %v2417 = vrcp.pop %v2406
    %v2418 = vmul.f32 1.0, %v2417
    %v2419 = vtanh.pop %v2381
    %v2420 = vtanh.pop %v2382
    %v2421 = vmul.f32 %v2412, %v2069
    %v2422 = vmul.f32 %v2414, %v2070
    %v2423 = vmul.f32 %v2408, %v2419
    %v2424 = vmul.f32 %v2410, %v2420
    %v2425 = vadd.f32 %v2421, %v2423
    %v2426 = vadd.f32 %v2422, %v2424
    %v2427 = vtanh.pop %v2425
    %v2428 = vtanh.pop %v2426
    %v2429 = vmul.f32 %v2416, %v2427
    %v2430 = vmul.f32 %v2418, %v2428
    %s2431 = smul.u32 2, 2
    %s2432 = smul.addr %s2431, 8
    %s2433 = scalar_lea.vmem [#allocation3], %s2432
    %2434 = vst [vmem:[%s2433] sm:$0xff] %v2429
    %2435 = vst [vmem:[%s2433 + $0x8] sm:$0xff] %v2430
    %s2436 = smul.u32 3, 8
    %s2437 = smul.addr %s2436, 8
    %s2438 = scalar_lea.vmem [#allocation2], %s2437
    %v2439 = vld [vmem:[%s2438] sm:$0xff]
    %v2440 = vld [vmem:[%s2438 + $0x8] sm:$0xff]
    %v2441 = vld [vmem:[%s2438 + $0x10] sm:$0xff]
    %v2442 = vld [vmem:[%s2438 + $0x18] sm:$0xff]
    %v2443 = vld [vmem:[%s2438 + $0x20] sm:$0xff]
    %v2444 = vld [vmem:[%s2438 + $0x28] sm:$0xff]
    %v2445 = vld [vmem:[%s2438 + $0x30] sm:$0xff]
    %v2446 = vld [vmem:[%s2438 + $0x38] sm:$0xff]
    %2447 = vmatprep.subr.mxu0 %v1109
    %2448 = vmatpush1.msra.mxu0 %v1108
    %2449 = vmatprep.subr.mxu0 %v1117
    %2450 = vmatpush1.msra.mxu0 %v1116
    %2451 = vmatprep.subr.mxu0 %v1125
    %2452 = vmatpush1.msra.mxu0 %v1124
    %2453 = vmatprep.subr.mxu0 %v1133
    %2454 = vmatpush1.msra.mxu0 %v1132
    %2455 = vmatprep.subr.mxu0 %v1141
    %2456 = vmatpush1.msra.mxu0 %v1140
    %2457 = vmatprep.subr.mxu0 %v1149
    %2458 = vmatpush1.msra.mxu0 %v1148
    %2459 = vmatprep.subr.mxu0 %v1157
    %2460 = vmatpush1.msra.mxu0 %v1156
    %2461 = vmatprep.subr.mxu0 %v1165
    %2462 = vmatpush1.msra.mxu0 %v1164
    %2463 = vmatprep.subr.mxu0 %v1173
    %2464 = vmatpush1.msra.mxu0 %v1172
    %2465 = vmatprep.subr.mxu0 %v1181
    %2466 = vmatpush1.msra.mxu0 %v1180
    %2467 = vmatprep.subr.mxu0 %v1189
    %2468 = vmatpush1.msra.mxu0 %v1188
    %2469 = vmatprep.subr.mxu0 %v1197
    %2470 = vmatpush1.msra.mxu0 %v1196
    %2471 = vmatprep.subr.mxu0 %v1205
    %2472 = vmatpush1.msra.mxu0 %v1204
    %2473 = vmatprep.subr.mxu0 %v1213
    %2474 = vmatpush1.msra.mxu0 %v1212
    %2475 = vmatprep.subr.mxu0 %v1221
    %2476 = vmatpush1.msra.mxu0 %v1220
    %2477 = vmatprep.subr.mxu0 %v1229
    %2478 = vmatpush1.msra.mxu0 %v1228
    %2479 = vmatprep.subr.mxu0 %v1237
    %2480 = vmatpush1.msra.mxu0 %v1236
    %2481 = vmatprep.subr.mxu0 %v1245
    %2482 = vmatpush1.msra.mxu0 %v1244
    %2483 = vmatprep.subr.mxu0 %v1253
    %2484 = vmatpush1.msra.mxu0 %v1252
    %2485 = vmatprep.subr.mxu0 %v1261
    %2486 = vmatpush1.msra.mxu0 %v1260
    %2487 = vmatprep.subr.mxu0 %v1269
    %2488 = vmatpush1.msra.mxu0 %v1268
    %2489 = vmatprep.subr.mxu0 %v1277
    %2490 = vmatpush1.msra.mxu0 %v1276
    %2491 = vmatprep.subr.mxu0 %v1285
    %2492 = vmatpush1.msra.mxu0 %v1284
    %2493 = vmatprep.subr.mxu0 %v1293
    %2494 = vmatpush1.msra.mxu0 %v1292
    %2495 = vmatprep.subr.mxu0 %v1301
    %2496 = vmatpush1.msra.mxu0 %v1300
    %2497 = vmatprep.subr.mxu0 %v1309
    %2498 = vmatpush1.msra.mxu0 %v1308
    %2499 = vmatprep.subr.mxu0 %v1317
    %2500 = vmatpush1.msra.mxu0 %v1316
    %2501 = vmatprep.subr.mxu0 %v1325
    %2502 = vmatpush1.msra.mxu0 %v1324
    %2503 = vmatprep.subr.mxu0 %v1333
    %2504 = vmatpush1.msra.mxu0 %v1332
    %2505 = vmatprep.subr.mxu0 %v1341
    %2506 = vmatpush1.msra.mxu0 %v1340
    %2507 = vmatprep.subr.mxu0 %v1349
    %2508 = vmatpush1.msra.mxu0 %v1348
    %2509 = vmatprep.subr.mxu0 %v1357
    %2510 = vmatpush1.msra.mxu0 %v1356
    %2511 = vmatprep.mubr.f32.mxu0 %v2430
    %2512 = vmatmul.mubr.f32.gmra.mrb[0].mxu0 %v2429
    %v2513 = vpop.f32.mrb[0].mxu0
    %v2514 = vadd.f32 0.0, %v2513
    %v2515 = vpop.f32.mrb[0].mxu0
    %v2516 = vadd.f32 0.0, %v2515
    %2517 = vdwg.mxu0
    %2518 = vmatprep.subr.mxu0 %v1111
    %2519 = vmatpush1.msra.mxu0 %v1110
    %2520 = vmatprep.subr.mxu0 %v1119
    %2521 = vmatpush1.msra.mxu0 %v1118
    %2522 = vmatprep.subr.mxu0 %v1127
    %2523 = vmatpush1.msra.mxu0 %v1126
    %2524 = vmatprep.subr.mxu0 %v1135
    %2525 = vmatpush1.msra.mxu0 %v1134
    %2526 = vmatprep.subr.mxu0 %v1143
    %2527 = vmatpush1.msra.mxu0 %v1142
    %2528 = vmatprep.subr.mxu0 %v1151
    %2529 = vmatpush1.msra.mxu0 %v1150
    %2530 = vmatprep.subr.mxu0 %v1159
    %2531 = vmatpush1.msra.mxu0 %v1158
    %2532 = vmatprep.subr.mxu0 %v1167
    %2533 = vmatpush1.msra.mxu0 %v1166
    %2534 = vmatprep.subr.mxu0 %v1175
    %2535 = vmatpush1.msra.mxu0 %v1174
    %2536 = vmatprep.subr.mxu0 %v1183
    %2537 = vmatpush1.msra.mxu0 %v1182
    %2538 = vmatprep.subr.mxu0 %v1191
    %2539 = vmatpush1.msra.mxu0 %v1190
    %2540 = vmatprep.subr.mxu0 %v1199
    %2541 = vmatpush1.msra.mxu0 %v1198
    %2542 = vmatprep.subr.mxu0 %v1207
    %2543 = vmatpush1.msra.mxu0 %v1206
    %2544 = vmatprep.subr.mxu0 %v1215
    %2545 = vmatpush1.msra.mxu0 %v1214
    %2546 = vmatprep.subr.mxu0 %v1223
    %2547 = vmatpush1.msra.mxu0 %v1222
    %2548 = vmatprep.subr.mxu0 %v1231
    %2549 = vmatpush1.msra.mxu0 %v1230
    %2550 = vmatprep.subr.mxu0 %v1239
    %2551 = vmatpush1.msra.mxu0 %v1238
    %2552 = vmatprep.subr.mxu0 %v1247
    %2553 = vmatpush1.msra.mxu0 %v1246
    %2554 = vmatprep.subr.mxu0 %v1255
    %2555 = vmatpush1.msra.mxu0 %v1254
    %2556 = vmatprep.subr.mxu0 %v1263
    %2557 = vmatpush1.msra.mxu0 %v1262
    %2558 = vmatprep.subr.mxu0 %v1271
    %2559 = vmatpush1.msra.mxu0 %v1270
    %2560 = vmatprep.subr.mxu0 %v1279
    %2561 = vmatpush1.msra.mxu0 %v1278
    %2562 = vmatprep.subr.mxu0 %v1287
    %2563 = vmatpush1.msra.mxu0 %v1286
    %2564 = vmatprep.subr.mxu0 %v1295
    %2565 = vmatpush1.msra.mxu0 %v1294
    %2566 = vmatprep.subr.mxu0 %v1303
    %2567 = vmatpush1.msra.mxu0 %v1302
    %2568 = vmatprep.subr.mxu0 %v1311
    %2569 = vmatpush1.msra.mxu0 %v1310
    %2570 = vmatprep.subr.mxu0 %v1319
    %2571 = vmatpush1.msra.mxu0 %v1318
    %2572 = vmatprep.subr.mxu0 %v1327
    %2573 = vmatpush1.msra.mxu0 %v1326
    %2574 = vmatprep.subr.mxu0 %v1335
    %2575 = vmatpush1.msra.mxu0 %v1334
    %2576 = vmatprep.subr.mxu0 %v1343
    %2577 = vmatpush1.msra.mxu0 %v1342
    %2578 = vmatprep.subr.mxu0 %v1351
    %2579 = vmatpush1.msra.mxu0 %v1350
    %2580 = vmatprep.subr.mxu0 %v1359
    %2581 = vmatpush1.msra.mxu0 %v1358
    %2582 = vmatprep.mubr.f32.mxu0 %v2430
    %2583 = vmatmul.mubr.f32.gmra.mrb[0].mxu0 %v2429
    %v2584 = vpop.f32.mrb[0].mxu0
    %v2585 = vadd.f32 0.0, %v2584
    %v2586 = vpop.f32.mrb[0].mxu0
    %v2587 = vadd.f32 0.0, %v2586
    %2588 = vdwg.mxu0
    %2589 = vmatprep.subr.mxu0 %v1113
    %2590 = vmatpush1.msra.mxu0 %v1112
    %2591 = vmatprep.subr.mxu0 %v1121
    %2592 = vmatpush1.msra.mxu0 %v1120
    %2593 = vmatprep.subr.mxu0 %v1129
    %2594 = vmatpush1.msra.mxu0 %v1128
    %2595 = vmatprep.subr.mxu0 %v1137
    %2596 = vmatpush1.msra.mxu0 %v1136
    %2597 = vmatprep.subr.mxu0 %v1145
    %2598 = vmatpush1.msra.mxu0 %v1144
    %2599 = vmatprep.subr.mxu0 %v1153
    %2600 = vmatpush1.msra.mxu0 %v1152
    %2601 = vmatprep.subr.mxu0 %v1161
    %2602 = vmatpush1.msra.mxu0 %v1160
    %2603 = vmatprep.subr.mxu0 %v1169
    %2604 = vmatpush1.msra.mxu0 %v1168
    %2605 = vmatprep.subr.mxu0 %v1177
    %2606 = vmatpush1.msra.mxu0 %v1176
    %2607 = vmatprep.subr.mxu0 %v1185
    %2608 = vmatpush1.msra.mxu0 %v1184
    %2609 = vmatprep.subr.mxu0 %v1193
    %2610 = vmatpush1.msra.mxu0 %v1192
    %2611 = vmatprep.subr.mxu0 %v1201
    %2612 = vmatpush1.msra.mxu0 %v1200
    %2613 = vmatprep.subr.mxu0 %v1209
    %2614 = vmatpush1.msra.mxu0 %v1208
    %2615 = vmatprep.subr.mxu0 %v1217
    %2616 = vmatpush1.msra.mxu0 %v1216
    %2617 = vmatprep.subr.mxu0 %v1225
    %2618 = vmatpush1.msra.mxu0 %v1224
    %2619 = vmatprep.subr.mxu0 %v1233
    %2620 = vmatpush1.msra.mxu0 %v1232
    %2621 = vmatprep.subr.mxu0 %v1241
    %2622 = vmatpush1.msra.mxu0 %v1240
    %2623 = vmatprep.subr.mxu0 %v1249
    %2624 = vmatpush1.msra.mxu0 %v1248
    %2625 = vmatprep.subr.mxu0 %v1257
    %2626 = vmatpush1.msra.mxu0 %v1256
    %2627 = vmatprep.subr.mxu0 %v1265
    %2628 = vmatpush1.msra.mxu0 %v1264
    %2629 = vmatprep.subr.mxu0 %v1273
    %2630 = vmatpush1.msra.mxu0 %v1272
    %2631 = vmatprep.subr.mxu0 %v1281
    %2632 = vmatpush1.msra.mxu0 %v1280
    %2633 = vmatprep.subr.mxu0 %v1289
    %2634 = vmatpush1.msra.mxu0 %v1288
    %2635 = vmatprep.subr.mxu0 %v1297
    %2636 = vmatpush1.msra.mxu0 %v1296
    %2637 = vmatprep.subr.mxu0 %v1305
    %2638 = vmatpush1.msra.mxu0 %v1304
    %2639 = vmatprep.subr.mxu0 %v1313
    %2640 = vmatpush1.msra.mxu0 %v1312
    %2641 = vmatprep.subr.mxu0 %v1321
    %2642 = vmatpush1.msra.mxu0 %v1320
    %2643 = vmatprep.subr.mxu0 %v1329
    %2644 = vmatpush1.msra.mxu0 %v1328
    %2645 = vmatprep.subr.mxu0 %v1337
    %2646 = vmatpush1.msra.mxu0 %v1336
    %2647 = vmatprep.subr.mxu0 %v1345
    %2648 = vmatpush1.msra.mxu0 %v1344
    %2649 = vmatprep.subr.mxu0 %v1353
    %2650 = vmatpush1.msra.mxu0 %v1352
    %2651 = vmatprep.subr.mxu0 %v1361
    %2652 = vmatpush1.msra.mxu0 %v1360
    %2653 = vmatprep.mubr.f32.mxu0 %v2430
    %2654 = vmatmul.mubr.f32.gmra.mrb[0].mxu0 %v2429
    %v2655 = vpop.f32.mrb[0].mxu0
    %v2656 = vadd.f32 0.0, %v2655
    %v2657 = vpop.f32.mrb[0].mxu0
    %v2658 = vadd.f32 0.0, %v2657
    %2659 = vdwg.mxu0
    %2660 = vmatprep.subr.mxu0 %v1115
    %2661 = vmatpush1.msra.mxu0 %v1114
    %2662 = vmatprep.subr.mxu0 %v1123
    %2663 = vmatpush1.msra.mxu0 %v1122
    %2664 = vmatprep.subr.mxu0 %v1131
    %2665 = vmatpush1.msra.mxu0 %v1130
    %2666 = vmatprep.subr.mxu0 %v1139
    %2667 = vmatpush1.msra.mxu0 %v1138
    %2668 = vmatprep.subr.mxu0 %v1147
    %2669 = vmatpush1.msra.mxu0 %v1146
    %2670 = vmatprep.subr.mxu0 %v1155
    %2671 = vmatpush1.msra.mxu0 %v1154
    %2672 = vmatprep.subr.mxu0 %v1163
    %2673 = vmatpush1.msra.mxu0 %v1162
    %2674 = vmatprep.subr.mxu0 %v1171
    %2675 = vmatpush1.msra.mxu0 %v1170
    %2676 = vmatprep.subr.mxu0 %v1179
    %2677 = vmatpush1.msra.mxu0 %v1178
    %2678 = vmatprep.subr.mxu0 %v1187
    %2679 = vmatpush1.msra.mxu0 %v1186
    %2680 = vmatprep.subr.mxu0 %v1195
    %2681 = vmatpush1.msra.mxu0 %v1194
    %2682 = vmatprep.subr.mxu0 %v1203
    %2683 = vmatpush1.msra.mxu0 %v1202
    %2684 = vmatprep.subr.mxu0 %v1211
    %2685 = vmatpush1.msra.mxu0 %v1210
    %2686 = vmatprep.subr.mxu0 %v1219
    %2687 = vmatpush1.msra.mxu0 %v1218
    %2688 = vmatprep.subr.mxu0 %v1227
    %2689 = vmatpush1.msra.mxu0 %v1226
    %2690 = vmatprep.subr.mxu0 %v1235
    %2691 = vmatpush1.msra.mxu0 %v1234
    %2692 = vmatprep.subr.mxu0 %v1243
    %2693 = vmatpush1.msra.mxu0 %v1242
    %2694 = vmatprep.subr.mxu0 %v1251
    %2695 = vmatpush1.msra.mxu0 %v1250
    %2696 = vmatprep.subr.mxu0 %v1259
    %2697 = vmatpush1.msra.mxu0 %v1258
    %2698 = vmatprep.subr.mxu0 %v1267
    %2699 = vmatpush1.msra.mxu0 %v1266
    %2700 = vmatprep.subr.mxu0 %v1275
    %2701 = vmatpush1.msra.mxu0 %v1274
    %2702 = vmatprep.subr.mxu0 %v1283
    %2703 = vmatpush1.msra.mxu0 %v1282
    %2704 = vmatprep.subr.mxu0 %v1291
    %2705 = vmatpush1.msra.mxu0 %v1290
    %2706 = vmatprep.subr.mxu0 %v1299
    %2707 = vmatpush1.msra.mxu0 %v1298
    %2708 = vmatprep.subr.mxu0 %v1307
    %2709 = vmatpush1.msra.mxu0 %v1306
    %2710 = vmatprep.subr.mxu0 %v1315
    %2711 = vmatpush1.msra.mxu0 %v1314
    %2712 = vmatprep.subr.mxu0 %v1323
    %2713 = vmatpush1.msra.mxu0 %v1322
    %2714 = vmatprep.subr.mxu0 %v1331
    %2715 = vmatpush1.msra.mxu0 %v1330
    %2716 = vmatprep.subr.mxu0 %v1339
    %2717 = vmatpush1.msra.mxu0 %v1338
    %2718 = vmatprep.subr.mxu0 %v1347
    %2719 = vmatpush1.msra.mxu0 %v1346
    %2720 = vmatprep.subr.mxu0 %v1355
    %2721 = vmatpush1.msra.mxu0 %v1354
    %2722 = vmatprep.subr.mxu0 %v1363
    %2723 = vmatpush1.msra.mxu0 %v1362
    %2724 = vmatprep.mubr.f32.mxu0 %v2430
    %2725 = vmatmul.mubr.f32.gmra.mrb[0].mxu0 %v2429
    %v2726 = vpop.f32.mrb[0].mxu0
    %v2727 = vadd.f32 0.0, %v2726
    %v2728 = vpop.f32.mrb[0].mxu0
    %v2729 = vadd.f32 0.0, %v2728
    %2730 = vdwg.mxu0
    %v2731 = vadd.f32 %v2439, %v2514
    %v2732 = vadd.f32 %v2440, %v2516
    %v2733 = vadd.f32 %v2441, %v2585
    %v2734 = vadd.f32 %v2442, %v2587
    %v2735 = vadd.f32 %v2443, %v2656
    %v2736 = vadd.f32 %v2444, %v2658
    %v2737 = vadd.f32 %v2445, %v2727
    %v2738 = vadd.f32 %v2446, %v2729
    %v2739 = vxor.u32 %v2731, 2147483648
    %v2740 = vxor.u32 %v2732, 2147483648
    %v2741 = vxor.u32 %v2733, 2147483648
    %v2742 = vxor.u32 %v2734, 2147483648
    %v2743 = vxor.u32 %v2735, 2147483648
    %v2744 = vxor.u32 %v2736, 2147483648
    %v2745 = vmul.f32 %v2739, 1.442695
    %v2746 = vpow.pop %v2745
    %v2747 = vmul.f32 %v2740, 1.442695
    %v2748 = vpow.pop %v2747
    %v2749 = vmul.f32 %v2741, 1.442695
    %v2750 = vpow.pop %v2749
    %v2751 = vmul.f32 %v2742, 1.442695
    %v2752 = vpow.pop %v2751
    %v2753 = vmul.f32 %v2743, 1.442695
    %v2754 = vpow.pop %v2753
    %v2755 = vmul.f32 %v2744, 1.442695
    %v2756 = vpow.pop %v2755
    %v2757 = vadd.f32 %v2746, 1.0
    %v2758 = vadd.f32 %v2748, 1.0
    %v2759 = vadd.f32 %v2750, 1.0
    %v2760 = vadd.f32 %v2752, 1.0
    %v2761 = vadd.f32 %v2754, 1.0
    %v2762 = vadd.f32 %v2756, 1.0
    %v2763 = vrcp.pop %v2757
    %v2764 = vmul.f32 1.0, %v2763
    %v2765 = vrcp.pop %v2758
    %v2766 = vmul.f32 1.0, %v2765
    %v2767 = vrcp.pop %v2759
    %v2768 = vmul.f32 1.0, %v2767
    %v2769 = vrcp.pop %v2760
    %v2770 = vmul.f32 1.0, %v2769
    %v2771 = vrcp.pop %v2761
    %v2772 = vmul.f32 1.0, %v2771
    %v2773 = vrcp.pop %v2762
    %v2774 = vmul.f32 1.0, %v2773
    %v2775 = vtanh.pop %v2737
    %v2776 = vtanh.pop %v2738
    %v2777 = vmul.f32 %v2768, %v2425
    %v2778 = vmul.f32 %v2770, %v2426
    %v2779 = vmul.f32 %v2764, %v2775
    %v2780 = vmul.f32 %v2766, %v2776
    %v2781 = vadd.f32 %v2777, %v2779
    %v2782 = vadd.f32 %v2778, %v2780
    %v2783 = vtanh.pop %v2781
    %v2784 = vtanh.pop %v2782
    %v2785 = vmul.f32 %v2772, %v2783
    %v2786 = vmul.f32 %v2774, %v2784
    %s2787 = smul.u32 3, 2
    %s2788 = smul.addr %s2787, 8
    %s2789 = scalar_lea.vmem [#allocation3], %s2788
    %2790 = vst [vmem:[%s2789] sm:$0xff] %v2785
    %2791 = vst [vmem:[%s2789 + $0x8] sm:$0xff] %v2786
    %s2792 = smul.u32 4, 8
    %s2793 = smul.addr %s2792, 8
    %s2794 = scalar_lea.vmem [#allocation2], %s2793
    %v2795 = vld [vmem:[%s2794] sm:$0xff]
    %v2796 = vld [vmem:[%s2794 + $0x8] sm:$0xff]
    %v2797 = vld [vmem:[%s2794 + $0x10] sm:$0xff]
    %v2798 = vld [vmem:[%s2794 + $0x18] sm:$0xff]
    %v2799 = vld [vmem:[%s2794 + $0x20] sm:$0xff]
    %v2800 = vld [vmem:[%s2794 + $0x28] sm:$0xff]
    %v2801 = vld [vmem:[%s2794 + $0x30] sm:$0xff]
    %v2802 = vld [vmem:[%s2794 + $0x38] sm:$0xff]
    %2803 = vmatprep.subr.mxu0 %v1109
    %2804 = vmatpush1.msra.mxu0 %v1108
    %2805 = vmatprep.subr.mxu0 %v1117
    %2806 = vmatpush1.msra.mxu0 %v1116
    %2807 = vmatprep.subr.mxu0 %v1125
    %2808 = vmatpush1.msra.mxu0 %v1124
    %2809 = vmatprep.subr.mxu0 %v1133
    %2810 = vmatpush1.msra.mxu0 %v1132
    %2811 = vmatprep.subr.mxu0 %v1141
    %2812 = vmatpush1.msra.mxu0 %v1140
    %2813 = vmatprep.subr.mxu0 %v1149
    %2814 = vmatpush1.msra.mxu0 %v1148
    %2815 = vmatprep.subr.mxu0 %v1157
    %2816 = vmatpush1.msra.mxu0 %v1156
    %2817 = vmatprep.subr.mxu0 %v1165
    %2818 = vmatpush1.msra.mxu0 %v1164
    %2819 = vmatprep.subr.mxu0 %v1173
    %2820 = vmatpush1.msra.mxu0 %v1172
    %2821 = vmatprep.subr.mxu0 %v1181
    %2822 = vmatpush1.msra.mxu0 %v1180
    %2823 = vmatprep.subr.mxu0 %v1189
    %2824 = vmatpush1.msra.mxu0 %v1188
    %2825 = vmatprep.subr.mxu0 %v1197
    %2826 = vmatpush1.msra.mxu0 %v1196
    %2827 = vmatprep.subr.mxu0 %v1205
    %2828 = vmatpush1.msra.mxu0 %v1204
    %2829 = vmatprep.subr.mxu0 %v1213
    %2830 = vmatpush1.msra.mxu0 %v1212
    %2831 = vmatprep.subr.mxu0 %v1221
    %2832 = vmatpush1.msra.mxu0 %v1220
    %2833 = vmatprep.subr.mxu0 %v1229
    %2834 = vmatpush1.msra.mxu0 %v1228
    %2835 = vmatprep.subr.mxu0 %v1237
    %2836 = vmatpush1.msra.mxu0 %v1236
    %2837 = vmatprep.subr.mxu0 %v1245
    %2838 = vmatpush1.msra.mxu0 %v1244
    %2839 = vmatprep.subr.mxu0 %v1253
    %2840 = vmatpush1.msra.mxu0 %v1252
    %2841 = vmatprep.subr.mxu0 %v1261
    %2842 = vmatpush1.msra.mxu0 %v1260
    %2843 = vmatprep.subr.mxu0 %v1269
    %2844 = vmatpush1.msra.mxu0 %v1268
    %2845 = vmatprep.subr.mxu0 %v1277
    %2846 = vmatpush1.msra.mxu0 %v1276
    %2847 = vmatprep.subr.mxu0 %v1285
    %2848 = vmatpush1.msra.mxu0 %v1284
    %2849 = vmatprep.subr.mxu0 %v1293
    %2850 = vmatpush1.msra.mxu0 %v1292
    %2851 = vmatprep.subr.mxu0 %v1301
    %2852 = vmatpush1.msra.mxu0 %v1300
    %2853 = vmatprep.subr.mxu0 %v1309
    %2854 = vmatpush1.msra.mxu0 %v1308
    %2855 = vmatprep.subr.mxu0 %v1317
    %2856 = vmatpush1.msra.mxu0 %v1316
    %2857 = vmatprep.subr.mxu0 %v1325
    %2858 = vmatpush1.msra.mxu0 %v1324
    %2859 = vmatprep.subr.mxu0 %v1333
    %2860 = vmatpush1.msra.mxu0 %v1332
    %2861 = vmatprep.subr.mxu0 %v1341
    %2862 = vmatpush1.msra.mxu0 %v1340
    %2863 = vmatprep.subr.mxu0 %v1349
    %2864 = vmatpush1.msra.mxu0 %v1348
    %2865 = vmatprep.subr.mxu0 %v1357
    %2866 = vmatpush1.msra.mxu0 %v1356
    %2867 = vmatprep.mubr.f32.mxu0 %v2786
    %2868 = vmatmul.mubr.f32.gmra.mrb[0].mxu0 %v2785
    %v2869 = vpop.f32.mrb[0].mxu0
    %v2870 = vadd.f32 0.0, %v2869
    %v2871 = vpop.f32.mrb[0].mxu0
    %v2872 = vadd.f32 0.0, %v2871
    %2873 = vdwg.mxu0
    %2874 = vmatprep.subr.mxu0 %v1111
    %2875 = vmatpush1.msra.mxu0 %v1110
    %2876 = vmatprep.subr.mxu0 %v1119
    %2877 = vmatpush1.msra.mxu0 %v1118
    %2878 = vmatprep.subr.mxu0 %v1127
    %2879 = vmatpush1.msra.mxu0 %v1126
    %2880 = vmatprep.subr.mxu0 %v1135
    %2881 = vmatpush1.msra.mxu0 %v1134
    %2882 = vmatprep.subr.mxu0 %v1143
    %2883 = vmatpush1.msra.mxu0 %v1142
    %2884 = vmatprep.subr.mxu0 %v1151
    %2885 = vmatpush1.msra.mxu0 %v1150
    %2886 = vmatprep.subr.mxu0 %v1159
    %2887 = vmatpush1.msra.mxu0 %v1158
    %2888 = vmatprep.subr.mxu0 %v1167
    %2889 = vmatpush1.msra.mxu0 %v1166
    %2890 = vmatprep.subr.mxu0 %v1175
    %2891 = vmatpush1.msra.mxu0 %v1174
    %2892 = vmatprep.subr.mxu0 %v1183
    %2893 = vmatpush1.msra.mxu0 %v1182
    %2894 = vmatprep.subr.mxu0 %v1191
    %2895 = vmatpush1.msra.mxu0 %v1190
    %2896 = vmatprep.subr.mxu0 %v1199
    %2897 = vmatpush1.msra.mxu0 %v1198
    %2898 = vmatprep.subr.mxu0 %v1207
    %2899 = vmatpush1.msra.mxu0 %v1206
    %2900 = vmatprep.subr.mxu0 %v1215
    %2901 = vmatpush1.msra.mxu0 %v1214
    %2902 = vmatprep.subr.mxu0 %v1223
    %2903 = vmatpush1.msra.mxu0 %v1222
    %2904 = vmatprep.subr.mxu0 %v1231
    %2905 = vmatpush1.msra.mxu0 %v1230
    %2906 = vmatprep.subr.mxu0 %v1239
    %2907 = vmatpush1.msra.mxu0 %v1238
    %2908 = vmatprep.subr.mxu0 %v1247
    %2909 = vmatpush1.msra.mxu0 %v1246
    %2910 = vmatprep.subr.mxu0 %v1255
    %2911 = vmatpush1.msra.mxu0 %v1254
    %2912 = vmatprep.subr.mxu0 %v1263
    %2913 = vmatpush1.msra.mxu0 %v1262
    %2914 = vmatprep.subr.mxu0 %v1271
    %2915 = vmatpush1.msra.mxu0 %v1270
    %2916 = vmatprep.subr.mxu0 %v1279
    %2917 = vmatpush1.msra.mxu0 %v1278
    %2918 = vmatprep.subr.mxu0 %v1287
    %2919 = vmatpush1.msra.mxu0 %v1286
    %2920 = vmatprep.subr.mxu0 %v1295
    %2921 = vmatpush1.msra.mxu0 %v1294
    %2922 = vmatprep.subr.mxu0 %v1303
    %2923 = vmatpush1.msra.mxu0 %v1302
    %2924 = vmatprep.subr.mxu0 %v1311
    %2925 = vmatpush1.msra.mxu0 %v1310
    %2926 = vmatprep.subr.mxu0 %v1319
    %2927 = vmatpush1.msra.mxu0 %v1318
    %2928 = vmatprep.subr.mxu0 %v1327
    %2929 = vmatpush1.msra.mxu0 %v1326
    %2930 = vmatprep.subr.mxu0 %v1335
    %2931 = vmatpush1.msra.mxu0 %v1334
    %2932 = vmatprep.subr.mxu0 %v1343
    %2933 = vmatpush1.msra.mxu0 %v1342
    %2934 = vmatprep.subr.mxu0 %v1351
    %2935 = vmatpush1.msra.mxu0 %v1350
    %2936 = vmatprep.subr.mxu0 %v1359
    %2937 = vmatpush1.msra.mxu0 %v1358
    %2938 = vmatprep.mubr.f32.mxu0 %v2786
    %2939 = vmatmul.mubr.f32.gmra.mrb[0].mxu0 %v2785
    %v2940 = vpop.f32.mrb[0].mxu0
    %v2941 = vadd.f32 0.0, %v2940
    %v2942 = vpop.f32.mrb[0].mxu0
    %v2943 = vadd.f32 0.0, %v2942
    %2944 = vdwg.mxu0
    %2945 = vmatprep.subr.mxu0 %v1113
    %2946 = vmatpush1.msra.mxu0 %v1112
    %2947 = vmatprep.subr.mxu0 %v1121
    %2948 = vmatpush1.msra.mxu0 %v1120
    %2949 = vmatprep.subr.mxu0 %v1129
    %2950 = vmatpush1.msra.mxu0 %v1128
    %2951 = vmatprep.subr.mxu0 %v1137
    %2952 = vmatpush1.msra.mxu0 %v1136
    %2953 = vmatprep.subr.mxu0 %v1145
    %2954 = vmatpush1.msra.mxu0 %v1144
    %2955 = vmatprep.subr.mxu0 %v1153
    %2956 = vmatpush1.msra.mxu0 %v1152
    %2957 = vmatprep.subr.mxu0 %v1161
    %2958 = vmatpush1.msra.mxu0 %v1160
    %2959 = vmatprep.subr.mxu0 %v1169
    %2960 = vmatpush1.msra.mxu0 %v1168
    %2961 = vmatprep.subr.mxu0 %v1177
    %2962 = vmatpush1.msra.mxu0 %v1176
    %2963 = vmatprep.subr.mxu0 %v1185
    %2964 = vmatpush1.msra.mxu0 %v1184
    %2965 = vmatprep.subr.mxu0 %v1193
    %2966 = vmatpush1.msra.mxu0 %v1192
    %2967 = vmatprep.subr.mxu0 %v1201
    %2968 = vmatpush1.msra.mxu0 %v1200
    %2969 = vmatprep.subr.mxu0 %v1209
    %2970 = vmatpush1.msra.mxu0 %v1208
    %2971 = vmatprep.subr.mxu0 %v1217
    %2972 = vmatpush1.msra.mxu0 %v1216
    %2973 = vmatprep.subr.mxu0 %v1225
    %2974 = vmatpush1.msra.mxu0 %v1224
    %2975 = vmatprep.subr.mxu0 %v1233
    %2976 = vmatpush1.msra.mxu0 %v1232
    %2977 = vmatprep.subr.mxu0 %v1241
    %2978 = vmatpush1.msra.mxu0 %v1240
    %2979 = vmatprep.subr.mxu0 %v1249
    %2980 = vmatpush1.msra.mxu0 %v1248
    %2981 = vmatprep.subr.mxu0 %v1257
    %2982 = vmatpush1.msra.mxu0 %v1256
    %2983 = vmatprep.subr.mxu0 %v1265
    %2984 = vmatpush1.msra.mxu0 %v1264
    %2985 = vmatprep.subr.mxu0 %v1273
    %2986 = vmatpush1.msra.mxu0 %v1272
    %2987 = vmatprep.subr.mxu0 %v1281
    %2988 = vmatpush1.msra.mxu0 %v1280
    %2989 = vmatprep.subr.mxu0 %v1289
    %2990 = vmatpush1.msra.mxu0 %v1288
    %2991 = vmatprep.subr.mxu0 %v1297
    %2992 = vmatpush1.msra.mxu0 %v1296
    %2993 = vmatprep.subr.mxu0 %v1305
    %2994 = vmatpush1.msra.mxu0 %v1304
    %2995 = vmatprep.subr.mxu0 %v1313
    %2996 = vmatpush1.msra.mxu0 %v1312
    %2997 = vmatprep.subr.mxu0 %v1321
    %2998 = vmatpush1.msra.mxu0 %v1320
    %2999 = vmatprep.subr.mxu0 %v1329
    %3000 = vmatpush1.msra.mxu0 %v1328
    %3001 = vmatprep.subr.mxu0 %v1337
    %3002 = vmatpush1.msra.mxu0 %v1336
    %3003 = vmatprep.subr.mxu0 %v1345
    %3004 = vmatpush1.msra.mxu0 %v1344
    %3005 = vmatprep.subr.mxu0 %v1353
    %3006 = vmatpush1.msra.mxu0 %v1352
    %3007 = vmatprep.subr.mxu0 %v1361
    %3008 = vmatpush1.msra.mxu0 %v1360
    %3009 = vmatprep.mubr.f32.mxu0 %v2786
    %3010 = vmatmul.mubr.f32.gmra.mrb[0].mxu0 %v2785
    %v3011 = vpop.f32.mrb[0].mxu0
    %v3012 = vadd.f32 0.0, %v3011
    %v3013 = vpop.f32.mrb[0].mxu0
    %v3014 = vadd.f32 0.0, %v3013
    %3015 = vdwg.mxu0
    %3016 = vmatprep.subr.mxu0 %v1115
    %3017 = vmatpush1.msra.mxu0 %v1114
    %3018 = vmatprep.subr.mxu0 %v1123
    %3019 = vmatpush1.msra.mxu0 %v1122
    %3020 = vmatprep.subr.mxu0 %v1131
    %3021 = vmatpush1.msra.mxu0 %v1130
    %3022 = vmatprep.subr.mxu0 %v1139
    %3023 = vmatpush1.msra.mxu0 %v1138
    %3024 = vmatprep.subr.mxu0 %v1147
    %3025 = vmatpush1.msra.mxu0 %v1146
    %3026 = vmatprep.subr.mxu0 %v1155
    %3027 = vmatpush1.msra.mxu0 %v1154
    %3028 = vmatprep.subr.mxu0 %v1163
    %3029 = vmatpush1.msra.mxu0 %v1162
    %3030 = vmatprep.subr.mxu0 %v1171
    %3031 = vmatpush1.msra.mxu0 %v1170
    %3032 = vmatprep.subr.mxu0 %v1179
    %3033 = vmatpush1.msra.mxu0 %v1178
    %3034 = vmatprep.subr.mxu0 %v1187
    %3035 = vmatpush1.msra.mxu0 %v1186
    %3036 = vmatprep.subr.mxu0 %v1195
    %3037 = vmatpush1.msra.mxu0 %v1194
    %3038 = vmatprep.subr.mxu0 %v1203
    %3039 = vmatpush1.msra.mxu0 %v1202
    %3040 = vmatprep.subr.mxu0 %v1211
    %3041 = vmatpush1.msra.mxu0 %v1210
    %3042 = vmatprep.subr.mxu0 %v1219
    %3043 = vmatpush1.msra.mxu0 %v1218
    %3044 = vmatprep.subr.mxu0 %v1227
    %3045 = vmatpush1.msra.mxu0 %v1226
    %3046 = vmatprep.subr.mxu0 %v1235
    %3047 = vmatpush1.msra.mxu0 %v1234
    %3048 = vmatprep.subr.mxu0 %v1243
    %3049 = vmatpush1.msra.mxu0 %v1242
    %3050 = vmatprep.subr.mxu0 %v1251
    %3051 = vmatpush1.msra.mxu0 %v1250
    %3052 = vmatprep.subr.mxu0 %v1259
    %3053 = vmatpush1.msra.mxu0 %v1258
    %3054 = vmatprep.subr.mxu0 %v1267
    %3055 = vmatpush1.msra.mxu0 %v1266
    %3056 = vmatprep.subr.mxu0 %v1275
    %3057 = vmatpush1.msra.mxu0 %v1274
    %3058 = vmatprep.subr.mxu0 %v1283
    %3059 = vmatpush1.msra.mxu0 %v1282
    %3060 = vmatprep.subr.mxu0 %v1291
    %3061 = vmatpush1.msra.mxu0 %v1290
    %3062 = vmatprep.subr.mxu0 %v1299
    %3063 = vmatpush1.msra.mxu0 %v1298
    %3064 = vmatprep.subr.mxu0 %v1307
    %3065 = vmatpush1.msra.mxu0 %v1306
    %3066 = vmatprep.subr.mxu0 %v1315
    %3067 = vmatpush1.msra.mxu0 %v1314
    %3068 = vmatprep.subr.mxu0 %v1323
    %3069 = vmatpush1.msra.mxu0 %v1322
    %3070 = vmatprep.subr.mxu0 %v1331
    %3071 = vmatpush1.msra.mxu0 %v1330
    %3072 = vmatprep.subr.mxu0 %v1339
    %3073 = vmatpush1.msra.mxu0 %v1338
    %3074 = vmatprep.subr.mxu0 %v1347
    %3075 = vmatpush1.msra.mxu0 %v1346
    %3076 = vmatprep.subr.mxu0 %v1355
    %3077 = vmatpush1.msra.mxu0 %v1354
    %3078 = vmatprep.subr.mxu0 %v1363
    %3079 = vmatpush1.msra.mxu0 %v1362
    %3080 = vmatprep.mubr.f32.mxu0 %v2786
    %3081 = vmatmul.mubr.f32.gmra.mrb[0].mxu0 %v2785
    %v3082 = vpop.f32.mrb[0].mxu0
    %v3083 = vadd.f32 0.0, %v3082
    %v3084 = vpop.f32.mrb[0].mxu0
    %v3085 = vadd.f32 0.0, %v3084
    %3086 = vdwg.mxu0
    %v3087 = vadd.f32 %v2795, %v2870
    %v3088 = vadd.f32 %v2796, %v2872
    %v3089 = vadd.f32 %v2797, %v2941
    %v3090 = vadd.f32 %v2798, %v2943
    %v3091 = vadd.f32 %v2799, %v3012
    %v3092 = vadd.f32 %v2800, %v3014
    %v3093 = vadd.f32 %v2801, %v3083
    %v3094 = vadd.f32 %v2802, %v3085
    %v3095 = vxor.u32 %v3087, 2147483648
    %v3096 = vxor.u32 %v3088, 2147483648
    %v3097 = vxor.u32 %v3089, 2147483648
    %v3098 = vxor.u32 %v3090, 2147483648
    %v3099 = vxor.u32 %v3091, 2147483648
    %v3100 = vxor.u32 %v3092, 2147483648
    %v3101 = vmul.f32 %v3095, 1.442695
    %v3102 = vpow.pop %v3101
    %v3103 = vmul.f32 %v3096, 1.442695
    %v3104 = vpow.pop %v3103
    %v3105 = vmul.f32 %v3097, 1.442695
    %v3106 = vpow.pop %v3105
    %v3107 = vmul.f32 %v3098, 1.442695
    %v3108 = vpow.pop %v3107
    %v3109 = vmul.f32 %v3099, 1.442695
    %v3110 = vpow.pop %v3109
    %v3111 = vmul.f32 %v3100, 1.442695
    %v3112 = vpow.pop %v3111
    %v3113 = vadd.f32 %v3102, 1.0
    %v3114 = vadd.f32 %v3104, 1.0
    %v3115 = vadd.f32 %v3106, 1.0
    %v3116 = vadd.f32 %v3108, 1.0
    %v3117 = vadd.f32 %v3110, 1.0
    %v3118 = vadd.f32 %v3112, 1.0
    %v3119 = vrcp.pop %v3113
    %v3120 = vmul.f32 1.0, %v3119
    %v3121 = vrcp.pop %v3114
    %v3122 = vmul.f32 1.0, %v3121
    %v3123 = vrcp.pop %v3115
    %v3124 = vmul.f32 1.0, %v3123
    %v3125 = vrcp.pop %v3116
    %v3126 = vmul.f32 1.0, %v3125
    %v3127 = vrcp.pop %v3117
    %v3128 = vmul.f32 1.0, %v3127
    %v3129 = vrcp.pop %v3118
    %v3130 = vmul.f32 1.0, %v3129
    %v3131 = vtanh.pop %v3093
    %v3132 = vtanh.pop %v3094
    %v3133 = vmul.f32 %v3124, %v2781
    %v3134 = vmul.f32 %v3126, %v2782
    %v3135 = vmul.f32 %v3120, %v3131
    %v3136 = vmul.f32 %v3122, %v3132
    %v3137 = vadd.f32 %v3133, %v3135
    %v3138 = vadd.f32 %v3134, %v3136
    %v3139 = vtanh.pop %v3137
    %v3140 = vtanh.pop %v3138
    %v3141 = vmul.f32 %v3128, %v3139
    %v3142 = vmul.f32 %v3130, %v3140
    %s3143 = smul.u32 4, 2
    %s3144 = smul.addr %s3143, 8
    %s3145 = scalar_lea.vmem [#allocation3], %s3144
    %3146 = vst [vmem:[%s3145] sm:$0xff] %v3141
    %3147 = vst [vmem:[%s3145 + $0x8] sm:$0xff] %v3142
    %s3148 = smul.u32 5, 8
    %s3149 = smul.addr %s3148, 8
    %s3150 = scalar_lea.vmem [#allocation2], %s3149
    %v3151 = vld [vmem:[%s3150] sm:$0xff]
    %v3152 = vld [vmem:[%s3150 + $0x8] sm:$0xff]
    %v3153 = vld [vmem:[%s3150 + $0x10] sm:$0xff]
    %v3154 = vld [vmem:[%s3150 + $0x18] sm:$0xff]
    %v3155 = vld [vmem:[%s3150 + $0x20] sm:$0xff]
    %v3156 = vld [vmem:[%s3150 + $0x28] sm:$0xff]
    %v3157 = vld [vmem:[%s3150 + $0x30] sm:$0xff]
    %v3158 = vld [vmem:[%s3150 + $0x38] sm:$0xff]
    %3159 = vmatprep.subr.mxu0 %v1109
    %3160 = vmatpush1.msra.mxu0 %v1108
    %3161 = vmatprep.subr.mxu0 %v1117
    %3162 = vmatpush1.msra.mxu0 %v1116
    %3163 = vmatprep.subr.mxu0 %v1125
    %3164 = vmatpush1.msra.mxu0 %v1124
    %3165 = vmatprep.subr.mxu0 %v1133
    %3166 = vmatpush1.msra.mxu0 %v1132
    %3167 = vmatprep.subr.mxu0 %v1141
    %3168 = vmatpush1.msra.mxu0 %v1140
    %3169 = vmatprep.subr.mxu0 %v1149
    %3170 = vmatpush1.msra.mxu0 %v1148
    %3171 = vmatprep.subr.mxu0 %v1157
    %3172 = vmatpush1.msra.mxu0 %v1156
    %3173 = vmatprep.subr.mxu0 %v1165
    %3174 = vmatpush1.msra.mxu0 %v1164
    %3175 = vmatprep.subr.mxu0 %v1173
    %3176 = vmatpush1.msra.mxu0 %v1172
    %3177 = vmatprep.subr.mxu0 %v1181
    %3178 = vmatpush1.msra.mxu0 %v1180
    %3179 = vmatprep.subr.mxu0 %v1189
    %3180 = vmatpush1.msra.mxu0 %v1188
    %3181 = vmatprep.subr.mxu0 %v1197
    %3182 = vmatpush1.msra.mxu0 %v1196
    %3183 = vmatprep.subr.mxu0 %v1205
    %3184 = vmatpush1.msra.mxu0 %v1204
    %3185 = vmatprep.subr.mxu0 %v1213
    %3186 = vmatpush1.msra.mxu0 %v1212
    %3187 = vmatprep.subr.mxu0 %v1221
    %3188 = vmatpush1.msra.mxu0 %v1220
    %3189 = vmatprep.subr.mxu0 %v1229
    %3190 = vmatpush1.msra.mxu0 %v1228
    %3191 = vmatprep.subr.mxu0 %v1237
    %3192 = vmatpush1.msra.mxu0 %v1236
    %3193 = vmatprep.subr.mxu0 %v1245
    %3194 = vmatpush1.msra.mxu0 %v1244
    %3195 = vmatprep.subr.mxu0 %v1253
    %3196 = vmatpush1.msra.mxu0 %v1252
    %3197 = vmatprep.subr.mxu0 %v1261
    %3198 = vmatpush1.msra.mxu0 %v1260
    %3199 = vmatprep.subr.mxu0 %v1269
    %3200 = vmatpush1.msra.mxu0 %v1268
    %3201 = vmatprep.subr.mxu0 %v1277
    %3202 = vmatpush1.msra.mxu0 %v1276
    %3203 = vmatprep.subr.mxu0 %v1285
    %3204 = vmatpush1.msra.mxu0 %v1284
    %3205 = vmatprep.subr.mxu0 %v1293
    %3206 = vmatpush1.msra.mxu0 %v1292
    %3207 = vmatprep.subr.mxu0 %v1301
    %3208 = vmatpush1.msra.mxu0 %v1300
    %3209 = vmatprep.subr.mxu0 %v1309
    %3210 = vmatpush1.msra.mxu0 %v1308
    %3211 = vmatprep.subr.mxu0 %v1317
    %3212 = vmatpush1.msra.mxu0 %v1316
    %3213 = vmatprep.subr.mxu0 %v1325
    %3214 = vmatpush1.msra.mxu0 %v1324
    %3215 = vmatprep.subr.mxu0 %v1333
    %3216 = vmatpush1.msra.mxu0 %v1332
    %3217 = vmatprep.subr.mxu0 %v1341
    %3218 = vmatpush1.msra.mxu0 %v1340
    %3219 = vmatprep.subr.mxu0 %v1349
    %3220 = vmatpush1.msra.mxu0 %v1348
    %3221 = vmatprep.subr.mxu0 %v1357
    %3222 = vmatpush1.msra.mxu0 %v1356
    %3223 = vmatprep.mubr.f32.mxu0 %v3142
    %3224 = vmatmul.mubr.f32.gmra.mrb[0].mxu0 %v3141
    %v3225 = vpop.f32.mrb[0].mxu0
    %v3226 = vadd.f32 0.0, %v3225
    %v3227 = vpop.f32.mrb[0].mxu0
    %v3228 = vadd.f32 0.0, %v3227
    %3229 = vdwg.mxu0
    %3230 = vmatprep.subr.mxu0 %v1111
    %3231 = vmatpush1.msra.mxu0 %v1110
    %3232 = vmatprep.subr.mxu0 %v1119
    %3233 = vmatpush1.msra.mxu0 %v1118
    %3234 = vmatprep.subr.mxu0 %v1127
    %3235 = vmatpush1.msra.mxu0 %v1126
    %3236 = vmatprep.subr.mxu0 %v1135
    %3237 = vmatpush1.msra.mxu0 %v1134
    %3238 = vmatprep.subr.mxu0 %v1143
    %3239 = vmatpush1.msra.mxu0 %v1142
    %3240 = vmatprep.subr.mxu0 %v1151
    %3241 = vmatpush1.msra.mxu0 %v1150
    %3242 = vmatprep.subr.mxu0 %v1159
    %3243 = vmatpush1.msra.mxu0 %v1158
    %3244 = vmatprep.subr.mxu0 %v1167
    %3245 = vmatpush1.msra.mxu0 %v1166
    %3246 = vmatprep.subr.mxu0 %v1175
    %3247 = vmatpush1.msra.mxu0 %v1174
    %3248 = vmatprep.subr.mxu0 %v1183
    %3249 = vmatpush1.msra.mxu0 %v1182
    %3250 = vmatprep.subr.mxu0 %v1191
    %3251 = vmatpush1.msra.mxu0 %v1190
    %3252 = vmatprep.subr.mxu0 %v1199
    %3253 = vmatpush1.msra.mxu0 %v1198
    %3254 = vmatprep.subr.mxu0 %v1207
    %3255 = vmatpush1.msra.mxu0 %v1206
    %3256 = vmatprep.subr.mxu0 %v1215
    %3257 = vmatpush1.msra.mxu0 %v1214
    %3258 = vmatprep.subr.mxu0 %v1223
    %3259 = vmatpush1.msra.mxu0 %v1222
    %3260 = vmatprep.subr.mxu0 %v1231
    %3261 = vmatpush1.msra.mxu0 %v1230
    %3262 = vmatprep.subr.mxu0 %v1239
    %3263 = vmatpush1.msra.mxu0 %v1238
    %3264 = vmatprep.subr.mxu0 %v1247
    %3265 = vmatpush1.msra.mxu0 %v1246
    %3266 = vmatprep.subr.mxu0 %v1255
    %3267 = vmatpush1.msra.mxu0 %v1254
    %3268 = vmatprep.subr.mxu0 %v1263
    %3269 = vmatpush1.msra.mxu0 %v1262
    %3270 = vmatprep.subr.mxu0 %v1271
    %3271 = vmatpush1.msra.mxu0 %v1270
    %3272 = vmatprep.subr.mxu0 %v1279
    %3273 = vmatpush1.msra.mxu0 %v1278
    %3274 = vmatprep.subr.mxu0 %v1287
    %3275 = vmatpush1.msra.mxu0 %v1286
    %3276 = vmatprep.subr.mxu0 %v1295
    %3277 = vmatpush1.msra.mxu0 %v1294
    %3278 = vmatprep.subr.mxu0 %v1303
    %3279 = vmatpush1.msra.mxu0 %v1302
    %3280 = vmatprep.subr.mxu0 %v1311
    %3281 = vmatpush1.msra.mxu0 %v1310
    %3282 = vmatprep.subr.mxu0 %v1319
    %3283 = vmatpush1.msra.mxu0 %v1318
    %3284 = vmatprep.subr.mxu0 %v1327
    %3285 = vmatpush1.msra.mxu0 %v1326
    %3286 = vmatprep.subr.mxu0 %v1335
    %3287 = vmatpush1.msra.mxu0 %v1334
    %3288 = vmatprep.subr.mxu0 %v1343
    %3289 = vmatpush1.msra.mxu0 %v1342
    %3290 = vmatprep.subr.mxu0 %v1351
    %3291 = vmatpush1.msra.mxu0 %v1350
    %3292 = vmatprep.subr.mxu0 %v1359
    %3293 = vmatpush1.msra.mxu0 %v1358
    %3294 = vmatprep.mubr.f32.mxu0 %v3142
    %3295 = vmatmul.mubr.f32.gmra.mrb[0].mxu0 %v3141
    %v3296 = vpop.f32.mrb[0].mxu0
    %v3297 = vadd.f32 0.0, %v3296
    %v3298 = vpop.f32.mrb[0].mxu0
    %v3299 = vadd.f32 0.0, %v3298
    %3300 = vdwg.mxu0
    %3301 = vmatprep.subr.mxu0 %v1113
    %3302 = vmatpush1.msra.mxu0 %v1112
    %3303 = vmatprep.subr.mxu0 %v1121
    %3304 = vmatpush1.msra.mxu0 %v1120
    %3305 = vmatprep.subr.mxu0 %v1129
    %3306 = vmatpush1.msra.mxu0 %v1128
    %3307 = vmatprep.subr.mxu0 %v1137
    %3308 = vmatpush1.msra.mxu0 %v1136
    %3309 = vmatprep.subr.mxu0 %v1145
    %3310 = vmatpush1.msra.mxu0 %v1144
    %3311 = vmatprep.subr.mxu0 %v1153
    %3312 = vmatpush1.msra.mxu0 %v1152
    %3313 = vmatprep.subr.mxu0 %v1161
    %3314 = vmatpush1.msra.mxu0 %v1160
    %3315 = vmatprep.subr.mxu0 %v1169
    %3316 = vmatpush1.msra.mxu0 %v1168
    %3317 = vmatprep.subr.mxu0 %v1177
    %3318 = vmatpush1.msra.mxu0 %v1176
    %3319 = vmatprep.subr.mxu0 %v1185
    %3320 = vmatpush1.msra.mxu0 %v1184
    %3321 = vmatprep.subr.mxu0 %v1193
    %3322 = vmatpush1.msra.mxu0 %v1192
    %3323 = vmatprep.subr.mxu0 %v1201
    %3324 = vmatpush1.msra.mxu0 %v1200
    %3325 = vmatprep.subr.mxu0 %v1209
    %3326 = vmatpush1.msra.mxu0 %v1208
    %3327 = vmatprep.subr.mxu0 %v1217
    %3328 = vmatpush1.msra.mxu0 %v1216
    %3329 = vmatprep.subr.mxu0 %v1225
    %3330 = vmatpush1.msra.mxu0 %v1224
    %3331 = vmatprep.subr.mxu0 %v1233
    %3332 = vmatpush1.msra.mxu0 %v1232
    %3333 = vmatprep.subr.mxu0 %v1241
    %3334 = vmatpush1.msra.mxu0 %v1240
    %3335 = vmatprep.subr.mxu0 %v1249
    %3336 = vmatpush1.msra.mxu0 %v1248
    %3337 = vmatprep.subr.mxu0 %v1257
    %3338 = vmatpush1.msra.mxu0 %v1256
    %3339 = vmatprep.subr.mxu0 %v1265
    %3340 = vmatpush1.msra.mxu0 %v1264
    %3341 = vmatprep.subr.mxu0 %v1273
    %3342 = vmatpush1.msra.mxu0 %v1272
    %3343 = vmatprep.subr.mxu0 %v1281
    %3344 = vmatpush1.msra.mxu0 %v1280
    %3345 = vmatprep.subr.mxu0 %v1289
    %3346 = vmatpush1.msra.mxu0 %v1288
    %3347 = vmatprep.subr.mxu0 %v1297
    %3348 = vmatpush1.msra.mxu0 %v1296
    %3349 = vmatprep.subr.mxu0 %v1305
    %3350 = vmatpush1.msra.mxu0 %v1304
    %3351 = vmatprep.subr.mxu0 %v1313
    %3352 = vmatpush1.msra.mxu0 %v1312
    %3353 = vmatprep.subr.mxu0 %v1321
    %3354 = vmatpush1.msra.mxu0 %v1320
    %3355 = vmatprep.subr.mxu0 %v1329
    %3356 = vmatpush1.msra.mxu0 %v1328
    %3357 = vmatprep.subr.mxu0 %v1337
    %3358 = vmatpush1.msra.mxu0 %v1336
    %3359 = vmatprep.subr.mxu0 %v1345
    %3360 = vmatpush1.msra.mxu0 %v1344
    %3361 = vmatprep.subr.mxu0 %v1353
    %3362 = vmatpush1.msra.mxu0 %v1352
    %3363 = vmatprep.subr.mxu0 %v1361
    %3364 = vmatpush1.msra.mxu0 %v1360
    %3365 = vmatprep.mubr.f32.mxu0 %v3142
    %3366 = vmatmul.mubr.f32.gmra.mrb[0].mxu0 %v3141
    %v3367 = vpop.f32.mrb[0].mxu0
    %v3368 = vadd.f32 0.0, %v3367
    %v3369 = vpop.f32.mrb[0].mxu0
    %v3370 = vadd.f32 0.0, %v3369
    %3371 = vdwg.mxu0
    %3372 = vmatprep.subr.mxu0 %v1115
    %3373 = vmatpush1.msra.mxu0 %v1114
    %3374 = vmatprep.subr.mxu0 %v1123
    %3375 = vmatpush1.msra.mxu0 %v1122
    %3376 = vmatprep.subr.mxu0 %v1131
    %3377 = vmatpush1.msra.mxu0 %v1130
    %3378 = vmatprep.subr.mxu0 %v1139
    %3379 = vmatpush1.msra.mxu0 %v1138
    %3380 = vmatprep.subr.mxu0 %v1147
    %3381 = vmatpush1.msra.mxu0 %v1146
    %3382 = vmatprep.subr.mxu0 %v1155
    %3383 = vmatpush1.msra.mxu0 %v1154
    %3384 = vmatprep.subr.mxu0 %v1163
    %3385 = vmatpush1.msra.mxu0 %v1162
    %3386 = vmatprep.subr.mxu0 %v1171
    %3387 = vmatpush1.msra.mxu0 %v1170
    %3388 = vmatprep.subr.mxu0 %v1179
    %3389 = vmatpush1.msra.mxu0 %v1178
    %3390 = vmatprep.subr.mxu0 %v1187
    %3391 = vmatpush1.msra.mxu0 %v1186
    %3392 = vmatprep.subr.mxu0 %v1195
    %3393 = vmatpush1.msra.mxu0 %v1194
    %3394 = vmatprep.subr.mxu0 %v1203
    %3395 = vmatpush1.msra.mxu0 %v1202
    %3396 = vmatprep.subr.mxu0 %v1211
    %3397 = vmatpush1.msra.mxu0 %v1210
    %3398 = vmatprep.subr.mxu0 %v1219
    %3399 = vmatpush1.msra.mxu0 %v1218
    %3400 = vmatprep.subr.mxu0 %v1227
    %3401 = vmatpush1.msra.mxu0 %v1226
    %3402 = vmatprep.subr.mxu0 %v1235
    %3403 = vmatpush1.msra.mxu0 %v1234
    %3404 = vmatprep.subr.mxu0 %v1243
    %3405 = vmatpush1.msra.mxu0 %v1242
    %3406 = vmatprep.subr.mxu0 %v1251
    %3407 = vmatpush1.msra.mxu0 %v1250
    %3408 = vmatprep.subr.mxu0 %v1259
    %3409 = vmatpush1.msra.mxu0 %v1258
    %3410 = vmatprep.subr.mxu0 %v1267
    %3411 = vmatpush1.msra.mxu0 %v1266
    %3412 = vmatprep.subr.mxu0 %v1275
    %3413 = vmatpush1.msra.mxu0 %v1274
    %3414 = vmatprep.subr.mxu0 %v1283
    %3415 = vmatpush1.msra.mxu0 %v1282
    %3416 = vmatprep.subr.mxu0 %v1291
    %3417 = vmatpush1.msra.mxu0 %v1290
    %3418 = vmatprep.subr.mxu0 %v1299
    %3419 = vmatpush1.msra.mxu0 %v1298
    %3420 = vmatprep.subr.mxu0 %v1307
    %3421 = vmatpush1.msra.mxu0 %v1306
    %3422 = vmatprep.subr.mxu0 %v1315
    %3423 = vmatpush1.msra.mxu0 %v1314
    %3424 = vmatprep.subr.mxu0 %v1323
    %3425 = vmatpush1.msra.mxu0 %v1322
    %3426 = vmatprep.subr.mxu0 %v1331
    %3427 = vmatpush1.msra.mxu0 %v1330
    %3428 = vmatprep.subr.mxu0 %v1339
    %3429 = vmatpush1.msra.mxu0 %v1338
    %3430 = vmatprep.subr.mxu0 %v1347
    %3431 = vmatpush1.msra.mxu0 %v1346
    %3432 = vmatprep.subr.mxu0 %v1355
    %3433 = vmatpush1.msra.mxu0 %v1354
    %3434 = vmatprep.subr.mxu0 %v1363
    %3435 = vmatpush1.msra.mxu0 %v1362
    %3436 = vmatprep.mubr.f32.mxu0 %v3142
    %3437 = vmatmul.mubr.f32.gmra.mrb[0].mxu0 %v3141
    %v3438 = vpop.f32.mrb[0].mxu0
    %v3439 = vadd.f32 0.0, %v3438
    %v3440 = vpop.f32.mrb[0].mxu0
    %v3441 = vadd.f32 0.0, %v3440
    %3442 = vdwg.mxu0
    %v3443 = vadd.f32 %v3151, %v3226
    %v3444 = vadd.f32 %v3152, %v3228
    %v3445 = vadd.f32 %v3153, %v3297
    %v3446 = vadd.f32 %v3154, %v3299
    %v3447 = vadd.f32 %v3155, %v3368
    %v3448 = vadd.f32 %v3156, %v3370
    %v3449 = vadd.f32 %v3157, %v3439
    %v3450 = vadd.f32 %v3158, %v3441
    %v3451 = vxor.u32 %v3443, 2147483648
    %v3452 = vxor.u32 %v3444, 2147483648
    %v3453 = vxor.u32 %v3445, 2147483648
    %v3454 = vxor.u32 %v3446, 2147483648
    %v3455 = vxor.u32 %v3447, 2147483648
    %v3456 = vxor.u32 %v3448, 2147483648
    %v3457 = vmul.f32 %v3451, 1.442695
    %v3458 = vpow.pop %v3457
    %v3459 = vmul.f32 %v3452, 1.442695
    %v3460 = vpow.pop %v3459
    %v3461 = vmul.f32 %v3453, 1.442695
    %v3462 = vpow.pop %v3461
    %v3463 = vmul.f32 %v3454, 1.442695
    %v3464 = vpow.pop %v3463
    %v3465 = vmul.f32 %v3455, 1.442695
    %v3466 = vpow.pop %v3465
    %v3467 = vmul.f32 %v3456, 1.442695
    %v3468 = vpow.pop %v3467
    %v3469 = vadd.f32 %v3458, 1.0
    %v3470 = vadd.f32 %v3460, 1.0
    %v3471 = vadd.f32 %v3462, 1.0
    %v3472 = vadd.f32 %v3464, 1.0
    %v3473 = vadd.f32 %v3466, 1.0
    %v3474 = vadd.f32 %v3468, 1.0
    %v3475 = vrcp.pop %v3469
    %v3476 = vmul.f32 1.0, %v3475
    %v3477 = vrcp.pop %v3470
    %v3478 = vmul.f32 1.0, %v3477
    %v3479 = vrcp.pop %v3471
    %v3480 = vmul.f32 1.0, %v3479
    %v3481 = vrcp.pop %v3472
    %v3482 = vmul.f32 1.0, %v3481
    %v3483 = vrcp.pop %v3473
    %v3484 = vmul.f32 1.0, %v3483
    %v3485 = vrcp.pop %v3474
    %v3486 = vmul.f32 1.0, %v3485
    %v3487 = vtanh.pop %v3449
    %v3488 = vtanh.pop %v3450
    %v3489 = vmul.f32 %v3480, %v3137
    %v3490 = vmul.f32 %v3482, %v3138
    %v3491 = vmul.f32 %v3476, %v3487
    %v3492 = vmul.f32 %v3478, %v3488
    %v3493 = vadd.f32 %v3489, %v3491
    %v3494 = vadd.f32 %v3490, %v3492
    %v3495 = vtanh.pop %v3493
    %v3496 = vtanh.pop %v3494
    %v3497 = vmul.f32 %v3484, %v3495
    %v3498 = vmul.f32 %v3486, %v3496
    %s3499 = smul.u32 5, 2
    %s3500 = smul.addr %s3499, 8
    %s3501 = scalar_lea.vmem [#allocation3], %s3500
    %3502 = vst [vmem:[%s3501] sm:$0xff] %v3497
    %3503 = vst [vmem:[%s3501 + $0x8] sm:$0xff] %v3498
    %s3504 = smul.u32 6, 8
    %s3505 = smul.addr %s3504, 8
    %s3506 = scalar_lea.vmem [#allocation2], %s3505
    %v3507 = vld [vmem:[%s3506] sm:$0xff]
    %v3508 = vld [vmem:[%s3506 + $0x8] sm:$0xff]
    %v3509 = vld [vmem:[%s3506 + $0x10] sm:$0xff]
    %v3510 = vld [vmem:[%s3506 + $0x18] sm:$0xff]
    %v3511 = vld [vmem:[%s3506 + $0x20] sm:$0xff]
    %v3512 = vld [vmem:[%s3506 + $0x28] sm:$0xff]
    %v3513 = vld [vmem:[%s3506 + $0x30] sm:$0xff]
    %v3514 = vld [vmem:[%s3506 + $0x38] sm:$0xff]
    %3515 = vmatprep.subr.mxu0 %v1109
    %3516 = vmatpush1.msra.mxu0 %v1108
    %3517 = vmatprep.subr.mxu0 %v1117
    %3518 = vmatpush1.msra.mxu0 %v1116
    %3519 = vmatprep.subr.mxu0 %v1125
    %3520 = vmatpush1.msra.mxu0 %v1124
    %3521 = vmatprep.subr.mxu0 %v1133
    %3522 = vmatpush1.msra.mxu0 %v1132
    %3523 = vmatprep.subr.mxu0 %v1141
    %3524 = vmatpush1.msra.mxu0 %v1140
    %3525 = vmatprep.subr.mxu0 %v1149
    %3526 = vmatpush1.msra.mxu0 %v1148
    %3527 = vmatprep.subr.mxu0 %v1157
    %3528 = vmatpush1.msra.mxu0 %v1156
    %3529 = vmatprep.subr.mxu0 %v1165
    %3530 = vmatpush1.msra.mxu0 %v1164
    %3531 = vmatprep.subr.mxu0 %v1173
    %3532 = vmatpush1.msra.mxu0 %v1172
    %3533 = vmatprep.subr.mxu0 %v1181
    %3534 = vmatpush1.msra.mxu0 %v1180
    %3535 = vmatprep.subr.mxu0 %v1189
    %3536 = vmatpush1.msra.mxu0 %v1188
    %3537 = vmatprep.subr.mxu0 %v1197
    %3538 = vmatpush1.msra.mxu0 %v1196
    %3539 = vmatprep.subr.mxu0 %v1205
    %3540 = vmatpush1.msra.mxu0 %v1204
    %3541 = vmatprep.subr.mxu0 %v1213
    %3542 = vmatpush1.msra.mxu0 %v1212
    %3543 = vmatprep.subr.mxu0 %v1221
    %3544 = vmatpush1.msra.mxu0 %v1220
    %3545 = vmatprep.subr.mxu0 %v1229
    %3546 = vmatpush1.msra.mxu0 %v1228
    %3547 = vmatprep.subr.mxu0 %v1237
    %3548 = vmatpush1.msra.mxu0 %v1236
    %3549 = vmatprep.subr.mxu0 %v1245
    %3550 = vmatpush1.msra.mxu0 %v1244
    %3551 = vmatprep.subr.mxu0 %v1253
    %3552 = vmatpush1.msra.mxu0 %v1252
    %3553 = vmatprep.subr.mxu0 %v1261
    %3554 = vmatpush1.msra.mxu0 %v1260
    %3555 = vmatprep.subr.mxu0 %v1269
    %3556 = vmatpush1.msra.mxu0 %v1268
    %3557 = vmatprep.subr.mxu0 %v1277
    %3558 = vmatpush1.msra.mxu0 %v1276
    %3559 = vmatprep.subr.mxu0 %v1285
    %3560 = vmatpush1.msra.mxu0 %v1284
    %3561 = vmatprep.subr.mxu0 %v1293
    %3562 = vmatpush1.msra.mxu0 %v1292
    %3563 = vmatprep.subr.mxu0 %v1301
    %3564 = vmatpush1.msra.mxu0 %v1300
    %3565 = vmatprep.subr.mxu0 %v1309
    %3566 = vmatpush1.msra.mxu0 %v1308
    %3567 = vmatprep.subr.mxu0 %v1317
    %3568 = vmatpush1.msra.mxu0 %v1316
    %3569 = vmatprep.subr.mxu0 %v1325
    %3570 = vmatpush1.msra.mxu0 %v1324
    %3571 = vmatprep.subr.mxu0 %v1333
    %3572 = vmatpush1.msra.mxu0 %v1332
    %3573 = vmatprep.subr.mxu0 %v1341
    %3574 = vmatpush1.msra.mxu0 %v1340
    %3575 = vmatprep.subr.mxu0 %v1349
    %3576 = vmatpush1.msra.mxu0 %v1348
    %3577 = vmatprep.subr.mxu0 %v1357
    %3578 = vmatpush1.msra.mxu0 %v1356
    %3579 = vmatprep.mubr.f32.mxu0 %v3498
    %3580 = vmatmul.mubr.f32.gmra.mrb[0].mxu0 %v3497
    %v3581 = vpop.f32.mrb[0].mxu0
    %v3582 = vadd.f32 0.0, %v3581
    %v3583 = vpop.f32.mrb[0].mxu0
    %v3584 = vadd.f32 0.0, %v3583
    %3585 = vdwg.mxu0
    %3586 = vmatprep.subr.mxu0 %v1111
    %3587 = vmatpush1.msra.mxu0 %v1110
    %3588 = vmatprep.subr.mxu0 %v1119
    %3589 = vmatpush1.msra.mxu0 %v1118
    %3590 = vmatprep.subr.mxu0 %v1127
    %3591 = vmatpush1.msra.mxu0 %v1126
    %3592 = vmatprep.subr.mxu0 %v1135
    %3593 = vmatpush1.msra.mxu0 %v1134
    %3594 = vmatprep.subr.mxu0 %v1143
    %3595 = vmatpush1.msra.mxu0 %v1142
    %3596 = vmatprep.subr.mxu0 %v1151
    %3597 = vmatpush1.msra.mxu0 %v1150
    %3598 = vmatprep.subr.mxu0 %v1159
    %3599 = vmatpush1.msra.mxu0 %v1158
    %3600 = vmatprep.subr.mxu0 %v1167
    %3601 = vmatpush1.msra.mxu0 %v1166
    %3602 = vmatprep.subr.mxu0 %v1175
    %3603 = vmatpush1.msra.mxu0 %v1174
    %3604 = vmatprep.subr.mxu0 %v1183
    %3605 = vmatpush1.msra.mxu0 %v1182
    %3606 = vmatprep.subr.mxu0 %v1191
    %3607 = vmatpush1.msra.mxu0 %v1190
    %3608 = vmatprep.subr.mxu0 %v1199
    %3609 = vmatpush1.msra.mxu0 %v1198
    %3610 = vmatprep.subr.mxu0 %v1207
    %3611 = vmatpush1.msra.mxu0 %v1206
    %3612 = vmatprep.subr.mxu0 %v1215
    %3613 = vmatpush1.msra.mxu0 %v1214
    %3614 = vmatprep.subr.mxu0 %v1223
    %3615 = vmatpush1.msra.mxu0 %v1222
    %3616 = vmatprep.subr.mxu0 %v1231
    %3617 = vmatpush1.msra.mxu0 %v1230
    %3618 = vmatprep.subr.mxu0 %v1239
    %3619 = vmatpush1.msra.mxu0 %v1238
    %3620 = vmatprep.subr.mxu0 %v1247
    %3621 = vmatpush1.msra.mxu0 %v1246
    %3622 = vmatprep.subr.mxu0 %v1255
    %3623 = vmatpush1.msra.mxu0 %v1254
    %3624 = vmatprep.subr.mxu0 %v1263
    %3625 = vmatpush1.msra.mxu0 %v1262
    %3626 = vmatprep.subr.mxu0 %v1271
    %3627 = vmatpush1.msra.mxu0 %v1270
    %3628 = vmatprep.subr.mxu0 %v1279
    %3629 = vmatpush1.msra.mxu0 %v1278
    %3630 = vmatprep.subr.mxu0 %v1287
    %3631 = vmatpush1.msra.mxu0 %v1286
    %3632 = vmatprep.subr.mxu0 %v1295
    %3633 = vmatpush1.msra.mxu0 %v1294
    %3634 = vmatprep.subr.mxu0 %v1303
    %3635 = vmatpush1.msra.mxu0 %v1302
    %3636 = vmatprep.subr.mxu0 %v1311
    %3637 = vmatpush1.msra.mxu0 %v1310
    %3638 = vmatprep.subr.mxu0 %v1319
    %3639 = vmatpush1.msra.mxu0 %v1318
    %3640 = vmatprep.subr.mxu0 %v1327
    %3641 = vmatpush1.msra.mxu0 %v1326
    %3642 = vmatprep.subr.mxu0 %v1335
    %3643 = vmatpush1.msra.mxu0 %v1334
    %3644 = vmatprep.subr.mxu0 %v1343
    %3645 = vmatpush1.msra.mxu0 %v1342
    %3646 = vmatprep.subr.mxu0 %v1351
    %3647 = vmatpush1.msra.mxu0 %v1350
    %3648 = vmatprep.subr.mxu0 %v1359
    %3649 = vmatpush1.msra.mxu0 %v1358
    %3650 = vmatprep.mubr.f32.mxu0 %v3498
    %3651 = vmatmul.mubr.f32.gmra.mrb[0].mxu0 %v3497
    %v3652 = vpop.f32.mrb[0].mxu0
    %v3653 = vadd.f32 0.0, %v3652
    %v3654 = vpop.f32.mrb[0].mxu0
    %v3655 = vadd.f32 0.0, %v3654
    %3656 = vdwg.mxu0
    %3657 = vmatprep.subr.mxu0 %v1113
    %3658 = vmatpush1.msra.mxu0 %v1112
    %3659 = vmatprep.subr.mxu0 %v1121
    %3660 = vmatpush1.msra.mxu0 %v1120
    %3661 = vmatprep.subr.mxu0 %v1129
    %3662 = vmatpush1.msra.mxu0 %v1128
    %3663 = vmatprep.subr.mxu0 %v1137
    %3664 = vmatpush1.msra.mxu0 %v1136
    %3665 = vmatprep.subr.mxu0 %v1145
    %3666 = vmatpush1.msra.mxu0 %v1144
    %3667 = vmatprep.subr.mxu0 %v1153
    %3668 = vmatpush1.msra.mxu0 %v1152
    %3669 = vmatprep.subr.mxu0 %v1161
    %3670 = vmatpush1.msra.mxu0 %v1160
    %3671 = vmatprep.subr.mxu0 %v1169
    %3672 = vmatpush1.msra.mxu0 %v1168
    %3673 = vmatprep.subr.mxu0 %v1177
    %3674 = vmatpush1.msra.mxu0 %v1176
    %3675 = vmatprep.subr.mxu0 %v1185
    %3676 = vmatpush1.msra.mxu0 %v1184
    %3677 = vmatprep.subr.mxu0 %v1193
    %3678 = vmatpush1.msra.mxu0 %v1192
    %3679 = vmatprep.subr.mxu0 %v1201
    %3680 = vmatpush1.msra.mxu0 %v1200
    %3681 = vmatprep.subr.mxu0 %v1209
    %3682 = vmatpush1.msra.mxu0 %v1208
    %3683 = vmatprep.subr.mxu0 %v1217
    %3684 = vmatpush1.msra.mxu0 %v1216
    %3685 = vmatprep.subr.mxu0 %v1225
    %3686 = vmatpush1.msra.mxu0 %v1224
    %3687 = vmatprep.subr.mxu0 %v1233
    %3688 = vmatpush1.msra.mxu0 %v1232
    %3689 = vmatprep.subr.mxu0 %v1241
    %3690 = vmatpush1.msra.mxu0 %v1240
    %3691 = vmatprep.subr.mxu0 %v1249
    %3692 = vmatpush1.msra.mxu0 %v1248
    %3693 = vmatprep.subr.mxu0 %v1257
    %3694 = vmatpush1.msra.mxu0 %v1256
    %3695 = vmatprep.subr.mxu0 %v1265
    %3696 = vmatpush1.msra.mxu0 %v1264
    %3697 = vmatprep.subr.mxu0 %v1273
    %3698 = vmatpush1.msra.mxu0 %v1272
    %3699 = vmatprep.subr.mxu0 %v1281
    %3700 = vmatpush1.msra.mxu0 %v1280
    %3701 = vmatprep.subr.mxu0 %v1289
    %3702 = vmatpush1.msra.mxu0 %v1288
    %3703 = vmatprep.subr.mxu0 %v1297
    %3704 = vmatpush1.msra.mxu0 %v1296
    %3705 = vmatprep.subr.mxu0 %v1305
    %3706 = vmatpush1.msra.mxu0 %v1304
    %3707 = vmatprep.subr.mxu0 %v1313
    %3708 = vmatpush1.msra.mxu0 %v1312
    %3709 = vmatprep.subr.mxu0 %v1321
    %3710 = vmatpush1.msra.mxu0 %v1320
    %3711 = vmatprep.subr.mxu0 %v1329
    %3712 = vmatpush1.msra.mxu0 %v1328
    %3713 = vmatprep.subr.mxu0 %v1337
    %3714 = vmatpush1.msra.mxu0 %v1336
    %3715 = vmatprep.subr.mxu0 %v1345
    %3716 = vmatpush1.msra.mxu0 %v1344
    %3717 = vmatprep.subr.mxu0 %v1353
    %3718 = vmatpush1.msra.mxu0 %v1352
    %3719 = vmatprep.subr.mxu0 %v1361
    %3720 = vmatpush1.msra.mxu0 %v1360
    %3721 = vmatprep.mubr.f32.mxu0 %v3498
    %3722 = vmatmul.mubr.f32.gmra.mrb[0].mxu0 %v3497
    %v3723 = vpop.f32.mrb[0].mxu0
    %v3724 = vadd.f32 0.0, %v3723
    %v3725 = vpop.f32.mrb[0].mxu0
    %v3726 = vadd.f32 0.0, %v3725
    %3727 = vdwg.mxu0
    %3728 = vmatprep.subr.mxu0 %v1115
    %3729 = vmatpush1.msra.mxu0 %v1114
    %3730 = vmatprep.subr.mxu0 %v1123
    %3731 = vmatpush1.msra.mxu0 %v1122
    %3732 = vmatprep.subr.mxu0 %v1131
    %3733 = vmatpush1.msra.mxu0 %v1130
    %3734 = vmatprep.subr.mxu0 %v1139
    %3735 = vmatpush1.msra.mxu0 %v1138
    %3736 = vmatprep.subr.mxu0 %v1147
    %3737 = vmatpush1.msra.mxu0 %v1146
    %3738 = vmatprep.subr.mxu0 %v1155
    %3739 = vmatpush1.msra.mxu0 %v1154
    %3740 = vmatprep.subr.mxu0 %v1163
    %3741 = vmatpush1.msra.mxu0 %v1162
    %3742 = vmatprep.subr.mxu0 %v1171
    %3743 = vmatpush1.msra.mxu0 %v1170
    %3744 = vmatprep.subr.mxu0 %v1179
    %3745 = vmatpush1.msra.mxu0 %v1178
    %3746 = vmatprep.subr.mxu0 %v1187
    %3747 = vmatpush1.msra.mxu0 %v1186
    %3748 = vmatprep.subr.mxu0 %v1195
    %3749 = vmatpush1.msra.mxu0 %v1194
    %3750 = vmatprep.subr.mxu0 %v1203
    %3751 = vmatpush1.msra.mxu0 %v1202
    %3752 = vmatprep.subr.mxu0 %v1211
    %3753 = vmatpush1.msra.mxu0 %v1210
    %3754 = vmatprep.subr.mxu0 %v1219
    %3755 = vmatpush1.msra.mxu0 %v1218
    %3756 = vmatprep.subr.mxu0 %v1227
    %3757 = vmatpush1.msra.mxu0 %v1226
    %3758 = vmatprep.subr.mxu0 %v1235
    %3759 = vmatpush1.msra.mxu0 %v1234
    %3760 = vmatprep.subr.mxu0 %v1243
    %3761 = vmatpush1.msra.mxu0 %v1242
    %3762 = vmatprep.subr.mxu0 %v1251
    %3763 = vmatpush1.msra.mxu0 %v1250
    %3764 = vmatprep.subr.mxu0 %v1259
    %3765 = vmatpush1.msra.mxu0 %v1258
    %3766 = vmatprep.subr.mxu0 %v1267
    %3767 = vmatpush1.msra.mxu0 %v1266
    %3768 = vmatprep.subr.mxu0 %v1275
    %3769 = vmatpush1.msra.mxu0 %v1274
    %3770 = vmatprep.subr.mxu0 %v1283
    %3771 = vmatpush1.msra.mxu0 %v1282
    %3772 = vmatprep.subr.mxu0 %v1291
    %3773 = vmatpush1.msra.mxu0 %v1290
    %3774 = vmatprep.subr.mxu0 %v1299
    %3775 = vmatpush1.msra.mxu0 %v1298
    %3776 = vmatprep.subr.mxu0 %v1307
    %3777 = vmatpush1.msra.mxu0 %v1306
    %3778 = vmatprep.subr.mxu0 %v1315
    %3779 = vmatpush1.msra.mxu0 %v1314
    %3780 = vmatprep.subr.mxu0 %v1323
    %3781 = vmatpush1.msra.mxu0 %v1322
    %3782 = vmatprep.subr.mxu0 %v1331
    %3783 = vmatpush1.msra.mxu0 %v1330
    %3784 = vmatprep.subr.mxu0 %v1339
    %3785 = vmatpush1.msra.mxu0 %v1338
    %3786 = vmatprep.subr.mxu0 %v1347
    %3787 = vmatpush1.msra.mxu0 %v1346
    %3788 = vmatprep.subr.mxu0 %v1355
    %3789 = vmatpush1.msra.mxu0 %v1354
    %3790 = vmatprep.subr.mxu0 %v1363
    %3791 = vmatpush1.msra.mxu0 %v1362
    %3792 = vmatprep.mubr.f32.mxu0 %v3498
    %3793 = vmatmul.mubr.f32.gmra.mrb[0].mxu0 %v3497
    %v3794 = vpop.f32.mrb[0].mxu0
    %v3795 = vadd.f32 0.0, %v3794
    %v3796 = vpop.f32.mrb[0].mxu0
    %v3797 = vadd.f32 0.0, %v3796
    %3798 = vdwg.mxu0
    %v3799 = vadd.f32 %v3507, %v3582
    %v3800 = vadd.f32 %v3508, %v3584
    %v3801 = vadd.f32 %v3509, %v3653
    %v3802 = vadd.f32 %v3510, %v3655
    %v3803 = vadd.f32 %v3511, %v3724
    %v3804 = vadd.f32 %v3512, %v3726
    %v3805 = vadd.f32 %v3513, %v3795
    %v3806 = vadd.f32 %v3514, %v3797
    %v3807 = vxor.u32 %v3799, 2147483648
    %v3808 = vxor.u32 %v3800, 2147483648
    %v3809 = vxor.u32 %v3801, 2147483648
    %v3810 = vxor.u32 %v3802, 2147483648
    %v3811 = vxor.u32 %v3803, 2147483648
    %v3812 = vxor.u32 %v3804, 2147483648
    %v3813 = vmul.f32 %v3807, 1.442695
    %v3814 = vpow.pop %v3813
    %v3815 = vmul.f32 %v3808, 1.442695
    %v3816 = vpow.pop %v3815
    %v3817 = vmul.f32 %v3809, 1.442695
    %v3818 = vpow.pop %v3817
    %v3819 = vmul.f32 %v3810, 1.442695
    %v3820 = vpow.pop %v3819
    %v3821 = vmul.f32 %v3811, 1.442695
    %v3822 = vpow.pop %v3821
    %v3823 = vmul.f32 %v3812, 1.442695
    %v3824 = vpow.pop %v3823
    %v3825 = vadd.f32 %v3814, 1.0
    %v3826 = vadd.f32 %v3816, 1.0
    %v3827 = vadd.f32 %v3818, 1.0
    %v3828 = vadd.f32 %v3820, 1.0
    %v3829 = vadd.f32 %v3822, 1.0
    %v3830 = vadd.f32 %v3824, 1.0
    %v3831 = vrcp.pop %v3825
    %v3832 = vmul.f32 1.0, %v3831
    %v3833 = vrcp.pop %v3826
    %v3834 = vmul.f32 1.0, %v3833
    %v3835 = vrcp.pop %v3827
    %v3836 = vmul.f32 1.0, %v3835
    %v3837 = vrcp.pop %v3828
    %v3838 = vmul.f32 1.0, %v3837
    %v3839 = vrcp.pop %v3829
    %v3840 = vmul.f32 1.0, %v3839
    %v3841 = vrcp.pop %v3830
    %v3842 = vmul.f32 1.0, %v3841
    %v3843 = vtanh.pop %v3805
    %v3844 = vtanh.pop %v3806
    %v3845 = vmul.f32 %v3836, %v3493
    %v3846 = vmul.f32 %v3838, %v3494
    %v3847 = vmul.f32 %v3832, %v3843
    %v3848 = vmul.f32 %v3834, %v3844
    %v3849 = vadd.f32 %v3845, %v3847
    %v3850 = vadd.f32 %v3846, %v3848
    %v3851 = vtanh.pop %v3849
    %v3852 = vtanh.pop %v3850
    %v3853 = vmul.f32 %v3840, %v3851
    %v3854 = vmul.f32 %v3842, %v3852
    %s3855 = smul.u32 6, 2
    %s3856 = smul.addr %s3855, 8
    %s3857 = scalar_lea.vmem [#allocation3], %s3856
    %3858 = vst [vmem:[%s3857] sm:$0xff] %v3853
    %3859 = vst [vmem:[%s3857 + $0x8] sm:$0xff] %v3854
    %s3860 = smul.u32 7, 8
    %s3861 = smul.addr %s3860, 8
    %s3862 = scalar_lea.vmem [#allocation2], %s3861
    %v3863 = vld [vmem:[%s3862] sm:$0xff]
    %v3864 = vld [vmem:[%s3862 + $0x8] sm:$0xff]
    %v3865 = vld [vmem:[%s3862 + $0x10] sm:$0xff]
    %v3866 = vld [vmem:[%s3862 + $0x18] sm:$0xff]
    %v3867 = vld [vmem:[%s3862 + $0x20] sm:$0xff]
    %v3868 = vld [vmem:[%s3862 + $0x28] sm:$0xff]
    %v3869 = vld [vmem:[%s3862 + $0x30] sm:$0xff]
    %v3870 = vld [vmem:[%s3862 + $0x38] sm:$0xff]
    %3871 = vmatprep.subr.mxu0 %v1109
    %3872 = vmatpush1.msra.mxu0 %v1108
    %3873 = vmatprep.subr.mxu0 %v1117
    %3874 = vmatpush1.msra.mxu0 %v1116
    %3875 = vmatprep.subr.mxu0 %v1125
    %3876 = vmatpush1.msra.mxu0 %v1124
    %3877 = vmatprep.subr.mxu0 %v1133
    %3878 = vmatpush1.msra.mxu0 %v1132
    %3879 = vmatprep.subr.mxu0 %v1141
    %3880 = vmatpush1.msra.mxu0 %v1140
    %3881 = vmatprep.subr.mxu0 %v1149
    %3882 = vmatpush1.msra.mxu0 %v1148
    %3883 = vmatprep.subr.mxu0 %v1157
    %3884 = vmatpush1.msra.mxu0 %v1156
    %3885 = vmatprep.subr.mxu0 %v1165
    %3886 = vmatpush1.msra.mxu0 %v1164
    %3887 = vmatprep.subr.mxu0 %v1173
    %3888 = vmatpush1.msra.mxu0 %v1172
    %3889 = vmatprep.subr.mxu0 %v1181
    %3890 = vmatpush1.msra.mxu0 %v1180
    %3891 = vmatprep.subr.mxu0 %v1189
    %3892 = vmatpush1.msra.mxu0 %v1188
    %3893 = vmatprep.subr.mxu0 %v1197
    %3894 = vmatpush1.msra.mxu0 %v1196
    %3895 = vmatprep.subr.mxu0 %v1205
    %3896 = vmatpush1.msra.mxu0 %v1204
    %3897 = vmatprep.subr.mxu0 %v1213
    %3898 = vmatpush1.msra.mxu0 %v1212
    %3899 = vmatprep.subr.mxu0 %v1221
    %3900 = vmatpush1.msra.mxu0 %v1220
    %3901 = vmatprep.subr.mxu0 %v1229
    %3902 = vmatpush1.msra.mxu0 %v1228
    %3903 = vmatprep.subr.mxu0 %v1237
    %3904 = vmatpush1.msra.mxu0 %v1236
    %3905 = vmatprep.subr.mxu0 %v1245
    %3906 = vmatpush1.msra.mxu0 %v1244
    %3907 = vmatprep.subr.mxu0 %v1253
    %3908 = vmatpush1.msra.mxu0 %v1252
    %3909 = vmatprep.subr.mxu0 %v1261
    %3910 = vmatpush1.msra.mxu0 %v1260
    %3911 = vmatprep.subr.mxu0 %v1269
    %3912 = vmatpush1.msra.mxu0 %v1268
    %3913 = vmatprep.subr.mxu0 %v1277
    %3914 = vmatpush1.msra.mxu0 %v1276
    %3915 = vmatprep.subr.mxu0 %v1285
    %3916 = vmatpush1.msra.mxu0 %v1284
    %3917 = vmatprep.subr.mxu0 %v1293
    %3918 = vmatpush1.msra.mxu0 %v1292
    %3919 = vmatprep.subr.mxu0 %v1301
    %3920 = vmatpush1.msra.mxu0 %v1300
    %3921 = vmatprep.subr.mxu0 %v1309
    %3922 = vmatpush1.msra.mxu0 %v1308
    %3923 = vmatprep.subr.mxu0 %v1317
    %3924 = vmatpush1.msra.mxu0 %v1316
    %3925 = vmatprep.subr.mxu0 %v1325
    %3926 = vmatpush1.msra.mxu0 %v1324
    %3927 = vmatprep.subr.mxu0 %v1333
    %3928 = vmatpush1.msra.mxu0 %v1332
    %3929 = vmatprep.subr.mxu0 %v1341
    %3930 = vmatpush1.msra.mxu0 %v1340
    %3931 = vmatprep.subr.mxu0 %v1349
    %3932 = vmatpush1.msra.mxu0 %v1348
    %3933 = vmatprep.subr.mxu0 %v1357
    %3934 = vmatpush1.msra.mxu0 %v1356
    %3935 = vmatprep.mubr.f32.mxu0 %v3854
    %3936 = vmatmul.mubr.f32.gmra.mrb[0].mxu0 %v3853
    %v3937 = vpop.f32.mrb[0].mxu0
    %v3938 = vadd.f32 0.0, %v3937
    %v3939 = vpop.f32.mrb[0].mxu0
    %v3940 = vadd.f32 0.0, %v3939
    %3941 = vdwg.mxu0
    %3942 = vmatprep.subr.mxu0 %v1111
    %3943 = vmatpush1.msra.mxu0 %v1110
    %3944 = vmatprep.subr.mxu0 %v1119
    %3945 = vmatpush1.msra.mxu0 %v1118
    %3946 = vmatprep.subr.mxu0 %v1127
    %3947 = vmatpush1.msra.mxu0 %v1126
    %3948 = vmatprep.subr.mxu0 %v1135
    %3949 = vmatpush1.msra.mxu0 %v1134
    %3950 = vmatprep.subr.mxu0 %v1143
    %3951 = vmatpush1.msra.mxu0 %v1142
    %3952 = vmatprep.subr.mxu0 %v1151
    %3953 = vmatpush1.msra.mxu0 %v1150
    %3954 = vmatprep.subr.mxu0 %v1159
    %3955 = vmatpush1.msra.mxu0 %v1158
    %3956 = vmatprep.subr.mxu0 %v1167
    %3957 = vmatpush1.msra.mxu0 %v1166
    %3958 = vmatprep.subr.mxu0 %v1175
    %3959 = vmatpush1.msra.mxu0 %v1174
    %3960 = vmatprep.subr.mxu0 %v1183
    %3961 = vmatpush1.msra.mxu0 %v1182
    %3962 = vmatprep.subr.mxu0 %v1191
    %3963 = vmatpush1.msra.mxu0 %v1190
    %3964 = vmatprep.subr.mxu0 %v1199
    %3965 = vmatpush1.msra.mxu0 %v1198
    %3966 = vmatprep.subr.mxu0 %v1207
    %3967 = vmatpush1.msra.mxu0 %v1206
    %3968 = vmatprep.subr.mxu0 %v1215
    %3969 = vmatpush1.msra.mxu0 %v1214
    %3970 = vmatprep.subr.mxu0 %v1223
    %3971 = vmatpush1.msra.mxu0 %v1222
    %3972 = vmatprep.subr.mxu0 %v1231
    %3973 = vmatpush1.msra.mxu0 %v1230
    %3974 = vmatprep.subr.mxu0 %v1239
    %3975 = vmatpush1.msra.mxu0 %v1238
    %3976 = vmatprep.subr.mxu0 %v1247
    %3977 = vmatpush1.msra.mxu0 %v1246
    %3978 = vmatprep.subr.mxu0 %v1255
    %3979 = vmatpush1.msra.mxu0 %v1254
    %3980 = vmatprep.subr.mxu0 %v1263
    %3981 = vmatpush1.msra.mxu0 %v1262
    %3982 = vmatprep.subr.mxu0 %v1271
    %3983 = vmatpush1.msra.mxu0 %v1270
    %3984 = vmatprep.subr.mxu0 %v1279
    %3985 = vmatpush1.msra.mxu0 %v1278
    %3986 = vmatprep.subr.mxu0 %v1287
    %3987 = vmatpush1.msra.mxu0 %v1286
    %3988 = vmatprep.subr.mxu0 %v1295
    %3989 = vmatpush1.msra.mxu0 %v1294
    %3990 = vmatprep.subr.mxu0 %v1303
    %3991 = vmatpush1.msra.mxu0 %v1302
    %3992 = vmatprep.subr.mxu0 %v1311
    %3993 = vmatpush1.msra.mxu0 %v1310
    %3994 = vmatprep.subr.mxu0 %v1319
    %3995 = vmatpush1.msra.mxu0 %v1318
    %3996 = vmatprep.subr.mxu0 %v1327
    %3997 = vmatpush1.msra.mxu0 %v1326
    %3998 = vmatprep.subr.mxu0 %v1335
    %3999 = vmatpush1.msra.mxu0 %v1334
    %4000 = vmatprep.subr.mxu0 %v1343
    %4001 = vmatpush1.msra.mxu0 %v1342
    %4002 = vmatprep.subr.mxu0 %v1351
    %4003 = vmatpush1.msra.mxu0 %v1350
    %4004 = vmatprep.subr.mxu0 %v1359
    %4005 = vmatpush1.msra.mxu0 %v1358
    %4006 = vmatprep.mubr.f32.mxu0 %v3854
    %4007 = vmatmul.mubr.f32.gmra.mrb[0].mxu0 %v3853
    %v4008 = vpop.f32.mrb[0].mxu0
    %v4009 = vadd.f32 0.0, %v4008
    %v4010 = vpop.f32.mrb[0].mxu0
    %v4011 = vadd.f32 0.0, %v4010
    %4012 = vdwg.mxu0
    %4013 = vmatprep.subr.mxu0 %v1113
    %4014 = vmatpush1.msra.mxu0 %v1112
    %4015 = vmatprep.subr.mxu0 %v1121
    %4016 = vmatpush1.msra.mxu0 %v1120
    %4017 = vmatprep.subr.mxu0 %v1129
    %4018 = vmatpush1.msra.mxu0 %v1128
    %4019 = vmatprep.subr.mxu0 %v1137
    %4020 = vmatpush1.msra.mxu0 %v1136
    %4021 = vmatprep.subr.mxu0 %v1145
    %4022 = vmatpush1.msra.mxu0 %v1144
    %4023 = vmatprep.subr.mxu0 %v1153
    %4024 = vmatpush1.msra.mxu0 %v1152
    %4025 = vmatprep.subr.mxu0 %v1161
    %4026 = vmatpush1.msra.mxu0 %v1160
    %4027 = vmatprep.subr.mxu0 %v1169
    %4028 = vmatpush1.msra.mxu0 %v1168
    %4029 = vmatprep.subr.mxu0 %v1177
    %4030 = vmatpush1.msra.mxu0 %v1176
    %4031 = vmatprep.subr.mxu0 %v1185
    %4032 = vmatpush1.msra.mxu0 %v1184
    %4033 = vmatprep.subr.mxu0 %v1193
    %4034 = vmatpush1.msra.mxu0 %v1192
    %4035 = vmatprep.subr.mxu0 %v1201
    %4036 = vmatpush1.msra.mxu0 %v1200
    %4037 = vmatprep.subr.mxu0 %v1209
    %4038 = vmatpush1.msra.mxu0 %v1208
    %4039 = vmatprep.subr.mxu0 %v1217
    %4040 = vmatpush1.msra.mxu0 %v1216
    %4041 = vmatprep.subr.mxu0 %v1225
    %4042 = vmatpush1.msra.mxu0 %v1224
    %4043 = vmatprep.subr.mxu0 %v1233
    %4044 = vmatpush1.msra.mxu0 %v1232
    %4045 = vmatprep.subr.mxu0 %v1241
    %4046 = vmatpush1.msra.mxu0 %v1240
    %4047 = vmatprep.subr.mxu0 %v1249
    %4048 = vmatpush1.msra.mxu0 %v1248
    %4049 = vmatprep.subr.mxu0 %v1257
    %4050 = vmatpush1.msra.mxu0 %v1256
    %4051 = vmatprep.subr.mxu0 %v1265
    %4052 = vmatpush1.msra.mxu0 %v1264
    %4053 = vmatprep.subr.mxu0 %v1273
    %4054 = vmatpush1.msra.mxu0 %v1272
    %4055 = vmatprep.subr.mxu0 %v1281
    %4056 = vmatpush1.msra.mxu0 %v1280
    %4057 = vmatprep.subr.mxu0 %v1289
    %4058 = vmatpush1.msra.mxu0 %v1288
    %4059 = vmatprep.subr.mxu0 %v1297
    %4060 = vmatpush1.msra.mxu0 %v1296
    %4061 = vmatprep.subr.mxu0 %v1305
    %4062 = vmatpush1.msra.mxu0 %v1304
    %4063 = vmatprep.subr.mxu0 %v1313
    %4064 = vmatpush1.msra.mxu0 %v1312
    %4065 = vmatprep.subr.mxu0 %v1321
    %4066 = vmatpush1.msra.mxu0 %v1320
    %4067 = vmatprep.subr.mxu0 %v1329
    %4068 = vmatpush1.msra.mxu0 %v1328
    %4069 = vmatprep.subr.mxu0 %v1337
    %4070 = vmatpush1.msra.mxu0 %v1336
    %4071 = vmatprep.subr.mxu0 %v1345
    %4072 = vmatpush1.msra.mxu0 %v1344
    %4073 = vmatprep.subr.mxu0 %v1353
    %4074 = vmatpush1.msra.mxu0 %v1352
    %4075 = vmatprep.subr.mxu0 %v1361
    %4076 = vmatpush1.msra.mxu0 %v1360
    %4077 = vmatprep.mubr.f32.mxu0 %v3854
    %4078 = vmatmul.mubr.f32.gmra.mrb[0].mxu0 %v3853
    %v4079 = vpop.f32.mrb[0].mxu0
    %v4080 = vadd.f32 0.0, %v4079
    %v4081 = vpop.f32.mrb[0].mxu0
    %v4082 = vadd.f32 0.0, %v4081
    %4083 = vdwg.mxu0
    %4084 = vmatprep.subr.mxu0 %v1115
    %4085 = vmatpush1.msra.mxu0 %v1114
    %4086 = vmatprep.subr.mxu0 %v1123
    %4087 = vmatpush1.msra.mxu0 %v1122
    %4088 = vmatprep.subr.mxu0 %v1131
    %4089 = vmatpush1.msra.mxu0 %v1130
    %4090 = vmatprep.subr.mxu0 %v1139
    %4091 = vmatpush1.msra.mxu0 %v1138
    %4092 = vmatprep.subr.mxu0 %v1147
    %4093 = vmatpush1.msra.mxu0 %v1146
    %4094 = vmatprep.subr.mxu0 %v1155
    %4095 = vmatpush1.msra.mxu0 %v1154
    %4096 = vmatprep.subr.mxu0 %v1163
    %4097 = vmatpush1.msra.mxu0 %v1162
    %4098 = vmatprep.subr.mxu0 %v1171
    %4099 = vmatpush1.msra.mxu0 %v1170
    %4100 = vmatprep.subr.mxu0 %v1179
    %4101 = vmatpush1.msra.mxu0 %v1178
    %4102 = vmatprep.subr.mxu0 %v1187
    %4103 = vmatpush1.msra.mxu0 %v1186
    %4104 = vmatprep.subr.mxu0 %v1195
    %4105 = vmatpush1.msra.mxu0 %v1194
    %4106 = vmatprep.subr.mxu0 %v1203
    %4107 = vmatpush1.msra.mxu0 %v1202
    %4108 = vmatprep.subr.mxu0 %v1211
    %4109 = vmatpush1.msra.mxu0 %v1210
    %4110 = vmatprep.subr.mxu0 %v1219
    %4111 = vmatpush1.msra.mxu0 %v1218
    %4112 = vmatprep.subr.mxu0 %v1227
    %4113 = vmatpush1.msra.mxu0 %v1226
    %4114 = vmatprep.subr.mxu0 %v1235
    %4115 = vmatpush1.msra.mxu0 %v1234
    %4116 = vmatprep.subr.mxu0 %v1243
    %4117 = vmatpush1.msra.mxu0 %v1242
    %4118 = vmatprep.subr.mxu0 %v1251
    %4119 = vmatpush1.msra.mxu0 %v1250
    %4120 = vmatprep.subr.mxu0 %v1259
    %4121 = vmatpush1.msra.mxu0 %v1258
    %4122 = vmatprep.subr.mxu0 %v1267
    %4123 = vmatpush1.msra.mxu0 %v1266
    %4124 = vmatprep.subr.mxu0 %v1275
    %4125 = vmatpush1.msra.mxu0 %v1274
    %4126 = vmatprep.subr.mxu0 %v1283
    %4127 = vmatpush1.msra.mxu0 %v1282
    %4128 = vmatprep.subr.mxu0 %v1291
    %4129 = vmatpush1.msra.mxu0 %v1290
    %4130 = vmatprep.subr.mxu0 %v1299
    %4131 = vmatpush1.msra.mxu0 %v1298
    %4132 = vmatprep.subr.mxu0 %v1307
    %4133 = vmatpush1.msra.mxu0 %v1306
    %4134 = vmatprep.subr.mxu0 %v1315
    %4135 = vmatpush1.msra.mxu0 %v1314
    %4136 = vmatprep.subr.mxu0 %v1323
    %4137 = vmatpush1.msra.mxu0 %v1322
    %4138 = vmatprep.subr.mxu0 %v1331
    %4139 = vmatpush1.msra.mxu0 %v1330
    %4140 = vmatprep.subr.mxu0 %v1339
    %4141 = vmatpush1.msra.mxu0 %v1338
    %4142 = vmatprep.subr.mxu0 %v1347
    %4143 = vmatpush1.msra.mxu0 %v1346
    %4144 = vmatprep.subr.mxu0 %v1355
    %4145 = vmatpush1.msra.mxu0 %v1354
    %4146 = vmatprep.subr.mxu0 %v1363
    %4147 = vmatpush1.msra.mxu0 %v1362
    %4148 = vmatprep.mubr.f32.mxu0 %v3854
    %4149 = vmatmul.mubr.f32.gmra.mrb[0].mxu0 %v3853
    %v4150 = vpop.f32.mrb[0].mxu0
    %v4151 = vadd.f32 0.0, %v4150
    %v4152 = vpop.f32.mrb[0].mxu0
    %v4153 = vadd.f32 0.0, %v4152
    %4154 = vdwg.mxu0
    %v4155 = vadd.f32 %v3863, %v3938
    %v4156 = vadd.f32 %v3864, %v3940
    %v4157 = vadd.f32 %v3865, %v4009
    %v4158 = vadd.f32 %v3866, %v4011
    %v4159 = vadd.f32 %v3867, %v4080
    %v4160 = vadd.f32 %v3868, %v4082
    %v4161 = vadd.f32 %v3869, %v4151
    %v4162 = vadd.f32 %v3870, %v4153
    %v4163 = vxor.u32 %v4155, 2147483648
    %v4164 = vxor.u32 %v4156, 2147483648
    %v4165 = vxor.u32 %v4157, 2147483648
    %v4166 = vxor.u32 %v4158, 2147483648
    %v4167 = vxor.u32 %v4159, 2147483648
    %v4168 = vxor.u32 %v4160, 2147483648
    %v4169 = vmul.f32 %v4163, 1.442695
    %v4170 = vpow.pop %v4169
    %v4171 = vmul.f32 %v4164, 1.442695
    %v4172 = vpow.pop %v4171
    %v4173 = vmul.f32 %v4165, 1.442695
    %v4174 = vpow.pop %v4173
    %v4175 = vmul.f32 %v4166, 1.442695
    %v4176 = vpow.pop %v4175
    %v4177 = vmul.f32 %v4167, 1.442695
    %v4178 = vpow.pop %v4177
    %v4179 = vmul.f32 %v4168, 1.442695
    %v4180 = vpow.pop %v4179
    %v4181 = vadd.f32 %v4170, 1.0
    %v4182 = vadd.f32 %v4172, 1.0
    %v4183 = vadd.f32 %v4174, 1.0
    %v4184 = vadd.f32 %v4176, 1.0
    %v4185 = vadd.f32 %v4178, 1.0
    %v4186 = vadd.f32 %v4180, 1.0
    %v4187 = vrcp.pop %v4181
    %v4188 = vmul.f32 1.0, %v4187
    %v4189 = vrcp.pop %v4182
    %v4190 = vmul.f32 1.0, %v4189
    %v4191 = vrcp.pop %v4183
    %v4192 = vmul.f32 1.0, %v4191
    %v4193 = vrcp.pop %v4184
    %v4194 = vmul.f32 1.0, %v4193
    %v4195 = vrcp.pop %v4185
    %v4196 = vmul.f32 1.0, %v4195
    %v4197 = vrcp.pop %v4186
    %v4198 = vmul.f32 1.0, %v4197
    %v4199 = vtanh.pop %v4161
    %v4200 = vtanh.pop %v4162
    %v4201 = vmul.f32 %v4192, %v3849
    %v4202 = vmul.f32 %v4194, %v3850
    %v4203 = vmul.f32 %v4188, %v4199
    %v4204 = vmul.f32 %v4190, %v4200
    %v4205 = vadd.f32 %v4201, %v4203
    %v4206 = vadd.f32 %v4202, %v4204
    %v4207 = vtanh.pop %v4205
    %v4208 = vtanh.pop %v4206
    %v4209 = vmul.f32 %v4196, %v4207
    %v4210 = vmul.f32 %v4198, %v4208
    %s4211 = smul.u32 7, 2
    %s4212 = smul.addr %s4211, 8
    %s4213 = scalar_lea.vmem [#allocation3], %s4212
    %4214 = vst [vmem:[%s4213] sm:$0xff] %v4209
    %4215 = vst [vmem:[%s4213 + $0x8] sm:$0xff] %v4210
    %4216 = vst [vmem:[%s17] sm:$0xff] %v4209
    %4217 = vst [vmem:[%s17 + $0x8] sm:$0xff] %v4210
    %4218 = vst [vmem:[%s18] sm:$0xff] %v4205
    %4219 = vst [vmem:[%s18 + $0x8] sm:$0xff] %v4206
    %v4220 = vld [vmem:[#allocation3] sm:$0xff]
    %v4221 = vld [vmem:[#allocation3 + $0x8] sm:$0xff]
    %v4222 = vld [vmem:[#allocation3 + $0x10] sm:$0xff]
    %v4223 = vld [vmem:[#allocation3 + $0x18] sm:$0xff]
    %v4224 = vld [vmem:[#allocation3 + $0x20] sm:$0xff]
    %v4225 = vld [vmem:[#allocation3 + $0x28] sm:$0xff]
    %v4226 = vld [vmem:[#allocation3 + $0x30] sm:$0xff]
    %v4227 = vld [vmem:[#allocation3 + $0x38] sm:$0xff]
    %v4228 = vld [vmem:[#allocation3 + $0x40] sm:$0xff]
    %v4229 = vld [vmem:[#allocation3 + $0x48] sm:$0xff]
    %v4230 = vld [vmem:[#allocation3 + $0x50] sm:$0xff]
    %v4231 = vld [vmem:[#allocation3 + $0x58] sm:$0xff]
    %v4232 = vld [vmem:[#allocation3 + $0x60] sm:$0xff]
    %v4233 = vld [vmem:[#allocation3 + $0x68] sm:$0xff]
    %v4234 = vld [vmem:[#allocation3 + $0x70] sm:$0xff]
    %v4235 = vld [vmem:[#allocation3 + $0x78] sm:$0xff]
    %v4236 = vld [vmem:[#allocation8] sm:$0xff]
    %v4237 = vld [vmem:[#allocation8 + $0x8] sm:$0xff]
    %v4238 = vld [vmem:[#allocation8 + $0x10] sm:$0xff]
    %v4239 = vld [vmem:[#allocation8 + $0x18] sm:$0xff]
    %v4240 = vld [vmem:[#allocation8 + $0x20] sm:$0xff]
    %v4241 = vld [vmem:[#allocation8 + $0x28] sm:$0xff]
    %v4242 = vld [vmem:[#allocation8 + $0x30] sm:$0xff]
    %v4243 = vld [vmem:[#allocation8 + $0x38] sm:$0xff]
    %v4244 = vld [vmem:[#allocation8 + $0x40] sm:$0xff]
    %v4245 = vld [vmem:[#allocation8 + $0x48] sm:$0xff]
    %v4246 = vld [vmem:[#allocation8 + $0x50] sm:$0xff]
    %v4247 = vld [vmem:[#allocation8 + $0x58] sm:$0xff]
    %v4248 = vld [vmem:[#allocation8 + $0x60] sm:$0xff]
    %v4249 = vld [vmem:[#allocation8 + $0x68] sm:$0xff]
    %v4250 = vld [vmem:[#allocation8 + $0x70] sm:$0xff]
    %v4251 = vld [vmem:[#allocation8 + $0x78] sm:$0xff]
    %v4252 = vld [vmem:[#allocation8 + $0x80] sm:$0xff]
    %v4253 = vld [vmem:[#allocation8 + $0x88] sm:$0xff]
    %v4254 = vld [vmem:[#allocation8 + $0x90] sm:$0xff]
    %v4255 = vld [vmem:[#allocation8 + $0x98] sm:$0xff]
    %v4256 = vld [vmem:[#allocation8 + $0xa0] sm:$0xff]
    %v4257 = vld [vmem:[#allocation8 + $0xa8] sm:$0xff]
    %v4258 = vld [vmem:[#allocation8 + $0xb0] sm:$0xff]
    %v4259 = vld [vmem:[#allocation8 + $0xb8] sm:$0xff]
    %v4260 = vld [vmem:[#allocation8 + $0xc0] sm:$0xff]
    %v4261 = vld [vmem:[#allocation8 + $0xc8] sm:$0xff]
    %v4262 = vld [vmem:[#allocation8 + $0xd0] sm:$0xff]
    %v4263 = vld [vmem:[#allocation8 + $0xd8] sm:$0xff]
    %v4264 = vld [vmem:[#allocation8 + $0xe0] sm:$0xff]
    %v4265 = vld [vmem:[#allocation8 + $0xe8] sm:$0xff]
    %v4266 = vld [vmem:[#allocation8 + $0xf0] sm:$0xff]
    %v4267 = vld [vmem:[#allocation8 + $0xf8] sm:$0xff]
    %v4268 = vld [vmem:[#allocation8 + $0x100] sm:$0xff]
    %v4269 = vld [vmem:[#allocation8 + $0x108] sm:$0xff]
    %v4270 = vld [vmem:[#allocation8 + $0x110] sm:$0xff]
    %v4271 = vld [vmem:[#allocation8 + $0x118] sm:$0xff]
    %v4272 = vld [vmem:[#allocation8 + $0x120] sm:$0xff]
    %v4273 = vld [vmem:[#allocation8 + $0x128] sm:$0xff]
    %v4274 = vld [vmem:[#allocation8 + $0x130] sm:$0xff]
    %v4275 = vld [vmem:[#allocation8 + $0x138] sm:$0xff]
    %v4276 = vld [vmem:[#allocation8 + $0x140] sm:$0xff]
    %v4277 = vld [vmem:[#allocation8 + $0x148] sm:$0xff]
    %v4278 = vld [vmem:[#allocation8 + $0x150] sm:$0xff]
    %v4279 = vld [vmem:[#allocation8 + $0x158] sm:$0xff]
    %v4280 = vld [vmem:[#allocation8 + $0x160] sm:$0xff]
    %v4281 = vld [vmem:[#allocation8 + $0x168] sm:$0xff]
    %v4282 = vld [vmem:[#allocation8 + $0x170] sm:$0xff]
    %v4283 = vld [vmem:[#allocation8 + $0x178] sm:$0xff]
    %v4284 = vld [vmem:[#allocation8 + $0x180] sm:$0xff]
    %v4285 = vld [vmem:[#allocation8 + $0x188] sm:$0xff]
    %v4286 = vld [vmem:[#allocation8 + $0x190] sm:$0xff]
    %v4287 = vld [vmem:[#allocation8 + $0x198] sm:$0xff]
    %v4288 = vld [vmem:[#allocation8 + $0x1a0] sm:$0xff]
    %v4289 = vld [vmem:[#allocation8 + $0x1a8] sm:$0xff]
    %v4290 = vld [vmem:[#allocation8 + $0x1b0] sm:$0xff]
    %v4291 = vld [vmem:[#allocation8 + $0x1b8] sm:$0xff]
    %v4292 = vld [vmem:[#allocation8 + $0x1c0] sm:$0xff]
    %v4293 = vld [vmem:[#allocation8 + $0x1c8] sm:$0xff]
    %v4294 = vld [vmem:[#allocation8 + $0x1d0] sm:$0xff]
    %v4295 = vld [vmem:[#allocation8 + $0x1d8] sm:$0xff]
    %v4296 = vld [vmem:[#allocation8 + $0x1e0] sm:$0xff]
    %v4297 = vld [vmem:[#allocation8 + $0x1e8] sm:$0xff]
    %v4298 = vld [vmem:[#allocation8 + $0x1f0] sm:$0xff]
    %v4299 = vld [vmem:[#allocation8 + $0x1f8] sm:$0xff]
    %v4300 = vld [vmem:[#allocation8 + $0x200] sm:$0xff]
    %v4301 = vld [vmem:[#allocation8 + $0x208] sm:$0xff]
    %v4302 = vld [vmem:[#allocation8 + $0x210] sm:$0xff]
    %v4303 = vld [vmem:[#allocation8 + $0x218] sm:$0xff]
    %v4304 = vld [vmem:[#allocation8 + $0x220] sm:$0xff]
    %v4305 = vld [vmem:[#allocation8 + $0x228] sm:$0xff]
    %v4306 = vld [vmem:[#allocation8 + $0x230] sm:$0xff]
    %v4307 = vld [vmem:[#allocation8 + $0x238] sm:$0xff]
    %v4308 = vld [vmem:[#allocation8 + $0x240] sm:$0xff]
    %v4309 = vld [vmem:[#allocation8 + $0x248] sm:$0xff]
    %v4310 = vld [vmem:[#allocation8 + $0x250] sm:$0xff]
    %v4311 = vld [vmem:[#allocation8 + $0x258] sm:$0xff]
    %v4312 = vld [vmem:[#allocation8 + $0x260] sm:$0xff]
    %v4313 = vld [vmem:[#allocation8 + $0x268] sm:$0xff]
    %v4314 = vld [vmem:[#allocation8 + $0x270] sm:$0xff]
    %v4315 = vld [vmem:[#allocation8 + $0x278] sm:$0xff]
    %v4316 = vld [vmem:[#allocation8 + $0x280] sm:$0xff]
    %v4317 = vld [vmem:[#allocation8 + $0x288] sm:$0xff]
    %v4318 = vld [vmem:[#allocation8 + $0x290] sm:$0xff]
    %v4319 = vld [vmem:[#allocation8 + $0x298] sm:$0xff]
    %v4320 = vld [vmem:[#allocation8 + $0x2a0] sm:$0xff]
    %v4321 = vld [vmem:[#allocation8 + $0x2a8] sm:$0xff]
    %v4322 = vld [vmem:[#allocation8 + $0x2b0] sm:$0xff]
    %v4323 = vld [vmem:[#allocation8 + $0x2b8] sm:$0xff]
    %v4324 = vld [vmem:[#allocation8 + $0x2c0] sm:$0xff]
    %v4325 = vld [vmem:[#allocation8 + $0x2c8] sm:$0xff]
    %v4326 = vld [vmem:[#allocation8 + $0x2d0] sm:$0xff]
    %v4327 = vld [vmem:[#allocation8 + $0x2d8] sm:$0xff]
    %v4328 = vld [vmem:[#allocation8 + $0x2e0] sm:$0xff]
    %v4329 = vld [vmem:[#allocation8 + $0x2e8] sm:$0xff]
    %v4330 = vld [vmem:[#allocation8 + $0x2f0] sm:$0xff]
    %v4331 = vld [vmem:[#allocation8 + $0x2f8] sm:$0xff]
    %v4332 = vld [vmem:[#allocation8 + $0x300] sm:$0xff]
    %v4333 = vld [vmem:[#allocation8 + $0x308] sm:$0xff]
    %v4334 = vld [vmem:[#allocation8 + $0x310] sm:$0xff]
    %v4335 = vld [vmem:[#allocation8 + $0x318] sm:$0xff]
    %v4336 = vld [vmem:[#allocation8 + $0x320] sm:$0xff]
    %v4337 = vld [vmem:[#allocation8 + $0x328] sm:$0xff]
    %v4338 = vld [vmem:[#allocation8 + $0x330] sm:$0xff]
    %v4339 = vld [vmem:[#allocation8 + $0x338] sm:$0xff]
    %v4340 = vld [vmem:[#allocation8 + $0x340] sm:$0xff]
    %v4341 = vld [vmem:[#allocation8 + $0x348] sm:$0xff]
    %v4342 = vld [vmem:[#allocation8 + $0x350] sm:$0xff]
    %v4343 = vld [vmem:[#allocation8 + $0x358] sm:$0xff]
    %v4344 = vld [vmem:[#allocation8 + $0x360] sm:$0xff]
    %v4345 = vld [vmem:[#allocation8 + $0x368] sm:$0xff]
    %v4346 = vld [vmem:[#allocation8 + $0x370] sm:$0xff]
    %v4347 = vld [vmem:[#allocation8 + $0x378] sm:$0xff]
    %v4348 = vld [vmem:[#allocation8 + $0x380] sm:$0xff]
    %v4349 = vld [vmem:[#allocation8 + $0x388] sm:$0xff]
    %v4350 = vld [vmem:[#allocation8 + $0x390] sm:$0xff]
    %v4351 = vld [vmem:[#allocation8 + $0x398] sm:$0xff]
    %v4352 = vld [vmem:[#allocation8 + $0x3a0] sm:$0xff]
    %v4353 = vld [vmem:[#allocation8 + $0x3a8] sm:$0xff]
    %v4354 = vld [vmem:[#allocation8 + $0x3b0] sm:$0xff]
    %v4355 = vld [vmem:[#allocation8 + $0x3b8] sm:$0xff]
    %v4356 = vld [vmem:[#allocation8 + $0x3c0] sm:$0xff]
    %v4357 = vld [vmem:[#allocation8 + $0x3c8] sm:$0xff]
    %v4358 = vld [vmem:[#allocation8 + $0x3d0] sm:$0xff]
    %v4359 = vld [vmem:[#allocation8 + $0x3d8] sm:$0xff]
    %v4360 = vld [vmem:[#allocation8 + $0x3e0] sm:$0xff]
    %v4361 = vld [vmem:[#allocation8 + $0x3e8] sm:$0xff]
    %v4362 = vld [vmem:[#allocation8 + $0x3f0] sm:$0xff]
    %v4363 = vld [vmem:[#allocation8 + $0x3f8] sm:$0xff]
    %v4364 = vld [vmem:[#allocation8 + $0x400] sm:$0xff]
    %v4365 = vld [vmem:[#allocation8 + $0x408] sm:$0xff]
    %v4366 = vld [vmem:[#allocation8 + $0x410] sm:$0xff]
    %v4367 = vld [vmem:[#allocation8 + $0x418] sm:$0xff]
    %v4368 = vld [vmem:[#allocation8 + $0x420] sm:$0xff]
    %v4369 = vld [vmem:[#allocation8 + $0x428] sm:$0xff]
    %v4370 = vld [vmem:[#allocation8 + $0x430] sm:$0xff]
    %v4371 = vld [vmem:[#allocation8 + $0x438] sm:$0xff]
    %v4372 = vld [vmem:[#allocation8 + $0x440] sm:$0xff]
    %v4373 = vld [vmem:[#allocation8 + $0x448] sm:$0xff]
    %v4374 = vld [vmem:[#allocation8 + $0x450] sm:$0xff]
    %v4375 = vld [vmem:[#allocation8 + $0x458] sm:$0xff]
    %v4376 = vld [vmem:[#allocation8 + $0x460] sm:$0xff]
    %v4377 = vld [vmem:[#allocation8 + $0x468] sm:$0xff]
    %v4378 = vld [vmem:[#allocation8 + $0x470] sm:$0xff]
    %v4379 = vld [vmem:[#allocation8 + $0x478] sm:$0xff]
    %v4380 = vld [vmem:[#allocation8 + $0x480] sm:$0xff]
    %v4381 = vld [vmem:[#allocation8 + $0x488] sm:$0xff]
    %v4382 = vld [vmem:[#allocation8 + $0x490] sm:$0xff]
    %v4383 = vld [vmem:[#allocation8 + $0x498] sm:$0xff]
    %v4384 = vld [vmem:[#allocation8 + $0x4a0] sm:$0xff]
    %v4385 = vld [vmem:[#allocation8 + $0x4a8] sm:$0xff]
    %v4386 = vld [vmem:[#allocation8 + $0x4b0] sm:$0xff]
    %v4387 = vld [vmem:[#allocation8 + $0x4b8] sm:$0xff]
    %v4388 = vld [vmem:[#allocation8 + $0x4c0] sm:$0xff]
    %v4389 = vld [vmem:[#allocation8 + $0x4c8] sm:$0xff]
    %v4390 = vld [vmem:[#allocation8 + $0x4d0] sm:$0xff]
    %v4391 = vld [vmem:[#allocation8 + $0x4d8] sm:$0xff]
    %v4392 = vld [vmem:[#allocation8 + $0x4e0] sm:$0xff]
    %v4393 = vld [vmem:[#allocation8 + $0x4e8] sm:$0xff]
    %v4394 = vld [vmem:[#allocation8 + $0x4f0] sm:$0xff]
    %v4395 = vld [vmem:[#allocation8 + $0x4f8] sm:$0xff]
    %v4396 = vld [vmem:[#allocation8 + $0x500] sm:$0xff]
    %v4397 = vld [vmem:[#allocation8 + $0x508] sm:$0xff]
    %v4398 = vld [vmem:[#allocation8 + $0x510] sm:$0xff]
    %v4399 = vld [vmem:[#allocation8 + $0x518] sm:$0xff]
    %v4400 = vld [vmem:[#allocation8 + $0x520] sm:$0xff]
    %v4401 = vld [vmem:[#allocation8 + $0x528] sm:$0xff]
    %v4402 = vld [vmem:[#allocation8 + $0x530] sm:$0xff]
    %v4403 = vld [vmem:[#allocation8 + $0x538] sm:$0xff]
    %v4404 = vld [vmem:[#allocation8 + $0x540] sm:$0xff]
    %v4405 = vld [vmem:[#allocation8 + $0x548] sm:$0xff]
    %v4406 = vld [vmem:[#allocation8 + $0x550] sm:$0xff]
    %v4407 = vld [vmem:[#allocation8 + $0x558] sm:$0xff]
    %v4408 = vld [vmem:[#allocation8 + $0x560] sm:$0xff]
    %v4409 = vld [vmem:[#allocation8 + $0x568] sm:$0xff]
    %v4410 = vld [vmem:[#allocation8 + $0x570] sm:$0xff]
    %v4411 = vld [vmem:[#allocation8 + $0x578] sm:$0xff]
    %v4412 = vld [vmem:[#allocation8 + $0x580] sm:$0xff]
    %v4413 = vld [vmem:[#allocation8 + $0x588] sm:$0xff]
    %v4414 = vld [vmem:[#allocation8 + $0x590] sm:$0xff]
    %v4415 = vld [vmem:[#allocation8 + $0x598] sm:$0xff]
    %v4416 = vld [vmem:[#allocation8 + $0x5a0] sm:$0xff]
    %v4417 = vld [vmem:[#allocation8 + $0x5a8] sm:$0xff]
    %v4418 = vld [vmem:[#allocation8 + $0x5b0] sm:$0xff]
    %v4419 = vld [vmem:[#allocation8 + $0x5b8] sm:$0xff]
    %v4420 = vld [vmem:[#allocation8 + $0x5c0] sm:$0xff]
    %v4421 = vld [vmem:[#allocation8 + $0x5c8] sm:$0xff]
    %v4422 = vld [vmem:[#allocation8 + $0x5d0] sm:$0xff]
    %v4423 = vld [vmem:[#allocation8 + $0x5d8] sm:$0xff]
    %v4424 = vld [vmem:[#allocation8 + $0x5e0] sm:$0xff]
    %v4425 = vld [vmem:[#allocation8 + $0x5e8] sm:$0xff]
    %v4426 = vld [vmem:[#allocation8 + $0x5f0] sm:$0xff]
    %v4427 = vld [vmem:[#allocation8 + $0x5f8] sm:$0xff]
    %v4428 = vld [vmem:[#allocation8 + $0x600] sm:$0xff]
    %v4429 = vld [vmem:[#allocation8 + $0x608] sm:$0xff]
    %v4430 = vld [vmem:[#allocation8 + $0x610] sm:$0xff]
    %v4431 = vld [vmem:[#allocation8 + $0x618] sm:$0xff]
    %v4432 = vld [vmem:[#allocation8 + $0x620] sm:$0xff]
    %v4433 = vld [vmem:[#allocation8 + $0x628] sm:$0xff]
    %v4434 = vld [vmem:[#allocation8 + $0x630] sm:$0xff]
    %v4435 = vld [vmem:[#allocation8 + $0x638] sm:$0xff]
    %v4436 = vld [vmem:[#allocation8 + $0x640] sm:$0xff]
    %v4437 = vld [vmem:[#allocation8 + $0x648] sm:$0xff]
    %v4438 = vld [vmem:[#allocation8 + $0x650] sm:$0xff]
    %v4439 = vld [vmem:[#allocation8 + $0x658] sm:$0xff]
    %v4440 = vld [vmem:[#allocation8 + $0x660] sm:$0xff]
    %v4441 = vld [vmem:[#allocation8 + $0x668] sm:$0xff]
    %v4442 = vld [vmem:[#allocation8 + $0x670] sm:$0xff]
    %v4443 = vld [vmem:[#allocation8 + $0x678] sm:$0xff]
    %v4444 = vld [vmem:[#allocation8 + $0x680] sm:$0xff]
    %v4445 = vld [vmem:[#allocation8 + $0x688] sm:$0xff]
    %v4446 = vld [vmem:[#allocation8 + $0x690] sm:$0xff]
    %v4447 = vld [vmem:[#allocation8 + $0x698] sm:$0xff]
    %v4448 = vld [vmem:[#allocation8 + $0x6a0] sm:$0xff]
    %v4449 = vld [vmem:[#allocation8 + $0x6a8] sm:$0xff]
    %v4450 = vld [vmem:[#allocation8 + $0x6b0] sm:$0xff]
    %v4451 = vld [vmem:[#allocation8 + $0x6b8] sm:$0xff]
    %v4452 = vld [vmem:[#allocation8 + $0x6c0] sm:$0xff]
    %v4453 = vld [vmem:[#allocation8 + $0x6c8] sm:$0xff]
    %v4454 = vld [vmem:[#allocation8 + $0x6d0] sm:$0xff]
    %v4455 = vld [vmem:[#allocation8 + $0x6d8] sm:$0xff]
    %v4456 = vld [vmem:[#allocation8 + $0x6e0] sm:$0xff]
    %v4457 = vld [vmem:[#allocation8 + $0x6e8] sm:$0xff]
    %v4458 = vld [vmem:[#allocation8 + $0x6f0] sm:$0xff]
    %v4459 = vld [vmem:[#allocation8 + $0x6f8] sm:$0xff]
    %v4460 = vld [vmem:[#allocation8 + $0x700] sm:$0xff]
    %v4461 = vld [vmem:[#allocation8 + $0x708] sm:$0xff]
    %v4462 = vld [vmem:[#allocation8 + $0x710] sm:$0xff]
    %v4463 = vld [vmem:[#allocation8 + $0x718] sm:$0xff]
    %v4464 = vld [vmem:[#allocation8 + $0x720] sm:$0xff]
    %v4465 = vld [vmem:[#allocation8 + $0x728] sm:$0xff]
    %v4466 = vld [vmem:[#allocation8 + $0x730] sm:$0xff]
    %v4467 = vld [vmem:[#allocation8 + $0x738] sm:$0xff]
    %v4468 = vld [vmem:[#allocation8 + $0x740] sm:$0xff]
    %v4469 = vld [vmem:[#allocation8 + $0x748] sm:$0xff]
    %v4470 = vld [vmem:[#allocation8 + $0x750] sm:$0xff]
    %v4471 = vld [vmem:[#allocation8 + $0x758] sm:$0xff]
    %v4472 = vld [vmem:[#allocation8 + $0x760] sm:$0xff]
    %v4473 = vld [vmem:[#allocation8 + $0x768] sm:$0xff]
    %v4474 = vld [vmem:[#allocation8 + $0x770] sm:$0xff]
    %v4475 = vld [vmem:[#allocation8 + $0x778] sm:$0xff]
    %v4476 = vld [vmem:[#allocation8 + $0x780] sm:$0xff]
    %v4477 = vld [vmem:[#allocation8 + $0x788] sm:$0xff]
    %v4478 = vld [vmem:[#allocation8 + $0x790] sm:$0xff]
    %v4479 = vld [vmem:[#allocation8 + $0x798] sm:$0xff]
    %v4480 = vld [vmem:[#allocation8 + $0x7a0] sm:$0xff]
    %v4481 = vld [vmem:[#allocation8 + $0x7a8] sm:$0xff]
    %v4482 = vld [vmem:[#allocation8 + $0x7b0] sm:$0xff]
    %v4483 = vld [vmem:[#allocation8 + $0x7b8] sm:$0xff]
    %v4484 = vld [vmem:[#allocation8 + $0x7c0] sm:$0xff]
    %v4485 = vld [vmem:[#allocation8 + $0x7c8] sm:$0xff]
    %v4486 = vld [vmem:[#allocation8 + $0x7d0] sm:$0xff]
    %v4487 = vld [vmem:[#allocation8 + $0x7d8] sm:$0xff]
    %v4488 = vld [vmem:[#allocation8 + $0x7e0] sm:$0xff]
    %v4489 = vld [vmem:[#allocation8 + $0x7e8] sm:$0xff]
    %v4490 = vld [vmem:[#allocation8 + $0x7f0] sm:$0xff]
    %v4491 = vld [vmem:[#allocation8 + $0x7f8] sm:$0xff]
    %v4492 = vld [vmem:[%s9] sm:$0xff]
    %v4494 = vlaneseq
    %v4495 = vshrl.u32 %v4494, 7
    %v4496 = vsub.s32 0, %v4495
    %v4497 = vrot.slane %v4492, %v4496
    %v4498 = vlaneseq
    %v4499 = vshrl.u32 %v4498, 7
    %v4500 = vsub.s32 1, %v4499
    %v4501 = vrot.slane %v4492, %v4500
    %v4502 = vlaneseq
    %v4503 = vshrl.u32 %v4502, 7
    %v4504 = vsub.s32 2, %v4503
    %v4505 = vrot.slane %v4492, %v4504
    %v4506 = vlaneseq
    %v4507 = vshrl.u32 %v4506, 7
    %v4508 = vsub.s32 3, %v4507
    %v4509 = vrot.slane %v4492, %v4508
    %v4510 = vlaneseq
    %v4511 = vshrl.u32 %v4510, 7
    %v4512 = vsub.s32 4, %v4511
    %v4513 = vrot.slane %v4492, %v4512
    %v4514 = vlaneseq
    %v4515 = vshrl.u32 %v4514, 7
    %v4516 = vsub.s32 5, %v4515
    %v4517 = vrot.slane %v4492, %v4516
    %v4518 = vlaneseq
    %v4519 = vshrl.u32 %v4518, 7
    %v4520 = vsub.s32 6, %v4519
    %v4521 = vrot.slane %v4492, %v4520
    %v4522 = vlaneseq
    %v4523 = vshrl.u32 %v4522, 7
    %v4524 = vsub.s32 7, %v4523
    %v4525 = vrot.slane %v4492, %v4524
    %4534 = vmatprep.subr.mxu0 %v4237
    %4535 = vmatpush1.msra.mxu0 %v4236
    %4536 = vmatprep.subr.mxu0 %v4245
    %4537 = vmatpush1.msra.mxu0 %v4244
    %4538 = vmatprep.subr.mxu0 %v4253
    %4539 = vmatpush1.msra.mxu0 %v4252
    %4540 = vmatprep.subr.mxu0 %v4261
    %4541 = vmatpush1.msra.mxu0 %v4260
    %4542 = vmatprep.subr.mxu0 %v4269
    %4543 = vmatpush1.msra.mxu0 %v4268
    %4544 = vmatprep.subr.mxu0 %v4277
    %4545 = vmatpush1.msra.mxu0 %v4276
    %4546 = vmatprep.subr.mxu0 %v4285
    %4547 = vmatpush1.msra.mxu0 %v4284
    %4548 = vmatprep.subr.mxu0 %v4293
    %4549 = vmatpush1.msra.mxu0 %v4292
    %4550 = vmatprep.subr.mxu0 %v4301
    %4551 = vmatpush1.msra.mxu0 %v4300
    %4552 = vmatprep.subr.mxu0 %v4309
    %4553 = vmatpush1.msra.mxu0 %v4308
    %4554 = vmatprep.subr.mxu0 %v4317
    %4555 = vmatpush1.msra.mxu0 %v4316
    %4556 = vmatprep.subr.mxu0 %v4325
    %4557 = vmatpush1.msra.mxu0 %v4324
    %4558 = vmatprep.subr.mxu0 %v4333
    %4559 = vmatpush1.msra.mxu0 %v4332
    %4560 = vmatprep.subr.mxu0 %v4341
    %4561 = vmatpush1.msra.mxu0 %v4340
    %4562 = vmatprep.subr.mxu0 %v4349
    %4563 = vmatpush1.msra.mxu0 %v4348
    %4564 = vmatprep.subr.mxu0 %v4357
    %4565 = vmatpush1.msra.mxu0 %v4356
    %4566 = vmatprep.subr.mxu0 %v4365
    %4567 = vmatpush1.msra.mxu0 %v4364
    %4568 = vmatprep.subr.mxu0 %v4373
    %4569 = vmatpush1.msra.mxu0 %v4372
    %4570 = vmatprep.subr.mxu0 %v4381
    %4571 = vmatpush1.msra.mxu0 %v4380
    %4572 = vmatprep.subr.mxu0 %v4389
    %4573 = vmatpush1.msra.mxu0 %v4388
    %4574 = vmatprep.subr.mxu0 %v4397
    %4575 = vmatpush1.msra.mxu0 %v4396
    %4576 = vmatprep.subr.mxu0 %v4405
    %4577 = vmatpush1.msra.mxu0 %v4404
    %4578 = vmatprep.subr.mxu0 %v4413
    %4579 = vmatpush1.msra.mxu0 %v4412
    %4580 = vmatprep.subr.mxu0 %v4421
    %4581 = vmatpush1.msra.mxu0 %v4420
    %4582 = vmatprep.subr.mxu0 %v4429
    %4583 = vmatpush1.msra.mxu0 %v4428
    %4584 = vmatprep.subr.mxu0 %v4437
    %4585 = vmatpush1.msra.mxu0 %v4436
    %4586 = vmatprep.subr.mxu0 %v4445
    %4587 = vmatpush1.msra.mxu0 %v4444
    %4588 = vmatprep.subr.mxu0 %v4453
    %4589 = vmatpush1.msra.mxu0 %v4452
    %4590 = vmatprep.subr.mxu0 %v4461
    %4591 = vmatpush1.msra.mxu0 %v4460
    %4592 = vmatprep.subr.mxu0 %v4469
    %4593 = vmatpush1.msra.mxu0 %v4468
    %4594 = vmatprep.subr.mxu0 %v4477
    %4595 = vmatpush1.msra.mxu0 %v4476
    %4596 = vmatprep.subr.mxu0 %v4485
    %4597 = vmatpush1.msra.mxu0 %v4484
    %4598 = vmatprep.mubr.f32.mxu0 %v4221
    %4599 = vmatmul.mubr.f32.gmra.mrb[0].mxu0 %v4220
    %v4600 = vpop.f32.mrb[0].mxu0
    %v4601 = vadd.f32 %v4497, %v4600
    %v4602 = vpop.f32.mrb[0].mxu0
    %v4603 = vadd.f32 %v4501, %v4602
    %4604 = vmatprep.mubr.f32.mxu0 %v4223
    %4605 = vmatmul.mubr.f32.gmra.mrb[0].mxu0 %v4222
    %v4606 = vpop.f32.mrb[0].mxu0
    %v4607 = vadd.f32 %v4497, %v4606
    %v4608 = vpop.f32.mrb[0].mxu0
    %v4609 = vadd.f32 %v4501, %v4608
    %4610 = vmatprep.mubr.f32.mxu0 %v4225
    %4611 = vmatmul.mubr.f32.gmra.mrb[0].mxu0 %v4224
    %v4612 = vpop.f32.mrb[0].mxu0
    %v4613 = vadd.f32 %v4497, %v4612
    %v4614 = vpop.f32.mrb[0].mxu0
    %v4615 = vadd.f32 %v4501, %v4614
    %4616 = vmatprep.mubr.f32.mxu0 %v4227
    %4617 = vmatmul.mubr.f32.gmra.mrb[0].mxu0 %v4226
    %v4618 = vpop.f32.mrb[0].mxu0
    %v4619 = vadd.f32 %v4497, %v4618
    %v4620 = vpop.f32.mrb[0].mxu0
    %v4621 = vadd.f32 %v4501, %v4620
    %4622 = vmatprep.mubr.f32.mxu0 %v4229
    %4623 = vmatmul.mubr.f32.gmra.mrb[0].mxu0 %v4228
    %v4624 = vpop.f32.mrb[0].mxu0
    %v4625 = vadd.f32 %v4497, %v4624
    %v4626 = vpop.f32.mrb[0].mxu0
    %v4627 = vadd.f32 %v4501, %v4626
    %4628 = vmatprep.mubr.f32.mxu0 %v4231
    %4629 = vmatmul.mubr.f32.gmra.mrb[0].mxu0 %v4230
    %v4630 = vpop.f32.mrb[0].mxu0
    %v4631 = vadd.f32 %v4497, %v4630
    %v4632 = vpop.f32.mrb[0].mxu0
    %v4633 = vadd.f32 %v4501, %v4632
    %4634 = vmatprep.mubr.f32.mxu0 %v4233
    %4635 = vmatmul.mubr.f32.gmra.mrb[0].mxu0 %v4232
    %v4636 = vpop.f32.mrb[0].mxu0
    %v4637 = vadd.f32 %v4497, %v4636
    %v4638 = vpop.f32.mrb[0].mxu0
    %v4639 = vadd.f32 %v4501, %v4638
    %4640 = vmatprep.mubr.f32.mxu0 %v4235
    %4641 = vmatmul.mubr.f32.gmra.mrb[0].mxu0 %v4234
    %v4642 = vpop.f32.mrb[0].mxu0
    %v4643 = vadd.f32 %v4497, %v4642
    %v4644 = vpop.f32.mrb[0].mxu0
    %v4645 = vadd.f32 %v4501, %v4644
    %4646 = vdwg.mxu0
    %4647 = vmatprep.subr.mxu0 %v4239
    %4648 = vmatpush1.msra.mxu0 %v4238
    %4649 = vmatprep.subr.mxu0 %v4247
    %4650 = vmatpush1.msra.mxu0 %v4246
    %4651 = vmatprep.subr.mxu0 %v4255
    %4652 = vmatpush1.msra.mxu0 %v4254
    %4653 = vmatprep.subr.mxu0 %v4263
    %4654 = vmatpush1.msra.mxu0 %v4262
    %4655 = vmatprep.subr.mxu0 %v4271
    %4656 = vmatpush1.msra.mxu0 %v4270
    %4657 = vmatprep.subr.mxu0 %v4279
    %4658 = vmatpush1.msra.mxu0 %v4278
    %4659 = vmatprep.subr.mxu0 %v4287
    %4660 = vmatpush1.msra.mxu0 %v4286
    %4661 = vmatprep.subr.mxu0 %v4295
    %4662 = vmatpush1.msra.mxu0 %v4294
    %4663 = vmatprep.subr.mxu0 %v4303
    %4664 = vmatpush1.msra.mxu0 %v4302
    %4665 = vmatprep.subr.mxu0 %v4311
    %4666 = vmatpush1.msra.mxu0 %v4310
    %4667 = vmatprep.subr.mxu0 %v4319
    %4668 = vmatpush1.msra.mxu0 %v4318
    %4669 = vmatprep.subr.mxu0 %v4327
    %4670 = vmatpush1.msra.mxu0 %v4326
    %4671 = vmatprep.subr.mxu0 %v4335
    %4672 = vmatpush1.msra.mxu0 %v4334
    %4673 = vmatprep.subr.mxu0 %v4343
    %4674 = vmatpush1.msra.mxu0 %v4342
    %4675 = vmatprep.subr.mxu0 %v4351
    %4676 = vmatpush1.msra.mxu0 %v4350
    %4677 = vmatprep.subr.mxu0 %v4359
    %4678 = vmatpush1.msra.mxu0 %v4358
    %4679 = vmatprep.subr.mxu0 %v4367
    %4680 = vmatpush1.msra.mxu0 %v4366
    %4681 = vmatprep.subr.mxu0 %v4375
    %4682 = vmatpush1.msra.mxu0 %v4374
    %4683 = vmatprep.subr.mxu0 %v4383
    %4684 = vmatpush1.msra.mxu0 %v4382
    %4685 = vmatprep.subr.mxu0 %v4391
    %4686 = vmatpush1.msra.mxu0 %v4390
    %4687 = vmatprep.subr.mxu0 %v4399
    %4688 = vmatpush1.msra.mxu0 %v4398
    %4689 = vmatprep.subr.mxu0 %v4407
    %4690 = vmatpush1.msra.mxu0 %v4406
    %4691 = vmatprep.subr.mxu0 %v4415
    %4692 = vmatpush1.msra.mxu0 %v4414
    %4693 = vmatprep.subr.mxu0 %v4423
    %4694 = vmatpush1.msra.mxu0 %v4422
    %4695 = vmatprep.subr.mxu0 %v4431
    %4696 = vmatpush1.msra.mxu0 %v4430
    %4697 = vmatprep.subr.mxu0 %v4439
    %4698 = vmatpush1.msra.mxu0 %v4438
    %4699 = vmatprep.subr.mxu0 %v4447
    %4700 = vmatpush1.msra.mxu0 %v4446
    %4701 = vmatprep.subr.mxu0 %v4455
    %4702 = vmatpush1.msra.mxu0 %v4454
    %4703 = vmatprep.subr.mxu0 %v4463
    %4704 = vmatpush1.msra.mxu0 %v4462
    %4705 = vmatprep.subr.mxu0 %v4471
    %4706 = vmatpush1.msra.mxu0 %v4470
    %4707 = vmatprep.subr.mxu0 %v4479
    %4708 = vmatpush1.msra.mxu0 %v4478
    %4709 = vmatprep.subr.mxu0 %v4487
    %4710 = vmatpush1.msra.mxu0 %v4486
    %4711 = vmatprep.mubr.f32.mxu0 %v4221
    %4712 = vmatmul.mubr.f32.gmra.mrb[0].mxu0 %v4220
    %v4713 = vpop.f32.mrb[0].mxu0
    %v4714 = vadd.f32 %v4505, %v4713
    %v4715 = vpop.f32.mrb[0].mxu0
    %v4716 = vadd.f32 %v4509, %v4715
    %4717 = vmatprep.mubr.f32.mxu0 %v4223
    %4718 = vmatmul.mubr.f32.gmra.mrb[0].mxu0 %v4222
    %v4719 = vpop.f32.mrb[0].mxu0
    %v4720 = vadd.f32 %v4505, %v4719
    %v4721 = vpop.f32.mrb[0].mxu0
    %v4722 = vadd.f32 %v4509, %v4721
    %4723 = vmatprep.mubr.f32.mxu0 %v4225
    %4724 = vmatmul.mubr.f32.gmra.mrb[0].mxu0 %v4224
    %v4725 = vpop.f32.mrb[0].mxu0
    %v4726 = vadd.f32 %v4505, %v4725
    %v4727 = vpop.f32.mrb[0].mxu0
    %v4728 = vadd.f32 %v4509, %v4727
    %4729 = vmatprep.mubr.f32.mxu0 %v4227
    %4730 = vmatmul.mubr.f32.gmra.mrb[0].mxu0 %v4226
    %v4731 = vpop.f32.mrb[0].mxu0
    %v4732 = vadd.f32 %v4505, %v4731
    %v4733 = vpop.f32.mrb[0].mxu0
    %v4734 = vadd.f32 %v4509, %v4733
    %4735 = vmatprep.mubr.f32.mxu0 %v4229
    %4736 = vmatmul.mubr.f32.gmra.mrb[0].mxu0 %v4228
    %v4737 = vpop.f32.mrb[0].mxu0
    %v4738 = vadd.f32 %v4505, %v4737
    %v4739 = vpop.f32.mrb[0].mxu0
    %v4740 = vadd.f32 %v4509, %v4739
    %4741 = vmatprep.mubr.f32.mxu0 %v4231
    %4742 = vmatmul.mubr.f32.gmra.mrb[0].mxu0 %v4230
    %v4743 = vpop.f32.mrb[0].mxu0
    %v4744 = vadd.f32 %v4505, %v4743
    %v4745 = vpop.f32.mrb[0].mxu0
    %v4746 = vadd.f32 %v4509, %v4745
    %4747 = vmatprep.mubr.f32.mxu0 %v4233
    %4748 = vmatmul.mubr.f32.gmra.mrb[0].mxu0 %v4232
    %v4749 = vpop.f32.mrb[0].mxu0
    %v4750 = vadd.f32 %v4505, %v4749
    %v4751 = vpop.f32.mrb[0].mxu0
    %v4752 = vadd.f32 %v4509, %v4751
    %4753 = vmatprep.mubr.f32.mxu0 %v4235
    %4754 = vmatmul.mubr.f32.gmra.mrb[0].mxu0 %v4234
    %v4755 = vpop.f32.mrb[0].mxu0
    %v4756 = vadd.f32 %v4505, %v4755
    %v4757 = vpop.f32.mrb[0].mxu0
    %v4758 = vadd.f32 %v4509, %v4757
    %4759 = vdwg.mxu0
    %4760 = vmatprep.subr.mxu0 %v4241
    %4761 = vmatpush1.msra.mxu0 %v4240
    %4762 = vmatprep.subr.mxu0 %v4249
    %4763 = vmatpush1.msra.mxu0 %v4248
    %4764 = vmatprep.subr.mxu0 %v4257
    %4765 = vmatpush1.msra.mxu0 %v4256
    %4766 = vmatprep.subr.mxu0 %v4265
    %4767 = vmatpush1.msra.mxu0 %v4264
    %4768 = vmatprep.subr.mxu0 %v4273
    %4769 = vmatpush1.msra.mxu0 %v4272
    %4770 = vmatprep.subr.mxu0 %v4281
    %4771 = vmatpush1.msra.mxu0 %v4280
    %4772 = vmatprep.subr.mxu0 %v4289
    %4773 = vmatpush1.msra.mxu0 %v4288
    %4774 = vmatprep.subr.mxu0 %v4297
    %4775 = vmatpush1.msra.mxu0 %v4296
    %4776 = vmatprep.subr.mxu0 %v4305
    %4777 = vmatpush1.msra.mxu0 %v4304
    %4778 = vmatprep.subr.mxu0 %v4313
    %4779 = vmatpush1.msra.mxu0 %v4312
    %4780 = vmatprep.subr.mxu0 %v4321
    %4781 = vmatpush1.msra.mxu0 %v4320
    %4782 = vmatprep.subr.mxu0 %v4329
    %4783 = vmatpush1.msra.mxu0 %v4328
    %4784 = vmatprep.subr.mxu0 %v4337
    %4785 = vmatpush1.msra.mxu0 %v4336
    %4786 = vmatprep.subr.mxu0 %v4345
    %4787 = vmatpush1.msra.mxu0 %v4344
    %4788 = vmatprep.subr.mxu0 %v4353
    %4789 = vmatpush1.msra.mxu0 %v4352
    %4790 = vmatprep.subr.mxu0 %v4361
    %4791 = vmatpush1.msra.mxu0 %v4360
    %4792 = vmatprep.subr.mxu0 %v4369
    %4793 = vmatpush1.msra.mxu0 %v4368
    %4794 = vmatprep.subr.mxu0 %v4377
    %4795 = vmatpush1.msra.mxu0 %v4376
    %4796 = vmatprep.subr.mxu0 %v4385
    %4797 = vmatpush1.msra.mxu0 %v4384
    %4798 = vmatprep.subr.mxu0 %v4393
    %4799 = vmatpush1.msra.mxu0 %v4392
    %4800 = vmatprep.subr.mxu0 %v4401
    %4801 = vmatpush1.msra.mxu0 %v4400
    %4802 = vmatprep.subr.mxu0 %v4409
    %4803 = vmatpush1.msra.mxu0 %v4408
    %4804 = vmatprep.subr.mxu0 %v4417
    %4805 = vmatpush1.msra.mxu0 %v4416
    %4806 = vmatprep.subr.mxu0 %v4425
    %4807 = vmatpush1.msra.mxu0 %v4424
    %4808 = vmatprep.subr.mxu0 %v4433
    %4809 = vmatpush1.msra.mxu0 %v4432
    %4810 = vmatprep.subr.mxu0 %v4441
    %4811 = vmatpush1.msra.mxu0 %v4440
    %4812 = vmatprep.subr.mxu0 %v4449
    %4813 = vmatpush1.msra.mxu0 %v4448
    %4814 = vmatprep.subr.mxu0 %v4457
    %4815 = vmatpush1.msra.mxu0 %v4456
    %4816 = vmatprep.subr.mxu0 %v4465
    %4817 = vmatpush1.msra.mxu0 %v4464
    %4818 = vmatprep.subr.mxu0 %v4473
    %4819 = vmatpush1.msra.mxu0 %v4472
    %4820 = vmatprep.subr.mxu0 %v4481
    %4821 = vmatpush1.msra.mxu0 %v4480
    %4822 = vmatprep.subr.mxu0 %v4489
    %4823 = vmatpush1.msra.mxu0 %v4488
    %4824 = vmatprep.mubr.f32.mxu0 %v4221
    %4825 = vmatmul.mubr.f32.gmra.mrb[0].mxu0 %v4220
    %v4826 = vpop.f32.mrb[0].mxu0
    %v4827 = vadd.f32 %v4513, %v4826
    %v4828 = vpop.f32.mrb[0].mxu0
    %v4829 = vadd.f32 %v4517, %v4828
    %4830 = vmatprep.mubr.f32.mxu0 %v4223
    %4831 = vmatmul.mubr.f32.gmra.mrb[0].mxu0 %v4222
    %v4832 = vpop.f32.mrb[0].mxu0
    %v4833 = vadd.f32 %v4513, %v4832
    %v4834 = vpop.f32.mrb[0].mxu0
    %v4835 = vadd.f32 %v4517, %v4834
    %4836 = vmatprep.mubr.f32.mxu0 %v4225
    %4837 = vmatmul.mubr.f32.gmra.mrb[0].mxu0 %v4224
    %v4838 = vpop.f32.mrb[0].mxu0
    %v4839 = vadd.f32 %v4513, %v4838
    %v4840 = vpop.f32.mrb[0].mxu0
    %v4841 = vadd.f32 %v4517, %v4840
    %4842 = vmatprep.mubr.f32.mxu0 %v4227
    %4843 = vmatmul.mubr.f32.gmra.mrb[0].mxu0 %v4226
    %v4844 = vpop.f32.mrb[0].mxu0
    %v4845 = vadd.f32 %v4513, %v4844
    %v4846 = vpop.f32.mrb[0].mxu0
    %v4847 = vadd.f32 %v4517, %v4846
    %4848 = vmatprep.mubr.f32.mxu0 %v4229
    %4849 = vmatmul.mubr.f32.gmra.mrb[0].mxu0 %v4228
    %v4850 = vpop.f32.mrb[0].mxu0
    %v4851 = vadd.f32 %v4513, %v4850
    %v4852 = vpop.f32.mrb[0].mxu0
    %v4853 = vadd.f32 %v4517, %v4852
    %4854 = vmatprep.mubr.f32.mxu0 %v4231
    %4855 = vmatmul.mubr.f32.gmra.mrb[0].mxu0 %v4230
    %v4856 = vpop.f32.mrb[0].mxu0
    %v4857 = vadd.f32 %v4513, %v4856
    %v4858 = vpop.f32.mrb[0].mxu0
    %v4859 = vadd.f32 %v4517, %v4858
    %4860 = vmatprep.mubr.f32.mxu0 %v4233
    %4861 = vmatmul.mubr.f32.gmra.mrb[0].mxu0 %v4232
    %v4862 = vpop.f32.mrb[0].mxu0
    %v4863 = vadd.f32 %v4513, %v4862
    %v4864 = vpop.f32.mrb[0].mxu0
    %v4865 = vadd.f32 %v4517, %v4864
    %4866 = vmatprep.mubr.f32.mxu0 %v4235
    %4867 = vmatmul.mubr.f32.gmra.mrb[0].mxu0 %v4234
    %v4868 = vpop.f32.mrb[0].mxu0
    %v4869 = vadd.f32 %v4513, %v4868
    %v4870 = vpop.f32.mrb[0].mxu0
    %v4871 = vadd.f32 %v4517, %v4870
    %4872 = vdwg.mxu0
    %4873 = vmatprep.subr.mxu0 %v4243
    %4874 = vmatpush1.msra.mxu0 %v4242
    %4875 = vmatprep.subr.mxu0 %v4251
    %4876 = vmatpush1.msra.mxu0 %v4250
    %4877 = vmatprep.subr.mxu0 %v4259
    %4878 = vmatpush1.msra.mxu0 %v4258
    %4879 = vmatprep.subr.mxu0 %v4267
    %4880 = vmatpush1.msra.mxu0 %v4266
    %4881 = vmatprep.subr.mxu0 %v4275
    %4882 = vmatpush1.msra.mxu0 %v4274
    %4883 = vmatprep.subr.mxu0 %v4283
    %4884 = vmatpush1.msra.mxu0 %v4282
    %4885 = vmatprep.subr.mxu0 %v4291
    %4886 = vmatpush1.msra.mxu0 %v4290
    %4887 = vmatprep.subr.mxu0 %v4299
    %4888 = vmatpush1.msra.mxu0 %v4298
    %4889 = vmatprep.subr.mxu0 %v4307
    %4890 = vmatpush1.msra.mxu0 %v4306
    %4891 = vmatprep.subr.mxu0 %v4315
    %4892 = vmatpush1.msra.mxu0 %v4314
    %4893 = vmatprep.subr.mxu0 %v4323
    %4894 = vmatpush1.msra.mxu0 %v4322
    %4895 = vmatprep.subr.mxu0 %v4331
    %4896 = vmatpush1.msra.mxu0 %v4330
    %4897 = vmatprep.subr.mxu0 %v4339
    %4898 = vmatpush1.msra.mxu0 %v4338
    %4899 = vmatprep.subr.mxu0 %v4347
    %4900 = vmatpush1.msra.mxu0 %v4346
    %4901 = vmatprep.subr.mxu0 %v4355
    %4902 = vmatpush1.msra.mxu0 %v4354
    %4903 = vmatprep.subr.mxu0 %v4363
    %4904 = vmatpush1.msra.mxu0 %v4362
    %4905 = vmatprep.subr.mxu0 %v4371
    %4906 = vmatpush1.msra.mxu0 %v4370
    %4907 = vmatprep.subr.mxu0 %v4379
    %4908 = vmatpush1.msra.mxu0 %v4378
    %4909 = vmatprep.subr.mxu0 %v4387
    %4910 = vmatpush1.msra.mxu0 %v4386
    %4911 = vmatprep.subr.mxu0 %v4395
    %4912 = vmatpush1.msra.mxu0 %v4394
    %4913 = vmatprep.subr.mxu0 %v4403
    %4914 = vmatpush1.msra.mxu0 %v4402
    %4915 = vmatprep.subr.mxu0 %v4411
    %4916 = vmatpush1.msra.mxu0 %v4410
    %4917 = vmatprep.subr.mxu0 %v4419
    %4918 = vmatpush1.msra.mxu0 %v4418
    %4919 = vmatprep.subr.mxu0 %v4427
    %4920 = vmatpush1.msra.mxu0 %v4426
    %4921 = vmatprep.subr.mxu0 %v4435
    %4922 = vmatpush1.msra.mxu0 %v4434
    %4923 = vmatprep.subr.mxu0 %v4443
    %4924 = vmatpush1.msra.mxu0 %v4442
    %4925 = vmatprep.subr.mxu0 %v4451
    %4926 = vmatpush1.msra.mxu0 %v4450
    %4927 = vmatprep.subr.mxu0 %v4459
    %4928 = vmatpush1.msra.mxu0 %v4458
    %4929 = vmatprep.subr.mxu0 %v4467
    %4930 = vmatpush1.msra.mxu0 %v4466
    %4931 = vmatprep.subr.mxu0 %v4475
    %4932 = vmatpush1.msra.mxu0 %v4474
    %4933 = vmatprep.subr.mxu0 %v4483
    %4934 = vmatpush1.msra.mxu0 %v4482
    %4935 = vmatprep.subr.mxu0 %v4491
    %4936 = vmatpush1.msra.mxu0 %v4490
    %4937 = vmatprep.mubr.f32.mxu0 %v4221
    %4938 = vmatmul.mubr.f32.gmra.mrb[0].mxu0 %v4220
    %v4939 = vpop.f32.mrb[0].mxu0
    %v4940 = vadd.f32 %v4521, %v4939
    %v4941 = vpop.f32.mrb[0].mxu0
    %v4942 = vadd.f32 %v4525, %v4941
    %4943 = vmatprep.mubr.f32.mxu0 %v4223
    %4944 = vmatmul.mubr.f32.gmra.mrb[0].mxu0 %v4222
    %v4945 = vpop.f32.mrb[0].mxu0
    %v4946 = vadd.f32 %v4521, %v4945
    %v4947 = vpop.f32.mrb[0].mxu0
    %v4948 = vadd.f32 %v4525, %v4947
    %4949 = vmatprep.mubr.f32.mxu0 %v4225
    %4950 = vmatmul.mubr.f32.gmra.mrb[0].mxu0 %v4224
    %v4951 = vpop.f32.mrb[0].mxu0
    %v4952 = vadd.f32 %v4521, %v4951
    %v4953 = vpop.f32.mrb[0].mxu0
    %v4954 = vadd.f32 %v4525, %v4953
    %4955 = vmatprep.mubr.f32.mxu0 %v4227
    %4956 = vmatmul.mubr.f32.gmra.mrb[0].mxu0 %v4226
    %v4957 = vpop.f32.mrb[0].mxu0
    %v4958 = vadd.f32 %v4521, %v4957
    %v4959 = vpop.f32.mrb[0].mxu0
    %v4960 = vadd.f32 %v4525, %v4959
    %4961 = vmatprep.mubr.f32.mxu0 %v4229
    %4962 = vmatmul.mubr.f32.gmra.mrb[0].mxu0 %v4228
    %v4963 = vpop.f32.mrb[0].mxu0
    %v4964 = vadd.f32 %v4521, %v4963
    %v4965 = vpop.f32.mrb[0].mxu0
    %v4966 = vadd.f32 %v4525, %v4965
    %4967 = vmatprep.mubr.f32.mxu0 %v4231
    %4968 = vmatmul.mubr.f32.gmra.mrb[0].mxu0 %v4230
    %v4969 = vpop.f32.mrb[0].mxu0
    %v4970 = vadd.f32 %v4521, %v4969
    %v4971 = vpop.f32.mrb[0].mxu0
    %v4972 = vadd.f32 %v4525, %v4971
    %4973 = vmatprep.mubr.f32.mxu0 %v4233
    %4974 = vmatmul.mubr.f32.gmra.mrb[0].mxu0 %v4232
    %v4975 = vpop.f32.mrb[0].mxu0
    %v4976 = vadd.f32 %v4521, %v4975
    %v4977 = vpop.f32.mrb[0].mxu0
    %v4978 = vadd.f32 %v4525, %v4977
    %4979 = vmatprep.mubr.f32.mxu0 %v4235
    %4980 = vmatmul.mubr.f32.gmra.mrb[0].mxu0 %v4234
    %v4981 = vpop.f32.mrb[0].mxu0
    %v4982 = vadd.f32 %v4521, %v4981
    %v4983 = vpop.f32.mrb[0].mxu0
    %v4984 = vadd.f32 %v4525, %v4983
    %4985 = vdwg.mxu0
    %4986 = vst [vmem:[#allocation2] sm:$0xff] %v4601
    %4987 = vst [vmem:[#allocation2 + $0x8] sm:$0xff] %v4603
    %4988 = vst [vmem:[#allocation2 + $0x10] sm:$0xff] %v4714
    %4989 = vst [vmem:[#allocation2 + $0x18] sm:$0xff] %v4716
    %4990 = vst [vmem:[#allocation2 + $0x20] sm:$0xff] %v4827
    %4991 = vst [vmem:[#allocation2 + $0x28] sm:$0xff] %v4829
    %4992 = vst [vmem:[#allocation2 + $0x30] sm:$0xff] %v4940
    %4993 = vst [vmem:[#allocation2 + $0x38] sm:$0xff] %v4942
    %4994 = vst [vmem:[#allocation2 + $0x40] sm:$0xff] %v4607
    %4995 = vst [vmem:[#allocation2 + $0x48] sm:$0xff] %v4609
    %4996 = vst [vmem:[#allocation2 + $0x50] sm:$0xff] %v4720
    %4997 = vst [vmem:[#allocation2 + $0x58] sm:$0xff] %v4722
    %4998 = vst [vmem:[#allocation2 + $0x60] sm:$0xff] %v4833
    %4999 = vst [vmem:[#allocation2 + $0x68] sm:$0xff] %v4835
    %5000 = vst [vmem:[#allocation2 + $0x70] sm:$0xff] %v4946
    %5001 = vst [vmem:[#allocation2 + $0x78] sm:$0xff] %v4948
    %5002 = vst [vmem:[#allocation2 + $0x80] sm:$0xff] %v4613
    %5003 = vst [vmem:[#allocation2 + $0x88] sm:$0xff] %v4615
    %5004 = vst [vmem:[#allocation2 + $0x90] sm:$0xff] %v4726
    %5005 = vst [vmem:[#allocation2 + $0x98] sm:$0xff] %v4728
    %5006 = vst [vmem:[#allocation2 + $0xa0] sm:$0xff] %v4839
    %5007 = vst [vmem:[#allocation2 + $0xa8] sm:$0xff] %v4841
    %5008 = vst [vmem:[#allocation2 + $0xb0] sm:$0xff] %v4952
    %5009 = vst [vmem:[#allocation2 + $0xb8] sm:$0xff] %v4954
    %5010 = vst [vmem:[#allocation2 + $0xc0] sm:$0xff] %v4619
    %5011 = vst [vmem:[#allocation2 + $0xc8] sm:$0xff] %v4621
    %5012 = vst [vmem:[#allocation2 + $0xd0] sm:$0xff] %v4732
    %5013 = vst [vmem:[#allocation2 + $0xd8] sm:$0xff] %v4734
    %5014 = vst [vmem:[#allocation2 + $0xe0] sm:$0xff] %v4845
    %5015 = vst [vmem:[#allocation2 + $0xe8] sm:$0xff] %v4847
    %5016 = vst [vmem:[#allocation2 + $0xf0] sm:$0xff] %v4958
    %5017 = vst [vmem:[#allocation2 + $0xf8] sm:$0xff] %v4960
    %5018 = vst [vmem:[#allocation2 + $0x100] sm:$0xff] %v4625
    %5019 = vst [vmem:[#allocation2 + $0x108] sm:$0xff] %v4627
    %5020 = vst [vmem:[#allocation2 + $0x110] sm:$0xff] %v4738
    %5021 = vst [vmem:[#allocation2 + $0x118] sm:$0xff] %v4740
    %5022 = vst [vmem:[#allocation2 + $0x120] sm:$0xff] %v4851
    %5023 = vst [vmem:[#allocation2 + $0x128] sm:$0xff] %v4853
    %5024 = vst [vmem:[#allocation2 + $0x130] sm:$0xff] %v4964
    %5025 = vst [vmem:[#allocation2 + $0x138] sm:$0xff] %v4966
    %5026 = vst [vmem:[#allocation2 + $0x140] sm:$0xff] %v4631
    %5027 = vst [vmem:[#allocation2 + $0x148] sm:$0xff] %v4633
    %5028 = vst [vmem:[#allocation2 + $0x150] sm:$0xff] %v4744
    %5029 = vst [vmem:[#allocation2 + $0x158] sm:$0xff] %v4746
    %5030 = vst [vmem:[#allocation2 + $0x160] sm:$0xff] %v4857
    %5031 = vst [vmem:[#allocation2 + $0x168] sm:$0xff] %v4859
    %5032 = vst [vmem:[#allocation2 + $0x170] sm:$0xff] %v4970
    %5033 = vst [vmem:[#allocation2 + $0x178] sm:$0xff] %v4972
    %5034 = vst [vmem:[#allocation2 + $0x180] sm:$0xff] %v4637
    %5035 = vst [vmem:[#allocation2 + $0x188] sm:$0xff] %v4639
    %5036 = vst [vmem:[#allocation2 + $0x190] sm:$0xff] %v4750
    %5037 = vst [vmem:[#allocation2 + $0x198] sm:$0xff] %v4752
    %5038 = vst [vmem:[#allocation2 + $0x1a0] sm:$0xff] %v4863
    %5039 = vst [vmem:[#allocation2 + $0x1a8] sm:$0xff] %v4865
    %5040 = vst [vmem:[#allocation2 + $0x1b0] sm:$0xff] %v4976
    %5041 = vst [vmem:[#allocation2 + $0x1b8] sm:$0xff] %v4978
    %5042 = vst [vmem:[#allocation2 + $0x1c0] sm:$0xff] %v4643
    %5043 = vst [vmem:[#allocation2 + $0x1c8] sm:$0xff] %v4645
    %5044 = vst [vmem:[#allocation2 + $0x1d0] sm:$0xff] %v4756
    %5045 = vst [vmem:[#allocation2 + $0x1d8] sm:$0xff] %v4758
    %5046 = vst [vmem:[#allocation2 + $0x1e0] sm:$0xff] %v4869
    %5047 = vst [vmem:[#allocation2 + $0x1e8] sm:$0xff] %v4871
    %5048 = vst [vmem:[#allocation2 + $0x1f0] sm:$0xff] %v4982
    %5049 = vst [vmem:[#allocation2 + $0x1f8] sm:$0xff] %v4984
    %v5050 = vld [vmem:[#allocation9] sm:$0xff]
    %v5051 = vld [vmem:[#allocation9 + $0x8] sm:$0xff]
    %v5052 = vld [vmem:[#allocation9 + $0x10] sm:$0xff]
    %v5053 = vld [vmem:[#allocation9 + $0x18] sm:$0xff]
    %v5054 = vld [vmem:[#allocation9 + $0x20] sm:$0xff]
    %v5055 = vld [vmem:[#allocation9 + $0x28] sm:$0xff]
    %v5056 = vld [vmem:[#allocation9 + $0x30] sm:$0xff]
    %v5057 = vld [vmem:[#allocation9 + $0x38] sm:$0xff]
    %v5058 = vld [vmem:[#allocation9 + $0x40] sm:$0xff]
    %v5059 = vld [vmem:[#allocation9 + $0x48] sm:$0xff]
    %v5060 = vld [vmem:[#allocation9 + $0x50] sm:$0xff]
    %v5061 = vld [vmem:[#allocation9 + $0x58] sm:$0xff]
    %v5062 = vld [vmem:[#allocation9 + $0x60] sm:$0xff]
    %v5063 = vld [vmem:[#allocation9 + $0x68] sm:$0xff]
    %v5064 = vld [vmem:[#allocation9 + $0x70] sm:$0xff]
    %v5065 = vld [vmem:[#allocation9 + $0x78] sm:$0xff]
    %v5066 = vld [vmem:[#allocation9 + $0x80] sm:$0xff]
    %v5067 = vld [vmem:[#allocation9 + $0x88] sm:$0xff]
    %v5068 = vld [vmem:[#allocation9 + $0x90] sm:$0xff]
    %v5069 = vld [vmem:[#allocation9 + $0x98] sm:$0xff]
    %v5070 = vld [vmem:[#allocation9 + $0xa0] sm:$0xff]
    %v5071 = vld [vmem:[#allocation9 + $0xa8] sm:$0xff]
    %v5072 = vld [vmem:[#allocation9 + $0xb0] sm:$0xff]
    %v5073 = vld [vmem:[#allocation9 + $0xb8] sm:$0xff]
    %v5074 = vld [vmem:[#allocation9 + $0xc0] sm:$0xff]
    %v5075 = vld [vmem:[#allocation9 + $0xc8] sm:$0xff]
    %v5076 = vld [vmem:[#allocation9 + $0xd0] sm:$0xff]
    %v5077 = vld [vmem:[#allocation9 + $0xd8] sm:$0xff]
    %v5078 = vld [vmem:[#allocation9 + $0xe0] sm:$0xff]
    %v5079 = vld [vmem:[#allocation9 + $0xe8] sm:$0xff]
    %v5080 = vld [vmem:[#allocation9 + $0xf0] sm:$0xff]
    %v5081 = vld [vmem:[#allocation9 + $0xf8] sm:$0xff]
    %v5082 = vld [vmem:[#allocation9 + $0x100] sm:$0xff]
    %v5083 = vld [vmem:[#allocation9 + $0x108] sm:$0xff]
    %v5084 = vld [vmem:[#allocation9 + $0x110] sm:$0xff]
    %v5085 = vld [vmem:[#allocation9 + $0x118] sm:$0xff]
    %v5086 = vld [vmem:[#allocation9 + $0x120] sm:$0xff]
    %v5087 = vld [vmem:[#allocation9 + $0x128] sm:$0xff]
    %v5088 = vld [vmem:[#allocation9 + $0x130] sm:$0xff]
    %v5089 = vld [vmem:[#allocation9 + $0x138] sm:$0xff]
    %v5090 = vld [vmem:[#allocation9 + $0x140] sm:$0xff]
    %v5091 = vld [vmem:[#allocation9 + $0x148] sm:$0xff]
    %v5092 = vld [vmem:[#allocation9 + $0x150] sm:$0xff]
    %v5093 = vld [vmem:[#allocation9 + $0x158] sm:$0xff]
    %v5094 = vld [vmem:[#allocation9 + $0x160] sm:$0xff]
    %v5095 = vld [vmem:[#allocation9 + $0x168] sm:$0xff]
    %v5096 = vld [vmem:[#allocation9 + $0x170] sm:$0xff]
    %v5097 = vld [vmem:[#allocation9 + $0x178] sm:$0xff]
    %v5098 = vld [vmem:[#allocation9 + $0x180] sm:$0xff]
    %v5099 = vld [vmem:[#allocation9 + $0x188] sm:$0xff]
    %v5100 = vld [vmem:[#allocation9 + $0x190] sm:$0xff]
    %v5101 = vld [vmem:[#allocation9 + $0x198] sm:$0xff]
    %v5102 = vld [vmem:[#allocation9 + $0x1a0] sm:$0xff]
    %v5103 = vld [vmem:[#allocation9 + $0x1a8] sm:$0xff]
    %v5104 = vld [vmem:[#allocation9 + $0x1b0] sm:$0xff]
    %v5105 = vld [vmem:[#allocation9 + $0x1b8] sm:$0xff]
    %v5106 = vld [vmem:[#allocation9 + $0x1c0] sm:$0xff]
    %v5107 = vld [vmem:[#allocation9 + $0x1c8] sm:$0xff]
    %v5108 = vld [vmem:[#allocation9 + $0x1d0] sm:$0xff]
    %v5109 = vld [vmem:[#allocation9 + $0x1d8] sm:$0xff]
    %v5110 = vld [vmem:[#allocation9 + $0x1e0] sm:$0xff]
    %v5111 = vld [vmem:[#allocation9 + $0x1e8] sm:$0xff]
    %v5112 = vld [vmem:[#allocation9 + $0x1f0] sm:$0xff]
    %v5113 = vld [vmem:[#allocation9 + $0x1f8] sm:$0xff]
    %v5114 = vld [vmem:[#allocation9 + $0x200] sm:$0xff]
    %v5115 = vld [vmem:[#allocation9 + $0x208] sm:$0xff]
    %v5116 = vld [vmem:[#allocation9 + $0x210] sm:$0xff]
    %v5117 = vld [vmem:[#allocation9 + $0x218] sm:$0xff]
    %v5118 = vld [vmem:[#allocation9 + $0x220] sm:$0xff]
    %v5119 = vld [vmem:[#allocation9 + $0x228] sm:$0xff]
    %v5120 = vld [vmem:[#allocation9 + $0x230] sm:$0xff]
    %v5121 = vld [vmem:[#allocation9 + $0x238] sm:$0xff]
    %v5122 = vld [vmem:[#allocation9 + $0x240] sm:$0xff]
    %v5123 = vld [vmem:[#allocation9 + $0x248] sm:$0xff]
    %v5124 = vld [vmem:[#allocation9 + $0x250] sm:$0xff]
    %v5125 = vld [vmem:[#allocation9 + $0x258] sm:$0xff]
    %v5126 = vld [vmem:[#allocation9 + $0x260] sm:$0xff]
    %v5127 = vld [vmem:[#allocation9 + $0x268] sm:$0xff]
    %v5128 = vld [vmem:[#allocation9 + $0x270] sm:$0xff]
    %v5129 = vld [vmem:[#allocation9 + $0x278] sm:$0xff]
    %v5130 = vld [vmem:[#allocation9 + $0x280] sm:$0xff]
    %v5131 = vld [vmem:[#allocation9 + $0x288] sm:$0xff]
    %v5132 = vld [vmem:[#allocation9 + $0x290] sm:$0xff]
    %v5133 = vld [vmem:[#allocation9 + $0x298] sm:$0xff]
    %v5134 = vld [vmem:[#allocation9 + $0x2a0] sm:$0xff]
    %v5135 = vld [vmem:[#allocation9 + $0x2a8] sm:$0xff]
    %v5136 = vld [vmem:[#allocation9 + $0x2b0] sm:$0xff]
    %v5137 = vld [vmem:[#allocation9 + $0x2b8] sm:$0xff]
    %v5138 = vld [vmem:[#allocation9 + $0x2c0] sm:$0xff]
    %v5139 = vld [vmem:[#allocation9 + $0x2c8] sm:$0xff]
    %v5140 = vld [vmem:[#allocation9 + $0x2d0] sm:$0xff]
    %v5141 = vld [vmem:[#allocation9 + $0x2d8] sm:$0xff]
    %v5142 = vld [vmem:[#allocation9 + $0x2e0] sm:$0xff]
    %v5143 = vld [vmem:[#allocation9 + $0x2e8] sm:$0xff]
    %v5144 = vld [vmem:[#allocation9 + $0x2f0] sm:$0xff]
    %v5145 = vld [vmem:[#allocation9 + $0x2f8] sm:$0xff]
    %v5146 = vld [vmem:[#allocation9 + $0x300] sm:$0xff]
    %v5147 = vld [vmem:[#allocation9 + $0x308] sm:$0xff]
    %v5148 = vld [vmem:[#allocation9 + $0x310] sm:$0xff]
    %v5149 = vld [vmem:[#allocation9 + $0x318] sm:$0xff]
    %v5150 = vld [vmem:[#allocation9 + $0x320] sm:$0xff]
    %v5151 = vld [vmem:[#allocation9 + $0x328] sm:$0xff]
    %v5152 = vld [vmem:[#allocation9 + $0x330] sm:$0xff]
    %v5153 = vld [vmem:[#allocation9 + $0x338] sm:$0xff]
    %v5154 = vld [vmem:[#allocation9 + $0x340] sm:$0xff]
    %v5155 = vld [vmem:[#allocation9 + $0x348] sm:$0xff]
    %v5156 = vld [vmem:[#allocation9 + $0x350] sm:$0xff]
    %v5157 = vld [vmem:[#allocation9 + $0x358] sm:$0xff]
    %v5158 = vld [vmem:[#allocation9 + $0x360] sm:$0xff]
    %v5159 = vld [vmem:[#allocation9 + $0x368] sm:$0xff]
    %v5160 = vld [vmem:[#allocation9 + $0x370] sm:$0xff]
    %v5161 = vld [vmem:[#allocation9 + $0x378] sm:$0xff]
    %v5162 = vld [vmem:[#allocation9 + $0x380] sm:$0xff]
    %v5163 = vld [vmem:[#allocation9 + $0x388] sm:$0xff]
    %v5164 = vld [vmem:[#allocation9 + $0x390] sm:$0xff]
    %v5165 = vld [vmem:[#allocation9 + $0x398] sm:$0xff]
    %v5166 = vld [vmem:[#allocation9 + $0x3a0] sm:$0xff]
    %v5167 = vld [vmem:[#allocation9 + $0x3a8] sm:$0xff]
    %v5168 = vld [vmem:[#allocation9 + $0x3b0] sm:$0xff]
    %v5169 = vld [vmem:[#allocation9 + $0x3b8] sm:$0xff]
    %v5170 = vld [vmem:[#allocation9 + $0x3c0] sm:$0xff]
    %v5171 = vld [vmem:[#allocation9 + $0x3c8] sm:$0xff]
    %v5172 = vld [vmem:[#allocation9 + $0x3d0] sm:$0xff]
    %v5173 = vld [vmem:[#allocation9 + $0x3d8] sm:$0xff]
    %v5174 = vld [vmem:[#allocation9 + $0x3e0] sm:$0xff]
    %v5175 = vld [vmem:[#allocation9 + $0x3e8] sm:$0xff]
    %v5176 = vld [vmem:[#allocation9 + $0x3f0] sm:$0xff]
    %v5177 = vld [vmem:[#allocation9 + $0x3f8] sm:$0xff]
    %v5178 = vld [vmem:[#allocation9 + $0x400] sm:$0xff]
    %v5179 = vld [vmem:[#allocation9 + $0x408] sm:$0xff]
    %v5180 = vld [vmem:[#allocation9 + $0x410] sm:$0xff]
    %v5181 = vld [vmem:[#allocation9 + $0x418] sm:$0xff]
    %v5182 = vld [vmem:[#allocation9 + $0x420] sm:$0xff]
    %v5183 = vld [vmem:[#allocation9 + $0x428] sm:$0xff]
    %v5184 = vld [vmem:[#allocation9 + $0x430] sm:$0xff]
    %v5185 = vld [vmem:[#allocation9 + $0x438] sm:$0xff]
    %v5186 = vld [vmem:[#allocation9 + $0x440] sm:$0xff]
    %v5187 = vld [vmem:[#allocation9 + $0x448] sm:$0xff]
    %v5188 = vld [vmem:[#allocation9 + $0x450] sm:$0xff]
    %v5189 = vld [vmem:[#allocation9 + $0x458] sm:$0xff]
    %v5190 = vld [vmem:[#allocation9 + $0x460] sm:$0xff]
    %v5191 = vld [vmem:[#allocation9 + $0x468] sm:$0xff]
    %v5192 = vld [vmem:[#allocation9 + $0x470] sm:$0xff]
    %v5193 = vld [vmem:[#allocation9 + $0x478] sm:$0xff]
    %v5194 = vld [vmem:[#allocation9 + $0x480] sm:$0xff]
    %v5195 = vld [vmem:[#allocation9 + $0x488] sm:$0xff]
    %v5196 = vld [vmem:[#allocation9 + $0x490] sm:$0xff]
    %v5197 = vld [vmem:[#allocation9 + $0x498] sm:$0xff]
    %v5198 = vld [vmem:[#allocation9 + $0x4a0] sm:$0xff]
    %v5199 = vld [vmem:[#allocation9 + $0x4a8] sm:$0xff]
    %v5200 = vld [vmem:[#allocation9 + $0x4b0] sm:$0xff]
    %v5201 = vld [vmem:[#allocation9 + $0x4b8] sm:$0xff]
    %v5202 = vld [vmem:[#allocation9 + $0x4c0] sm:$0xff]
    %v5203 = vld [vmem:[#allocation9 + $0x4c8] sm:$0xff]
    %v5204 = vld [vmem:[#allocation9 + $0x4d0] sm:$0xff]
    %v5205 = vld [vmem:[#allocation9 + $0x4d8] sm:$0xff]
    %v5206 = vld [vmem:[#allocation9 + $0x4e0] sm:$0xff]
    %v5207 = vld [vmem:[#allocation9 + $0x4e8] sm:$0xff]
    %v5208 = vld [vmem:[#allocation9 + $0x4f0] sm:$0xff]
    %v5209 = vld [vmem:[#allocation9 + $0x4f8] sm:$0xff]
    %v5210 = vld [vmem:[#allocation9 + $0x500] sm:$0xff]
    %v5211 = vld [vmem:[#allocation9 + $0x508] sm:$0xff]
    %v5212 = vld [vmem:[#allocation9 + $0x510] sm:$0xff]
    %v5213 = vld [vmem:[#allocation9 + $0x518] sm:$0xff]
    %v5214 = vld [vmem:[#allocation9 + $0x520] sm:$0xff]
    %v5215 = vld [vmem:[#allocation9 + $0x528] sm:$0xff]
    %v5216 = vld [vmem:[#allocation9 + $0x530] sm:$0xff]
    %v5217 = vld [vmem:[#allocation9 + $0x538] sm:$0xff]
    %v5218 = vld [vmem:[#allocation9 + $0x540] sm:$0xff]
    %v5219 = vld [vmem:[#allocation9 + $0x548] sm:$0xff]
    %v5220 = vld [vmem:[#allocation9 + $0x550] sm:$0xff]
    %v5221 = vld [vmem:[#allocation9 + $0x558] sm:$0xff]
    %v5222 = vld [vmem:[#allocation9 + $0x560] sm:$0xff]
    %v5223 = vld [vmem:[#allocation9 + $0x568] sm:$0xff]
    %v5224 = vld [vmem:[#allocation9 + $0x570] sm:$0xff]
    %v5225 = vld [vmem:[#allocation9 + $0x578] sm:$0xff]
    %v5226 = vld [vmem:[#allocation9 + $0x580] sm:$0xff]
    %v5227 = vld [vmem:[#allocation9 + $0x588] sm:$0xff]
    %v5228 = vld [vmem:[#allocation9 + $0x590] sm:$0xff]
    %v5229 = vld [vmem:[#allocation9 + $0x598] sm:$0xff]
    %v5230 = vld [vmem:[#allocation9 + $0x5a0] sm:$0xff]
    %v5231 = vld [vmem:[#allocation9 + $0x5a8] sm:$0xff]
    %v5232 = vld [vmem:[#allocation9 + $0x5b0] sm:$0xff]
    %v5233 = vld [vmem:[#allocation9 + $0x5b8] sm:$0xff]
    %v5234 = vld [vmem:[#allocation9 + $0x5c0] sm:$0xff]
    %v5235 = vld [vmem:[#allocation9 + $0x5c8] sm:$0xff]
    %v5236 = vld [vmem:[#allocation9 + $0x5d0] sm:$0xff]
    %v5237 = vld [vmem:[#allocation9 + $0x5d8] sm:$0xff]
    %v5238 = vld [vmem:[#allocation9 + $0x5e0] sm:$0xff]
    %v5239 = vld [vmem:[#allocation9 + $0x5e8] sm:$0xff]
    %v5240 = vld [vmem:[#allocation9 + $0x5f0] sm:$0xff]
    %v5241 = vld [vmem:[#allocation9 + $0x5f8] sm:$0xff]
    %v5242 = vld [vmem:[#allocation9 + $0x600] sm:$0xff]
    %v5243 = vld [vmem:[#allocation9 + $0x608] sm:$0xff]
    %v5244 = vld [vmem:[#allocation9 + $0x610] sm:$0xff]
    %v5245 = vld [vmem:[#allocation9 + $0x618] sm:$0xff]
    %v5246 = vld [vmem:[#allocation9 + $0x620] sm:$0xff]
    %v5247 = vld [vmem:[#allocation9 + $0x628] sm:$0xff]
    %v5248 = vld [vmem:[#allocation9 + $0x630] sm:$0xff]
    %v5249 = vld [vmem:[#allocation9 + $0x638] sm:$0xff]
    %v5250 = vld [vmem:[#allocation9 + $0x640] sm:$0xff]
    %v5251 = vld [vmem:[#allocation9 + $0x648] sm:$0xff]
    %v5252 = vld [vmem:[#allocation9 + $0x650] sm:$0xff]
    %v5253 = vld [vmem:[#allocation9 + $0x658] sm:$0xff]
    %v5254 = vld [vmem:[#allocation9 + $0x660] sm:$0xff]
    %v5255 = vld [vmem:[#allocation9 + $0x668] sm:$0xff]
    %v5256 = vld [vmem:[#allocation9 + $0x670] sm:$0xff]
    %v5257 = vld [vmem:[#allocation9 + $0x678] sm:$0xff]
    %v5258 = vld [vmem:[#allocation9 + $0x680] sm:$0xff]
    %v5259 = vld [vmem:[#allocation9 + $0x688] sm:$0xff]
    %v5260 = vld [vmem:[#allocation9 + $0x690] sm:$0xff]
    %v5261 = vld [vmem:[#allocation9 + $0x698] sm:$0xff]
    %v5262 = vld [vmem:[#allocation9 + $0x6a0] sm:$0xff]
    %v5263 = vld [vmem:[#allocation9 + $0x6a8] sm:$0xff]
    %v5264 = vld [vmem:[#allocation9 + $0x6b0] sm:$0xff]
    %v5265 = vld [vmem:[#allocation9 + $0x6b8] sm:$0xff]
    %v5266 = vld [vmem:[#allocation9 + $0x6c0] sm:$0xff]
    %v5267 = vld [vmem:[#allocation9 + $0x6c8] sm:$0xff]
    %v5268 = vld [vmem:[#allocation9 + $0x6d0] sm:$0xff]
    %v5269 = vld [vmem:[#allocation9 + $0x6d8] sm:$0xff]
    %v5270 = vld [vmem:[#allocation9 + $0x6e0] sm:$0xff]
    %v5271 = vld [vmem:[#allocation9 + $0x6e8] sm:$0xff]
    %v5272 = vld [vmem:[#allocation9 + $0x6f0] sm:$0xff]
    %v5273 = vld [vmem:[#allocation9 + $0x6f8] sm:$0xff]
    %v5274 = vld [vmem:[#allocation9 + $0x700] sm:$0xff]
    %v5275 = vld [vmem:[#allocation9 + $0x708] sm:$0xff]
    %v5276 = vld [vmem:[#allocation9 + $0x710] sm:$0xff]
    %v5277 = vld [vmem:[#allocation9 + $0x718] sm:$0xff]
    %v5278 = vld [vmem:[#allocation9 + $0x720] sm:$0xff]
    %v5279 = vld [vmem:[#allocation9 + $0x728] sm:$0xff]
    %v5280 = vld [vmem:[#allocation9 + $0x730] sm:$0xff]
    %v5281 = vld [vmem:[#allocation9 + $0x738] sm:$0xff]
    %v5282 = vld [vmem:[#allocation9 + $0x740] sm:$0xff]
    %v5283 = vld [vmem:[#allocation9 + $0x748] sm:$0xff]
    %v5284 = vld [vmem:[#allocation9 + $0x750] sm:$0xff]
    %v5285 = vld [vmem:[#allocation9 + $0x758] sm:$0xff]
    %v5286 = vld [vmem:[#allocation9 + $0x760] sm:$0xff]
    %v5287 = vld [vmem:[#allocation9 + $0x768] sm:$0xff]
    %v5288 = vld [vmem:[#allocation9 + $0x770] sm:$0xff]
    %v5289 = vld [vmem:[#allocation9 + $0x778] sm:$0xff]
    %v5290 = vld [vmem:[#allocation9 + $0x780] sm:$0xff]
    %v5291 = vld [vmem:[#allocation9 + $0x788] sm:$0xff]
    %v5292 = vld [vmem:[#allocation9 + $0x790] sm:$0xff]
    %v5293 = vld [vmem:[#allocation9 + $0x798] sm:$0xff]
    %v5294 = vld [vmem:[#allocation9 + $0x7a0] sm:$0xff]
    %v5295 = vld [vmem:[#allocation9 + $0x7a8] sm:$0xff]
    %v5296 = vld [vmem:[#allocation9 + $0x7b0] sm:$0xff]
    %v5297 = vld [vmem:[#allocation9 + $0x7b8] sm:$0xff]
    %v5298 = vld [vmem:[#allocation9 + $0x7c0] sm:$0xff]
    %v5299 = vld [vmem:[#allocation9 + $0x7c8] sm:$0xff]
    %v5300 = vld [vmem:[#allocation9 + $0x7d0] sm:$0xff]
    %v5301 = vld [vmem:[#allocation9 + $0x7d8] sm:$0xff]
    %v5302 = vld [vmem:[#allocation9 + $0x7e0] sm:$0xff]
    %v5303 = vld [vmem:[#allocation9 + $0x7e8] sm:$0xff]
    %v5304 = vld [vmem:[#allocation9 + $0x7f0] sm:$0xff]
    %v5305 = vld [vmem:[#allocation9 + $0x7f8] sm:$0xff]
    %s5306 = scalar_lea.vmem %s14, 16
    %v5307 = vld [vmem:[%s5306] sm:$0xff]
    %v5308 = vld [vmem:[%s5306 + $0x8] sm:$0xff]
    %s5309 = scalar_lea.vmem %s15, 16
    %v5310 = vld [vmem:[%s5309] sm:$0xff]
    %v5311 = vld [vmem:[%s5309 + $0x8] sm:$0xff]
    %v5312 = vld [vmem:[%s1370] sm:$0xff]
    %v5313 = vld [vmem:[%s1370 + $0x8] sm:$0xff]
    %v5314 = vld [vmem:[%s1370 + $0x10] sm:$0xff]
    %v5315 = vld [vmem:[%s1370 + $0x18] sm:$0xff]
    %v5316 = vld [vmem:[%s1370 + $0x20] sm:$0xff]
    %v5317 = vld [vmem:[%s1370 + $0x28] sm:$0xff]
    %v5318 = vld [vmem:[%s1370 + $0x30] sm:$0xff]
    %v5319 = vld [vmem:[%s1370 + $0x38] sm:$0xff]
    %5320 = vmatprep.subr.mxu0 %v5051
    %5321 = vmatpush1.msra.mxu0 %v5050
    %5322 = vmatprep.subr.mxu0 %v5059
    %5323 = vmatpush1.msra.mxu0 %v5058
    %5324 = vmatprep.subr.mxu0 %v5067
    %5325 = vmatpush1.msra.mxu0 %v5066
    %5326 = vmatprep.subr.mxu0 %v5075
    %5327 = vmatpush1.msra.mxu0 %v5074
    %5328 = vmatprep.subr.mxu0 %v5083
    %5329 = vmatpush1.msra.mxu0 %v5082
    %5330 = vmatprep.subr.mxu0 %v5091
    %5331 = vmatpush1.msra.mxu0 %v5090
    %5332 = vmatprep.subr.mxu0 %v5099
    %5333 = vmatpush1.msra.mxu0 %v5098
    %5334 = vmatprep.subr.mxu0 %v5107
    %5335 = vmatpush1.msra.mxu0 %v5106
    %5336 = vmatprep.subr.mxu0 %v5115
    %5337 = vmatpush1.msra.mxu0 %v5114
    %5338 = vmatprep.subr.mxu0 %v5123
    %5339 = vmatpush1.msra.mxu0 %v5122
    %5340 = vmatprep.subr.mxu0 %v5131
    %5341 = vmatpush1.msra.mxu0 %v5130
    %5342 = vmatprep.subr.mxu0 %v5139
    %5343 = vmatpush1.msra.mxu0 %v5138
    %5344 = vmatprep.subr.mxu0 %v5147
    %5345 = vmatpush1.msra.mxu0 %v5146
    %5346 = vmatprep.subr.mxu0 %v5155
    %5347 = vmatpush1.msra.mxu0 %v5154
    %5348 = vmatprep.subr.mxu0 %v5163
    %5349 = vmatpush1.msra.mxu0 %v5162
    %5350 = vmatprep.subr.mxu0 %v5171
    %5351 = vmatpush1.msra.mxu0 %v5170
    %5352 = vmatprep.subr.mxu0 %v5179
    %5353 = vmatpush1.msra.mxu0 %v5178
    %5354 = vmatprep.subr.mxu0 %v5187
    %5355 = vmatpush1.msra.mxu0 %v5186
    %5356 = vmatprep.subr.mxu0 %v5195
    %5357 = vmatpush1.msra.mxu0 %v5194
    %5358 = vmatprep.subr.mxu0 %v5203
    %5359 = vmatpush1.msra.mxu0 %v5202
    %5360 = vmatprep.subr.mxu0 %v5211
    %5361 = vmatpush1.msra.mxu0 %v5210
    %5362 = vmatprep.subr.mxu0 %v5219
    %5363 = vmatpush1.msra.mxu0 %v5218
    %5364 = vmatprep.subr.mxu0 %v5227
    %5365 = vmatpush1.msra.mxu0 %v5226
    %5366 = vmatprep.subr.mxu0 %v5235
    %5367 = vmatpush1.msra.mxu0 %v5234
    %5368 = vmatprep.subr.mxu0 %v5243
    %5369 = vmatpush1.msra.mxu0 %v5242
    %5370 = vmatprep.subr.mxu0 %v5251
    %5371 = vmatpush1.msra.mxu0 %v5250
    %5372 = vmatprep.subr.mxu0 %v5259
    %5373 = vmatpush1.msra.mxu0 %v5258
    %5374 = vmatprep.subr.mxu0 %v5267
    %5375 = vmatpush1.msra.mxu0 %v5266
    %5376 = vmatprep.subr.mxu0 %v5275
    %5377 = vmatpush1.msra.mxu0 %v5274
    %5378 = vmatprep.subr.mxu0 %v5283
    %5379 = vmatpush1.msra.mxu0 %v5282
    %5380 = vmatprep.subr.mxu0 %v5291
    %5381 = vmatpush1.msra.mxu0 %v5290
    %5382 = vmatprep.subr.mxu0 %v5299
    %5383 = vmatpush1.msra.mxu0 %v5298
    %5384 = vmatprep.mubr.f32.mxu0 %v5308
    %5385 = vmatmul.mubr.f32.gmra.mrb[0].mxu0 %v5307
    %v5386 = vpop.f32.mrb[0].mxu0
    %v5387 = vadd.f32 0.0, %v5386
    %v5388 = vpop.f32.mrb[0].mxu0
    %v5389 = vadd.f32 0.0, %v5388
    %5390 = vdwg.mxu0
    %5391 = vmatprep.subr.mxu0 %v5053
    %5392 = vmatpush1.msra.mxu0 %v5052
    %5393 = vmatprep.subr.mxu0 %v5061
    %5394 = vmatpush1.msra.mxu0 %v5060
    %5395 = vmatprep.subr.mxu0 %v5069
    %5396 = vmatpush1.msra.mxu0 %v5068
    %5397 = vmatprep.subr.mxu0 %v5077
    %5398 = vmatpush1.msra.mxu0 %v5076
    %5399 = vmatprep.subr.mxu0 %v5085
    %5400 = vmatpush1.msra.mxu0 %v5084
    %5401 = vmatprep.subr.mxu0 %v5093
    %5402 = vmatpush1.msra.mxu0 %v5092
    %5403 = vmatprep.subr.mxu0 %v5101
    %5404 = vmatpush1.msra.mxu0 %v5100
    %5405 = vmatprep.subr.mxu0 %v5109
    %5406 = vmatpush1.msra.mxu0 %v5108
    %5407 = vmatprep.subr.mxu0 %v5117
    %5408 = vmatpush1.msra.mxu0 %v5116
    %5409 = vmatprep.subr.mxu0 %v5125
    %5410 = vmatpush1.msra.mxu0 %v5124
    %5411 = vmatprep.subr.mxu0 %v5133
    %5412 = vmatpush1.msra.mxu0 %v5132
    %5413 = vmatprep.subr.mxu0 %v5141
    %5414 = vmatpush1.msra.mxu0 %v5140
    %5415 = vmatprep.subr.mxu0 %v5149
    %5416 = vmatpush1.msra.mxu0 %v5148
    %5417 = vmatprep.subr.mxu0 %v5157
    %5418 = vmatpush1.msra.mxu0 %v5156
    %5419 = vmatprep.subr.mxu0 %v5165
    %5420 = vmatpush1.msra.mxu0 %v5164
    %5421 = vmatprep.subr.mxu0 %v5173
    %5422 = vmatpush1.msra.mxu0 %v5172
    %5423 = vmatprep.subr.mxu0 %v5181
    %5424 = vmatpush1.msra.mxu0 %v5180
    %5425 = vmatprep.subr.mxu0 %v5189
    %5426 = vmatpush1.msra.mxu0 %v5188
    %5427 = vmatprep.subr.mxu0 %v5197
    %5428 = vmatpush1.msra.mxu0 %v5196
    %5429 = vmatprep.subr.mxu0 %v5205
    %5430 = vmatpush1.msra.mxu0 %v5204
    %5431 = vmatprep.subr.mxu0 %v5213
    %5432 = vmatpush1.msra.mxu0 %v5212
    %5433 = vmatprep.subr.mxu0 %v5221
    %5434 = vmatpush1.msra.mxu0 %v5220
    %5435 = vmatprep.subr.mxu0 %v5229
    %5436 = vmatpush1.msra.mxu0 %v5228
    %5437 = vmatprep.subr.mxu0 %v5237
    %5438 = vmatpush1.msra.mxu0 %v5236
    %5439 = vmatprep.subr.mxu0 %v5245
    %5440 = vmatpush1.msra.mxu0 %v5244
    %5441 = vmatprep.subr.mxu0 %v5253
    %5442 = vmatpush1.msra.mxu0 %v5252
    %5443 = vmatprep.subr.mxu0 %v5261
    %5444 = vmatpush1.msra.mxu0 %v5260
    %5445 = vmatprep.subr.mxu0 %v5269
    %5446 = vmatpush1.msra.mxu0 %v5268
    %5447 = vmatprep.subr.mxu0 %v5277
    %5448 = vmatpush1.msra.mxu0 %v5276
    %5449 = vmatprep.subr.mxu0 %v5285
    %5450 = vmatpush1.msra.mxu0 %v5284
    %5451 = vmatprep.subr.mxu0 %v5293
    %5452 = vmatpush1.msra.mxu0 %v5292
    %5453 = vmatprep.subr.mxu0 %v5301
    %5454 = vmatpush1.msra.mxu0 %v5300
    %5455 = vmatprep.mubr.f32.mxu0 %v5308
    %5456 = vmatmul.mubr.f32.gmra.mrb[0].mxu0 %v5307
    %v5457 = vpop.f32.mrb[0].mxu0
    %v5458 = vadd.f32 0.0, %v5457
    %v5459 = vpop.f32.mrb[0].mxu0
    %v5460 = vadd.f32 0.0, %v5459
    %5461 = vdwg.mxu0
    %5462 = vmatprep.subr.mxu0 %v5055
    %5463 = vmatpush1.msra.mxu0 %v5054
    %5464 = vmatprep.subr.mxu0 %v5063
    %5465 = vmatpush1.msra.mxu0 %v5062
    %5466 = vmatprep.subr.mxu0 %v5071
    %5467 = vmatpush1.msra.mxu0 %v5070
    %5468 = vmatprep.subr.mxu0 %v5079
    %5469 = vmatpush1.msra.mxu0 %v5078
    %5470 = vmatprep.subr.mxu0 %v5087
    %5471 = vmatpush1.msra.mxu0 %v5086
    %5472 = vmatprep.subr.mxu0 %v5095
    %5473 = vmatpush1.msra.mxu0 %v5094
    %5474 = vmatprep.subr.mxu0 %v5103
    %5475 = vmatpush1.msra.mxu0 %v5102
    %5476 = vmatprep.subr.mxu0 %v5111
    %5477 = vmatpush1.msra.mxu0 %v5110
    %5478 = vmatprep.subr.mxu0 %v5119
    %5479 = vmatpush1.msra.mxu0 %v5118
    %5480 = vmatprep.subr.mxu0 %v5127
    %5481 = vmatpush1.msra.mxu0 %v5126
    %5482 = vmatprep.subr.mxu0 %v5135
    %5483 = vmatpush1.msra.mxu0 %v5134
    %5484 = vmatprep.subr.mxu0 %v5143
    %5485 = vmatpush1.msra.mxu0 %v5142
    %5486 = vmatprep.subr.mxu0 %v5151
    %5487 = vmatpush1.msra.mxu0 %v5150
    %5488 = vmatprep.subr.mxu0 %v5159
    %5489 = vmatpush1.msra.mxu0 %v5158
    %5490 = vmatprep.subr.mxu0 %v5167
    %5491 = vmatpush1.msra.mxu0 %v5166
    %5492 = vmatprep.subr.mxu0 %v5175
    %5493 = vmatpush1.msra.mxu0 %v5174
    %5494 = vmatprep.subr.mxu0 %v5183
    %5495 = vmatpush1.msra.mxu0 %v5182
    %5496 = vmatprep.subr.mxu0 %v5191
    %5497 = vmatpush1.msra.mxu0 %v5190
    %5498 = vmatprep.subr.mxu0 %v5199
    %5499 = vmatpush1.msra.mxu0 %v5198
    %5500 = vmatprep.subr.mxu0 %v5207
    %5501 = vmatpush1.msra.mxu0 %v5206
    %5502 = vmatprep.subr.mxu0 %v5215
    %5503 = vmatpush1.msra.mxu0 %v5214
    %5504 = vmatprep.subr.mxu0 %v5223
    %5505 = vmatpush1.msra.mxu0 %v5222
    %5506 = vmatprep.subr.mxu0 %v5231
    %5507 = vmatpush1.msra.mxu0 %v5230
    %5508 = vmatprep.subr.mxu0 %v5239
    %5509 = vmatpush1.msra.mxu0 %v5238
    %5510 = vmatprep.subr.mxu0 %v5247
    %5511 = vmatpush1.msra.mxu0 %v5246
    %5512 = vmatprep.subr.mxu0 %v5255
    %5513 = vmatpush1.msra.mxu0 %v5254
    %5514 = vmatprep.subr.mxu0 %v5263
    %5515 = vmatpush1.msra.mxu0 %v5262
    %5516 = vmatprep.subr.mxu0 %v5271
    %5517 = vmatpush1.msra.mxu0 %v5270
    %5518 = vmatprep.subr.mxu0 %v5279
    %5519 = vmatpush1.msra.mxu0 %v5278
    %5520 = vmatprep.subr.mxu0 %v5287
    %5521 = vmatpush1.msra.mxu0 %v5286
    %5522 = vmatprep.subr.mxu0 %v5295
    %5523 = vmatpush1.msra.mxu0 %v5294
    %5524 = vmatprep.subr.mxu0 %v5303
    %5525 = vmatpush1.msra.mxu0 %v5302
    %5526 = vmatprep.mubr.f32.mxu0 %v5308
    %5527 = vmatmul.mubr.f32.gmra.mrb[0].mxu0 %v5307
    %v5528 = vpop.f32.mrb[0].mxu0
    %v5529 = vadd.f32 0.0, %v5528
    %v5530 = vpop.f32.mrb[0].mxu0
    %v5531 = vadd.f32 0.0, %v5530
    %5532 = vdwg.mxu0
    %5533 = vmatprep.subr.mxu0 %v5057
    %5534 = vmatpush1.msra.mxu0 %v5056
    %5535 = vmatprep.subr.mxu0 %v5065
    %5536 = vmatpush1.msra.mxu0 %v5064
    %5537 = vmatprep.subr.mxu0 %v5073
    %5538 = vmatpush1.msra.mxu0 %v5072
    %5539 = vmatprep.subr.mxu0 %v5081
    %5540 = vmatpush1.msra.mxu0 %v5080
    %5541 = vmatprep.subr.mxu0 %v5089
    %5542 = vmatpush1.msra.mxu0 %v5088
    %5543 = vmatprep.subr.mxu0 %v5097
    %5544 = vmatpush1.msra.mxu0 %v5096
    %5545 = vmatprep.subr.mxu0 %v5105
    %5546 = vmatpush1.msra.mxu0 %v5104
    %5547 = vmatprep.subr.mxu0 %v5113
    %5548 = vmatpush1.msra.mxu0 %v5112
    %5549 = vmatprep.subr.mxu0 %v5121
    %5550 = vmatpush1.msra.mxu0 %v5120
    %5551 = vmatprep.subr.mxu0 %v5129
    %5552 = vmatpush1.msra.mxu0 %v5128
    %5553 = vmatprep.subr.mxu0 %v5137
    %5554 = vmatpush1.msra.mxu0 %v5136
    %5555 = vmatprep.subr.mxu0 %v5145
    %5556 = vmatpush1.msra.mxu0 %v5144
    %5557 = vmatprep.subr.mxu0 %v5153
    %5558 = vmatpush1.msra.mxu0 %v5152
    %5559 = vmatprep.subr.mxu0 %v5161
    %5560 = vmatpush1.msra.mxu0 %v5160
    %5561 = vmatprep.subr.mxu0 %v5169
    %5562 = vmatpush1.msra.mxu0 %v5168
    %5563 = vmatprep.subr.mxu0 %v5177
    %5564 = vmatpush1.msra.mxu0 %v5176
    %5565 = vmatprep.subr.mxu0 %v5185
    %5566 = vmatpush1.msra.mxu0 %v5184
    %5567 = vmatprep.subr.mxu0 %v5193
    %5568 = vmatpush1.msra.mxu0 %v5192
    %5569 = vmatprep.subr.mxu0 %v5201
    %5570 = vmatpush1.msra.mxu0 %v5200
    %5571 = vmatprep.subr.mxu0 %v5209
    %5572 = vmatpush1.msra.mxu0 %v5208
    %5573 = vmatprep.subr.mxu0 %v5217
    %5574 = vmatpush1.msra.mxu0 %v5216
    %5575 = vmatprep.subr.mxu0 %v5225
    %5576 = vmatpush1.msra.mxu0 %v5224
    %5577 = vmatprep.subr.mxu0 %v5233
    %5578 = vmatpush1.msra.mxu0 %v5232
    %5579 = vmatprep.subr.mxu0 %v5241
    %5580 = vmatpush1.msra.mxu0 %v5240
    %5581 = vmatprep.subr.mxu0 %v5249
    %5582 = vmatpush1.msra.mxu0 %v5248
    %5583 = vmatprep.subr.mxu0 %v5257
    %5584 = vmatpush1.msra.mxu0 %v5256
    %5585 = vmatprep.subr.mxu0 %v5265
    %5586 = vmatpush1.msra.mxu0 %v5264
    %5587 = vmatprep.subr.mxu0 %v5273
    %5588 = vmatpush1.msra.mxu0 %v5272
    %5589 = vmatprep.subr.mxu0 %v5281
    %5590 = vmatpush1.msra.mxu0 %v5280
    %5591 = vmatprep.subr.mxu0 %v5289
    %5592 = vmatpush1.msra.mxu0 %v5288
    %5593 = vmatprep.subr.mxu0 %v5297
    %5594 = vmatpush1.msra.mxu0 %v5296
    %5595 = vmatprep.subr.mxu0 %v5305
    %5596 = vmatpush1.msra.mxu0 %v5304
    %5597 = vmatprep.mubr.f32.mxu0 %v5308
    %5598 = vmatmul.mubr.f32.gmra.mrb[0].mxu0 %v5307
    %v5599 = vpop.f32.mrb[0].mxu0
    %v5600 = vadd.f32 0.0, %v5599
    %v5601 = vpop.f32.mrb[0].mxu0
    %v5602 = vadd.f32 0.0, %v5601
    %5603 = vdwg.mxu0
    %v5604 = vadd.f32 %v5312, %v5387
    %v5605 = vadd.f32 %v5313, %v5389
    %v5606 = vadd.f32 %v5314, %v5458
    %v5607 = vadd.f32 %v5315, %v5460
    %v5608 = vadd.f32 %v5316, %v5529
    %v5609 = vadd.f32 %v5317, %v5531
    %v5610 = vadd.f32 %v5318, %v5600
    %v5611 = vadd.f32 %v5319, %v5602
    %v5612 = vxor.u32 %v5604, 2147483648
    %v5613 = vxor.u32 %v5605, 2147483648
    %v5614 = vxor.u32 %v5606, 2147483648
    %v5615 = vxor.u32 %v5607, 2147483648
    %v5616 = vxor.u32 %v5608, 2147483648
    %v5617 = vxor.u32 %v5609, 2147483648
    %v5618 = vmul.f32 %v5612, 1.442695
    %v5619 = vpow.pop %v5618
    %v5620 = vmul.f32 %v5613, 1.442695
    %v5621 = vpow.pop %v5620
    %v5622 = vmul.f32 %v5614, 1.442695
    %v5623 = vpow.pop %v5622
    %v5624 = vmul.f32 %v5615, 1.442695
    %v5625 = vpow.pop %v5624
    %v5626 = vmul.f32 %v5616, 1.442695
    %v5627 = vpow.pop %v5626
    %v5628 = vmul.f32 %v5617, 1.442695
    %v5629 = vpow.pop %v5628
    %v5630 = vadd.f32 %v5619, 1.0
    %v5631 = vadd.f32 %v5621, 1.0
    %v5632 = vadd.f32 %v5623, 1.0
    %v5633 = vadd.f32 %v5625, 1.0
    %v5634 = vadd.f32 %v5627, 1.0
    %v5635 = vadd.f32 %v5629, 1.0
    %v5636 = vrcp.pop %v5630
    %v5637 = vmul.f32 1.0, %v5636
    %v5638 = vrcp.pop %v5631
    %v5639 = vmul.f32 1.0, %v5638
    %v5640 = vrcp.pop %v5632
    %v5641 = vmul.f32 1.0, %v5640
    %v5642 = vrcp.pop %v5633
    %v5643 = vmul.f32 1.0, %v5642
    %v5644 = vrcp.pop %v5634
    %v5645 = vmul.f32 1.0, %v5644
    %v5646 = vrcp.pop %v5635
    %v5647 = vmul.f32 1.0, %v5646
    %v5648 = vtanh.pop %v5610
    %v5649 = vtanh.pop %v5611
    %v5650 = vmul.f32 %v5641, %v5310
    %v5651 = vmul.f32 %v5643, %v5311
    %v5652 = vmul.f32 %v5637, %v5648
    %v5653 = vmul.f32 %v5639, %v5649
    %v5654 = vadd.f32 %v5650, %v5652
    %v5655 = vadd.f32 %v5651, %v5653
    %v5656 = vtanh.pop %v5654
    %v5657 = vtanh.pop %v5655
    %v5658 = vmul.f32 %v5645, %v5656
    %v5659 = vmul.f32 %v5647, %v5657
    %5660 = vst [vmem:[%s1721] sm:$0xff] %v5658
    %5661 = vst [vmem:[%s1721 + $0x8] sm:$0xff] %v5659
    %v5662 = vld [vmem:[%s1726] sm:$0xff]
    %v5663 = vld [vmem:[%s1726 + $0x8] sm:$0xff]
    %v5664 = vld [vmem:[%s1726 + $0x10] sm:$0xff]
    %v5665 = vld [vmem:[%s1726 + $0x18] sm:$0xff]
    %v5666 = vld [vmem:[%s1726 + $0x20] sm:$0xff]
    %v5667 = vld [vmem:[%s1726 + $0x28] sm:$0xff]
    %v5668 = vld [vmem:[%s1726 + $0x30] sm:$0xff]
    %v5669 = vld [vmem:[%s1726 + $0x38] sm:$0xff]
    %5670 = vmatprep.subr.mxu0 %v5051
    %5671 = vmatpush1.msra.mxu0 %v5050
    %5672 = vmatprep.subr.mxu0 %v5059
    %5673 = vmatpush1.msra.mxu0 %v5058
    %5674 = vmatprep.subr.mxu0 %v5067
    %5675 = vmatpush1.msra.mxu0 %v5066
    %5676 = vmatprep.subr.mxu0 %v5075
    %5677 = vmatpush1.msra.mxu0 %v5074
    %5678 = vmatprep.subr.mxu0 %v5083
    %5679 = vmatpush1.msra.mxu0 %v5082
    %5680 = vmatprep.subr.mxu0 %v5091
    %5681 = vmatpush1.msra.mxu0 %v5090
    %5682 = vmatprep.subr.mxu0 %v5099
    %5683 = vmatpush1.msra.mxu0 %v5098
    %5684 = vmatprep.subr.mxu0 %v5107
    %5685 = vmatpush1.msra.mxu0 %v5106
    %5686 = vmatprep.subr.mxu0 %v5115
    %5687 = vmatpush1.msra.mxu0 %v5114
    %5688 = vmatprep.subr.mxu0 %v5123
    %5689 = vmatpush1.msra.mxu0 %v5122
    %5690 = vmatprep.subr.mxu0 %v5131
    %5691 = vmatpush1.msra.mxu0 %v5130
    %5692 = vmatprep.subr.mxu0 %v5139
    %5693 = vmatpush1.msra.mxu0 %v5138
    %5694 = vmatprep.subr.mxu0 %v5147
    %5695 = vmatpush1.msra.mxu0 %v5146
    %5696 = vmatprep.subr.mxu0 %v5155
    %5697 = vmatpush1.msra.mxu0 %v5154
    %5698 = vmatprep.subr.mxu0 %v5163
    %5699 = vmatpush1.msra.mxu0 %v5162
    %5700 = vmatprep.subr.mxu0 %v5171
    %5701 = vmatpush1.msra.mxu0 %v5170
    %5702 = vmatprep.subr.mxu0 %v5179
    %5703 = vmatpush1.msra.mxu0 %v5178
    %5704 = vmatprep.subr.mxu0 %v5187
    %5705 = vmatpush1.msra.mxu0 %v5186
    %5706 = vmatprep.subr.mxu0 %v5195
    %5707 = vmatpush1.msra.mxu0 %v5194
    %5708 = vmatprep.subr.mxu0 %v5203
    %5709 = vmatpush1.msra.mxu0 %v5202
    %5710 = vmatprep.subr.mxu0 %v5211
    %5711 = vmatpush1.msra.mxu0 %v5210
    %5712 = vmatprep.subr.mxu0 %v5219
    %5713 = vmatpush1.msra.mxu0 %v5218
    %5714 = vmatprep.subr.mxu0 %v5227
    %5715 = vmatpush1.msra.mxu0 %v5226
    %5716 = vmatprep.subr.mxu0 %v5235
    %5717 = vmatpush1.msra.mxu0 %v5234
    %5718 = vmatprep.subr.mxu0 %v5243
    %5719 = vmatpush1.msra.mxu0 %v5242
    %5720 = vmatprep.subr.mxu0 %v5251
    %5721 = vmatpush1.msra.mxu0 %v5250
    %5722 = vmatprep.subr.mxu0 %v5259
    %5723 = vmatpush1.msra.mxu0 %v5258
    %5724 = vmatprep.subr.mxu0 %v5267
    %5725 = vmatpush1.msra.mxu0 %v5266
    %5726 = vmatprep.subr.mxu0 %v5275
    %5727 = vmatpush1.msra.mxu0 %v5274
    %5728 = vmatprep.subr.mxu0 %v5283
    %5729 = vmatpush1.msra.mxu0 %v5282
    %5730 = vmatprep.subr.mxu0 %v5291
    %5731 = vmatpush1.msra.mxu0 %v5290
    %5732 = vmatprep.subr.mxu0 %v5299
    %5733 = vmatpush1.msra.mxu0 %v5298
    %5734 = vmatprep.mubr.f32.mxu0 %v5659
    %5735 = vmatmul.mubr.f32.gmra.mrb[0].mxu0 %v5658
    %v5736 = vpop.f32.mrb[0].mxu0
    %v5737 = vadd.f32 0.0, %v5736
    %v5738 = vpop.f32.mrb[0].mxu0
    %v5739 = vadd.f32 0.0, %v5738
    %5740 = vdwg.mxu0
    %5741 = vmatprep.subr.mxu0 %v5053
    %5742 = vmatpush1.msra.mxu0 %v5052
    %5743 = vmatprep.subr.mxu0 %v5061
    %5744 = vmatpush1.msra.mxu0 %v5060
    %5745 = vmatprep.subr.mxu0 %v5069
    %5746 = vmatpush1.msra.mxu0 %v5068
    %5747 = vmatprep.subr.mxu0 %v5077
    %5748 = vmatpush1.msra.mxu0 %v5076
    %5749 = vmatprep.subr.mxu0 %v5085
    %5750 = vmatpush1.msra.mxu0 %v5084
    %5751 = vmatprep.subr.mxu0 %v5093
    %5752 = vmatpush1.msra.mxu0 %v5092
    %5753 = vmatprep.subr.mxu0 %v5101
    %5754 = vmatpush1.msra.mxu0 %v5100
    %5755 = vmatprep.subr.mxu0 %v5109
    %5756 = vmatpush1.msra.mxu0 %v5108
    %5757 = vmatprep.subr.mxu0 %v5117
    %5758 = vmatpush1.msra.mxu0 %v5116
    %5759 = vmatprep.subr.mxu0 %v5125
    %5760 = vmatpush1.msra.mxu0 %v5124
    %5761 = vmatprep.subr.mxu0 %v5133
    %5762 = vmatpush1.msra.mxu0 %v5132
    %5763 = vmatprep.subr.mxu0 %v5141
    %5764 = vmatpush1.msra.mxu0 %v5140
    %5765 = vmatprep.subr.mxu0 %v5149
    %5766 = vmatpush1.msra.mxu0 %v5148
    %5767 = vmatprep.subr.mxu0 %v5157
    %5768 = vmatpush1.msra.mxu0 %v5156
    %5769 = vmatprep.subr.mxu0 %v5165
    %5770 = vmatpush1.msra.mxu0 %v5164
    %5771 = vmatprep.subr.mxu0 %v5173
    %5772 = vmatpush1.msra.mxu0 %v5172
    %5773 = vmatprep.subr.mxu0 %v5181
    %5774 = vmatpush1.msra.mxu0 %v5180
    %5775 = vmatprep.subr.mxu0 %v5189
    %5776 = vmatpush1.msra.mxu0 %v5188
    %5777 = vmatprep.subr.mxu0 %v5197
    %5778 = vmatpush1.msra.mxu0 %v5196
    %5779 = vmatprep.subr.mxu0 %v5205
    %5780 = vmatpush1.msra.mxu0 %v5204
    %5781 = vmatprep.subr.mxu0 %v5213
    %5782 = vmatpush1.msra.mxu0 %v5212
    %5783 = vmatprep.subr.mxu0 %v5221
    %5784 = vmatpush1.msra.mxu0 %v5220
    %5785 = vmatprep.subr.mxu0 %v5229
    %5786 = vmatpush1.msra.mxu0 %v5228
    %5787 = vmatprep.subr.mxu0 %v5237
    %5788 = vmatpush1.msra.mxu0 %v5236
    %5789 = vmatprep.subr.mxu0 %v5245
    %5790 = vmatpush1.msra.mxu0 %v5244
    %5791 = vmatprep.subr.mxu0 %v5253
    %5792 = vmatpush1.msra.mxu0 %v5252
    %5793 = vmatprep.subr.mxu0 %v5261
    %5794 = vmatpush1.msra.mxu0 %v5260
    %5795 = vmatprep.subr.mxu0 %v5269
    %5796 = vmatpush1.msra.mxu0 %v5268
    %5797 = vmatprep.subr.mxu0 %v5277
    %5798 = vmatpush1.msra.mxu0 %v5276
    %5799 = vmatprep.subr.mxu0 %v5285
    %5800 = vmatpush1.msra.mxu0 %v5284
    %5801 = vmatprep.subr.mxu0 %v5293
    %5802 = vmatpush1.msra.mxu0 %v5292
    %5803 = vmatprep.subr.mxu0 %v5301
    %5804 = vmatpush1.msra.mxu0 %v5300
    %5805 = vmatprep.mubr.f32.mxu0 %v5659
    %5806 = vmatmul.mubr.f32.gmra.mrb[0].mxu0 %v5658
    %v5807 = vpop.f32.mrb[0].mxu0
    %v5808 = vadd.f32 0.0, %v5807
    %v5809 = vpop.f32.mrb[0].mxu0
    %v5810 = vadd.f32 0.0, %v5809
    %5811 = vdwg.mxu0
    %5812 = vmatprep.subr.mxu0 %v5055
    %5813 = vmatpush1.msra.mxu0 %v5054
    %5814 = vmatprep.subr.mxu0 %v5063
    %5815 = vmatpush1.msra.mxu0 %v5062
    %5816 = vmatprep.subr.mxu0 %v5071
    %5817 = vmatpush1.msra.mxu0 %v5070
    %5818 = vmatprep.subr.mxu0 %v5079
    %5819 = vmatpush1.msra.mxu0 %v5078
    %5820 = vmatprep.subr.mxu0 %v5087
    %5821 = vmatpush1.msra.mxu0 %v5086
    %5822 = vmatprep.subr.mxu0 %v5095
    %5823 = vmatpush1.msra.mxu0 %v5094
    %5824 = vmatprep.subr.mxu0 %v5103
    %5825 = vmatpush1.msra.mxu0 %v5102
    %5826 = vmatprep.subr.mxu0 %v5111
    %5827 = vmatpush1.msra.mxu0 %v5110
    %5828 = vmatprep.subr.mxu0 %v5119
    %5829 = vmatpush1.msra.mxu0 %v5118
    %5830 = vmatprep.subr.mxu0 %v5127
    %5831 = vmatpush1.msra.mxu0 %v5126
    %5832 = vmatprep.subr.mxu0 %v5135
    %5833 = vmatpush1.msra.mxu0 %v5134
    %5834 = vmatprep.subr.mxu0 %v5143
    %5835 = vmatpush1.msra.mxu0 %v5142
    %5836 = vmatprep.subr.mxu0 %v5151
    %5837 = vmatpush1.msra.mxu0 %v5150
    %5838 = vmatprep.subr.mxu0 %v5159
    %5839 = vmatpush1.msra.mxu0 %v5158
    %5840 = vmatprep.subr.mxu0 %v5167
    %5841 = vmatpush1.msra.mxu0 %v5166
    %5842 = vmatprep.subr.mxu0 %v5175
    %5843 = vmatpush1.msra.mxu0 %v5174
    %5844 = vmatprep.subr.mxu0 %v5183
    %5845 = vmatpush1.msra.mxu0 %v5182
    %5846 = vmatprep.subr.mxu0 %v5191
    %5847 = vmatpush1.msra.mxu0 %v5190
    %5848 = vmatprep.subr.mxu0 %v5199
    %5849 = vmatpush1.msra.mxu0 %v5198
    %5850 = vmatprep.subr.mxu0 %v5207
    %5851 = vmatpush1.msra.mxu0 %v5206
    %5852 = vmatprep.subr.mxu0 %v5215
    %5853 = vmatpush1.msra.mxu0 %v5214
    %5854 = vmatprep.subr.mxu0 %v5223
    %5855 = vmatpush1.msra.mxu0 %v5222
    %5856 = vmatprep.subr.mxu0 %v5231
    %5857 = vmatpush1.msra.mxu0 %v5230
    %5858 = vmatprep.subr.mxu0 %v5239
    %5859 = vmatpush1.msra.mxu0 %v5238
    %5860 = vmatprep.subr.mxu0 %v5247
    %5861 = vmatpush1.msra.mxu0 %v5246
    %5862 = vmatprep.subr.mxu0 %v5255
    %5863 = vmatpush1.msra.mxu0 %v5254
    %5864 = vmatprep.subr.mxu0 %v5263
    %5865 = vmatpush1.msra.mxu0 %v5262
    %5866 = vmatprep.subr.mxu0 %v5271
    %5867 = vmatpush1.msra.mxu0 %v5270
    %5868 = vmatprep.subr.mxu0 %v5279
    %5869 = vmatpush1.msra.mxu0 %v5278
    %5870 = vmatprep.subr.mxu0 %v5287
    %5871 = vmatpush1.msra.mxu0 %v5286
    %5872 = vmatprep.subr.mxu0 %v5295
    %5873 = vmatpush1.msra.mxu0 %v5294
    %5874 = vmatprep.subr.mxu0 %v5303
    %5875 = vmatpush1.msra.mxu0 %v5302
    %5876 = vmatprep.mubr.f32.mxu0 %v5659
    %5877 = vmatmul.mubr.f32.gmra.mrb[0].mxu0 %v5658
    %v5878 = vpop.f32.mrb[0].mxu0
    %v5879 = vadd.f32 0.0, %v5878
    %v5880 = vpop.f32.mrb[0].mxu0
    %v5881 = vadd.f32 0.0, %v5880
    %5882 = vdwg.mxu0
    %5883 = vmatprep.subr.mxu0 %v5057
    %5884 = vmatpush1.msra.mxu0 %v5056
    %5885 = vmatprep.subr.mxu0 %v5065
    %5886 = vmatpush1.msra.mxu0 %v5064
    %5887 = vmatprep.subr.mxu0 %v5073
    %5888 = vmatpush1.msra.mxu0 %v5072
    %5889 = vmatprep.subr.mxu0 %v5081
    %5890 = vmatpush1.msra.mxu0 %v5080
    %5891 = vmatprep.subr.mxu0 %v5089
    %5892 = vmatpush1.msra.mxu0 %v5088
    %5893 = vmatprep.subr.mxu0 %v5097
    %5894 = vmatpush1.msra.mxu0 %v5096
    %5895 = vmatprep.subr.mxu0 %v5105
    %5896 = vmatpush1.msra.mxu0 %v5104
    %5897 = vmatprep.subr.mxu0 %v5113
    %5898 = vmatpush1.msra.mxu0 %v5112
    %5899 = vmatprep.subr.mxu0 %v5121
    %5900 = vmatpush1.msra.mxu0 %v5120
    %5901 = vmatprep.subr.mxu0 %v5129
    %5902 = vmatpush1.msra.mxu0 %v5128
    %5903 = vmatprep.subr.mxu0 %v5137
    %5904 = vmatpush1.msra.mxu0 %v5136
    %5905 = vmatprep.subr.mxu0 %v5145
    %5906 = vmatpush1.msra.mxu0 %v5144
    %5907 = vmatprep.subr.mxu0 %v5153
    %5908 = vmatpush1.msra.mxu0 %v5152
    %5909 = vmatprep.subr.mxu0 %v5161
    %5910 = vmatpush1.msra.mxu0 %v5160
    %5911 = vmatprep.subr.mxu0 %v5169
    %5912 = vmatpush1.msra.mxu0 %v5168
    %5913 = vmatprep.subr.mxu0 %v5177
    %5914 = vmatpush1.msra.mxu0 %v5176
    %5915 = vmatprep.subr.mxu0 %v5185
    %5916 = vmatpush1.msra.mxu0 %v5184
    %5917 = vmatprep.subr.mxu0 %v5193
    %5918 = vmatpush1.msra.mxu0 %v5192
    %5919 = vmatprep.subr.mxu0 %v5201
    %5920 = vmatpush1.msra.mxu0 %v5200
    %5921 = vmatprep.subr.mxu0 %v5209
    %5922 = vmatpush1.msra.mxu0 %v5208
    %5923 = vmatprep.subr.mxu0 %v5217
    %5924 = vmatpush1.msra.mxu0 %v5216
    %5925 = vmatprep.subr.mxu0 %v5225
    %5926 = vmatpush1.msra.mxu0 %v5224
    %5927 = vmatprep.subr.mxu0 %v5233
    %5928 = vmatpush1.msra.mxu0 %v5232
    %5929 = vmatprep.subr.mxu0 %v5241
    %5930 = vmatpush1.msra.mxu0 %v5240
    %5931 = vmatprep.subr.mxu0 %v5249
    %5932 = vmatpush1.msra.mxu0 %v5248
    %5933 = vmatprep.subr.mxu0 %v5257
    %5934 = vmatpush1.msra.mxu0 %v5256
    %5935 = vmatprep.subr.mxu0 %v5265
    %5936 = vmatpush1.msra.mxu0 %v5264
    %5937 = vmatprep.subr.mxu0 %v5273
    %5938 = vmatpush1.msra.mxu0 %v5272
    %5939 = vmatprep.subr.mxu0 %v5281
    %5940 = vmatpush1.msra.mxu0 %v5280
    %5941 = vmatprep.subr.mxu0 %v5289
    %5942 = vmatpush1.msra.mxu0 %v5288
    %5943 = vmatprep.subr.mxu0 %v5297
    %5944 = vmatpush1.msra.mxu0 %v5296
    %5945 = vmatprep.subr.mxu0 %v5305
    %5946 = vmatpush1.msra.mxu0 %v5304
    %5947 = vmatprep.mubr.f32.mxu0 %v5659
    %5948 = vmatmul.mubr.f32.gmra.mrb[0].mxu0 %v5658
    %v5949 = vpop.f32.mrb[0].mxu0
    %v5950 = vadd.f32 0.0, %v5949
    %v5951 = vpop.f32.mrb[0].mxu0
    %v5952 = vadd.f32 0.0, %v5951
    %5953 = vdwg.mxu0
    %v5954 = vadd.f32 %v5662, %v5737
    %v5955 = vadd.f32 %v5663, %v5739
    %v5956 = vadd.f32 %v5664, %v5808
    %v5957 = vadd.f32 %v5665, %v5810
    %v5958 = vadd.f32 %v5666, %v5879
    %v5959 = vadd.f32 %v5667, %v5881
    %v5960 = vadd.f32 %v5668, %v5950
    %v5961 = vadd.f32 %v5669, %v5952
    %v5962 = vxor.u32 %v5954, 2147483648
    %v5963 = vxor.u32 %v5955, 2147483648
    %v5964 = vxor.u32 %v5956, 2147483648
    %v5965 = vxor.u32 %v5957, 2147483648
    %v5966 = vxor.u32 %v5958, 2147483648
    %v5967 = vxor.u32 %v5959, 2147483648
    %v5968 = vmul.f32 %v5962, 1.442695
    %v5969 = vpow.pop %v5968
    %v5970 = vmul.f32 %v5963, 1.442695
    %v5971 = vpow.pop %v5970
    %v5972 = vmul.f32 %v5964, 1.442695
    %v5973 = vpow.pop %v5972
    %v5974 = vmul.f32 %v5965, 1.442695
    %v5975 = vpow.pop %v5974
    %v5976 = vmul.f32 %v5966, 1.442695
    %v5977 = vpow.pop %v5976
    %v5978 = vmul.f32 %v5967, 1.442695
    %v5979 = vpow.pop %v5978
    %v5980 = vadd.f32 %v5969, 1.0
    %v5981 = vadd.f32 %v5971, 1.0
    %v5982 = vadd.f32 %v5973, 1.0
    %v5983 = vadd.f32 %v5975, 1.0
    %v5984 = vadd.f32 %v5977, 1.0
    %v5985 = vadd.f32 %v5979, 1.0
    %v5986 = vrcp.pop %v5980
    %v5987 = vmul.f32 1.0, %v5986
    %v5988 = vrcp.pop %v5981
    %v5989 = vmul.f32 1.0, %v5988
    %v5990 = vrcp.pop %v5982
    %v5991 = vmul.f32 1.0, %v5990
    %v5992 = vrcp.pop %v5983
    %v5993 = vmul.f32 1.0, %v5992
    %v5994 = vrcp.pop %v5984
    %v5995 = vmul.f32 1.0, %v5994
    %v5996 = vrcp.pop %v5985
    %v5997 = vmul.f32 1.0, %v5996
    %v5998 = vtanh.pop %v5960
    %v5999 = vtanh.pop %v5961
    %v6000 = vmul.f32 %v5991, %v5654
    %v6001 = vmul.f32 %v5993, %v5655
    %v6002 = vmul.f32 %v5987, %v5998
    %v6003 = vmul.f32 %v5989, %v5999
    %v6004 = vadd.f32 %v6000, %v6002
    %v6005 = vadd.f32 %v6001, %v6003
    %v6006 = vtanh.pop %v6004
    %v6007 = vtanh.pop %v6005
    %v6008 = vmul.f32 %v5995, %v6006
    %v6009 = vmul.f32 %v5997, %v6007
    %6010 = vst [vmem:[%s2077] sm:$0xff] %v6008
    %6011 = vst [vmem:[%s2077 + $0x8] sm:$0xff] %v6009
    %v6012 = vld [vmem:[%s2082] sm:$0xff]
    %v6013 = vld [vmem:[%s2082 + $0x8] sm:$0xff]
    %v6014 = vld [vmem:[%s2082 + $0x10] sm:$0xff]
    %v6015 = vld [vmem:[%s2082 + $0x18] sm:$0xff]
    %v6016 = vld [vmem:[%s2082 + $0x20] sm:$0xff]
    %v6017 = vld [vmem:[%s2082 + $0x28] sm:$0xff]
    %v6018 = vld [vmem:[%s2082 + $0x30] sm:$0xff]
    %v6019 = vld [vmem:[%s2082 + $0x38] sm:$0xff]
    %6020 = vmatprep.subr.mxu0 %v5051
    %6021 = vmatpush1.msra.mxu0 %v5050
    %6022 = vmatprep.subr.mxu0 %v5059
    %6023 = vmatpush1.msra.mxu0 %v5058
    %6024 = vmatprep.subr.mxu0 %v5067
    %6025 = vmatpush1.msra.mxu0 %v5066
    %6026 = vmatprep.subr.mxu0 %v5075
    %6027 = vmatpush1.msra.mxu0 %v5074
    %6028 = vmatprep.subr.mxu0 %v5083
    %6029 = vmatpush1.msra.mxu0 %v5082
    %6030 = vmatprep.subr.mxu0 %v5091
    %6031 = vmatpush1.msra.mxu0 %v5090
    %6032 = vmatprep.subr.mxu0 %v5099
    %6033 = vmatpush1.msra.mxu0 %v5098
    %6034 = vmatprep.subr.mxu0 %v5107
    %6035 = vmatpush1.msra.mxu0 %v5106
    %6036 = vmatprep.subr.mxu0 %v5115
    %6037 = vmatpush1.msra.mxu0 %v5114
    %6038 = vmatprep.subr.mxu0 %v5123
    %6039 = vmatpush1.msra.mxu0 %v5122
    %6040 = vmatprep.subr.mxu0 %v5131
    %6041 = vmatpush1.msra.mxu0 %v5130
    %6042 = vmatprep.subr.mxu0 %v5139
    %6043 = vmatpush1.msra.mxu0 %v5138
    %6044 = vmatprep.subr.mxu0 %v5147
    %6045 = vmatpush1.msra.mxu0 %v5146
    %6046 = vmatprep.subr.mxu0 %v5155
    %6047 = vmatpush1.msra.mxu0 %v5154
    %6048 = vmatprep.subr.mxu0 %v5163
    %6049 = vmatpush1.msra.mxu0 %v5162
    %6050 = vmatprep.subr.mxu0 %v5171
    %6051 = vmatpush1.msra.mxu0 %v5170
    %6052 = vmatprep.subr.mxu0 %v5179
    %6053 = vmatpush1.msra.mxu0 %v5178
    %6054 = vmatprep.subr.mxu0 %v5187
    %6055 = vmatpush1.msra.mxu0 %v5186
    %6056 = vmatprep.subr.mxu0 %v5195
    %6057 = vmatpush1.msra.mxu0 %v5194
    %6058 = vmatprep.subr.mxu0 %v5203
    %6059 = vmatpush1.msra.mxu0 %v5202
    %6060 = vmatprep.subr.mxu0 %v5211
    %6061 = vmatpush1.msra.mxu0 %v5210
    %6062 = vmatprep.subr.mxu0 %v5219
    %6063 = vmatpush1.msra.mxu0 %v5218
    %6064 = vmatprep.subr.mxu0 %v5227
    %6065 = vmatpush1.msra.mxu0 %v5226
    %6066 = vmatprep.subr.mxu0 %v5235
    %6067 = vmatpush1.msra.mxu0 %v5234
    %6068 = vmatprep.subr.mxu0 %v5243
    %6069 = vmatpush1.msra.mxu0 %v5242
    %6070 = vmatprep.subr.mxu0 %v5251
    %6071 = vmatpush1.msra.mxu0 %v5250
    %6072 = vmatprep.subr.mxu0 %v5259
    %6073 = vmatpush1.msra.mxu0 %v5258
    %6074 = vmatprep.subr.mxu0 %v5267
    %6075 = vmatpush1.msra.mxu0 %v5266
    %6076 = vmatprep.subr.mxu0 %v5275
    %6077 = vmatpush1.msra.mxu0 %v5274
    %6078 = vmatprep.subr.mxu0 %v5283
    %6079 = vmatpush1.msra.mxu0 %v5282
    %6080 = vmatprep.subr.mxu0 %v5291
    %6081 = vmatpush1.msra.mxu0 %v5290
    %6082 = vmatprep.subr.mxu0 %v5299
    %6083 = vmatpush1.msra.mxu0 %v5298
    %6084 = vmatprep.mubr.f32.mxu0 %v6009
    %6085 = vmatmul.mubr.f32.gmra.mrb[0].mxu0 %v6008
    %v6086 = vpop.f32.mrb[0].mxu0
    %v6087 = vadd.f32 0.0, %v6086
    %v6088 = vpop.f32.mrb[0].mxu0
    %v6089 = vadd.f32 0.0, %v6088
    %6090 = vdwg.mxu0
    %6091 = vmatprep.subr.mxu0 %v5053
    %6092 = vmatpush1.msra.mxu0 %v5052
    %6093 = vmatprep.subr.mxu0 %v5061
    %6094 = vmatpush1.msra.mxu0 %v5060
    %6095 = vmatprep.subr.mxu0 %v5069
    %6096 = vmatpush1.msra.mxu0 %v5068
    %6097 = vmatprep.subr.mxu0 %v5077
    %6098 = vmatpush1.msra.mxu0 %v5076
    %6099 = vmatprep.subr.mxu0 %v5085
    %6100 = vmatpush1.msra.mxu0 %v5084
    %6101 = vmatprep.subr.mxu0 %v5093
    %6102 = vmatpush1.msra.mxu0 %v5092
    %6103 = vmatprep.subr.mxu0 %v5101
    %6104 = vmatpush1.msra.mxu0 %v5100
    %6105 = vmatprep.subr.mxu0 %v5109
    %6106 = vmatpush1.msra.mxu0 %v5108
    %6107 = vmatprep.subr.mxu0 %v5117
    %6108 = vmatpush1.msra.mxu0 %v5116
    %6109 = vmatprep.subr.mxu0 %v5125
    %6110 = vmatpush1.msra.mxu0 %v5124
    %6111 = vmatprep.subr.mxu0 %v5133
    %6112 = vmatpush1.msra.mxu0 %v5132
    %6113 = vmatprep.subr.mxu0 %v5141
    %6114 = vmatpush1.msra.mxu0 %v5140
    %6115 = vmatprep.subr.mxu0 %v5149
    %6116 = vmatpush1.msra.mxu0 %v5148
    %6117 = vmatprep.subr.mxu0 %v5157
    %6118 = vmatpush1.msra.mxu0 %v5156
    %6119 = vmatprep.subr.mxu0 %v5165
    %6120 = vmatpush1.msra.mxu0 %v5164
    %6121 = vmatprep.subr.mxu0 %v5173
    %6122 = vmatpush1.msra.mxu0 %v5172
    %6123 = vmatprep.subr.mxu0 %v5181
    %6124 = vmatpush1.msra.mxu0 %v5180
    %6125 = vmatprep.subr.mxu0 %v5189
    %6126 = vmatpush1.msra.mxu0 %v5188
    %6127 = vmatprep.subr.mxu0 %v5197
    %6128 = vmatpush1.msra.mxu0 %v5196
    %6129 = vmatprep.subr.mxu0 %v5205
    %6130 = vmatpush1.msra.mxu0 %v5204
    %6131 = vmatprep.subr.mxu0 %v5213
    %6132 = vmatpush1.msra.mxu0 %v5212
    %6133 = vmatprep.subr.mxu0 %v5221
    %6134 = vmatpush1.msra.mxu0 %v5220
    %6135 = vmatprep.subr.mxu0 %v5229
    %6136 = vmatpush1.msra.mxu0 %v5228
    %6137 = vmatprep.subr.mxu0 %v5237
    %6138 = vmatpush1.msra.mxu0 %v5236
    %6139 = vmatprep.subr.mxu0 %v5245
    %6140 = vmatpush1.msra.mxu0 %v5244
    %6141 = vmatprep.subr.mxu0 %v5253
    %6142 = vmatpush1.msra.mxu0 %v5252
    %6143 = vmatprep.subr.mxu0 %v5261
    %6144 = vmatpush1.msra.mxu0 %v5260
    %6145 = vmatprep.subr.mxu0 %v5269
    %6146 = vmatpush1.msra.mxu0 %v5268
    %6147 = vmatprep.subr.mxu0 %v5277
    %6148 = vmatpush1.msra.mxu0 %v5276
    %6149 = vmatprep.subr.mxu0 %v5285
    %6150 = vmatpush1.msra.mxu0 %v5284
    %6151 = vmatprep.subr.mxu0 %v5293
    %6152 = vmatpush1.msra.mxu0 %v5292
    %6153 = vmatprep.subr.mxu0 %v5301
    %6154 = vmatpush1.msra.mxu0 %v5300
    %6155 = vmatprep.mubr.f32.mxu0 %v6009
    %6156 = vmatmul.mubr.f32.gmra.mrb[0].mxu0 %v6008
    %v6157 = vpop.f32.mrb[0].mxu0
    %v6158 = vadd.f32 0.0, %v6157
    %v6159 = vpop.f32.mrb[0].mxu0
    %v6160 = vadd.f32 0.0, %v6159
    %6161 = vdwg.mxu0
    %6162 = vmatprep.subr.mxu0 %v5055
    %6163 = vmatpush1.msra.mxu0 %v5054
    %6164 = vmatprep.subr.mxu0 %v5063
    %6165 = vmatpush1.msra.mxu0 %v5062
    %6166 = vmatprep.subr.mxu0 %v5071
    %6167 = vmatpush1.msra.mxu0 %v5070
    %6168 = vmatprep.subr.mxu0 %v5079
    %6169 = vmatpush1.msra.mxu0 %v5078
    %6170 = vmatprep.subr.mxu0 %v5087
    %6171 = vmatpush1.msra.mxu0 %v5086
    %6172 = vmatprep.subr.mxu0 %v5095
    %6173 = vmatpush1.msra.mxu0 %v5094
    %6174 = vmatprep.subr.mxu0 %v5103
    %6175 = vmatpush1.msra.mxu0 %v5102
    %6176 = vmatprep.subr.mxu0 %v5111
    %6177 = vmatpush1.msra.mxu0 %v5110
    %6178 = vmatprep.subr.mxu0 %v5119
    %6179 = vmatpush1.msra.mxu0 %v5118
    %6180 = vmatprep.subr.mxu0 %v5127
    %6181 = vmatpush1.msra.mxu0 %v5126
    %6182 = vmatprep.subr.mxu0 %v5135
    %6183 = vmatpush1.msra.mxu0 %v5134
    %6184 = vmatprep.subr.mxu0 %v5143
    %6185 = vmatpush1.msra.mxu0 %v5142
    %6186 = vmatprep.subr.mxu0 %v5151
    %6187 = vmatpush1.msra.mxu0 %v5150
    %6188 = vmatprep.subr.mxu0 %v5159
    %6189 = vmatpush1.msra.mxu0 %v5158
    %6190 = vmatprep.subr.mxu0 %v5167
    %6191 = vmatpush1.msra.mxu0 %v5166
    %6192 = vmatprep.subr.mxu0 %v5175
    %6193 = vmatpush1.msra.mxu0 %v5174
    %6194 = vmatprep.subr.mxu0 %v5183
    %6195 = vmatpush1.msra.mxu0 %v5182
    %6196 = vmatprep.subr.mxu0 %v5191
    %6197 = vmatpush1.msra.mxu0 %v5190
    %6198 = vmatprep.subr.mxu0 %v5199
    %6199 = vmatpush1.msra.mxu0 %v5198
    %6200 = vmatprep.subr.mxu0 %v5207
    %6201 = vmatpush1.msra.mxu0 %v5206
    %6202 = vmatprep.subr.mxu0 %v5215
    %6203 = vmatpush1.msra.mxu0 %v5214
    %6204 = vmatprep.subr.mxu0 %v5223
    %6205 = vmatpush1.msra.mxu0 %v5222
    %6206 = vmatprep.subr.mxu0 %v5231
    %6207 = vmatpush1.msra.mxu0 %v5230
    %6208 = vmatprep.subr.mxu0 %v5239
    %6209 = vmatpush1.msra.mxu0 %v5238
    %6210 = vmatprep.subr.mxu0 %v5247
    %6211 = vmatpush1.msra.mxu0 %v5246
    %6212 = vmatprep.subr.mxu0 %v5255
    %6213 = vmatpush1.msra.mxu0 %v5254
    %6214 = vmatprep.subr.mxu0 %v5263
    %6215 = vmatpush1.msra.mxu0 %v5262
    %6216 = vmatprep.subr.mxu0 %v5271
    %6217 = vmatpush1.msra.mxu0 %v5270
    %6218 = vmatprep.subr.mxu0 %v5279
    %6219 = vmatpush1.msra.mxu0 %v5278
    %6220 = vmatprep.subr.mxu0 %v5287
    %6221 = vmatpush1.msra.mxu0 %v5286
    %6222 = vmatprep.subr.mxu0 %v5295
    %6223 = vmatpush1.msra.mxu0 %v5294
    %6224 = vmatprep.subr.mxu0 %v5303
    %6225 = vmatpush1.msra.mxu0 %v5302
    %6226 = vmatprep.mubr.f32.mxu0 %v6009
    %6227 = vmatmul.mubr.f32.gmra.mrb[0].mxu0 %v6008
    %v6228 = vpop.f32.mrb[0].mxu0
    %v6229 = vadd.f32 0.0, %v6228
    %v6230 = vpop.f32.mrb[0].mxu0
    %v6231 = vadd.f32 0.0, %v6230
    %6232 = vdwg.mxu0
    %6233 = vmatprep.subr.mxu0 %v5057
    %6234 = vmatpush1.msra.mxu0 %v5056
    %6235 = vmatprep.subr.mxu0 %v5065
    %6236 = vmatpush1.msra.mxu0 %v5064
    %6237 = vmatprep.subr.mxu0 %v5073
    %6238 = vmatpush1.msra.mxu0 %v5072
    %6239 = vmatprep.subr.mxu0 %v5081
    %6240 = vmatpush1.msra.mxu0 %v5080
    %6241 = vmatprep.subr.mxu0 %v5089
    %6242 = vmatpush1.msra.mxu0 %v5088
    %6243 = vmatprep.subr.mxu0 %v5097
    %6244 = vmatpush1.msra.mxu0 %v5096
    %6245 = vmatprep.subr.mxu0 %v5105
    %6246 = vmatpush1.msra.mxu0 %v5104
    %6247 = vmatprep.subr.mxu0 %v5113
    %6248 = vmatpush1.msra.mxu0 %v5112
    %6249 = vmatprep.subr.mxu0 %v5121
    %6250 = vmatpush1.msra.mxu0 %v5120
    %6251 = vmatprep.subr.mxu0 %v5129
    %6252 = vmatpush1.msra.mxu0 %v5128
    %6253 = vmatprep.subr.mxu0 %v5137
    %6254 = vmatpush1.msra.mxu0 %v5136
    %6255 = vmatprep.subr.mxu0 %v5145
    %6256 = vmatpush1.msra.mxu0 %v5144
    %6257 = vmatprep.subr.mxu0 %v5153
    %6258 = vmatpush1.msra.mxu0 %v5152
    %6259 = vmatprep.subr.mxu0 %v5161
    %6260 = vmatpush1.msra.mxu0 %v5160
    %6261 = vmatprep.subr.mxu0 %v5169
    %6262 = vmatpush1.msra.mxu0 %v5168
    %6263 = vmatprep.subr.mxu0 %v5177
    %6264 = vmatpush1.msra.mxu0 %v5176
    %6265 = vmatprep.subr.mxu0 %v5185
    %6266 = vmatpush1.msra.mxu0 %v5184
    %6267 = vmatprep.subr.mxu0 %v5193
    %6268 = vmatpush1.msra.mxu0 %v5192
    %6269 = vmatprep.subr.mxu0 %v5201
    %6270 = vmatpush1.msra.mxu0 %v5200
    %6271 = vmatprep.subr.mxu0 %v5209
    %6272 = vmatpush1.msra.mxu0 %v5208
    %6273 = vmatprep.subr.mxu0 %v5217
    %6274 = vmatpush1.msra.mxu0 %v5216
    %6275 = vmatprep.subr.mxu0 %v5225
    %6276 = vmatpush1.msra.mxu0 %v5224
    %6277 = vmatprep.subr.mxu0 %v5233
    %6278 = vmatpush1.msra.mxu0 %v5232
    %6279 = vmatprep.subr.mxu0 %v5241
    %6280 = vmatpush1.msra.mxu0 %v5240
    %6281 = vmatprep.subr.mxu0 %v5249
    %6282 = vmatpush1.msra.mxu0 %v5248
    %6283 = vmatprep.subr.mxu0 %v5257
    %6284 = vmatpush1.msra.mxu0 %v5256
    %6285 = vmatprep.subr.mxu0 %v5265
    %6286 = vmatpush1.msra.mxu0 %v5264
    %6287 = vmatprep.subr.mxu0 %v5273
    %6288 = vmatpush1.msra.mxu0 %v5272
    %6289 = vmatprep.subr.mxu0 %v5281
    %6290 = vmatpush1.msra.mxu0 %v5280
    %6291 = vmatprep.subr.mxu0 %v5289
    %6292 = vmatpush1.msra.mxu0 %v5288
    %6293 = vmatprep.subr.mxu0 %v5297
    %6294 = vmatpush1.msra.mxu0 %v5296
    %6295 = vmatprep.subr.mxu0 %v5305
    %6296 = vmatpush1.msra.mxu0 %v5304
    %6297 = vmatprep.mubr.f32.mxu0 %v6009
    %6298 = vmatmul.mubr.f32.gmra.mrb[0].mxu0 %v6008
    %v6299 = vpop.f32.mrb[0].mxu0
    %v6300 = vadd.f32 0.0, %v6299
    %v6301 = vpop.f32.mrb[0].mxu0
    %v6302 = vadd.f32 0.0, %v6301
    %6303 = vdwg.mxu0
    %v6304 = vadd.f32 %v6012, %v6087
    %v6305 = vadd.f32 %v6013, %v6089
    %v6306 = vadd.f32 %v6014, %v6158
    %v6307 = vadd.f32 %v6015, %v6160
    %v6308 = vadd.f32 %v6016, %v6229
    %v6309 = vadd.f32 %v6017, %v6231
    %v6310 = vadd.f32 %v6018, %v6300
    %v6311 = vadd.f32 %v6019, %v6302
    %v6312 = vxor.u32 %v6304, 2147483648
    %v6313 = vxor.u32 %v6305, 2147483648
    %v6314 = vxor.u32 %v6306, 2147483648
    %v6315 = vxor.u32 %v6307, 2147483648
    %v6316 = vxor.u32 %v6308, 2147483648
    %v6317 = vxor.u32 %v6309, 2147483648
    %v6318 = vmul.f32 %v6312, 1.442695
    %v6319 = vpow.pop %v6318
    %v6320 = vmul.f32 %v6313, 1.442695
    %v6321 = vpow.pop %v6320
    %v6322 = vmul.f32 %v6314, 1.442695
    %v6323 = vpow.pop %v6322
    %v6324 = vmul.f32 %v6315, 1.442695
    %v6325 = vpow.pop %v6324
    %v6326 = vmul.f32 %v6316, 1.442695
    %v6327 = vpow.pop %v6326
    %v6328 = vmul.f32 %v6317, 1.442695
    %v6329 = vpow.pop %v6328
    %v6330 = vadd.f32 %v6319, 1.0
    %v6331 = vadd.f32 %v6321, 1.0
    %v6332 = vadd.f32 %v6323, 1.0
    %v6333 = vadd.f32 %v6325, 1.0
    %v6334 = vadd.f32 %v6327, 1.0
    %v6335 = vadd.f32 %v6329, 1.0
    %v6336 = vrcp.pop %v6330
    %v6337 = vmul.f32 1.0, %v6336
    %v6338 = vrcp.pop %v6331
    %v6339 = vmul.f32 1.0, %v6338
    %v6340 = vrcp.pop %v6332
    %v6341 = vmul.f32 1.0, %v6340
    %v6342 = vrcp.pop %v6333
    %v6343 = vmul.f32 1.0, %v6342
    %v6344 = vrcp.pop %v6334
    %v6345 = vmul.f32 1.0, %v6344
    %v6346 = vrcp.pop %v6335
    %v6347 = vmul.f32 1.0, %v6346
    %v6348 = vtanh.pop %v6310
    %v6349 = vtanh.pop %v6311
    %v6350 = vmul.f32 %v6341, %v6004
    %v6351 = vmul.f32 %v6343, %v6005
    %v6352 = vmul.f32 %v6337, %v6348
    %v6353 = vmul.f32 %v6339, %v6349
    %v6354 = vadd.f32 %v6350, %v6352
    %v6355 = vadd.f32 %v6351, %v6353
    %v6356 = vtanh.pop %v6354
    %v6357 = vtanh.pop %v6355
    %v6358 = vmul.f32 %v6345, %v6356
    %v6359 = vmul.f32 %v6347, %v6357
    %6360 = vst [vmem:[%s2433] sm:$0xff] %v6358
    %6361 = vst [vmem:[%s2433 + $0x8] sm:$0xff] %v6359
    %v6362 = vld [vmem:[%s2438] sm:$0xff]
    %v6363 = vld [vmem:[%s2438 + $0x8] sm:$0xff]
    %v6364 = vld [vmem:[%s2438 + $0x10] sm:$0xff]
    %v6365 = vld [vmem:[%s2438 + $0x18] sm:$0xff]
    %v6366 = vld [vmem:[%s2438 + $0x20] sm:$0xff]
    %v6367 = vld [vmem:[%s2438 + $0x28] sm:$0xff]
    %v6368 = vld [vmem:[%s2438 + $0x30] sm:$0xff]
    %v6369 = vld [vmem:[%s2438 + $0x38] sm:$0xff]
    %6370 = vmatprep.subr.mxu0 %v5051
    %6371 = vmatpush1.msra.mxu0 %v5050
    %6372 = vmatprep.subr.mxu0 %v5059
    %6373 = vmatpush1.msra.mxu0 %v5058
    %6374 = vmatprep.subr.mxu0 %v5067
    %6375 = vmatpush1.msra.mxu0 %v5066
    %6376 = vmatprep.subr.mxu0 %v5075
    %6377 = vmatpush1.msra.mxu0 %v5074
    %6378 = vmatprep.subr.mxu0 %v5083
    %6379 = vmatpush1.msra.mxu0 %v5082
    %6380 = vmatprep.subr.mxu0 %v5091
    %6381 = vmatpush1.msra.mxu0 %v5090
    %6382 = vmatprep.subr.mxu0 %v5099
    %6383 = vmatpush1.msra.mxu0 %v5098
    %6384 = vmatprep.subr.mxu0 %v5107
    %6385 = vmatpush1.msra.mxu0 %v5106
    %6386 = vmatprep.subr.mxu0 %v5115
    %6387 = vmatpush1.msra.mxu0 %v5114
    %6388 = vmatprep.subr.mxu0 %v5123
    %6389 = vmatpush1.msra.mxu0 %v5122
    %6390 = vmatprep.subr.mxu0 %v5131
    %6391 = vmatpush1.msra.mxu0 %v5130
    %6392 = vmatprep.subr.mxu0 %v5139
    %6393 = vmatpush1.msra.mxu0 %v5138
    %6394 = vmatprep.subr.mxu0 %v5147
    %6395 = vmatpush1.msra.mxu0 %v5146
    %6396 = vmatprep.subr.mxu0 %v5155
    %6397 = vmatpush1.msra.mxu0 %v5154
    %6398 = vmatprep.subr.mxu0 %v5163
    %6399 = vmatpush1.msra.mxu0 %v5162
    %6400 = vmatprep.subr.mxu0 %v5171
    %6401 = vmatpush1.msra.mxu0 %v5170
    %6402 = vmatprep.subr.mxu0 %v5179
    %6403 = vmatpush1.msra.mxu0 %v5178
    %6404 = vmatprep.subr.mxu0 %v5187
    %6405 = vmatpush1.msra.mxu0 %v5186
    %6406 = vmatprep.subr.mxu0 %v5195
    %6407 = vmatpush1.msra.mxu0 %v5194
    %6408 = vmatprep.subr.mxu0 %v5203
    %6409 = vmatpush1.msra.mxu0 %v5202
    %6410 = vmatprep.subr.mxu0 %v5211
    %6411 = vmatpush1.msra.mxu0 %v5210
    %6412 = vmatprep.subr.mxu0 %v5219
    %6413 = vmatpush1.msra.mxu0 %v5218
    %6414 = vmatprep.subr.mxu0 %v5227
    %6415 = vmatpush1.msra.mxu0 %v5226
    %6416 = vmatprep.subr.mxu0 %v5235
    %6417 = vmatpush1.msra.mxu0 %v5234
    %6418 = vmatprep.subr.mxu0 %v5243
    %6419 = vmatpush1.msra.mxu0 %v5242
    %6420 = vmatprep.subr.mxu0 %v5251
    %6421 = vmatpush1.msra.mxu0 %v5250
    %6422 = vmatprep.subr.mxu0 %v5259
    %6423 = vmatpush1.msra.mxu0 %v5258
    %6424 = vmatprep.subr.mxu0 %v5267
    %6425 = vmatpush1.msra.mxu0 %v5266
    %6426 = vmatprep.subr.mxu0 %v5275
    %6427 = vmatpush1.msra.mxu0 %v5274
    %6428 = vmatprep.subr.mxu0 %v5283
    %6429 = vmatpush1.msra.mxu0 %v5282
    %6430 = vmatprep.subr.mxu0 %v5291
    %6431 = vmatpush1.msra.mxu0 %v5290
    %6432 = vmatprep.subr.mxu0 %v5299
    %6433 = vmatpush1.msra.mxu0 %v5298
    %6434 = vmatprep.mubr.f32.mxu0 %v6359
    %6435 = vmatmul.mubr.f32.gmra.mrb[0].mxu0 %v6358
    %v6436 = vpop.f32.mrb[0].mxu0
    %v6437 = vadd.f32 0.0, %v6436
    %v6438 = vpop.f32.mrb[0].mxu0
    %v6439 = vadd.f32 0.0, %v6438
    %6440 = vdwg.mxu0
    %6441 = vmatprep.subr.mxu0 %v5053
    %6442 = vmatpush1.msra.mxu0 %v5052
    %6443 = vmatprep.subr.mxu0 %v5061
    %6444 = vmatpush1.msra.mxu0 %v5060
    %6445 = vmatprep.subr.mxu0 %v5069
    %6446 = vmatpush1.msra.mxu0 %v5068
    %6447 = vmatprep.subr.mxu0 %v5077
    %6448 = vmatpush1.msra.mxu0 %v5076
    %6449 = vmatprep.subr.mxu0 %v5085
    %6450 = vmatpush1.msra.mxu0 %v5084
    %6451 = vmatprep.subr.mxu0 %v5093
    %6452 = vmatpush1.msra.mxu0 %v5092
    %6453 = vmatprep.subr.mxu0 %v5101
    %6454 = vmatpush1.msra.mxu0 %v5100
    %6455 = vmatprep.subr.mxu0 %v5109
    %6456 = vmatpush1.msra.mxu0 %v5108
    %6457 = vmatprep.subr.mxu0 %v5117
    %6458 = vmatpush1.msra.mxu0 %v5116
    %6459 = vmatprep.subr.mxu0 %v5125
    %6460 = vmatpush1.msra.mxu0 %v5124
    %6461 = vmatprep.subr.mxu0 %v5133
    %6462 = vmatpush1.msra.mxu0 %v5132
    %6463 = vmatprep.subr.mxu0 %v5141
    %6464 = vmatpush1.msra.mxu0 %v5140
    %6465 = vmatprep.subr.mxu0 %v5149
    %6466 = vmatpush1.msra.mxu0 %v5148
    %6467 = vmatprep.subr.mxu0 %v5157
    %6468 = vmatpush1.msra.mxu0 %v5156
    %6469 = vmatprep.subr.mxu0 %v5165
    %6470 = vmatpush1.msra.mxu0 %v5164
    %6471 = vmatprep.subr.mxu0 %v5173
    %6472 = vmatpush1.msra.mxu0 %v5172
    %6473 = vmatprep.subr.mxu0 %v5181
    %6474 = vmatpush1.msra.mxu0 %v5180
    %6475 = vmatprep.subr.mxu0 %v5189
    %6476 = vmatpush1.msra.mxu0 %v5188
    %6477 = vmatprep.subr.mxu0 %v5197
    %6478 = vmatpush1.msra.mxu0 %v5196
    %6479 = vmatprep.subr.mxu0 %v5205
    %6480 = vmatpush1.msra.mxu0 %v5204
    %6481 = vmatprep.subr.mxu0 %v5213
    %6482 = vmatpush1.msra.mxu0 %v5212
    %6483 = vmatprep.subr.mxu0 %v5221
    %6484 = vmatpush1.msra.mxu0 %v5220
    %6485 = vmatprep.subr.mxu0 %v5229
    %6486 = vmatpush1.msra.mxu0 %v5228
    %6487 = vmatprep.subr.mxu0 %v5237
    %6488 = vmatpush1.msra.mxu0 %v5236
    %6489 = vmatprep.subr.mxu0 %v5245
    %6490 = vmatpush1.msra.mxu0 %v5244
    %6491 = vmatprep.subr.mxu0 %v5253
    %6492 = vmatpush1.msra.mxu0 %v5252
    %6493 = vmatprep.subr.mxu0 %v5261
    %6494 = vmatpush1.msra.mxu0 %v5260
    %6495 = vmatprep.subr.mxu0 %v5269
    %6496 = vmatpush1.msra.mxu0 %v5268
    %6497 = vmatprep.subr.mxu0 %v5277
    %6498 = vmatpush1.msra.mxu0 %v5276
    %6499 = vmatprep.subr.mxu0 %v5285
    %6500 = vmatpush1.msra.mxu0 %v5284
    %6501 = vmatprep.subr.mxu0 %v5293
    %6502 = vmatpush1.msra.mxu0 %v5292
    %6503 = vmatprep.subr.mxu0 %v5301
    %6504 = vmatpush1.msra.mxu0 %v5300
    %6505 = vmatprep.mubr.f32.mxu0 %v6359
    %6506 = vmatmul.mubr.f32.gmra.mrb[0].mxu0 %v6358
    %v6507 = vpop.f32.mrb[0].mxu0
    %v6508 = vadd.f32 0.0, %v6507
    %v6509 = vpop.f32.mrb[0].mxu0
    %v6510 = vadd.f32 0.0, %v6509
    %6511 = vdwg.mxu0
    %6512 = vmatprep.subr.mxu0 %v5055
    %6513 = vmatpush1.msra.mxu0 %v5054
    %6514 = vmatprep.subr.mxu0 %v5063
    %6515 = vmatpush1.msra.mxu0 %v5062
    %6516 = vmatprep.subr.mxu0 %v5071
    %6517 = vmatpush1.msra.mxu0 %v5070
    %6518 = vmatprep.subr.mxu0 %v5079
    %6519 = vmatpush1.msra.mxu0 %v5078
    %6520 = vmatprep.subr.mxu0 %v5087
    %6521 = vmatpush1.msra.mxu0 %v5086
    %6522 = vmatprep.subr.mxu0 %v5095
    %6523 = vmatpush1.msra.mxu0 %v5094
    %6524 = vmatprep.subr.mxu0 %v5103
    %6525 = vmatpush1.msra.mxu0 %v5102
    %6526 = vmatprep.subr.mxu0 %v5111
    %6527 = vmatpush1.msra.mxu0 %v5110
    %6528 = vmatprep.subr.mxu0 %v5119
    %6529 = vmatpush1.msra.mxu0 %v5118
    %6530 = vmatprep.subr.mxu0 %v5127
    %6531 = vmatpush1.msra.mxu0 %v5126
    %6532 = vmatprep.subr.mxu0 %v5135
    %6533 = vmatpush1.msra.mxu0 %v5134
    %6534 = vmatprep.subr.mxu0 %v5143
    %6535 = vmatpush1.msra.mxu0 %v5142
    %6536 = vmatprep.subr.mxu0 %v5151
    %6537 = vmatpush1.msra.mxu0 %v5150
    %6538 = vmatprep.subr.mxu0 %v5159
    %6539 = vmatpush1.msra.mxu0 %v5158
    %6540 = vmatprep.subr.mxu0 %v5167
    %6541 = vmatpush1.msra.mxu0 %v5166
    %6542 = vmatprep.subr.mxu0 %v5175
    %6543 = vmatpush1.msra.mxu0 %v5174
    %6544 = vmatprep.subr.mxu0 %v5183
    %6545 = vmatpush1.msra.mxu0 %v5182
    %6546 = vmatprep.subr.mxu0 %v5191
    %6547 = vmatpush1.msra.mxu0 %v5190
    %6548 = vmatprep.subr.mxu0 %v5199
    %6549 = vmatpush1.msra.mxu0 %v5198
    %6550 = vmatprep.subr.mxu0 %v5207
    %6551 = vmatpush1.msra.mxu0 %v5206
    %6552 = vmatprep.subr.mxu0 %v5215
    %6553 = vmatpush1.msra.mxu0 %v5214
    %6554 = vmatprep.subr.mxu0 %v5223
    %6555 = vmatpush1.msra.mxu0 %v5222
    %6556 = vmatprep.subr.mxu0 %v5231
    %6557 = vmatpush1.msra.mxu0 %v5230
    %6558 = vmatprep.subr.mxu0 %v5239
    %6559 = vmatpush1.msra.mxu0 %v5238
    %6560 = vmatprep.subr.mxu0 %v5247
    %6561 = vmatpush1.msra.mxu0 %v5246
    %6562 = vmatprep.subr.mxu0 %v5255
    %6563 = vmatpush1.msra.mxu0 %v5254
    %6564 = vmatprep.subr.mxu0 %v5263
    %6565 = vmatpush1.msra.mxu0 %v5262
    %6566 = vmatprep.subr.mxu0 %v5271
    %6567 = vmatpush1.msra.mxu0 %v5270
    %6568 = vmatprep.subr.mxu0 %v5279
    %6569 = vmatpush1.msra.mxu0 %v5278
    %6570 = vmatprep.subr.mxu0 %v5287
    %6571 = vmatpush1.msra.mxu0 %v5286
    %6572 = vmatprep.subr.mxu0 %v5295
    %6573 = vmatpush1.msra.mxu0 %v5294
    %6574 = vmatprep.subr.mxu0 %v5303
    %6575 = vmatpush1.msra.mxu0 %v5302
    %6576 = vmatprep.mubr.f32.mxu0 %v6359
    %6577 = vmatmul.mubr.f32.gmra.mrb[0].mxu0 %v6358
    %v6578 = vpop.f32.mrb[0].mxu0
    %v6579 = vadd.f32 0.0, %v6578
    %v6580 = vpop.f32.mrb[0].mxu0
    %v6581 = vadd.f32 0.0, %v6580
    %6582 = vdwg.mxu0
    %6583 = vmatprep.subr.mxu0 %v5057
    %6584 = vmatpush1.msra.mxu0 %v5056
    %6585 = vmatprep.subr.mxu0 %v5065
    %6586 = vmatpush1.msra.mxu0 %v5064
    %6587 = vmatprep.subr.mxu0 %v5073
    %6588 = vmatpush1.msra.mxu0 %v5072
    %6589 = vmatprep.subr.mxu0 %v5081
    %6590 = vmatpush1.msra.mxu0 %v5080
    %6591 = vmatprep.subr.mxu0 %v5089
    %6592 = vmatpush1.msra.mxu0 %v5088
    %6593 = vmatprep.subr.mxu0 %v5097
    %6594 = vmatpush1.msra.mxu0 %v5096
    %6595 = vmatprep.subr.mxu0 %v5105
    %6596 = vmatpush1.msra.mxu0 %v5104
    %6597 = vmatprep.subr.mxu0 %v5113
    %6598 = vmatpush1.msra.mxu0 %v5112
    %6599 = vmatprep.subr.mxu0 %v5121
    %6600 = vmatpush1.msra.mxu0 %v5120
    %6601 = vmatprep.subr.mxu0 %v5129
    %6602 = vmatpush1.msra.mxu0 %v5128
    %6603 = vmatprep.subr.mxu0 %v5137
    %6604 = vmatpush1.msra.mxu0 %v5136
    %6605 = vmatprep.subr.mxu0 %v5145
    %6606 = vmatpush1.msra.mxu0 %v5144
    %6607 = vmatprep.subr.mxu0 %v5153
    %6608 = vmatpush1.msra.mxu0 %v5152
    %6609 = vmatprep.subr.mxu0 %v5161
    %6610 = vmatpush1.msra.mxu0 %v5160
    %6611 = vmatprep.subr.mxu0 %v5169
    %6612 = vmatpush1.msra.mxu0 %v5168
    %6613 = vmatprep.subr.mxu0 %v5177
    %6614 = vmatpush1.msra.mxu0 %v5176
    %6615 = vmatprep.subr.mxu0 %v5185
    %6616 = vmatpush1.msra.mxu0 %v5184
    %6617 = vmatprep.subr.mxu0 %v5193
    %6618 = vmatpush1.msra.mxu0 %v5192
    %6619 = vmatprep.subr.mxu0 %v5201
    %6620 = vmatpush1.msra.mxu0 %v5200
    %6621 = vmatprep.subr.mxu0 %v5209
    %6622 = vmatpush1.msra.mxu0 %v5208
    %6623 = vmatprep.subr.mxu0 %v5217
    %6624 = vmatpush1.msra.mxu0 %v5216
    %6625 = vmatprep.subr.mxu0 %v5225
    %6626 = vmatpush1.msra.mxu0 %v5224
    %6627 = vmatprep.subr.mxu0 %v5233
    %6628 = vmatpush1.msra.mxu0 %v5232
    %6629 = vmatprep.subr.mxu0 %v5241
    %6630 = vmatpush1.msra.mxu0 %v5240
    %6631 = vmatprep.subr.mxu0 %v5249
    %6632 = vmatpush1.msra.mxu0 %v5248
    %6633 = vmatprep.subr.mxu0 %v5257
    %6634 = vmatpush1.msra.mxu0 %v5256
    %6635 = vmatprep.subr.mxu0 %v5265
    %6636 = vmatpush1.msra.mxu0 %v5264
    %6637 = vmatprep.subr.mxu0 %v5273
    %6638 = vmatpush1.msra.mxu0 %v5272
    %6639 = vmatprep.subr.mxu0 %v5281
    %6640 = vmatpush1.msra.mxu0 %v5280
    %6641 = vmatprep.subr.mxu0 %v5289
    %6642 = vmatpush1.msra.mxu0 %v5288
    %6643 = vmatprep.subr.mxu0 %v5297
    %6644 = vmatpush1.msra.mxu0 %v5296
    %6645 = vmatprep.subr.mxu0 %v5305
    %6646 = vmatpush1.msra.mxu0 %v5304
    %6647 = vmatprep.mubr.f32.mxu0 %v6359
    %6648 = vmatmul.mubr.f32.gmra.mrb[0].mxu0 %v6358
    %v6649 = vpop.f32.mrb[0].mxu0
    %v6650 = vadd.f32 0.0, %v6649
    %v6651 = vpop.f32.mrb[0].mxu0
    %v6652 = vadd.f32 0.0, %v6651
    %6653 = vdwg.mxu0
    %v6654 = vadd.f32 %v6362, %v6437
    %v6655 = vadd.f32 %v6363, %v6439
    %v6656 = vadd.f32 %v6364, %v6508
    %v6657 = vadd.f32 %v6365, %v6510
    %v6658 = vadd.f32 %v6366, %v6579
    %v6659 = vadd.f32 %v6367, %v6581
    %v6660 = vadd.f32 %v6368, %v6650
    %v6661 = vadd.f32 %v6369, %v6652
    %v6662 = vxor.u32 %v6654, 2147483648
    %v6663 = vxor.u32 %v6655, 2147483648
    %v6664 = vxor.u32 %v6656, 2147483648
    %v6665 = vxor.u32 %v6657, 2147483648
    %v6666 = vxor.u32 %v6658, 2147483648
    %v6667 = vxor.u32 %v6659, 2147483648
    %v6668 = vmul.f32 %v6662, 1.442695
    %v6669 = vpow.pop %v6668
    %v6670 = vmul.f32 %v6663, 1.442695
    %v6671 = vpow.pop %v6670
    %v6672 = vmul.f32 %v6664, 1.442695
    %v6673 = vpow.pop %v6672
    %v6674 = vmul.f32 %v6665, 1.442695
    %v6675 = vpow.pop %v6674
    %v6676 = vmul.f32 %v6666, 1.442695
    %v6677 = vpow.pop %v6676
    %v6678 = vmul.f32 %v6667, 1.442695
    %v6679 = vpow.pop %v6678
    %v6680 = vadd.f32 %v6669, 1.0
    %v6681 = vadd.f32 %v6671, 1.0
    %v6682 = vadd.f32 %v6673, 1.0
    %v6683 = vadd.f32 %v6675, 1.0
    %v6684 = vadd.f32 %v6677, 1.0
    %v6685 = vadd.f32 %v6679, 1.0
    %v6686 = vrcp.pop %v6680
    %v6687 = vmul.f32 1.0, %v6686
    %v6688 = vrcp.pop %v6681
    %v6689 = vmul.f32 1.0, %v6688
    %v6690 = vrcp.pop %v6682
    %v6691 = vmul.f32 1.0, %v6690
    %v6692 = vrcp.pop %v6683
    %v6693 = vmul.f32 1.0, %v6692
    %v6694 = vrcp.pop %v6684
    %v6695 = vmul.f32 1.0, %v6694
    %v6696 = vrcp.pop %v6685
    %v6697 = vmul.f32 1.0, %v6696
    %v6698 = vtanh.pop %v6660
    %v6699 = vtanh.pop %v6661
    %v6700 = vmul.f32 %v6691, %v6354
    %v6701 = vmul.f32 %v6693, %v6355
    %v6702 = vmul.f32 %v6687, %v6698
    %v6703 = vmul.f32 %v6689, %v6699
    %v6704 = vadd.f32 %v6700, %v6702
    %v6705 = vadd.f32 %v6701, %v6703
    %v6706 = vtanh.pop %v6704
    %v6707 = vtanh.pop %v6705
    %v6708 = vmul.f32 %v6695, %v6706
    %v6709 = vmul.f32 %v6697, %v6707
    %6710 = vst [vmem:[%s2789] sm:$0xff] %v6708
    %6711 = vst [vmem:[%s2789 + $0x8] sm:$0xff] %v6709
    %v6712 = vld [vmem:[%s2794] sm:$0xff]
    %v6713 = vld [vmem:[%s2794 + $0x8] sm:$0xff]
    %v6714 = vld [vmem:[%s2794 + $0x10] sm:$0xff]
    %v6715 = vld [vmem:[%s2794 + $0x18] sm:$0xff]
    %v6716 = vld [vmem:[%s2794 + $0x20] sm:$0xff]
    %v6717 = vld [vmem:[%s2794 + $0x28] sm:$0xff]
    %v6718 = vld [vmem:[%s2794 + $0x30] sm:$0xff]
    %v6719 = vld [vmem:[%s2794 + $0x38] sm:$0xff]
    %6720 = vmatprep.subr.mxu0 %v5051
    %6721 = vmatpush1.msra.mxu0 %v5050
    %6722 = vmatprep.subr.mxu0 %v5059
    %6723 = vmatpush1.msra.mxu0 %v5058
    %6724 = vmatprep.subr.mxu0 %v5067
    %6725 = vmatpush1.msra.mxu0 %v5066
    %6726 = vmatprep.subr.mxu0 %v5075
    %6727 = vmatpush1.msra.mxu0 %v5074
    %6728 = vmatprep.subr.mxu0 %v5083
    %6729 = vmatpush1.msra.mxu0 %v5082
    %6730 = vmatprep.subr.mxu0 %v5091
    %6731 = vmatpush1.msra.mxu0 %v5090
    %6732 = vmatprep.subr.mxu0 %v5099
    %6733 = vmatpush1.msra.mxu0 %v5098
    %6734 = vmatprep.subr.mxu0 %v5107
    %6735 = vmatpush1.msra.mxu0 %v5106
    %6736 = vmatprep.subr.mxu0 %v5115
    %6737 = vmatpush1.msra.mxu0 %v5114
    %6738 = vmatprep.subr.mxu0 %v5123
    %6739 = vmatpush1.msra.mxu0 %v5122
    %6740 = vmatprep.subr.mxu0 %v5131
    %6741 = vmatpush1.msra.mxu0 %v5130
    %6742 = vmatprep.subr.mxu0 %v5139
    %6743 = vmatpush1.msra.mxu0 %v5138
    %6744 = vmatprep.subr.mxu0 %v5147
    %6745 = vmatpush1.msra.mxu0 %v5146
    %6746 = vmatprep.subr.mxu0 %v5155
    %6747 = vmatpush1.msra.mxu0 %v5154
    %6748 = vmatprep.subr.mxu0 %v5163
    %6749 = vmatpush1.msra.mxu0 %v5162
    %6750 = vmatprep.subr.mxu0 %v5171
    %6751 = vmatpush1.msra.mxu0 %v5170
    %6752 = vmatprep.subr.mxu0 %v5179
    %6753 = vmatpush1.msra.mxu0 %v5178
    %6754 = vmatprep.subr.mxu0 %v5187
    %6755 = vmatpush1.msra.mxu0 %v5186
    %6756 = vmatprep.subr.mxu0 %v5195
    %6757 = vmatpush1.msra.mxu0 %v5194
    %6758 = vmatprep.subr.mxu0 %v5203
    %6759 = vmatpush1.msra.mxu0 %v5202
    %6760 = vmatprep.subr.mxu0 %v5211
    %6761 = vmatpush1.msra.mxu0 %v5210
    %6762 = vmatprep.subr.mxu0 %v5219
    %6763 = vmatpush1.msra.mxu0 %v5218
    %6764 = vmatprep.subr.mxu0 %v5227
    %6765 = vmatpush1.msra.mxu0 %v5226
    %6766 = vmatprep.subr.mxu0 %v5235
    %6767 = vmatpush1.msra.mxu0 %v5234
    %6768 = vmatprep.subr.mxu0 %v5243
    %6769 = vmatpush1.msra.mxu0 %v5242
    %6770 = vmatprep.subr.mxu0 %v5251
    %6771 = vmatpush1.msra.mxu0 %v5250
    %6772 = vmatprep.subr.mxu0 %v5259
    %6773 = vmatpush1.msra.mxu0 %v5258
    %6774 = vmatprep.subr.mxu0 %v5267
    %6775 = vmatpush1.msra.mxu0 %v5266
    %6776 = vmatprep.subr.mxu0 %v5275
    %6777 = vmatpush1.msra.mxu0 %v5274
    %6778 = vmatprep.subr.mxu0 %v5283
    %6779 = vmatpush1.msra.mxu0 %v5282
    %6780 = vmatprep.subr.mxu0 %v5291
    %6781 = vmatpush1.msra.mxu0 %v5290
    %6782 = vmatprep.subr.mxu0 %v5299
    %6783 = vmatpush1.msra.mxu0 %v5298
    %6784 = vmatprep.mubr.f32.mxu0 %v6709
    %6785 = vmatmul.mubr.f32.gmra.mrb[0].mxu0 %v6708
    %v6786 = vpop.f32.mrb[0].mxu0
    %v6787 = vadd.f32 0.0, %v6786
    %v6788 = vpop.f32.mrb[0].mxu0
    %v6789 = vadd.f32 0.0, %v6788
    %6790 = vdwg.mxu0
    %6791 = vmatprep.subr.mxu0 %v5053
    %6792 = vmatpush1.msra.mxu0 %v5052
    %6793 = vmatprep.subr.mxu0 %v5061
    %6794 = vmatpush1.msra.mxu0 %v5060
    %6795 = vmatprep.subr.mxu0 %v5069
    %6796 = vmatpush1.msra.mxu0 %v5068
    %6797 = vmatprep.subr.mxu0 %v5077
    %6798 = vmatpush1.msra.mxu0 %v5076
    %6799 = vmatprep.subr.mxu0 %v5085
    %6800 = vmatpush1.msra.mxu0 %v5084
    %6801 = vmatprep.subr.mxu0 %v5093
    %6802 = vmatpush1.msra.mxu0 %v5092
    %6803 = vmatprep.subr.mxu0 %v5101
    %6804 = vmatpush1.msra.mxu0 %v5100
    %6805 = vmatprep.subr.mxu0 %v5109
    %6806 = vmatpush1.msra.mxu0 %v5108
    %6807 = vmatprep.subr.mxu0 %v5117
    %6808 = vmatpush1.msra.mxu0 %v5116
    %6809 = vmatprep.subr.mxu0 %v5125
    %6810 = vmatpush1.msra.mxu0 %v5124
    %6811 = vmatprep.subr.mxu0 %v5133
    %6812 = vmatpush1.msra.mxu0 %v5132
    %6813 = vmatprep.subr.mxu0 %v5141
    %6814 = vmatpush1.msra.mxu0 %v5140
    %6815 = vmatprep.subr.mxu0 %v5149
    %6816 = vmatpush1.msra.mxu0 %v5148
    %6817 = vmatprep.subr.mxu0 %v5157
    %6818 = vmatpush1.msra.mxu0 %v5156
    %6819 = vmatprep.subr.mxu0 %v5165
    %6820 = vmatpush1.msra.mxu0 %v5164
    %6821 = vmatprep.subr.mxu0 %v5173
    %6822 = vmatpush1.msra.mxu0 %v5172
    %6823 = vmatprep.subr.mxu0 %v5181
    %6824 = vmatpush1.msra.mxu0 %v5180
    %6825 = vmatprep.subr.mxu0 %v5189
    %6826 = vmatpush1.msra.mxu0 %v5188
    %6827 = vmatprep.subr.mxu0 %v5197
    %6828 = vmatpush1.msra.mxu0 %v5196
    %6829 = vmatprep.subr.mxu0 %v5205
    %6830 = vmatpush1.msra.mxu0 %v5204
    %6831 = vmatprep.subr.mxu0 %v5213
    %6832 = vmatpush1.msra.mxu0 %v5212
    %6833 = vmatprep.subr.mxu0 %v5221
    %6834 = vmatpush1.msra.mxu0 %v5220
    %6835 = vmatprep.subr.mxu0 %v5229
    %6836 = vmatpush1.msra.mxu0 %v5228
    %6837 = vmatprep.subr.mxu0 %v5237
    %6838 = vmatpush1.msra.mxu0 %v5236
    %6839 = vmatprep.subr.mxu0 %v5245
    %6840 = vmatpush1.msra.mxu0 %v5244
    %6841 = vmatprep.subr.mxu0 %v5253
    %6842 = vmatpush1.msra.mxu0 %v5252
    %6843 = vmatprep.subr.mxu0 %v5261
    %6844 = vmatpush1.msra.mxu0 %v5260
    %6845 = vmatprep.subr.mxu0 %v5269
    %6846 = vmatpush1.msra.mxu0 %v5268
    %6847 = vmatprep.subr.mxu0 %v5277
    %6848 = vmatpush1.msra.mxu0 %v5276
    %6849 = vmatprep.subr.mxu0 %v5285
    %6850 = vmatpush1.msra.mxu0 %v5284
    %6851 = vmatprep.subr.mxu0 %v5293
    %6852 = vmatpush1.msra.mxu0 %v5292
    %6853 = vmatprep.subr.mxu0 %v5301
    %6854 = vmatpush1.msra.mxu0 %v5300
    %6855 = vmatprep.mubr.f32.mxu0 %v6709
    %6856 = vmatmul.mubr.f32.gmra.mrb[0].mxu0 %v6708
    %v6857 = vpop.f32.mrb[0].mxu0
    %v6858 = vadd.f32 0.0, %v6857
    %v6859 = vpop.f32.mrb[0].mxu0
    %v6860 = vadd.f32 0.0, %v6859
    %6861 = vdwg.mxu0
    %6862 = vmatprep.subr.mxu0 %v5055
    %6863 = vmatpush1.msra.mxu0 %v5054
    %6864 = vmatprep.subr.mxu0 %v5063
    %6865 = vmatpush1.msra.mxu0 %v5062
    %6866 = vmatprep.subr.mxu0 %v5071
    %6867 = vmatpush1.msra.mxu0 %v5070
    %6868 = vmatprep.subr.mxu0 %v5079
    %6869 = vmatpush1.msra.mxu0 %v5078
    %6870 = vmatprep.subr.mxu0 %v5087
    %6871 = vmatpush1.msra.mxu0 %v5086
    %6872 = vmatprep.subr.mxu0 %v5095
    %6873 = vmatpush1.msra.mxu0 %v5094
    %6874 = vmatprep.subr.mxu0 %v5103
    %6875 = vmatpush1.msra.mxu0 %v5102
    %6876 = vmatprep.subr.mxu0 %v5111
    %6877 = vmatpush1.msra.mxu0 %v5110
    %6878 = vmatprep.subr.mxu0 %v5119
    %6879 = vmatpush1.msra.mxu0 %v5118
    %6880 = vmatprep.subr.mxu0 %v5127
    %6881 = vmatpush1.msra.mxu0 %v5126
    %6882 = vmatprep.subr.mxu0 %v5135
    %6883 = vmatpush1.msra.mxu0 %v5134
    %6884 = vmatprep.subr.mxu0 %v5143
    %6885 = vmatpush1.msra.mxu0 %v5142
    %6886 = vmatprep.subr.mxu0 %v5151
    %6887 = vmatpush1.msra.mxu0 %v5150
    %6888 = vmatprep.subr.mxu0 %v5159
    %6889 = vmatpush1.msra.mxu0 %v5158
    %6890 = vmatprep.subr.mxu0 %v5167
    %6891 = vmatpush1.msra.mxu0 %v5166
    %6892 = vmatprep.subr.mxu0 %v5175
    %6893 = vmatpush1.msra.mxu0 %v5174
    %6894 = vmatprep.subr.mxu0 %v5183
    %6895 = vmatpush1.msra.mxu0 %v5182
    %6896 = vmatprep.subr.mxu0 %v5191
    %6897 = vmatpush1.msra.mxu0 %v5190
    %6898 = vmatprep.subr.mxu0 %v5199
    %6899 = vmatpush1.msra.mxu0 %v5198
    %6900 = vmatprep.subr.mxu0 %v5207
    %6901 = vmatpush1.msra.mxu0 %v5206
    %6902 = vmatprep.subr.mxu0 %v5215
    %6903 = vmatpush1.msra.mxu0 %v5214
    %6904 = vmatprep.subr.mxu0 %v5223
    %6905 = vmatpush1.msra.mxu0 %v5222
    %6906 = vmatprep.subr.mxu0 %v5231
    %6907 = vmatpush1.msra.mxu0 %v5230
    %6908 = vmatprep.subr.mxu0 %v5239
    %6909 = vmatpush1.msra.mxu0 %v5238
    %6910 = vmatprep.subr.mxu0 %v5247
    %6911 = vmatpush1.msra.mxu0 %v5246
    %6912 = vmatprep.subr.mxu0 %v5255
    %6913 = vmatpush1.msra.mxu0 %v5254
    %6914 = vmatprep.subr.mxu0 %v5263
    %6915 = vmatpush1.msra.mxu0 %v5262
    %6916 = vmatprep.subr.mxu0 %v5271
    %6917 = vmatpush1.msra.mxu0 %v5270
    %6918 = vmatprep.subr.mxu0 %v5279
    %6919 = vmatpush1.msra.mxu0 %v5278
    %6920 = vmatprep.subr.mxu0 %v5287
    %6921 = vmatpush1.msra.mxu0 %v5286
    %6922 = vmatprep.subr.mxu0 %v5295
    %6923 = vmatpush1.msra.mxu0 %v5294
    %6924 = vmatprep.subr.mxu0 %v5303
    %6925 = vmatpush1.msra.mxu0 %v5302
    %6926 = vmatprep.mubr.f32.mxu0 %v6709
    %6927 = vmatmul.mubr.f32.gmra.mrb[0].mxu0 %v6708
    %v6928 = vpop.f32.mrb[0].mxu0
    %v6929 = vadd.f32 0.0, %v6928
    %v6930 = vpop.f32.mrb[0].mxu0
    %v6931 = vadd.f32 0.0, %v6930
    %6932 = vdwg.mxu0
    %6933 = vmatprep.subr.mxu0 %v5057
    %6934 = vmatpush1.msra.mxu0 %v5056
    %6935 = vmatprep.subr.mxu0 %v5065
    %6936 = vmatpush1.msra.mxu0 %v5064
    %6937 = vmatprep.subr.mxu0 %v5073
    %6938 = vmatpush1.msra.mxu0 %v5072
    %6939 = vmatprep.subr.mxu0 %v5081
    %6940 = vmatpush1.msra.mxu0 %v5080
    %6941 = vmatprep.subr.mxu0 %v5089
    %6942 = vmatpush1.msra.mxu0 %v5088
    %6943 = vmatprep.subr.mxu0 %v5097
    %6944 = vmatpush1.msra.mxu0 %v5096
    %6945 = vmatprep.subr.mxu0 %v5105
    %6946 = vmatpush1.msra.mxu0 %v5104
    %6947 = vmatprep.subr.mxu0 %v5113
    %6948 = vmatpush1.msra.mxu0 %v5112
    %6949 = vmatprep.subr.mxu0 %v5121
    %6950 = vmatpush1.msra.mxu0 %v5120
    %6951 = vmatprep.subr.mxu0 %v5129
    %6952 = vmatpush1.msra.mxu0 %v5128
    %6953 = vmatprep.subr.mxu0 %v5137
    %6954 = vmatpush1.msra.mxu0 %v5136
    %6955 = vmatprep.subr.mxu0 %v5145
    %6956 = vmatpush1.msra.mxu0 %v5144
    %6957 = vmatprep.subr.mxu0 %v5153
    %6958 = vmatpush1.msra.mxu0 %v5152
    %6959 = vmatprep.subr.mxu0 %v5161
    %6960 = vmatpush1.msra.mxu0 %v5160
    %6961 = vmatprep.subr.mxu0 %v5169
    %6962 = vmatpush1.msra.mxu0 %v5168
    %6963 = vmatprep.subr.mxu0 %v5177
    %6964 = vmatpush1.msra.mxu0 %v5176
    %6965 = vmatprep.subr.mxu0 %v5185
    %6966 = vmatpush1.msra.mxu0 %v5184
    %6967 = vmatprep.subr.mxu0 %v5193
    %6968 = vmatpush1.msra.mxu0 %v5192
    %6969 = vmatprep.subr.mxu0 %v5201
    %6970 = vmatpush1.msra.mxu0 %v5200
    %6971 = vmatprep.subr.mxu0 %v5209
    %6972 = vmatpush1.msra.mxu0 %v5208
    %6973 = vmatprep.subr.mxu0 %v5217
    %6974 = vmatpush1.msra.mxu0 %v5216
    %6975 = vmatprep.subr.mxu0 %v5225
    %6976 = vmatpush1.msra.mxu0 %v5224
    %6977 = vmatprep.subr.mxu0 %v5233
    %6978 = vmatpush1.msra.mxu0 %v5232
    %6979 = vmatprep.subr.mxu0 %v5241
    %6980 = vmatpush1.msra.mxu0 %v5240
    %6981 = vmatprep.subr.mxu0 %v5249
    %6982 = vmatpush1.msra.mxu0 %v5248
    %6983 = vmatprep.subr.mxu0 %v5257
    %6984 = vmatpush1.msra.mxu0 %v5256
    %6985 = vmatprep.subr.mxu0 %v5265
    %6986 = vmatpush1.msra.mxu0 %v5264
    %6987 = vmatprep.subr.mxu0 %v5273
    %6988 = vmatpush1.msra.mxu0 %v5272
    %6989 = vmatprep.subr.mxu0 %v5281
    %6990 = vmatpush1.msra.mxu0 %v5280
    %6991 = vmatprep.subr.mxu0 %v5289
    %6992 = vmatpush1.msra.mxu0 %v5288
    %6993 = vmatprep.subr.mxu0 %v5297
    %6994 = vmatpush1.msra.mxu0 %v5296
    %6995 = vmatprep.subr.mxu0 %v5305
    %6996 = vmatpush1.msra.mxu0 %v5304
    %6997 = vmatprep.mubr.f32.mxu0 %v6709
    %6998 = vmatmul.mubr.f32.gmra.mrb[0].mxu0 %v6708
    %v6999 = vpop.f32.mrb[0].mxu0
    %v7000 = vadd.f32 0.0, %v6999
    %v7001 = vpop.f32.mrb[0].mxu0
    %v7002 = vadd.f32 0.0, %v7001
    %7003 = vdwg.mxu0
    %v7004 = vadd.f32 %v6712, %v6787
    %v7005 = vadd.f32 %v6713, %v6789
    %v7006 = vadd.f32 %v6714, %v6858
    %v7007 = vadd.f32 %v6715, %v6860
    %v7008 = vadd.f32 %v6716, %v6929
    %v7009 = vadd.f32 %v6717, %v6931
    %v7010 = vadd.f32 %v6718, %v7000
    %v7011 = vadd.f32 %v6719, %v7002
    %v7012 = vxor.u32 %v7004, 2147483648
    %v7013 = vxor.u32 %v7005, 2147483648
    %v7014 = vxor.u32 %v7006, 2147483648
    %v7015 = vxor.u32 %v7007, 2147483648
    %v7016 = vxor.u32 %v7008, 2147483648
    %v7017 = vxor.u32 %v7009, 2147483648
    %v7018 = vmul.f32 %v7012, 1.442695
    %v7019 = vpow.pop %v7018
    %v7020 = vmul.f32 %v7013, 1.442695
    %v7021 = vpow.pop %v7020
    %v7022 = vmul.f32 %v7014, 1.442695
    %v7023 = vpow.pop %v7022
    %v7024 = vmul.f32 %v7015, 1.442695
    %v7025 = vpow.pop %v7024
    %v7026 = vmul.f32 %v7016, 1.442695
    %v7027 = vpow.pop %v7026
    %v7028 = vmul.f32 %v7017, 1.442695
    %v7029 = vpow.pop %v7028
    %v7030 = vadd.f32 %v7019, 1.0
    %v7031 = vadd.f32 %v7021, 1.0
    %v7032 = vadd.f32 %v7023, 1.0
    %v7033 = vadd.f32 %v7025, 1.0
    %v7034 = vadd.f32 %v7027, 1.0
    %v7035 = vadd.f32 %v7029, 1.0
    %v7036 = vrcp.pop %v7030
    %v7037 = vmul.f32 1.0, %v7036
    %v7038 = vrcp.pop %v7031
    %v7039 = vmul.f32 1.0, %v7038
    %v7040 = vrcp.pop %v7032
    %v7041 = vmul.f32 1.0, %v7040
    %v7042 = vrcp.pop %v7033
    %v7043 = vmul.f32 1.0, %v7042
    %v7044 = vrcp.pop %v7034
    %v7045 = vmul.f32 1.0, %v7044
    %v7046 = vrcp.pop %v7035
    %v7047 = vmul.f32 1.0, %v7046
    %v7048 = vtanh.pop %v7010
    %v7049 = vtanh.pop %v7011
    %v7050 = vmul.f32 %v7041, %v6704
    %v7051 = vmul.f32 %v7043, %v6705
    %v7052 = vmul.f32 %v7037, %v7048
    %v7053 = vmul.f32 %v7039, %v7049
    %v7054 = vadd.f32 %v7050, %v7052
    %v7055 = vadd.f32 %v7051, %v7053
    %v7056 = vtanh.pop %v7054
    %v7057 = vtanh.pop %v7055
    %v7058 = vmul.f32 %v7045, %v7056
    %v7059 = vmul.f32 %v7047, %v7057
    %7060 = vst [vmem:[%s3145] sm:$0xff] %v7058
    %7061 = vst [vmem:[%s3145 + $0x8] sm:$0xff] %v7059
    %v7062 = vld [vmem:[%s3150] sm:$0xff]
    %v7063 = vld [vmem:[%s3150 + $0x8] sm:$0xff]
    %v7064 = vld [vmem:[%s3150 + $0x10] sm:$0xff]
    %v7065 = vld [vmem:[%s3150 + $0x18] sm:$0xff]
    %v7066 = vld [vmem:[%s3150 + $0x20] sm:$0xff]
    %v7067 = vld [vmem:[%s3150 + $0x28] sm:$0xff]
    %v7068 = vld [vmem:[%s3150 + $0x30] sm:$0xff]
    %v7069 = vld [vmem:[%s3150 + $0x38] sm:$0xff]
    %7070 = vmatprep.subr.mxu0 %v5051
    %7071 = vmatpush1.msra.mxu0 %v5050
    %7072 = vmatprep.subr.mxu0 %v5059
    %7073 = vmatpush1.msra.mxu0 %v5058
    %7074 = vmatprep.subr.mxu0 %v5067
    %7075 = vmatpush1.msra.mxu0 %v5066
    %7076 = vmatprep.subr.mxu0 %v5075
    %7077 = vmatpush1.msra.mxu0 %v5074
    %7078 = vmatprep.subr.mxu0 %v5083
    %7079 = vmatpush1.msra.mxu0 %v5082
    %7080 = vmatprep.subr.mxu0 %v5091
    %7081 = vmatpush1.msra.mxu0 %v5090
    %7082 = vmatprep.subr.mxu0 %v5099
    %7083 = vmatpush1.msra.mxu0 %v5098
    %7084 = vmatprep.subr.mxu0 %v5107
    %7085 = vmatpush1.msra.mxu0 %v5106
    %7086 = vmatprep.subr.mxu0 %v5115
    %7087 = vmatpush1.msra.mxu0 %v5114
    %7088 = vmatprep.subr.mxu0 %v5123
    %7089 = vmatpush1.msra.mxu0 %v5122
    %7090 = vmatprep.subr.mxu0 %v5131
    %7091 = vmatpush1.msra.mxu0 %v5130
    %7092 = vmatprep.subr.mxu0 %v5139
    %7093 = vmatpush1.msra.mxu0 %v5138
    %7094 = vmatprep.subr.mxu0 %v5147
    %7095 = vmatpush1.msra.mxu0 %v5146
    %7096 = vmatprep.subr.mxu0 %v5155
    %7097 = vmatpush1.msra.mxu0 %v5154
    %7098 = vmatprep.subr.mxu0 %v5163
    %7099 = vmatpush1.msra.mxu0 %v5162
    %7100 = vmatprep.subr.mxu0 %v5171
    %7101 = vmatpush1.msra.mxu0 %v5170
    %7102 = vmatprep.subr.mxu0 %v5179
    %7103 = vmatpush1.msra.mxu0 %v5178
    %7104 = vmatprep.subr.mxu0 %v5187
    %7105 = vmatpush1.msra.mxu0 %v5186
    %7106 = vmatprep.subr.mxu0 %v5195
    %7107 = vmatpush1.msra.mxu0 %v5194
    %7108 = vmatprep.subr.mxu0 %v5203
    %7109 = vmatpush1.msra.mxu0 %v5202
    %7110 = vmatprep.subr.mxu0 %v5211
    %7111 = vmatpush1.msra.mxu0 %v5210
    %7112 = vmatprep.subr.mxu0 %v5219
    %7113 = vmatpush1.msra.mxu0 %v5218
    %7114 = vmatprep.subr.mxu0 %v5227
    %7115 = vmatpush1.msra.mxu0 %v5226
    %7116 = vmatprep.subr.mxu0 %v5235
    %7117 = vmatpush1.msra.mxu0 %v5234
    %7118 = vmatprep.subr.mxu0 %v5243
    %7119 = vmatpush1.msra.mxu0 %v5242
    %7120 = vmatprep.subr.mxu0 %v5251
    %7121 = vmatpush1.msra.mxu0 %v5250
    %7122 = vmatprep.subr.mxu0 %v5259
    %7123 = vmatpush1.msra.mxu0 %v5258
    %7124 = vmatprep.subr.mxu0 %v5267
    %7125 = vmatpush1.msra.mxu0 %v5266
    %7126 = vmatprep.subr.mxu0 %v5275
    %7127 = vmatpush1.msra.mxu0 %v5274
    %7128 = vmatprep.subr.mxu0 %v5283
    %7129 = vmatpush1.msra.mxu0 %v5282
    %7130 = vmatprep.subr.mxu0 %v5291
    %7131 = vmatpush1.msra.mxu0 %v5290
    %7132 = vmatprep.subr.mxu0 %v5299
    %7133 = vmatpush1.msra.mxu0 %v5298
    %7134 = vmatprep.mubr.f32.mxu0 %v7059
    %7135 = vmatmul.mubr.f32.gmra.mrb[0].mxu0 %v7058
    %v7136 = vpop.f32.mrb[0].mxu0
    %v7137 = vadd.f32 0.0, %v7136
    %v7138 = vpop.f32.mrb[0].mxu0
    %v7139 = vadd.f32 0.0, %v7138
    %7140 = vdwg.mxu0
    %7141 = vmatprep.subr.mxu0 %v5053
    %7142 = vmatpush1.msra.mxu0 %v5052
    %7143 = vmatprep.subr.mxu0 %v5061
    %7144 = vmatpush1.msra.mxu0 %v5060
    %7145 = vmatprep.subr.mxu0 %v5069
    %7146 = vmatpush1.msra.mxu0 %v5068
    %7147 = vmatprep.subr.mxu0 %v5077
    %7148 = vmatpush1.msra.mxu0 %v5076
    %7149 = vmatprep.subr.mxu0 %v5085
    %7150 = vmatpush1.msra.mxu0 %v5084
    %7151 = vmatprep.subr.mxu0 %v5093
    %7152 = vmatpush1.msra.mxu0 %v5092
    %7153 = vmatprep.subr.mxu0 %v5101
    %7154 = vmatpush1.msra.mxu0 %v5100
    %7155 = vmatprep.subr.mxu0 %v5109
    %7156 = vmatpush1.msra.mxu0 %v5108
    %7157 = vmatprep.subr.mxu0 %v5117
    %7158 = vmatpush1.msra.mxu0 %v5116
    %7159 = vmatprep.subr.mxu0 %v5125
    %7160 = vmatpush1.msra.mxu0 %v5124
    %7161 = vmatprep.subr.mxu0 %v5133
    %7162 = vmatpush1.msra.mxu0 %v5132
    %7163 = vmatprep.subr.mxu0 %v5141
    %7164 = vmatpush1.msra.mxu0 %v5140
    %7165 = vmatprep.subr.mxu0 %v5149
    %7166 = vmatpush1.msra.mxu0 %v5148
    %7167 = vmatprep.subr.mxu0 %v5157
    %7168 = vmatpush1.msra.mxu0 %v5156
    %7169 = vmatprep.subr.mxu0 %v5165
    %7170 = vmatpush1.msra.mxu0 %v5164
    %7171 = vmatprep.subr.mxu0 %v5173
    %7172 = vmatpush1.msra.mxu0 %v5172
    %7173 = vmatprep.subr.mxu0 %v5181
    %7174 = vmatpush1.msra.mxu0 %v5180
    %7175 = vmatprep.subr.mxu0 %v5189
    %7176 = vmatpush1.msra.mxu0 %v5188
    %7177 = vmatprep.subr.mxu0 %v5197
    %7178 = vmatpush1.msra.mxu0 %v5196
    %7179 = vmatprep.subr.mxu0 %v5205
    %7180 = vmatpush1.msra.mxu0 %v5204
    %7181 = vmatprep.subr.mxu0 %v5213
    %7182 = vmatpush1.msra.mxu0 %v5212
    %7183 = vmatprep.subr.mxu0 %v5221
    %7184 = vmatpush1.msra.mxu0 %v5220
    %7185 = vmatprep.subr.mxu0 %v5229
    %7186 = vmatpush1.msra.mxu0 %v5228
    %7187 = vmatprep.subr.mxu0 %v5237
    %7188 = vmatpush1.msra.mxu0 %v5236
    %7189 = vmatprep.subr.mxu0 %v5245
    %7190 = vmatpush1.msra.mxu0 %v5244
    %7191 = vmatprep.subr.mxu0 %v5253
    %7192 = vmatpush1.msra.mxu0 %v5252
    %7193 = vmatprep.subr.mxu0 %v5261
    %7194 = vmatpush1.msra.mxu0 %v5260
    %7195 = vmatprep.subr.mxu0 %v5269
    %7196 = vmatpush1.msra.mxu0 %v5268
    %7197 = vmatprep.subr.mxu0 %v5277
    %7198 = vmatpush1.msra.mxu0 %v5276
    %7199 = vmatprep.subr.mxu0 %v5285
    %7200 = vmatpush1.msra.mxu0 %v5284
    %7201 = vmatprep.subr.mxu0 %v5293
    %7202 = vmatpush1.msra.mxu0 %v5292
    %7203 = vmatprep.subr.mxu0 %v5301
    %7204 = vmatpush1.msra.mxu0 %v5300
    %7205 = vmatprep.mubr.f32.mxu0 %v7059
    %7206 = vmatmul.mubr.f32.gmra.mrb[0].mxu0 %v7058
    %v7207 = vpop.f32.mrb[0].mxu0
    %v7208 = vadd.f32 0.0, %v7207
    %v7209 = vpop.f32.mrb[0].mxu0
    %v7210 = vadd.f32 0.0, %v7209
    %7211 = vdwg.mxu0
    %7212 = vmatprep.subr.mxu0 %v5055
    %7213 = vmatpush1.msra.mxu0 %v5054
    %7214 = vmatprep.subr.mxu0 %v5063
    %7215 = vmatpush1.msra.mxu0 %v5062
    %7216 = vmatprep.subr.mxu0 %v5071
    %7217 = vmatpush1.msra.mxu0 %v5070
    %7218 = vmatprep.subr.mxu0 %v5079
    %7219 = vmatpush1.msra.mxu0 %v5078
    %7220 = vmatprep.subr.mxu0 %v5087
    %7221 = vmatpush1.msra.mxu0 %v5086
    %7222 = vmatprep.subr.mxu0 %v5095
    %7223 = vmatpush1.msra.mxu0 %v5094
    %7224 = vmatprep.subr.mxu0 %v5103
    %7225 = vmatpush1.msra.mxu0 %v5102
    %7226 = vmatprep.subr.mxu0 %v5111
    %7227 = vmatpush1.msra.mxu0 %v5110
    %7228 = vmatprep.subr.mxu0 %v5119
    %7229 = vmatpush1.msra.mxu0 %v5118
    %7230 = vmatprep.subr.mxu0 %v5127
    %7231 = vmatpush1.msra.mxu0 %v5126
    %7232 = vmatprep.subr.mxu0 %v5135
    %7233 = vmatpush1.msra.mxu0 %v5134
    %7234 = vmatprep.subr.mxu0 %v5143
    %7235 = vmatpush1.msra.mxu0 %v5142
    %7236 = vmatprep.subr.mxu0 %v5151
    %7237 = vmatpush1.msra.mxu0 %v5150
    %7238 = vmatprep.subr.mxu0 %v5159
    %7239 = vmatpush1.msra.mxu0 %v5158
    %7240 = vmatprep.subr.mxu0 %v5167
    %7241 = vmatpush1.msra.mxu0 %v5166
    %7242 = vmatprep.subr.mxu0 %v5175
    %7243 = vmatpush1.msra.mxu0 %v5174
    %7244 = vmatprep.subr.mxu0 %v5183
    %7245 = vmatpush1.msra.mxu0 %v5182
    %7246 = vmatprep.subr.mxu0 %v5191
    %7247 = vmatpush1.msra.mxu0 %v5190
    %7248 = vmatprep.subr.mxu0 %v5199
    %7249 = vmatpush1.msra.mxu0 %v5198
    %7250 = vmatprep.subr.mxu0 %v5207
    %7251 = vmatpush1.msra.mxu0 %v5206
    %7252 = vmatprep.subr.mxu0 %v5215
    %7253 = vmatpush1.msra.mxu0 %v5214
    %7254 = vmatprep.subr.mxu0 %v5223
    %7255 = vmatpush1.msra.mxu0 %v5222
    %7256 = vmatprep.subr.mxu0 %v5231
    %7257 = vmatpush1.msra.mxu0 %v5230
    %7258 = vmatprep.subr.mxu0 %v5239
    %7259 = vmatpush1.msra.mxu0 %v5238
    %7260 = vmatprep.subr.mxu0 %v5247
    %7261 = vmatpush1.msra.mxu0 %v5246
    %7262 = vmatprep.subr.mxu0 %v5255
    %7263 = vmatpush1.msra.mxu0 %v5254
    %7264 = vmatprep.subr.mxu0 %v5263
    %7265 = vmatpush1.msra.mxu0 %v5262
    %7266 = vmatprep.subr.mxu0 %v5271
    %7267 = vmatpush1.msra.mxu0 %v5270
    %7268 = vmatprep.subr.mxu0 %v5279
    %7269 = vmatpush1.msra.mxu0 %v5278
    %7270 = vmatprep.subr.mxu0 %v5287
    %7271 = vmatpush1.msra.mxu0 %v5286
    %7272 = vmatprep.subr.mxu0 %v5295
    %7273 = vmatpush1.msra.mxu0 %v5294
    %7274 = vmatprep.subr.mxu0 %v5303
    %7275 = vmatpush1.msra.mxu0 %v5302
    %7276 = vmatprep.mubr.f32.mxu0 %v7059
    %7277 = vmatmul.mubr.f32.gmra.mrb[0].mxu0 %v7058
    %v7278 = vpop.f32.mrb[0].mxu0
    %v7279 = vadd.f32 0.0, %v7278
    %v7280 = vpop.f32.mrb[0].mxu0
    %v7281 = vadd.f32 0.0, %v7280
    %7282 = vdwg.mxu0
    %7283 = vmatprep.subr.mxu0 %v5057
    %7284 = vmatpush1.msra.mxu0 %v5056
    %7285 = vmatprep.subr.mxu0 %v5065
    %7286 = vmatpush1.msra.mxu0 %v5064
    %7287 = vmatprep.subr.mxu0 %v5073
    %7288 = vmatpush1.msra.mxu0 %v5072
    %7289 = vmatprep.subr.mxu0 %v5081
    %7290 = vmatpush1.msra.mxu0 %v5080
    %7291 = vmatprep.subr.mxu0 %v5089
    %7292 = vmatpush1.msra.mxu0 %v5088
    %7293 = vmatprep.subr.mxu0 %v5097
    %7294 = vmatpush1.msra.mxu0 %v5096
    %7295 = vmatprep.subr.mxu0 %v5105
    %7296 = vmatpush1.msra.mxu0 %v5104
    %7297 = vmatprep.subr.mxu0 %v5113
    %7298 = vmatpush1.msra.mxu0 %v5112
    %7299 = vmatprep.subr.mxu0 %v5121
    %7300 = vmatpush1.msra.mxu0 %v5120
    %7301 = vmatprep.subr.mxu0 %v5129
    %7302 = vmatpush1.msra.mxu0 %v5128
    %7303 = vmatprep.subr.mxu0 %v5137
    %7304 = vmatpush1.msra.mxu0 %v5136
    %7305 = vmatprep.subr.mxu0 %v5145
    %7306 = vmatpush1.msra.mxu0 %v5144
    %7307 = vmatprep.subr.mxu0 %v5153
    %7308 = vmatpush1.msra.mxu0 %v5152
    %7309 = vmatprep.subr.mxu0 %v5161
    %7310 = vmatpush1.msra.mxu0 %v5160
    %7311 = vmatprep.subr.mxu0 %v5169
    %7312 = vmatpush1.msra.mxu0 %v5168
    %7313 = vmatprep.subr.mxu0 %v5177
    %7314 = vmatpush1.msra.mxu0 %v5176
    %7315 = vmatprep.subr.mxu0 %v5185
    %7316 = vmatpush1.msra.mxu0 %v5184
    %7317 = vmatprep.subr.mxu0 %v5193
    %7318 = vmatpush1.msra.mxu0 %v5192
    %7319 = vmatprep.subr.mxu0 %v5201
    %7320 = vmatpush1.msra.mxu0 %v5200
    %7321 = vmatprep.subr.mxu0 %v5209
    %7322 = vmatpush1.msra.mxu0 %v5208
    %7323 = vmatprep.subr.mxu0 %v5217
    %7324 = vmatpush1.msra.mxu0 %v5216
    %7325 = vmatprep.subr.mxu0 %v5225
    %7326 = vmatpush1.msra.mxu0 %v5224
    %7327 = vmatprep.subr.mxu0 %v5233
    %7328 = vmatpush1.msra.mxu0 %v5232
    %7329 = vmatprep.subr.mxu0 %v5241
    %7330 = vmatpush1.msra.mxu0 %v5240
    %7331 = vmatprep.subr.mxu0 %v5249
    %7332 = vmatpush1.msra.mxu0 %v5248
    %7333 = vmatprep.subr.mxu0 %v5257
    %7334 = vmatpush1.msra.mxu0 %v5256
    %7335 = vmatprep.subr.mxu0 %v5265
    %7336 = vmatpush1.msra.mxu0 %v5264
    %7337 = vmatprep.subr.mxu0 %v5273
    %7338 = vmatpush1.msra.mxu0 %v5272
    %7339 = vmatprep.subr.mxu0 %v5281
    %7340 = vmatpush1.msra.mxu0 %v5280
    %7341 = vmatprep.subr.mxu0 %v5289
    %7342 = vmatpush1.msra.mxu0 %v5288
    %7343 = vmatprep.subr.mxu0 %v5297
    %7344 = vmatpush1.msra.mxu0 %v5296
    %7345 = vmatprep.subr.mxu0 %v5305
    %7346 = vmatpush1.msra.mxu0 %v5304
    %7347 = vmatprep.mubr.f32.mxu0 %v7059
    %7348 = vmatmul.mubr.f32.gmra.mrb[0].mxu0 %v7058
    %v7349 = vpop.f32.mrb[0].mxu0
    %v7350 = vadd.f32 0.0, %v7349
    %v7351 = vpop.f32.mrb[0].mxu0
    %v7352 = vadd.f32 0.0, %v7351
    %7353 = vdwg.mxu0
    %v7354 = vadd.f32 %v7062, %v7137
    %v7355 = vadd.f32 %v7063, %v7139
    %v7356 = vadd.f32 %v7064, %v7208
    %v7357 = vadd.f32 %v7065, %v7210
    %v7358 = vadd.f32 %v7066, %v7279
    %v7359 = vadd.f32 %v7067, %v7281
    %v7360 = vadd.f32 %v7068, %v7350
    %v7361 = vadd.f32 %v7069, %v7352
    %v7362 = vxor.u32 %v7354, 2147483648
    %v7363 = vxor.u32 %v7355, 2147483648
    %v7364 = vxor.u32 %v7356, 2147483648
    %v7365 = vxor.u32 %v7357, 2147483648
    %v7366 = vxor.u32 %v7358, 2147483648
    %v7367 = vxor.u32 %v7359, 2147483648
    %v7368 = vmul.f32 %v7362, 1.442695
    %v7369 = vpow.pop %v7368
    %v7370 = vmul.f32 %v7363, 1.442695
    %v7371 = vpow.pop %v7370
    %v7372 = vmul.f32 %v7364, 1.442695
    %v7373 = vpow.pop %v7372
    %v7374 = vmul.f32 %v7365, 1.442695
    %v7375 = vpow.pop %v7374
    %v7376 = vmul.f32 %v7366, 1.442695
    %v7377 = vpow.pop %v7376
    %v7378 = vmul.f32 %v7367, 1.442695
    %v7379 = vpow.pop %v7378
    %v7380 = vadd.f32 %v7369, 1.0
    %v7381 = vadd.f32 %v7371, 1.0
    %v7382 = vadd.f32 %v7373, 1.0
    %v7383 = vadd.f32 %v7375, 1.0
    %v7384 = vadd.f32 %v7377, 1.0
    %v7385 = vadd.f32 %v7379, 1.0
    %v7386 = vrcp.pop %v7380
    %v7387 = vmul.f32 1.0, %v7386
    %v7388 = vrcp.pop %v7381
    %v7389 = vmul.f32 1.0, %v7388
    %v7390 = vrcp.pop %v7382
    %v7391 = vmul.f32 1.0, %v7390
    %v7392 = vrcp.pop %v7383
    %v7393 = vmul.f32 1.0, %v7392
    %v7394 = vrcp.pop %v7384
    %v7395 = vmul.f32 1.0, %v7394
    %v7396 = vrcp.pop %v7385
    %v7397 = vmul.f32 1.0, %v7396
    %v7398 = vtanh.pop %v7360
    %v7399 = vtanh.pop %v7361
    %v7400 = vmul.f32 %v7391, %v7054
    %v7401 = vmul.f32 %v7393, %v7055
    %v7402 = vmul.f32 %v7387, %v7398
    %v7403 = vmul.f32 %v7389, %v7399
    %v7404 = vadd.f32 %v7400, %v7402
    %v7405 = vadd.f32 %v7401, %v7403
    %v7406 = vtanh.pop %v7404
    %v7407 = vtanh.pop %v7405
    %v7408 = vmul.f32 %v7395, %v7406
    %v7409 = vmul.f32 %v7397, %v7407
    %7410 = vst [vmem:[%s3501] sm:$0xff] %v7408
    %7411 = vst [vmem:[%s3501 + $0x8] sm:$0xff] %v7409
    %v7412 = vld [vmem:[%s3506] sm:$0xff]
    %v7413 = vld [vmem:[%s3506 + $0x8] sm:$0xff]
    %v7414 = vld [vmem:[%s3506 + $0x10] sm:$0xff]
    %v7415 = vld [vmem:[%s3506 + $0x18] sm:$0xff]
    %v7416 = vld [vmem:[%s3506 + $0x20] sm:$0xff]
    %v7417 = vld [vmem:[%s3506 + $0x28] sm:$0xff]
    %v7418 = vld [vmem:[%s3506 + $0x30] sm:$0xff]
    %v7419 = vld [vmem:[%s3506 + $0x38] sm:$0xff]
    %7420 = vmatprep.subr.mxu0 %v5051
    %7421 = vmatpush1.msra.mxu0 %v5050
    %7422 = vmatprep.subr.mxu0 %v5059
    %7423 = vmatpush1.msra.mxu0 %v5058
    %7424 = vmatprep.subr.mxu0 %v5067
    %7425 = vmatpush1.msra.mxu0 %v5066
    %7426 = vmatprep.subr.mxu0 %v5075
    %7427 = vmatpush1.msra.mxu0 %v5074
    %7428 = vmatprep.subr.mxu0 %v5083
    %7429 = vmatpush1.msra.mxu0 %v5082
    %7430 = vmatprep.subr.mxu0 %v5091
    %7431 = vmatpush1.msra.mxu0 %v5090
    %7432 = vmatprep.subr.mxu0 %v5099
    %7433 = vmatpush1.msra.mxu0 %v5098
    %7434 = vmatprep.subr.mxu0 %v5107
    %7435 = vmatpush1.msra.mxu0 %v5106
    %7436 = vmatprep.subr.mxu0 %v5115
    %7437 = vmatpush1.msra.mxu0 %v5114
    %7438 = vmatprep.subr.mxu0 %v5123
    %7439 = vmatpush1.msra.mxu0 %v5122
    %7440 = vmatprep.subr.mxu0 %v5131
    %7441 = vmatpush1.msra.mxu0 %v5130
    %7442 = vmatprep.subr.mxu0 %v5139
    %7443 = vmatpush1.msra.mxu0 %v5138
    %7444 = vmatprep.subr.mxu0 %v5147
    %7445 = vmatpush1.msra.mxu0 %v5146
    %7446 = vmatprep.subr.mxu0 %v5155
    %7447 = vmatpush1.msra.mxu0 %v5154
    %7448 = vmatprep.subr.mxu0 %v5163
    %7449 = vmatpush1.msra.mxu0 %v5162
    %7450 = vmatprep.subr.mxu0 %v5171
    %7451 = vmatpush1.msra.mxu0 %v5170
    %7452 = vmatprep.subr.mxu0 %v5179
    %7453 = vmatpush1.msra.mxu0 %v5178
    %7454 = vmatprep.subr.mxu0 %v5187
    %7455 = vmatpush1.msra.mxu0 %v5186
    %7456 = vmatprep.subr.mxu0 %v5195
    %7457 = vmatpush1.msra.mxu0 %v5194
    %7458 = vmatprep.subr.mxu0 %v5203
    %7459 = vmatpush1.msra.mxu0 %v5202
    %7460 = vmatprep.subr.mxu0 %v5211
    %7461 = vmatpush1.msra.mxu0 %v5210
    %7462 = vmatprep.subr.mxu0 %v5219
    %7463 = vmatpush1.msra.mxu0 %v5218
    %7464 = vmatprep.subr.mxu0 %v5227
    %7465 = vmatpush1.msra.mxu0 %v5226
    %7466 = vmatprep.subr.mxu0 %v5235
    %7467 = vmatpush1.msra.mxu0 %v5234
    %7468 = vmatprep.subr.mxu0 %v5243
    %7469 = vmatpush1.msra.mxu0 %v5242
    %7470 = vmatprep.subr.mxu0 %v5251
    %7471 = vmatpush1.msra.mxu0 %v5250
    %7472 = vmatprep.subr.mxu0 %v5259
    %7473 = vmatpush1.msra.mxu0 %v5258
    %7474 = vmatprep.subr.mxu0 %v5267
    %7475 = vmatpush1.msra.mxu0 %v5266
    %7476 = vmatprep.subr.mxu0 %v5275
    %7477 = vmatpush1.msra.mxu0 %v5274
    %7478 = vmatprep.subr.mxu0 %v5283
    %7479 = vmatpush1.msra.mxu0 %v5282
    %7480 = vmatprep.subr.mxu0 %v5291
    %7481 = vmatpush1.msra.mxu0 %v5290
    %7482 = vmatprep.subr.mxu0 %v5299
    %7483 = vmatpush1.msra.mxu0 %v5298
    %7484 = vmatprep.mubr.f32.mxu0 %v7409
    %7485 = vmatmul.mubr.f32.gmra.mrb[0].mxu0 %v7408
    %v7486 = vpop.f32.mrb[0].mxu0
    %v7487 = vadd.f32 0.0, %v7486
    %v7488 = vpop.f32.mrb[0].mxu0
    %v7489 = vadd.f32 0.0, %v7488
    %7490 = vdwg.mxu0
    %7491 = vmatprep.subr.mxu0 %v5053
    %7492 = vmatpush1.msra.mxu0 %v5052
    %7493 = vmatprep.subr.mxu0 %v5061
    %7494 = vmatpush1.msra.mxu0 %v5060
    %7495 = vmatprep.subr.mxu0 %v5069
    %7496 = vmatpush1.msra.mxu0 %v5068
    %7497 = vmatprep.subr.mxu0 %v5077
    %7498 = vmatpush1.msra.mxu0 %v5076
    %7499 = vmatprep.subr.mxu0 %v5085
    %7500 = vmatpush1.msra.mxu0 %v5084
    %7501 = vmatprep.subr.mxu0 %v5093
    %7502 = vmatpush1.msra.mxu0 %v5092
    %7503 = vmatprep.subr.mxu0 %v5101
    %7504 = vmatpush1.msra.mxu0 %v5100
    %7505 = vmatprep.subr.mxu0 %v5109
    %7506 = vmatpush1.msra.mxu0 %v5108
    %7507 = vmatprep.subr.mxu0 %v5117
    %7508 = vmatpush1.msra.mxu0 %v5116
    %7509 = vmatprep.subr.mxu0 %v5125
    %7510 = vmatpush1.msra.mxu0 %v5124
    %7511 = vmatprep.subr.mxu0 %v5133
    %7512 = vmatpush1.msra.mxu0 %v5132
    %7513 = vmatprep.subr.mxu0 %v5141
    %7514 = vmatpush1.msra.mxu0 %v5140
    %7515 = vmatprep.subr.mxu0 %v5149
    %7516 = vmatpush1.msra.mxu0 %v5148
    %7517 = vmatprep.subr.mxu0 %v5157
    %7518 = vmatpush1.msra.mxu0 %v5156
    %7519 = vmatprep.subr.mxu0 %v5165
    %7520 = vmatpush1.msra.mxu0 %v5164
    %7521 = vmatprep.subr.mxu0 %v5173
    %7522 = vmatpush1.msra.mxu0 %v5172
    %7523 = vmatprep.subr.mxu0 %v5181
    %7524 = vmatpush1.msra.mxu0 %v5180
    %7525 = vmatprep.subr.mxu0 %v5189
    %7526 = vmatpush1.msra.mxu0 %v5188
    %7527 = vmatprep.subr.mxu0 %v5197
    %7528 = vmatpush1.msra.mxu0 %v5196
    %7529 = vmatprep.subr.mxu0 %v5205
    %7530 = vmatpush1.msra.mxu0 %v5204
    %7531 = vmatprep.subr.mxu0 %v5213
    %7532 = vmatpush1.msra.mxu0 %v5212
    %7533 = vmatprep.subr.mxu0 %v5221
    %7534 = vmatpush1.msra.mxu0 %v5220
    %7535 = vmatprep.subr.mxu0 %v5229
    %7536 = vmatpush1.msra.mxu0 %v5228
    %7537 = vmatprep.subr.mxu0 %v5237
    %7538 = vmatpush1.msra.mxu0 %v5236
    %7539 = vmatprep.subr.mxu0 %v5245
    %7540 = vmatpush1.msra.mxu0 %v5244
    %7541 = vmatprep.subr.mxu0 %v5253
    %7542 = vmatpush1.msra.mxu0 %v5252
    %7543 = vmatprep.subr.mxu0 %v5261
    %7544 = vmatpush1.msra.mxu0 %v5260
    %7545 = vmatprep.subr.mxu0 %v5269
    %7546 = vmatpush1.msra.mxu0 %v5268
    %7547 = vmatprep.subr.mxu0 %v5277
    %7548 = vmatpush1.msra.mxu0 %v5276
    %7549 = vmatprep.subr.mxu0 %v5285
    %7550 = vmatpush1.msra.mxu0 %v5284
    %7551 = vmatprep.subr.mxu0 %v5293
    %7552 = vmatpush1.msra.mxu0 %v5292
    %7553 = vmatprep.subr.mxu0 %v5301
    %7554 = vmatpush1.msra.mxu0 %v5300
    %7555 = vmatprep.mubr.f32.mxu0 %v7409
    %7556 = vmatmul.mubr.f32.gmra.mrb[0].mxu0 %v7408
    %v7557 = vpop.f32.mrb[0].mxu0
    %v7558 = vadd.f32 0.0, %v7557
    %v7559 = vpop.f32.mrb[0].mxu0
    %v7560 = vadd.f32 0.0, %v7559
    %7561 = vdwg.mxu0
    %7562 = vmatprep.subr.mxu0 %v5055
    %7563 = vmatpush1.msra.mxu0 %v5054
    %7564 = vmatprep.subr.mxu0 %v5063
    %7565 = vmatpush1.msra.mxu0 %v5062
    %7566 = vmatprep.subr.mxu0 %v5071
    %7567 = vmatpush1.msra.mxu0 %v5070
    %7568 = vmatprep.subr.mxu0 %v5079
    %7569 = vmatpush1.msra.mxu0 %v5078
    %7570 = vmatprep.subr.mxu0 %v5087
    %7571 = vmatpush1.msra.mxu0 %v5086
    %7572 = vmatprep.subr.mxu0 %v5095
    %7573 = vmatpush1.msra.mxu0 %v5094
    %7574 = vmatprep.subr.mxu0 %v5103
    %7575 = vmatpush1.msra.mxu0 %v5102
    %7576 = vmatprep.subr.mxu0 %v5111
    %7577 = vmatpush1.msra.mxu0 %v5110
    %7578 = vmatprep.subr.mxu0 %v5119
    %7579 = vmatpush1.msra.mxu0 %v5118
    %7580 = vmatprep.subr.mxu0 %v5127
    %7581 = vmatpush1.msra.mxu0 %v5126
    %7582 = vmatprep.subr.mxu0 %v5135
    %7583 = vmatpush1.msra.mxu0 %v5134
    %7584 = vmatprep.subr.mxu0 %v5143
    %7585 = vmatpush1.msra.mxu0 %v5142
    %7586 = vmatprep.subr.mxu0 %v5151
    %7587 = vmatpush1.msra.mxu0 %v5150
    %7588 = vmatprep.subr.mxu0 %v5159
    %7589 = vmatpush1.msra.mxu0 %v5158
    %7590 = vmatprep.subr.mxu0 %v5167
    %7591 = vmatpush1.msra.mxu0 %v5166
    %7592 = vmatprep.subr.mxu0 %v5175
    %7593 = vmatpush1.msra.mxu0 %v5174
    %7594 = vmatprep.subr.mxu0 %v5183
    %7595 = vmatpush1.msra.mxu0 %v5182
    %7596 = vmatprep.subr.mxu0 %v5191
    %7597 = vmatpush1.msra.mxu0 %v5190
    %7598 = vmatprep.subr.mxu0 %v5199
    %7599 = vmatpush1.msra.mxu0 %v5198
    %7600 = vmatprep.subr.mxu0 %v5207
    %7601 = vmatpush1.msra.mxu0 %v5206
    %7602 = vmatprep.subr.mxu0 %v5215
    %7603 = vmatpush1.msra.mxu0 %v5214
    %7604 = vmatprep.subr.mxu0 %v5223
    %7605 = vmatpush1.msra.mxu0 %v5222
    %7606 = vmatprep.subr.mxu0 %v5231
    %7607 = vmatpush1.msra.mxu0 %v5230
    %7608 = vmatprep.subr.mxu0 %v5239
    %7609 = vmatpush1.msra.mxu0 %v5238
    %7610 = vmatprep.subr.mxu0 %v5247
    %7611 = vmatpush1.msra.mxu0 %v5246
    %7612 = vmatprep.subr.mxu0 %v5255
    %7613 = vmatpush1.msra.mxu0 %v5254
    %7614 = vmatprep.subr.mxu0 %v5263
    %7615 = vmatpush1.msra.mxu0 %v5262
    %7616 = vmatprep.subr.mxu0 %v5271
    %7617 = vmatpush1.msra.mxu0 %v5270
    %7618 = vmatprep.subr.mxu0 %v5279
    %7619 = vmatpush1.msra.mxu0 %v5278
    %7620 = vmatprep.subr.mxu0 %v5287
    %7621 = vmatpush1.msra.mxu0 %v5286
    %7622 = vmatprep.subr.mxu0 %v5295
    %7623 = vmatpush1.msra.mxu0 %v5294
    %7624 = vmatprep.subr.mxu0 %v5303
    %7625 = vmatpush1.msra.mxu0 %v5302
    %7626 = vmatprep.mubr.f32.mxu0 %v7409
    %7627 = vmatmul.mubr.f32.gmra.mrb[0].mxu0 %v7408
    %v7628 = vpop.f32.mrb[0].mxu0
    %v7629 = vadd.f32 0.0, %v7628
    %v7630 = vpop.f32.mrb[0].mxu0
    %v7631 = vadd.f32 0.0, %v7630
    %7632 = vdwg.mxu0
    %7633 = vmatprep.subr.mxu0 %v5057
    %7634 = vmatpush1.msra.mxu0 %v5056
    %7635 = vmatprep.subr.mxu0 %v5065
    %7636 = vmatpush1.msra.mxu0 %v5064
    %7637 = vmatprep.subr.mxu0 %v5073
    %7638 = vmatpush1.msra.mxu0 %v5072
    %7639 = vmatprep.subr.mxu0 %v5081
    %7640 = vmatpush1.msra.mxu0 %v5080
    %7641 = vmatprep.subr.mxu0 %v5089
    %7642 = vmatpush1.msra.mxu0 %v5088
    %7643 = vmatprep.subr.mxu0 %v5097
    %7644 = vmatpush1.msra.mxu0 %v5096
    %7645 = vmatprep.subr.mxu0 %v5105
    %7646 = vmatpush1.msra.mxu0 %v5104
    %7647 = vmatprep.subr.mxu0 %v5113
    %7648 = vmatpush1.msra.mxu0 %v5112
    %7649 = vmatprep.subr.mxu0 %v5121
    %7650 = vmatpush1.msra.mxu0 %v5120
    %7651 = vmatprep.subr.mxu0 %v5129
    %7652 = vmatpush1.msra.mxu0 %v5128
    %7653 = vmatprep.subr.mxu0 %v5137
    %7654 = vmatpush1.msra.mxu0 %v5136
    %7655 = vmatprep.subr.mxu0 %v5145
    %7656 = vmatpush1.msra.mxu0 %v5144
    %7657 = vmatprep.subr.mxu0 %v5153
    %7658 = vmatpush1.msra.mxu0 %v5152
    %7659 = vmatprep.subr.mxu0 %v5161
    %7660 = vmatpush1.msra.mxu0 %v5160
    %7661 = vmatprep.subr.mxu0 %v5169
    %7662 = vmatpush1.msra.mxu0 %v5168
    %7663 = vmatprep.subr.mxu0 %v5177
    %7664 = vmatpush1.msra.mxu0 %v5176
    %7665 = vmatprep.subr.mxu0 %v5185
    %7666 = vmatpush1.msra.mxu0 %v5184
    %7667 = vmatprep.subr.mxu0 %v5193
    %7668 = vmatpush1.msra.mxu0 %v5192
    %7669 = vmatprep.subr.mxu0 %v5201
    %7670 = vmatpush1.msra.mxu0 %v5200
    %7671 = vmatprep.subr.mxu0 %v5209
    %7672 = vmatpush1.msra.mxu0 %v5208
    %7673 = vmatprep.subr.mxu0 %v5217
    %7674 = vmatpush1.msra.mxu0 %v5216
    %7675 = vmatprep.subr.mxu0 %v5225
    %7676 = vmatpush1.msra.mxu0 %v5224
    %7677 = vmatprep.subr.mxu0 %v5233
    %7678 = vmatpush1.msra.mxu0 %v5232
    %7679 = vmatprep.subr.mxu0 %v5241
    %7680 = vmatpush1.msra.mxu0 %v5240
    %7681 = vmatprep.subr.mxu0 %v5249
    %7682 = vmatpush1.msra.mxu0 %v5248
    %7683 = vmatprep.subr.mxu0 %v5257
    %7684 = vmatpush1.msra.mxu0 %v5256
    %7685 = vmatprep.subr.mxu0 %v5265
    %7686 = vmatpush1.msra.mxu0 %v5264
    %7687 = vmatprep.subr.mxu0 %v5273
    %7688 = vmatpush1.msra.mxu0 %v5272
    %7689 = vmatprep.subr.mxu0 %v5281
    %7690 = vmatpush1.msra.mxu0 %v5280
    %7691 = vmatprep.subr.mxu0 %v5289
    %7692 = vmatpush1.msra.mxu0 %v5288
    %7693 = vmatprep.subr.mxu0 %v5297
    %7694 = vmatpush1.msra.mxu0 %v5296
    %7695 = vmatprep.subr.mxu0 %v5305
    %7696 = vmatpush1.msra.mxu0 %v5304
    %7697 = vmatprep.mubr.f32.mxu0 %v7409
    %7698 = vmatmul.mubr.f32.gmra.mrb[0].mxu0 %v7408
    %v7699 = vpop.f32.mrb[0].mxu0
    %v7700 = vadd.f32 0.0, %v7699
    %v7701 = vpop.f32.mrb[0].mxu0
    %v7702 = vadd.f32 0.0, %v7701
    %7703 = vdwg.mxu0
    %v7704 = vadd.f32 %v7412, %v7487
    %v7705 = vadd.f32 %v7413, %v7489
    %v7706 = vadd.f32 %v7414, %v7558
    %v7707 = vadd.f32 %v7415, %v7560
    %v7708 = vadd.f32 %v7416, %v7629
    %v7709 = vadd.f32 %v7417, %v7631
    %v7710 = vadd.f32 %v7418, %v7700
    %v7711 = vadd.f32 %v7419, %v7702
    %v7712 = vxor.u32 %v7704, 2147483648
    %v7713 = vxor.u32 %v7705, 2147483648
    %v7714 = vxor.u32 %v7706, 2147483648
    %v7715 = vxor.u32 %v7707, 2147483648
    %v7716 = vxor.u32 %v7708, 2147483648
    %v7717 = vxor.u32 %v7709, 2147483648
    %v7718 = vmul.f32 %v7712, 1.442695
    %v7719 = vpow.pop %v7718
    %v7720 = vmul.f32 %v7713, 1.442695
    %v7721 = vpow.pop %v7720
    %v7722 = vmul.f32 %v7714, 1.442695
    %v7723 = vpow.pop %v7722
    %v7724 = vmul.f32 %v7715, 1.442695
    %v7725 = vpow.pop %v7724
    %v7726 = vmul.f32 %v7716, 1.442695
    %v7727 = vpow.pop %v7726
    %v7728 = vmul.f32 %v7717, 1.442695
    %v7729 = vpow.pop %v7728
    %v7730 = vadd.f32 %v7719, 1.0
    %v7731 = vadd.f32 %v7721, 1.0
    %v7732 = vadd.f32 %v7723, 1.0
    %v7733 = vadd.f32 %v7725, 1.0
    %v7734 = vadd.f32 %v7727, 1.0
    %v7735 = vadd.f32 %v7729, 1.0
    %v7736 = vrcp.pop %v7730
    %v7737 = vmul.f32 1.0, %v7736
    %v7738 = vrcp.pop %v7731
    %v7739 = vmul.f32 1.0, %v7738
    %v7740 = vrcp.pop %v7732
    %v7741 = vmul.f32 1.0, %v7740
    %v7742 = vrcp.pop %v7733
    %v7743 = vmul.f32 1.0, %v7742
    %v7744 = vrcp.pop %v7734
    %v7745 = vmul.f32 1.0, %v7744
    %v7746 = vrcp.pop %v7735
    %v7747 = vmul.f32 1.0, %v7746
    %v7748 = vtanh.pop %v7710
    %v7749 = vtanh.pop %v7711
    %v7750 = vmul.f32 %v7741, %v7404
    %v7751 = vmul.f32 %v7743, %v7405
    %v7752 = vmul.f32 %v7737, %v7748
    %v7753 = vmul.f32 %v7739, %v7749
    %v7754 = vadd.f32 %v7750, %v7752
    %v7755 = vadd.f32 %v7751, %v7753
    %v7756 = vtanh.pop %v7754
    %v7757 = vtanh.pop %v7755
    %v7758 = vmul.f32 %v7745, %v7756
    %v7759 = vmul.f32 %v7747, %v7757
    %7760 = vst [vmem:[%s3857] sm:$0xff] %v7758
    %7761 = vst [vmem:[%s3857 + $0x8] sm:$0xff] %v7759
    %v7762 = vld [vmem:[%s3862] sm:$0xff]
    %v7763 = vld [vmem:[%s3862 + $0x8] sm:$0xff]
    %v7764 = vld [vmem:[%s3862 + $0x10] sm:$0xff]
    %v7765 = vld [vmem:[%s3862 + $0x18] sm:$0xff]
    %v7766 = vld [vmem:[%s3862 + $0x20] sm:$0xff]
    %v7767 = vld [vmem:[%s3862 + $0x28] sm:$0xff]
    %v7768 = vld [vmem:[%s3862 + $0x30] sm:$0xff]
    %v7769 = vld [vmem:[%s3862 + $0x38] sm:$0xff]
    %7770 = vmatprep.subr.mxu0 %v5051
    %7771 = vmatpush1.msra.mxu0 %v5050
    %7772 = vmatprep.subr.mxu0 %v5059
    %7773 = vmatpush1.msra.mxu0 %v5058
    %7774 = vmatprep.subr.mxu0 %v5067
    %7775 = vmatpush1.msra.mxu0 %v5066
    %7776 = vmatprep.subr.mxu0 %v5075
    %7777 = vmatpush1.msra.mxu0 %v5074
    %7778 = vmatprep.subr.mxu0 %v5083
    %7779 = vmatpush1.msra.mxu0 %v5082
    %7780 = vmatprep.subr.mxu0 %v5091
    %7781 = vmatpush1.msra.mxu0 %v5090
    %7782 = vmatprep.subr.mxu0 %v5099
    %7783 = vmatpush1.msra.mxu0 %v5098
    %7784 = vmatprep.subr.mxu0 %v5107
    %7785 = vmatpush1.msra.mxu0 %v5106
    %7786 = vmatprep.subr.mxu0 %v5115
    %7787 = vmatpush1.msra.mxu0 %v5114
    %7788 = vmatprep.subr.mxu0 %v5123
    %7789 = vmatpush1.msra.mxu0 %v5122
    %7790 = vmatprep.subr.mxu0 %v5131
    %7791 = vmatpush1.msra.mxu0 %v5130
    %7792 = vmatprep.subr.mxu0 %v5139
    %7793 = vmatpush1.msra.mxu0 %v5138
    %7794 = vmatprep.subr.mxu0 %v5147
    %7795 = vmatpush1.msra.mxu0 %v5146
    %7796 = vmatprep.subr.mxu0 %v5155
    %7797 = vmatpush1.msra.mxu0 %v5154
    %7798 = vmatprep.subr.mxu0 %v5163
    %7799 = vmatpush1.msra.mxu0 %v5162
    %7800 = vmatprep.subr.mxu0 %v5171
    %7801 = vmatpush1.msra.mxu0 %v5170
    %7802 = vmatprep.subr.mxu0 %v5179
    %7803 = vmatpush1.msra.mxu0 %v5178
    %7804 = vmatprep.subr.mxu0 %v5187
    %7805 = vmatpush1.msra.mxu0 %v5186
    %7806 = vmatprep.subr.mxu0 %v5195
    %7807 = vmatpush1.msra.mxu0 %v5194
    %7808 = vmatprep.subr.mxu0 %v5203
    %7809 = vmatpush1.msra.mxu0 %v5202
    %7810 = vmatprep.subr.mxu0 %v5211
    %7811 = vmatpush1.msra.mxu0 %v5210
    %7812 = vmatprep.subr.mxu0 %v5219
    %7813 = vmatpush1.msra.mxu0 %v5218
    %7814 = vmatprep.subr.mxu0 %v5227
    %7815 = vmatpush1.msra.mxu0 %v5226
    %7816 = vmatprep.subr.mxu0 %v5235
    %7817 = vmatpush1.msra.mxu0 %v5234
    %7818 = vmatprep.subr.mxu0 %v5243
    %7819 = vmatpush1.msra.mxu0 %v5242
    %7820 = vmatprep.subr.mxu0 %v5251
    %7821 = vmatpush1.msra.mxu0 %v5250
    %7822 = vmatprep.subr.mxu0 %v5259
    %7823 = vmatpush1.msra.mxu0 %v5258
    %7824 = vmatprep.subr.mxu0 %v5267
    %7825 = vmatpush1.msra.mxu0 %v5266
    %7826 = vmatprep.subr.mxu0 %v5275
    %7827 = vmatpush1.msra.mxu0 %v5274
    %7828 = vmatprep.subr.mxu0 %v5283
    %7829 = vmatpush1.msra.mxu0 %v5282
    %7830 = vmatprep.subr.mxu0 %v5291
    %7831 = vmatpush1.msra.mxu0 %v5290
    %7832 = vmatprep.subr.mxu0 %v5299
    %7833 = vmatpush1.msra.mxu0 %v5298
    %7834 = vmatprep.mubr.f32.mxu0 %v7759
    %7835 = vmatmul.mubr.f32.gmra.mrb[0].mxu0 %v7758
    %v7836 = vpop.f32.mrb[0].mxu0
    %v7837 = vadd.f32 0.0, %v7836
    %v7838 = vpop.f32.mrb[0].mxu0
    %v7839 = vadd.f32 0.0, %v7838
    %7840 = vdwg.mxu0
    %7841 = vmatprep.subr.mxu0 %v5053
    %7842 = vmatpush1.msra.mxu0 %v5052
    %7843 = vmatprep.subr.mxu0 %v5061
    %7844 = vmatpush1.msra.mxu0 %v5060
    %7845 = vmatprep.subr.mxu0 %v5069
    %7846 = vmatpush1.msra.mxu0 %v5068
    %7847 = vmatprep.subr.mxu0 %v5077
    %7848 = vmatpush1.msra.mxu0 %v5076
    %7849 = vmatprep.subr.mxu0 %v5085
    %7850 = vmatpush1.msra.mxu0 %v5084
    %7851 = vmatprep.subr.mxu0 %v5093
    %7852 = vmatpush1.msra.mxu0 %v5092
    %7853 = vmatprep.subr.mxu0 %v5101
    %7854 = vmatpush1.msra.mxu0 %v5100
    %7855 = vmatprep.subr.mxu0 %v5109
    %7856 = vmatpush1.msra.mxu0 %v5108
    %7857 = vmatprep.subr.mxu0 %v5117
    %7858 = vmatpush1.msra.mxu0 %v5116
    %7859 = vmatprep.subr.mxu0 %v5125
    %7860 = vmatpush1.msra.mxu0 %v5124
    %7861 = vmatprep.subr.mxu0 %v5133
    %7862 = vmatpush1.msra.mxu0 %v5132
    %7863 = vmatprep.subr.mxu0 %v5141
    %7864 = vmatpush1.msra.mxu0 %v5140
    %7865 = vmatprep.subr.mxu0 %v5149
    %7866 = vmatpush1.msra.mxu0 %v5148
    %7867 = vmatprep.subr.mxu0 %v5157
    %7868 = vmatpush1.msra.mxu0 %v5156
    %7869 = vmatprep.subr.mxu0 %v5165
    %7870 = vmatpush1.msra.mxu0 %v5164
    %7871 = vmatprep.subr.mxu0 %v5173
    %7872 = vmatpush1.msra.mxu0 %v5172
    %7873 = vmatprep.subr.mxu0 %v5181
    %7874 = vmatpush1.msra.mxu0 %v5180
    %7875 = vmatprep.subr.mxu0 %v5189
    %7876 = vmatpush1.msra.mxu0 %v5188
    %7877 = vmatprep.subr.mxu0 %v5197
    %7878 = vmatpush1.msra.mxu0 %v5196
    %7879 = vmatprep.subr.mxu0 %v5205
    %7880 = vmatpush1.msra.mxu0 %v5204
    %7881 = vmatprep.subr.mxu0 %v5213
    %7882 = vmatpush1.msra.mxu0 %v5212
    %7883 = vmatprep.subr.mxu0 %v5221
    %7884 = vmatpush1.msra.mxu0 %v5220
    %7885 = vmatprep.subr.mxu0 %v5229
    %7886 = vmatpush1.msra.mxu0 %v5228
    %7887 = vmatprep.subr.mxu0 %v5237
    %7888 = vmatpush1.msra.mxu0 %v5236
    %7889 = vmatprep.subr.mxu0 %v5245
    %7890 = vmatpush1.msra.mxu0 %v5244
    %7891 = vmatprep.subr.mxu0 %v5253
    %7892 = vmatpush1.msra.mxu0 %v5252
    %7893 = vmatprep.subr.mxu0 %v5261
    %7894 = vmatpush1.msra.mxu0 %v5260
    %7895 = vmatprep.subr.mxu0 %v5269
    %7896 = vmatpush1.msra.mxu0 %v5268
    %7897 = vmatprep.subr.mxu0 %v5277
    %7898 = vmatpush1.msra.mxu0 %v5276
    %7899 = vmatprep.subr.mxu0 %v5285
    %7900 = vmatpush1.msra.mxu0 %v5284
    %7901 = vmatprep.subr.mxu0 %v5293
    %7902 = vmatpush1.msra.mxu0 %v5292
    %7903 = vmatprep.subr.mxu0 %v5301
    %7904 = vmatpush1.msra.mxu0 %v5300
    %7905 = vmatprep.mubr.f32.mxu0 %v7759
    %7906 = vmatmul.mubr.f32.gmra.mrb[0].mxu0 %v7758
    %v7907 = vpop.f32.mrb[0].mxu0
    %v7908 = vadd.f32 0.0, %v7907
    %v7909 = vpop.f32.mrb[0].mxu0
    %v7910 = vadd.f32 0.0, %v7909
    %7911 = vdwg.mxu0
    %7912 = vmatprep.subr.mxu0 %v5055
    %7913 = vmatpush1.msra.mxu0 %v5054
    %7914 = vmatprep.subr.mxu0 %v5063
    %7915 = vmatpush1.msra.mxu0 %v5062
    %7916 = vmatprep.subr.mxu0 %v5071
    %7917 = vmatpush1.msra.mxu0 %v5070
    %7918 = vmatprep.subr.mxu0 %v5079
    %7919 = vmatpush1.msra.mxu0 %v5078
    %7920 = vmatprep.subr.mxu0 %v5087
    %7921 = vmatpush1.msra.mxu0 %v5086
    %7922 = vmatprep.subr.mxu0 %v5095
    %7923 = vmatpush1.msra.mxu0 %v5094
    %7924 = vmatprep.subr.mxu0 %v5103
    %7925 = vmatpush1.msra.mxu0 %v5102
    %7926 = vmatprep.subr.mxu0 %v5111
    %7927 = vmatpush1.msra.mxu0 %v5110
    %7928 = vmatprep.subr.mxu0 %v5119
    %7929 = vmatpush1.msra.mxu0 %v5118
    %7930 = vmatprep.subr.mxu0 %v5127
    %7931 = vmatpush1.msra.mxu0 %v5126
    %7932 = vmatprep.subr.mxu0 %v5135
    %7933 = vmatpush1.msra.mxu0 %v5134
    %7934 = vmatprep.subr.mxu0 %v5143
    %7935 = vmatpush1.msra.mxu0 %v5142
    %7936 = vmatprep.subr.mxu0 %v5151
    %7937 = vmatpush1.msra.mxu0 %v5150
    %7938 = vmatprep.subr.mxu0 %v5159
    %7939 = vmatpush1.msra.mxu0 %v5158
    %7940 = vmatprep.subr.mxu0 %v5167
    %7941 = vmatpush1.msra.mxu0 %v5166
    %7942 = vmatprep.subr.mxu0 %v5175
    %7943 = vmatpush1.msra.mxu0 %v5174
    %7944 = vmatprep.subr.mxu0 %v5183
    %7945 = vmatpush1.msra.mxu0 %v5182
    %7946 = vmatprep.subr.mxu0 %v5191
    %7947 = vmatpush1.msra.mxu0 %v5190
    %7948 = vmatprep.subr.mxu0 %v5199
    %7949 = vmatpush1.msra.mxu0 %v5198
    %7950 = vmatprep.subr.mxu0 %v5207
    %7951 = vmatpush1.msra.mxu0 %v5206
    %7952 = vmatprep.subr.mxu0 %v5215
    %7953 = vmatpush1.msra.mxu0 %v5214
    %7954 = vmatprep.subr.mxu0 %v5223
    %7955 = vmatpush1.msra.mxu0 %v5222
    %7956 = vmatprep.subr.mxu0 %v5231
    %7957 = vmatpush1.msra.mxu0 %v5230
    %7958 = vmatprep.subr.mxu0 %v5239
    %7959 = vmatpush1.msra.mxu0 %v5238
    %7960 = vmatprep.subr.mxu0 %v5247
    %7961 = vmatpush1.msra.mxu0 %v5246
    %7962 = vmatprep.subr.mxu0 %v5255
    %7963 = vmatpush1.msra.mxu0 %v5254
    %7964 = vmatprep.subr.mxu0 %v5263
    %7965 = vmatpush1.msra.mxu0 %v5262
    %7966 = vmatprep.subr.mxu0 %v5271
    %7967 = vmatpush1.msra.mxu0 %v5270
    %7968 = vmatprep.subr.mxu0 %v5279
    %7969 = vmatpush1.msra.mxu0 %v5278
    %7970 = vmatprep.subr.mxu0 %v5287
    %7971 = vmatpush1.msra.mxu0 %v5286
    %7972 = vmatprep.subr.mxu0 %v5295
    %7973 = vmatpush1.msra.mxu0 %v5294
    %7974 = vmatprep.subr.mxu0 %v5303
    %7975 = vmatpush1.msra.mxu0 %v5302
    %7976 = vmatprep.mubr.f32.mxu0 %v7759
    %7977 = vmatmul.mubr.f32.gmra.mrb[0].mxu0 %v7758
    %v7978 = vpop.f32.mrb[0].mxu0
    %v7979 = vadd.f32 0.0, %v7978
    %v7980 = vpop.f32.mrb[0].mxu0
    %v7981 = vadd.f32 0.0, %v7980
    %7982 = vdwg.mxu0
    %7983 = vmatprep.subr.mxu0 %v5057
    %7984 = vmatpush1.msra.mxu0 %v5056
    %7985 = vmatprep.subr.mxu0 %v5065
    %7986 = vmatpush1.msra.mxu0 %v5064
    %7987 = vmatprep.subr.mxu0 %v5073
    %7988 = vmatpush1.msra.mxu0 %v5072
    %7989 = vmatprep.subr.mxu0 %v5081
    %7990 = vmatpush1.msra.mxu0 %v5080
    %7991 = vmatprep.subr.mxu0 %v5089
    %7992 = vmatpush1.msra.mxu0 %v5088
    %7993 = vmatprep.subr.mxu0 %v5097
    %7994 = vmatpush1.msra.mxu0 %v5096
    %7995 = vmatprep.subr.mxu0 %v5105
    %7996 = vmatpush1.msra.mxu0 %v5104
    %7997 = vmatprep.subr.mxu0 %v5113
    %7998 = vmatpush1.msra.mxu0 %v5112
    %7999 = vmatprep.subr.mxu0 %v5121
    %8000 = vmatpush1.msra.mxu0 %v5120
    %8001 = vmatprep.subr.mxu0 %v5129
    %8002 = vmatpush1.msra.mxu0 %v5128
    %8003 = vmatprep.subr.mxu0 %v5137
    %8004 = vmatpush1.msra.mxu0 %v5136
    %8005 = vmatprep.subr.mxu0 %v5145
    %8006 = vmatpush1.msra.mxu0 %v5144
    %8007 = vmatprep.subr.mxu0 %v5153
    %8008 = vmatpush1.msra.mxu0 %v5152
    %8009 = vmatprep.subr.mxu0 %v5161
    %8010 = vmatpush1.msra.mxu0 %v5160
    %8011 = vmatprep.subr.mxu0 %v5169
    %8012 = vmatpush1.msra.mxu0 %v5168
    %8013 = vmatprep.subr.mxu0 %v5177
    %8014 = vmatpush1.msra.mxu0 %v5176
    %8015 = vmatprep.subr.mxu0 %v5185
    %8016 = vmatpush1.msra.mxu0 %v5184
    %8017 = vmatprep.subr.mxu0 %v5193
    %8018 = vmatpush1.msra.mxu0 %v5192
    %8019 = vmatprep.subr.mxu0 %v5201
    %8020 = vmatpush1.msra.mxu0 %v5200
    %8021 = vmatprep.subr.mxu0 %v5209
    %8022 = vmatpush1.msra.mxu0 %v5208
    %8023 = vmatprep.subr.mxu0 %v5217
    %8024 = vmatpush1.msra.mxu0 %v5216
    %8025 = vmatprep.subr.mxu0 %v5225
    %8026 = vmatpush1.msra.mxu0 %v5224
    %8027 = vmatprep.subr.mxu0 %v5233
    %8028 = vmatpush1.msra.mxu0 %v5232
    %8029 = vmatprep.subr.mxu0 %v5241
    %8030 = vmatpush1.msra.mxu0 %v5240
    %8031 = vmatprep.subr.mxu0 %v5249
    %8032 = vmatpush1.msra.mxu0 %v5248
    %8033 = vmatprep.subr.mxu0 %v5257
    %8034 = vmatpush1.msra.mxu0 %v5256
    %8035 = vmatprep.subr.mxu0 %v5265
    %8036 = vmatpush1.msra.mxu0 %v5264
    %8037 = vmatprep.subr.mxu0 %v5273
    %8038 = vmatpush1.msra.mxu0 %v5272
    %8039 = vmatprep.subr.mxu0 %v5281
    %8040 = vmatpush1.msra.mxu0 %v5280
    %8041 = vmatprep.subr.mxu0 %v5289
    %8042 = vmatpush1.msra.mxu0 %v5288
    %8043 = vmatprep.subr.mxu0 %v5297
    %8044 = vmatpush1.msra.mxu0 %v5296
    %8045 = vmatprep.subr.mxu0 %v5305
    %8046 = vmatpush1.msra.mxu0 %v5304
    %8047 = vmatprep.mubr.f32.mxu0 %v7759
    %8048 = vmatmul.mubr.f32.gmra.mrb[0].mxu0 %v7758
    %v8049 = vpop.f32.mrb[0].mxu0
    %v8050 = vadd.f32 0.0, %v8049
    %v8051 = vpop.f32.mrb[0].mxu0
    %v8052 = vadd.f32 0.0, %v8051
    %8053 = vdwg.mxu0
    %v8054 = vadd.f32 %v7762, %v7837
    %v8055 = vadd.f32 %v7763, %v7839
    %v8056 = vadd.f32 %v7764, %v7908
    %v8057 = vadd.f32 %v7765, %v7910
    %v8058 = vadd.f32 %v7766, %v7979
    %v8059 = vadd.f32 %v7767, %v7981
    %v8060 = vadd.f32 %v7768, %v8050
    %v8061 = vadd.f32 %v7769, %v8052
    %v8062 = vxor.u32 %v8054, 2147483648
    %v8063 = vxor.u32 %v8055, 2147483648
    %v8064 = vxor.u32 %v8056, 2147483648
    %v8065 = vxor.u32 %v8057, 2147483648
    %v8066 = vxor.u32 %v8058, 2147483648
    %v8067 = vxor.u32 %v8059, 2147483648
    %v8068 = vmul.f32 %v8062, 1.442695
    %v8069 = vpow.pop %v8068
    %v8070 = vmul.f32 %v8063, 1.442695
    %v8071 = vpow.pop %v8070
    %v8072 = vmul.f32 %v8064, 1.442695
    %v8073 = vpow.pop %v8072
    %v8074 = vmul.f32 %v8065, 1.442695
    %v8075 = vpow.pop %v8074
    %v8076 = vmul.f32 %v8066, 1.442695
    %v8077 = vpow.pop %v8076
    %v8078 = vmul.f32 %v8067, 1.442695
    %v8079 = vpow.pop %v8078
    %v8080 = vadd.f32 %v8069, 1.0
    %v8081 = vadd.f32 %v8071, 1.0
    %v8082 = vadd.f32 %v8073, 1.0
    %v8083 = vadd.f32 %v8075, 1.0
    %v8084 = vadd.f32 %v8077, 1.0
    %v8085 = vadd.f32 %v8079, 1.0
    %v8086 = vrcp.pop %v8080
    %v8087 = vmul.f32 1.0, %v8086
    %v8088 = vrcp.pop %v8081
    %v8089 = vmul.f32 1.0, %v8088
    %v8090 = vrcp.pop %v8082
    %v8091 = vmul.f32 1.0, %v8090
    %v8092 = vrcp.pop %v8083
    %v8093 = vmul.f32 1.0, %v8092
    %v8094 = vrcp.pop %v8084
    %v8095 = vmul.f32 1.0, %v8094
    %v8096 = vrcp.pop %v8085
    %v8097 = vmul.f32 1.0, %v8096
    %v8098 = vtanh.pop %v8060
    %v8099 = vtanh.pop %v8061
    %v8100 = vmul.f32 %v8091, %v7754
    %v8101 = vmul.f32 %v8093, %v7755
    %v8102 = vmul.f32 %v8087, %v8098
    %v8103 = vmul.f32 %v8089, %v8099
    %v8104 = vadd.f32 %v8100, %v8102
    %v8105 = vadd.f32 %v8101, %v8103
    %v8106 = vtanh.pop %v8104
    %v8107 = vtanh.pop %v8105
    %v8108 = vmul.f32 %v8095, %v8106
    %v8109 = vmul.f32 %v8097, %v8107
    %8110 = vst [vmem:[%s4213] sm:$0xff] %v8108
    %8111 = vst [vmem:[%s4213 + $0x8] sm:$0xff] %v8109
    %s8112 = scalar_lea.vmem %s17, 16
    %8113 = vst [vmem:[%s8112] sm:$0xff] %v8108
    %8114 = vst [vmem:[%s8112 + $0x8] sm:$0xff] %v8109
    %s8115 = scalar_lea.vmem %s18, 16
    %8116 = vst [vmem:[%s8115] sm:$0xff] %v8104
    %8117 = vst [vmem:[%s8115 + $0x8] sm:$0xff] %v8105
    %v8118 = vld [vmem:[#allocation3] sm:$0xff]
    %v8119 = vld [vmem:[#allocation3 + $0x8] sm:$0xff]
    %v8120 = vld [vmem:[#allocation3 + $0x10] sm:$0xff]
    %v8121 = vld [vmem:[#allocation3 + $0x18] sm:$0xff]
    %v8122 = vld [vmem:[#allocation3 + $0x20] sm:$0xff]
    %v8123 = vld [vmem:[#allocation3 + $0x28] sm:$0xff]
    %v8124 = vld [vmem:[#allocation3 + $0x30] sm:$0xff]
    %v8125 = vld [vmem:[#allocation3 + $0x38] sm:$0xff]
    %v8126 = vld [vmem:[#allocation3 + $0x40] sm:$0xff]
    %v8127 = vld [vmem:[#allocation3 + $0x48] sm:$0xff]
    %v8128 = vld [vmem:[#allocation3 + $0x50] sm:$0xff]
    %v8129 = vld [vmem:[#allocation3 + $0x58] sm:$0xff]
    %v8130 = vld [vmem:[#allocation3 + $0x60] sm:$0xff]
    %v8131 = vld [vmem:[#allocation3 + $0x68] sm:$0xff]
    %v8132 = vld [vmem:[#allocation3 + $0x70] sm:$0xff]
    %v8133 = vld [vmem:[#allocation3 + $0x78] sm:$0xff]
    %v8134 = vld [vmem:[%s10] sm:$0x3]
    %v8135 = vld [vmem:[%s11] sm:$0x3]
    %v8136 = vadd.f32 %v8118, %v8119
    %8137 = vadd.xlane.f32.xlu0 %v8136
    %v8138 = vpop.xlane.xlu0 %8137
    %v8139 = vadd.f32 %v8120, %v8121
    %8140 = vadd.xlane.f32.xlu0 %v8139
    %v8141 = vpop.xlane.xlu0 %8140
    %v8142 = vadd.f32 %v8122, %v8123
    %8143 = vadd.xlane.f32.xlu0 %v8142
    %v8144 = vpop.xlane.xlu0 %8143
    %v8145 = vadd.f32 %v8124, %v8125
    %8146 = vadd.xlane.f32.xlu0 %v8145
    %v8147 = vpop.xlane.xlu0 %8146
    %v8148 = vadd.f32 %v8126, %v8127
    %8149 = vadd.xlane.f32.xlu0 %v8148
    %v8150 = vpop.xlane.xlu0 %8149
    %v8151 = vadd.f32 %v8128, %v8129
    %8152 = vadd.xlane.f32.xlu0 %v8151
    %v8153 = vpop.xlane.xlu0 %8152
    %v8154 = vadd.f32 %v8130, %v8131
    %8155 = vadd.xlane.f32.xlu0 %v8154
    %v8156 = vpop.xlane.xlu0 %8155
    %v8157 = vadd.f32 %v8132, %v8133
    %8158 = vadd.xlane.f32.xlu0 %v8157
    %v8159 = vpop.xlane.xlu0 %8158
    %v8160 = vrcp.pop 256.0
    %v8161 = vmul.f32 %v8138, %v8160
    %v8162 = vmul.f32 %v8141, %v8160
    %v8163 = vmul.f32 %v8144, %v8160
    %v8164 = vmul.f32 %v8147, %v8160
    %v8165 = vmul.f32 %v8150, %v8160
    %v8166 = vmul.f32 %v8153, %v8160
    %v8167 = vmul.f32 %v8156, %v8160
    %v8168 = vmul.f32 %v8159, %v8160
    %v8169 = vsub.f32 %v8118, %v8161
    %v8170 = vsub.f32 %v8119, %v8161
    %v8171 = vsub.f32 %v8120, %v8162
    %v8172 = vsub.f32 %v8121, %v8162
    %v8173 = vsub.f32 %v8122, %v8163
    %v8174 = vsub.f32 %v8123, %v8163
    %v8175 = vsub.f32 %v8124, %v8164
    %v8176 = vsub.f32 %v8125, %v8164
    %v8177 = vsub.f32 %v8126, %v8165
    %v8178 = vsub.f32 %v8127, %v8165
    %v8179 = vsub.f32 %v8128, %v8166
    %v8180 = vsub.f32 %v8129, %v8166
    %v8181 = vsub.f32 %v8130, %v8167
    %v8182 = vsub.f32 %v8131, %v8167
    %v8183 = vsub.f32 %v8132, %v8168
    %v8184 = vsub.f32 %v8133, %v8168
    %v8185 = vmul.f32 %v8169, %v8169
    %v8186 = vmul.f32 %v8170, %v8170
    %v8187 = vmul.f32 %v8171, %v8171
    %v8188 = vmul.f32 %v8172, %v8172
    %v8189 = vmul.f32 %v8173, %v8173
    %v8190 = vmul.f32 %v8174, %v8174
    %v8191 = vmul.f32 %v8175, %v8175
    %v8192 = vmul.f32 %v8176, %v8176
    %v8193 = vmul.f32 %v8177, %v8177
    %v8194 = vmul.f32 %v8178, %v8178
    %v8195 = vmul.f32 %v8179, %v8179
    %v8196 = vmul.f32 %v8180, %v8180
    %v8197 = vmul.f32 %v8181, %v8181
    %v8198 = vmul.f32 %v8182, %v8182
    %v8199 = vmul.f32 %v8183, %v8183
    %v8200 = vmul.f32 %v8184, %v8184
    %v8201 = vadd.f32 %v8185, %v8186
    %8202 = vadd.xlane.f32.xlu0 %v8201
    %v8203 = vpop.xlane.xlu0 %8202
    %v8204 = vadd.f32 %v8187, %v8188
    %8205 = vadd.xlane.f32.xlu0 %v8204
    %v8206 = vpop.xlane.xlu0 %8205
    %v8207 = vadd.f32 %v8189, %v8190
    %8208 = vadd.xlane.f32.xlu0 %v8207
    %v8209 = vpop.xlane.xlu0 %8208
    %v8210 = vadd.f32 %v8191, %v8192
    %8211 = vadd.xlane.f32.xlu0 %v8210
    %v8212 = vpop.xlane.xlu0 %8211
    %v8213 = vadd.f32 %v8193, %v8194
    %8214 = vadd.xlane.f32.xlu0 %v8213
    %v8215 = vpop.xlane.xlu0 %8214
    %v8216 = vadd.f32 %v8195, %v8196
    %8217 = vadd.xlane.f32.xlu0 %v8216
    %v8218 = vpop.xlane.xlu0 %8217
    %v8219 = vadd.f32 %v8197, %v8198
    %8220 = vadd.xlane.f32.xlu0 %v8219
    %v8221 = vpop.xlane.xlu0 %8220
    %v8222 = vadd.f32 %v8199, %v8200
    %8223 = vadd.xlane.f32.xlu0 %v8222
    %v8224 = vpop.xlane.xlu0 %8223
    %v8225 = vmul.f32 %v8203, %v8160
    %v8226 = vmul.f32 %v8206, %v8160
    %v8227 = vmul.f32 %v8209, %v8160
    %v8228 = vmul.f32 %v8212, %v8160
    %v8229 = vmul.f32 %v8215, %v8160
    %v8230 = vmul.f32 %v8218, %v8160
    %v8231 = vmul.f32 %v8221, %v8160
    %v8232 = vmul.f32 %v8224, %v8160
    %v8233 = vadd.f32 %v8225, 0.001
    %v8234 = vadd.f32 %v8226, 0.001
    %v8235 = vadd.f32 %v8227, 0.001
    %v8236 = vadd.f32 %v8228, 0.001
    %v8237 = vadd.f32 %v8229, 0.001
    %v8238 = vadd.f32 %v8230, 0.001
    %v8239 = vadd.f32 %v8231, 0.001
    %v8240 = vadd.f32 %v8232, 0.001
    %v8241 = vrsqrt.pop %v8233
    %v8242 = vrsqrt.pop %v8234
    %v8243 = vrsqrt.pop %v8235
    %v8244 = vrsqrt.pop %v8236
    %v8245 = vrsqrt.pop %v8237
    %v8246 = vrsqrt.pop %v8238
    %v8247 = vrsqrt.pop %v8239
    %v8248 = vrsqrt.pop %v8240
    %v8249 = vmul.f32 %v8169, %v8241
    %v8250 = vmul.f32 %v8170, %v8241
    %v8251 = vmul.f32 %v8171, %v8242
    %v8252 = vmul.f32 %v8172, %v8242
    %v8253 = vmul.f32 %v8173, %v8243
    %v8254 = vmul.f32 %v8174, %v8243
    %v8255 = vmul.f32 %v8175, %v8244
    %v8256 = vmul.f32 %v8176, %v8244
    %v8257 = vmul.f32 %v8177, %v8245
    %v8258 = vmul.f32 %v8178, %v8245
    %v8259 = vmul.f32 %v8179, %v8246
    %v8260 = vmul.f32 %v8180, %v8246
    %v8261 = vmul.f32 %v8181, %v8247
    %v8262 = vmul.f32 %v8182, %v8247
    %v8263 = vmul.f32 %v8183, %v8248
    %v8264 = vmul.f32 %v8184, %v8248
    %v8266 = vlaneseq
    %v8267 = vshrl.u32 %v8266, 7
    %v8268 = vsub.s32 0, %v8267
    %v8269 = vrot.slane %v8134, %v8268
    %v8270 = vlaneseq
    %v8271 = vshrl.u32 %v8270, 7
    %v8272 = vsub.s32 1, %v8271
    %v8273 = vrot.slane %v8134, %v8272
    %v8276 = vmul.f32 %v8249, %v8269
    %v8277 = vmul.f32 %v8250, %v8273
    %v8278 = vmul.f32 %v8251, %v8269
    %v8279 = vmul.f32 %v8252, %v8273
    %v8280 = vmul.f32 %v8253, %v8269
    %v8281 = vmul.f32 %v8254, %v8273
    %v8282 = vmul.f32 %v8255, %v8269
    %v8283 = vmul.f32 %v8256, %v8273
    %v8284 = vmul.f32 %v8257, %v8269
    %v8285 = vmul.f32 %v8258, %v8273
    %v8286 = vmul.f32 %v8259, %v8269
    %v8287 = vmul.f32 %v8260, %v8273
    %v8288 = vmul.f32 %v8261, %v8269
    %v8289 = vmul.f32 %v8262, %v8273
    %v8290 = vmul.f32 %v8263, %v8269
    %v8291 = vmul.f32 %v8264, %v8273
    %v8293 = vlaneseq
    %v8294 = vshrl.u32 %v8293, 7
    %v8295 = vsub.s32 0, %v8294
    %v8296 = vrot.slane %v8135, %v8295
    %v8297 = vlaneseq
    %v8298 = vshrl.u32 %v8297, 7
    %v8299 = vsub.s32 1, %v8298
    %v8300 = vrot.slane %v8135, %v8299
    %v8303 = vadd.f32 %v8276, %v8296
    %v8304 = vadd.f32 %v8277, %v8300
    %v8305 = vadd.f32 %v8278, %v8296
    %v8306 = vadd.f32 %v8279, %v8300
    %v8307 = vadd.f32 %v8280, %v8296
    %v8308 = vadd.f32 %v8281, %v8300
    %v8309 = vadd.f32 %v8282, %v8296
    %v8310 = vadd.f32 %v8283, %v8300
    %v8311 = vadd.f32 %v8284, %v8296
    %v8312 = vadd.f32 %v8285, %v8300
    %v8313 = vadd.f32 %v8286, %v8296
    %v8314 = vadd.f32 %v8287, %v8300
    %v8315 = vadd.f32 %v8288, %v8296
    %v8316 = vadd.f32 %v8289, %v8300
    %v8317 = vadd.f32 %v8290, %v8296
    %v8318 = vadd.f32 %v8291, %v8300
    %v8319 = vld [vmem:[#allocation11] sm:$0xff]
    %v8320 = vld [vmem:[#allocation11 + $0x8] sm:$0xff]
    %v8321 = vld [vmem:[#allocation11 + $0x10] sm:$0xff]
    %v8322 = vld [vmem:[#allocation11 + $0x18] sm:$0xff]
    %v8323 = vld [vmem:[#allocation11 + $0x20] sm:$0xff]
    %v8324 = vld [vmem:[#allocation11 + $0x28] sm:$0xff]
    %v8325 = vld [vmem:[#allocation11 + $0x30] sm:$0xff]
    %v8326 = vld [vmem:[#allocation11 + $0x38] sm:$0xff]
    %v8327 = vld [vmem:[#allocation11 + $0x40] sm:$0xff]
    %v8328 = vld [vmem:[#allocation11 + $0x48] sm:$0xff]
    %v8329 = vld [vmem:[#allocation11 + $0x50] sm:$0xff]
    %v8330 = vld [vmem:[#allocation11 + $0x58] sm:$0xff]
    %v8331 = vld [vmem:[#allocation11 + $0x60] sm:$0xff]
    %v8332 = vld [vmem:[#allocation11 + $0x68] sm:$0xff]
    %v8333 = vld [vmem:[#allocation11 + $0x70] sm:$0xff]
    %v8334 = vld [vmem:[#allocation11 + $0x78] sm:$0xff]
    %v8335 = vld [vmem:[#allocation11 + $0x80] sm:$0xff]
    %v8336 = vld [vmem:[#allocation11 + $0x88] sm:$0xff]
    %v8337 = vld [vmem:[#allocation11 + $0x90] sm:$0xff]
    %v8338 = vld [vmem:[#allocation11 + $0x98] sm:$0xff]
    %v8339 = vld [vmem:[#allocation11 + $0xa0] sm:$0xff]
    %v8340 = vld [vmem:[#allocation11 + $0xa8] sm:$0xff]
    %v8341 = vld [vmem:[#allocation11 + $0xb0] sm:$0xff]
    %v8342 = vld [vmem:[#allocation11 + $0xb8] sm:$0xff]
    %v8343 = vld [vmem:[#allocation11 + $0xc0] sm:$0xff]
    %v8344 = vld [vmem:[#allocation11 + $0xc8] sm:$0xff]
    %v8345 = vld [vmem:[#allocation11 + $0xd0] sm:$0xff]
    %v8346 = vld [vmem:[#allocation11 + $0xd8] sm:$0xff]
    %v8347 = vld [vmem:[#allocation11 + $0xe0] sm:$0xff]
    %v8348 = vld [vmem:[#allocation11 + $0xe8] sm:$0xff]
    %v8349 = vld [vmem:[#allocation11 + $0xf0] sm:$0xff]
    %v8350 = vld [vmem:[#allocation11 + $0xf8] sm:$0xff]
    %v8351 = vld [vmem:[%s13] sm:$0x1]
    %v8353 = vlaneseq
    %v8354 = vshrl.u32 %v8353, 7
    %v8355 = vsub.s32 0, %v8354
    %v8356 = vrot.slane %v8351, %v8355
    %8358 = vmatprep.subr.mxu0 0.0
    %8359 = vmatpush1.msra.mxu0 %v8319
    %8360 = vmatprep.subr.mxu0 0.0
    %8361 = vmatpush1.msra.mxu0 %v8320
    %8362 = vmatprep.subr.mxu0 0.0
    %8363 = vmatpush1.msra.mxu0 %v8321
    %8364 = vmatprep.subr.mxu0 0.0
    %8365 = vmatpush1.msra.mxu0 %v8322
    %8366 = vmatprep.subr.mxu0 0.0
    %8367 = vmatpush1.msra.mxu0 %v8323
    %8368 = vmatprep.subr.mxu0 0.0
    %8369 = vmatpush1.msra.mxu0 %v8324
    %8370 = vmatprep.subr.mxu0 0.0
    %8371 = vmatpush1.msra.mxu0 %v8325
    %8372 = vmatprep.subr.mxu0 0.0
    %8373 = vmatpush1.msra.mxu0 %v8326
    %8374 = vmatprep.subr.mxu0 0.0
    %8375 = vmatpush1.msra.mxu0 %v8327
    %8376 = vmatprep.subr.mxu0 0.0
    %8377 = vmatpush1.msra.mxu0 %v8328
    %8378 = vmatprep.subr.mxu0 0.0
    %8379 = vmatpush1.msra.mxu0 %v8329
    %8380 = vmatprep.subr.mxu0 0.0
    %8381 = vmatpush1.msra.mxu0 %v8330
    %8382 = vmatprep.subr.mxu0 0.0
    %8383 = vmatpush1.msra.mxu0 %v8331
    %8384 = vmatprep.subr.mxu0 0.0
    %8385 = vmatpush1.msra.mxu0 %v8332
    %8386 = vmatprep.subr.mxu0 0.0
    %8387 = vmatpush1.msra.mxu0 %v8333
    %8388 = vmatprep.subr.mxu0 0.0
    %8389 = vmatpush1.msra.mxu0 %v8334
    %8390 = vmatprep.subr.mxu0 0.0
    %8391 = vmatpush1.msra.mxu0 %v8335
    %8392 = vmatprep.subr.mxu0 0.0
    %8393 = vmatpush1.msra.mxu0 %v8336
    %8394 = vmatprep.subr.mxu0 0.0
    %8395 = vmatpush1.msra.mxu0 %v8337
    %8396 = vmatprep.subr.mxu0 0.0
    %8397 = vmatpush1.msra.mxu0 %v8338
    %8398 = vmatprep.subr.mxu0 0.0
    %8399 = vmatpush1.msra.mxu0 %v8339
    %8400 = vmatprep.subr.mxu0 0.0
    %8401 = vmatpush1.msra.mxu0 %v8340
    %8402 = vmatprep.subr.mxu0 0.0
    %8403 = vmatpush1.msra.mxu0 %v8341
    %8404 = vmatprep.subr.mxu0 0.0
    %8405 = vmatpush1.msra.mxu0 %v8342
    %8406 = vmatprep.subr.mxu0 0.0
    %8407 = vmatpush1.msra.mxu0 %v8343
    %8408 = vmatprep.subr.mxu0 0.0
    %8409 = vmatpush1.msra.mxu0 %v8344
    %8410 = vmatprep.subr.mxu0 0.0
    %8411 = vmatpush1.msra.mxu0 %v8345
    %8412 = vmatprep.subr.mxu0 0.0
    %8413 = vmatpush1.msra.mxu0 %v8346
    %8414 = vmatprep.subr.mxu0 0.0
    %8415 = vmatpush1.msra.mxu0 %v8347
    %8416 = vmatprep.subr.mxu0 0.0
    %8417 = vmatpush1.msra.mxu0 %v8348
    %8418 = vmatprep.subr.mxu0 0.0
    %8419 = vmatpush1.msra.mxu0 %v8349
    %8420 = vmatprep.subr.mxu0 0.0
    %8421 = vmatpush1.msra.mxu0 %v8350
    %8422 = vmatprep.mubr.f32.mxu0 %v8304
    %8423 = vmatmul.mubr.f32.gmra.mrb[0].mxu0 %v8303
    %v8424 = vpop.f32.mrb[0].mxu0
    %v8425 = vadd.f32 %v8356, %v8424
    %v8426 = vpop.f32.mrb[0].mxu0
    %8427 = vmatprep.mubr.f32.mxu0 %v8306
    %8428 = vmatmul.mubr.f32.gmra.mrb[0].mxu0 %v8305
    %v8429 = vpop.f32.mrb[0].mxu0
    %v8430 = vadd.f32 %v8356, %v8429
    %v8431 = vpop.f32.mrb[0].mxu0
    %8432 = vmatprep.mubr.f32.mxu0 %v8308
    %8433 = vmatmul.mubr.f32.gmra.mrb[0].mxu0 %v8307
    %v8434 = vpop.f32.mrb[0].mxu0
    %v8435 = vadd.f32 %v8356, %v8434
    %v8436 = vpop.f32.mrb[0].mxu0
    %8437 = vmatprep.mubr.f32.mxu0 %v8310
    %8438 = vmatmul.mubr.f32.gmra.mrb[0].mxu0 %v8309
    %v8439 = vpop.f32.mrb[0].mxu0
    %v8440 = vadd.f32 %v8356, %v8439
    %v8441 = vpop.f32.mrb[0].mxu0
    %8442 = vmatprep.mubr.f32.mxu0 %v8312
    %8443 = vmatmul.mubr.f32.gmra.mrb[0].mxu0 %v8311
    %v8444 = vpop.f32.mrb[0].mxu0
    %v8445 = vadd.f32 %v8356, %v8444
    %v8446 = vpop.f32.mrb[0].mxu0
    %8447 = vmatprep.mubr.f32.mxu0 %v8314
    %8448 = vmatmul.mubr.f32.gmra.mrb[0].mxu0 %v8313
    %v8449 = vpop.f32.mrb[0].mxu0
    %v8450 = vadd.f32 %v8356, %v8449
    %v8451 = vpop.f32.mrb[0].mxu0
    %8452 = vmatprep.mubr.f32.mxu0 %v8316
    %8453 = vmatmul.mubr.f32.gmra.mrb[0].mxu0 %v8315
    %v8454 = vpop.f32.mrb[0].mxu0
    %v8455 = vadd.f32 %v8356, %v8454
    %v8456 = vpop.f32.mrb[0].mxu0
    %8457 = vmatprep.mubr.f32.mxu0 %v8318
    %8458 = vmatmul.mubr.f32.gmra.mrb[0].mxu0 %v8317
    %v8459 = vpop.f32.mrb[0].mxu0
    %v8460 = vadd.f32 %v8356, %v8459
    %v8461 = vpop.f32.mrb[0].mxu0
    %8462 = vdwg.mxu0
    %8463 = vst [vmem:[%s16] sm:$0xff] %v8425
    %8464 = vst [vmem:[%s16 + $0x8] sm:$0xff] %v8430
    %8465 = vst [vmem:[%s16 + $0x10] sm:$0xff] %v8435
    %8466 = vst [vmem:[%s16 + $0x18] sm:$0xff] %v8440
    %8467 = vst [vmem:[%s16 + $0x20] sm:$0xff] %v8445
    %8468 = vst [vmem:[%s16 + $0x28] sm:$0xff] %v8450
    %8469 = vst [vmem:[%s16 + $0x30] sm:$0xff] %v8455
    %8470 = vst [vmem:[%s16 + $0x38] sm:$0xff] %v8460
    // Predicated region
    $region86: #{lstm_forward.1} parent=1 // pred_check
      _
    $region87: #{lstm_forward.1} parent=1 // pred_check_branch
      %8472 = sbr.rel (0) target = $region89
    $region88: #{lstm_forward.1} parent=1 // pred_region
      _
    $region89: #{lstm_forward.1} parent=1 // pred_fallthru
      _
    // Predicated region
    $region90: #{lstm_forward.1} parent=1 // pred_check
      _
    $region91: #{lstm_forward.1} parent=1 // pred_check_branch
      %8474 = sbr.rel (0) target = $region93
    $region92: #{lstm_forward.1} parent=1 // pred_region
      _
    $region93: #{lstm_forward.1} parent=1 // pred_fallthru
      _
    // Predicated region
    $region94: #{lstm_forward.1} parent=1 // pred_check
      _
    $region95: #{lstm_forward.1} parent=1 // pred_check_branch
      %8476 = sbr.rel (0) target = $region97
    $region96: #{lstm_forward.1} parent=1 // pred_region
      _
    $region97: #{lstm_forward.1} parent=1 // pred_fallthru
      _
    // Predicated region
    $region98: #{lstm_forward.1} parent=1 // pred_check
      _
    $region99: #{lstm_forward.1} parent=1 // pred_check_branch
      %8478 = sbr.rel (0) target = $region101
    $region100: #{lstm_forward.1} parent=1 // pred_region
      _
    $region101: #{lstm_forward.1} parent=1 // pred_fallthru
      _
    // Predicated region
    $region102: #{lstm_forward.1} parent=1 // pred_check
      _
    $region103: #{lstm_forward.1} parent=1 // pred_check_branch
      %8480 = sbr.rel (0) target = $region105
    $region104: #{lstm_forward.1} parent=1 // pred_region
      _
    $region105: #{lstm_forward.1} parent=1 // pred_fallthru
      _
    // Predicated region
    $region106: #{lstm_forward.1} parent=1 // pred_check
      _
    $region107: #{lstm_forward.1} parent=1 // pred_check_branch
      %8482 = sbr.rel (0) target = $region109
    $region108: #{lstm_forward.1} parent=1 // pred_region
      _
    $region109: #{lstm_forward.1} parent=1 // pred_fallthru
      _
    %8483 = vsyncpa [#allocation5], 1
    %8484 = vsyncpa [#allocation7], 1
    %8485 = vsyncpa [#allocation10], 1

</llo_original>
